<compile_context>
chip_gen: v7x
topology: tpu7x:2x2x1
jax: 0.10.0
libtpu: 0.0.40
codegen_flags: <defaults>
</compile_context>

<pallas_src>
import math

import jax
import jax.numpy as jnp
from jax.experimental import pallas as pl
from jax.experimental.pallas import tpu as pltpu


_BN_EPS = 1e-5
_IMG = 16                      # input spatial size (H == W == 16)
_WDTYPE = jnp.bfloat16         # MXU input dtype for all matmuls


# ============================================================================
# Raw (PyTorch-like) parameter construction -- deterministic, synthetic.
# ============================================================================
def _init_conv(key, kh, kw, cin, cout):
    k_w, k_b = jax.random.split(key)
    fan_in = cin * kh * kw
    bound = 1.0 / math.sqrt(fan_in)
    w = jax.random.uniform(k_w, (kh, kw, cin, cout), jnp.float32, -bound, bound)
    b = jax.random.uniform(k_b, (cout,), jnp.float32, -bound, bound)
    return w, b


def _init_bn_fold(key, c):
    k1, k2, k3, k4 = jax.random.split(key, 4)
    gamma = 1.0 + 0.1 * jax.random.normal(k1, (c,), jnp.float32)
    beta = 0.1 * jax.random.normal(k2, (c,), jnp.float32)
    mean = 0.1 * jax.random.normal(k3, (c,), jnp.float32)
    var = 1.0 + 0.1 * jnp.abs(jax.random.normal(k4, (c,), jnp.float32))
    scale = gamma / jnp.sqrt(var + _BN_EPS)       # eval-mode BatchNorm fold
    shift = beta - mean * scale
    return scale, shift


def _init_double_conv(key, cin, cout, normaliz=True):
    k1, k2, k3, k4 = jax.random.split(key, 4)
    w1, b1 = _init_conv(k1, 3, 3, cin, cout)
    w2, b2 = _init_conv(k2, 3, 3, cout, cout)
    if normaliz:
        s1, sh1 = _init_bn_fold(k3, cout)
        s2, sh2 = _init_bn_fold(k4, cout)
    else:
        s1 = s2 = jnp.ones((cout,), jnp.float32)
        sh1 = sh2 = jnp.zeros((cout,), jnp.float32)
    return dict(w1=w1, b1=b1, s1=s1, sh1=sh1, w2=w2, b2=b2, s2=s2, sh2=sh2)


def init_unet_raw(key, n_channels, n_classes):
    ks = jax.random.split(key, 8)
    raw = {
        "inc":   _init_double_conv(ks[0], n_channels, 8),
        "down1": _init_double_conv(ks[1], 8, 16),
        "down2": _init_double_conv(ks[2], 16, 32),
        "down3": _init_double_conv(ks[3], 32, 64, normaliz=False),
        "up1":   _init_double_conv(ks[4], 96, 32),
        "up2":   _init_double_conv(ks[5], 48, 16),
        "up3":   _init_double_conv(ks[6], 24, 8),
    }
    ow, ob = _init_conv(ks[7], 1, 1, 8, n_classes)
    raw["outc_w"] = ow[0, 0]          # (8, n_classes)
    raw["outc_b"] = ob                # (n_classes,)
    # TODO(synk): nn.Linear(1, 1, bias=False) is declared in the module but is
    # never used in forward(); it is intentionally omitted here.
    return raw


# ============================================================================
# Host-side packing: fold bias + eval-mode BN into the weights and expand
# everything into the batch-blocked, lane-dense matmul formulation used by the
# fused kernel.  A logical (B_BLK, H, W, C) activation is stored as a 2-D
# (B_BLK*H, W*C) tile (images stacked along sublanes, W*C = 64..256 lanes).
# ============================================================================
def _expand_conv3x3_stacked(w_eff, w_sp):
    """(3,3,Cin,Cout) -> (3*W*Cin, W*Cout).

    The three kernel rows (ky=0: row above, 1: center, 2: row below) are
    stacked along K in that order; the kx taps and the zero padding along W
    are baked into the block-shifted-diagonal structure.
    """
    k, _, cin, cout = w_eff.shape
    wi = jnp.arange(w_sp)[:, None]
    wo = jnp.arange(w_sp)[None, :]
    sel = jnp.stack([(wi == wo + kx - 1) for kx in range(k)], axis=0)
    sel = sel.astype(w_eff.dtype)                     # (3, W_in, W_out)
    m = jnp.einsum("xiw,yxco->yicwo", sel, w_eff)     # (ky, Win, Cin, Wout, Cout)
    return m.reshape(k * w_sp * cin, w_sp * cout)


def _tile_bias(bias_eff, w_sp, width=128):
    v = jnp.tile(bias_eff, w_sp).astype(jnp.float32)
    return jnp.pad(v, (0, width - v.shape[0]))


def _interp_matrix(n_in):
    """1-D x2 bilinear upsampling matrix (align_corners=True): (2*n_in, n_in)."""
    n_out = 2 * n_in
    src = jnp.arange(n_out, dtype=jnp.float32) * (n_in - 1) / (n_out - 1)
    i0 = jnp.floor(src).astype(jnp.int32)
    i1 = jnp.minimum(i0 + 1, n_in - 1)
    frac = src - i0.astype(jnp.float32)
    cols = jnp.arange(n_in)[None, :]
    return ((cols == i0[:, None]).astype(jnp.float32) * (1.0 - frac)[:, None]
            + (cols == i1[:, None]).astype(jnp.float32) * frac[:, None])


def _pool_col_mats(w_sp, c):
    """Exact 0/1 lane-selection matrices for the W half of MaxPool2d(2)."""
    rows = jnp.arange(w_sp * c)[:, None]
    cols = jnp.arange((w_sp // 2) * c)[None, :]
    w_in, c_in = rows // c, rows % c
    w_out, c_out = cols // c, cols % c
    sa = ((w_in == 2 * w_out) & (c_in == c_out)).astype(jnp.float32)
    sb = ((w_in == 2 * w_out + 1) & (c_in == c_out)).astype(jnp.float32)
    return sa, sb


def _pool_row_mats(h, b_blk):
    """Batched block-diagonal 0/1 row-selection matrices for the H half."""
    i = jnp.arange(h // 2)[:, None]
    j = jnp.arange(h)[None, :]
    pa = (j == 2 * i).astype(jnp.float32)
    pb = (j == 2 * i + 1).astype(jnp.float32)
    eye = jnp.eye(b_blk, dtype=jnp.float32)
    return jnp.kron(eye, pa), jnp.kron(eye, pb)


def _upsample_col_mat(w_in, c):
    ux = _interp_matrix(w_in)                                   # (2w, w)
    eye_c = jnp.eye(c, dtype=jnp.float32)
    uxb = ux.T[:, None, :, None] * eye_c[None, :, None, :]      # (w, c, 2w, c)
    return uxb.reshape(w_in * c, 2 * w_in * c)


def _upsample_row_mat(h_in, b_blk):
    return jnp.kron(jnp.eye(b_blk, dtype=jnp.float32), _interp_matrix(h_in))


def _fold_bn(dc):
    w1 = dc["w1"] * dc["s1"]
    b1 = dc["b1"] * dc["s1"] + dc["sh1"]
    w2 = dc["w2"] * dc["s2"]
    b2 = dc["b2"] * dc["s2"] + dc["sh2"]
    return w1, b1, w2, b2


def _pad2d(a, rows, cols):
    return jnp.pad(a, ((0, rows - a.shape[0]), (0, cols - a.shape[1])))


_PARAM_ORDER = ("wslab", "bias", "sa", "sb", "pa", "pb", "uy", "uxb")


def pack_unet_params(raw, b_blk):
    n_classes = raw["outc_w"].shape[1]
    cin = raw["inc"]["w1"].shape[2]
    cin_p = max(8, -(-cin // 8) * 8)      # pad channels -> 16*cin_p lane-dense
    assert _IMG * n_classes <= 128

    mats, biases = [], []
    offs, bias_idx = {}, {}

    def add_w(name, mat):
        offs[name] = (int(sum(m.shape[0] for m in mats)), int(mat.shape[0]))
        mats.append(mat)

    def add_b(name, b_eff, w_sp):
        bias_idx[name] = len(biases)
        biases.append(_tile_bias(b_eff, w_sp))

    # --- encoder double convs (input conv padded with zero input channels) ---
    for name, w_sp in (("inc", 16), ("down1", 8), ("down2", 4), ("down3", 2)):
        w1, b1, w2, b2 = _fold_bn(raw[name])
        if name == "inc":
            w1 = jnp.pad(w1, ((0, 0), (0, 0), (0, cin_p - w1.shape[2]), (0, 0)))
        add_w(name + "_c1", _expand_conv3x3_stacked(w1, w_sp))
        add_b(name + "_c1", b1, w_sp)
        add_w(name + "_c2", _expand_conv3x3_stacked(w2, w_sp))
        add_b(name + "_c2", b2, w_sp)

    # --- decoder: first conv split into [skip | upsampled] channel groups ---
    # (conv(cat([skip, up])) == conv_skip(skip) + conv_up(up), K-stacked)
    for name, w_sp, n_skip in (("up1", 4, 32), ("up2", 8, 16), ("up3", 16, 8)):
        w1, b1, w2, b2 = _fold_bn(raw[name])
        m1 = jnp.concatenate(
            [_expand_conv3x3_stacked(w1[:, :, :n_skip, :], w_sp),
             _expand_conv3x3_stacked(w1[:, :, n_skip:, :], w_sp)], axis=0)
        add_w(name + "_c1", m1)
        add_b(name + "_c1", b1, w_sp)
        add_w(name + "_c2", _expand_conv3x3_stacked(w2, w_sp))
        add_b(name + "_c2", b2, w_sp)

    # --- 1x1 out-conv: block-diagonal over W, N padded to 128 lanes ---
    eye_w = jnp.eye(_IMG, dtype=jnp.float32)
    m_out = (eye_w[:, None, :, None] * raw["outc_w"][None, :, None, :]
             ).reshape(_IMG * 8, _IMG * n_classes)
    add_w("outc", jnp.pad(m_out, ((0, 0), (0, 128 - m_out.shape[1]))))
    add_b("outc", raw["outc_b"], _IMG)

    wslab = jnp.concatenate(mats, axis=0).astype(_WDTYPE)
    bias = jnp.stack(biases, axis=0)
    bias = jnp.pad(bias, ((0, (-bias.shape[0]) % 8), (0, 0)))

    # --- MaxPool2d(2) helper matrices (all exact 0/1 selectors) ---
    sa_sb = [_pool_col_mats(w_sp, c) for w_sp, c in ((16, 8), (8, 16), (4, 32))]
    pa_pb = [_pool_row_mats(h, b_blk) for h in (16, 8, 4)]
    # --- bilinear x2 upsample matrices (align_corners=True) ---
    uy = [_upsample_row_mat(h, b_blk) for h in (2, 4, 8)]
    uxb = [_upsample_col_mat(w, c) for w, c in ((2, 64), (4, 32), (8, 16))]

    pa_r, pa_c = 8 * b_blk, 16 * b_blk
    uy_r, uy_c = 16 * b_blk, 8 * b_blk
    arrays = dict(
        wslab=wslab,
        bias=bias,
        sa=jnp.stack([m[0] for m in sa_sb]).astype(_WDTYPE),
        sb=jnp.stack([m[1] for m in sa_sb]).astype(_WDTYPE),
        pa=jnp.stack([_pad2d(m[0], pa_r, pa_c) for m in pa_pb]).astype(_WDTYPE),
        pb=jnp.stack([_pad2d(m[1], pa_r, pa_c) for m in pa_pb]).astype(_WDTYPE),
        uy=jnp.stack([_pad2d(m, uy_r, uy_c) for m in uy]).astype(_WDTYPE),
        uxb=jnp.stack(uxb).astype(_WDTYPE),
    )
    meta = dict(b_blk=b_blk, n_classes=n_classes, cin=cin, cin_p=cin_p,
                offs=offs, bias_idx=bias_idx)
    return arrays, meta


# ============================================================================
# Fused forward pass: one pallas_call, grid = batch-block axis ("parallel").
# ============================================================================
def unet_forward_pallas(arrays, meta, x_nchw):
    b_blk = meta["b_blk"]
    n_classes = meta["n_classes"]
    cin_p = meta["cin_p"]
    offs = meta["offs"]
    bidx = meta["bias_idx"]

    n, cin, hh, ww = x_nchw.shape
    assert (hh, ww) == (_IMG, _IMG) and cin == meta["cin"]

    # pad the batch to a multiple of the batch block
    n_pad = -(-n // b_blk) * b_blk
    if n_pad != n:
        x_nchw = jnp.pad(x_nchw, ((0, n_pad - n), (0, 0), (0, 0), (0, 0)))

    # NCHW -> batch-stacked lane-dense layout (N*H, W*Cin_p)
    x_nhwc = jnp.transpose(x_nchw, (0, 2, 3, 1)).astype(jnp.float32)
    x_nhwc = jnp.pad(x_nhwc, ((0, 0), (0, 0), (0, 0), (0, cin_p - cin)))
    x2d = x_nhwc.reshape(n_pad * _IMG, _IMG * cin_p)

    m_rows = b_blk * _IMG           # sublane rows per grid step (B_BLK images)

    def kernel(x_ref, w_ref, b_ref, sa_ref, sb_ref, pa_ref, pb_ref,
               uy_ref, uxb_ref, o_ref, pad_ref):

        def taps(x, h):
            """bf16 [row-above | center | row-below] taps, K-stacked on lanes.

            The +/-1 row-shifted copies come from a zero-guarded VMEM scratch
            window; rows belonging to different images (stacked along M) are
            masked so convolutions never bleed across images (h is a pow2).
            """
            m, wc = x.shape
            pad_ref[0:1, 0:wc] = jnp.zeros((1, wc), jnp.float32)
            pad_ref[m + 1:m + 2, 0:wc] = jnp.zeros((1, wc), jnp.float32)
            pad_ref[1:m + 1, 0:wc] = x
            x_dn = pad_ref[0:m, 0:wc]          # row i -> x[i-1]
            x_up = pad_ref[2:m + 2, 0:wc]      # row i -> x[i+1]
            row = jax.lax.broadcasted_iota(jnp.int32, (m, wc), 0)
            rin = jnp.bitwise_and(row, h - 1)  # row index within one image
            x_dn = jnp.where(rin == 0, 0.0, x_dn)
            x_up = jnp.where(rin == h - 1, 0.0, x_up)
            return jnp.concatenate([x_dn, x, x_up], axis=1).astype(_WDTYPE)

        def matmul_bias(t, name):
            k0, klen = offs[name]
            y = jnp.dot(t, w_ref[k0:k0 + klen, :],
                        preferred_element_type=jnp.float32)
            bi = bidx[name]
            return y + b_ref[bi:bi + 1, :]

        def conv(x, h, name, relu):
            """3x3 conv (+ folded bias/BatchNorm) as ONE bf16 MXU matmul."""
            y = matmul_bias(taps(x, h), name)
            return jnp.maximum(y, 0.0) if relu else y

        def conv_cat(skip, up, h, name, relu):
            """conv(cat([skip, upsampled])) as ONE K-stacked bf16 matmul."""
            t = jnp.concatenate([taps(skip, h), taps(up, h)], axis=1)
            y = matmul_bias(t, name)
            return jnp.maximum(y, 0.0) if relu else y

        def pool(x, lvl, h):
            """MaxPool2d(2): exact 0/1 selection matmuls + elementwise max."""
            xb = x.astype(_WDTYPE)
            col = jnp.maximum(
                jnp.dot(xb, sa_ref[lvl], preferred_element_type=jnp.float32),
                jnp.dot(xb, sb_ref[lvl], preferred_element_type=jnp.float32))
            colb = col.astype(_WDTYPE)
            ro, ri = b_blk * h // 2, b_blk * h
            pa = pa_ref[lvl][:ro, :ri]
            pb = pb_ref[lvl][:ro, :ri]
            return jnp.maximum(
                jnp.dot(pa, colb, preferred_element_type=jnp.float32),
                jnp.dot(pb, colb, preferred_element_type=jnp.float32))

        def upsample(u, lvl, h_in):
            """Bilinear x2 (align_corners=True) as two interpolation matmuls."""
            ri, ro = b_blk * h_in, 2 * b_blk * h_in
            uy = uy_ref[lvl][:ro, :ri]
            r = jnp.dot(uy, u.astype(_WDTYPE),
                        preferred_element_type=jnp.float32)
            return jnp.dot(r.astype(_WDTYPE), uxb_ref[lvl],
                           preferred_element_type=jnp.float32)

        x = x_ref[...]                                           # (B*16, 128)

        # ---------------- encoder ----------------
        x1 = conv(conv(x, 16, "inc_c1", True), 16, "inc_c2", True)   # 16x16x8
        x2 = conv(conv(pool(x1, 0, 16), 8, "down1_c1", True),
                  8, "down1_c2", True)                                # 8x8x16
        x3 = conv(conv(pool(x2, 1, 8), 4, "down2_c1", True),
                  4, "down2_c2", True)                                # 4x4x32
        x4 = conv(conv(pool(x3, 2, 4), 2, "down3_c1", True),
                  2, "down3_c2", True)                                # 2x2x64

        # ---------------- decoder ----------------
        u = conv(conv_cat(x3, upsample(x4, 0, 2), 4, "up1_c1", True),
                 4, "up1_c2", True)                                   # 4x4x32
        u = conv(conv_cat(x2, upsample(u, 1, 4), 8, "up2_c1", True),
                 8, "up2_c2", True)                                   # 8x8x16
        u = conv(conv_cat(x1, upsample(u, 2, 8), 16, "up3_c1", False),
                 16, "up3_c2", False)                                 # 16x16x8

        # ---- 1x1 out-conv + sigmoid, stored as a lane-dense (M, 128) tile ----
        logits = matmul_bias(u.astype(_WDTYPE), "outc")
        o_ref[...] = jax.nn.sigmoid(logits)

    def _const_spec(a):
        ndim = a.ndim
        return pl.BlockSpec(a.shape, lambda g: (0,) * ndim)

    out2d = pl.pallas_call(
        kernel,
        out_shape=jax.ShapeDtypeStruct((n_pad * _IMG, 128), jnp.float32),
        grid=(n_pad // b_blk,),
        in_specs=([pl.BlockSpec((m_rows, _IMG * cin_p), lambda g: (g, 0))]
                  + [_const_spec(arrays[k]) for k in _PARAM_ORDER]),
        out_specs=pl.BlockSpec((m_rows, 128), lambda g: (g, 0)),
        scratch_shapes=[pltpu.VMEM((m_rows + 8, 256), jnp.float32)],
        compiler_params=pltpu.CompilerParams(
            dimension_semantics=("parallel",)),
    )(x2d, *[arrays[k] for k in _PARAM_ORDER])

    out = out2d.reshape(n_pad, _IMG, 128)[:n, :, :_IMG * n_classes]
    out = out.reshape(n, _IMG, _IMG, n_classes)
    return jnp.transpose(out, (0, 3, 1, 2))       # -> NCHW


# ============================================================================
# Pure-JAX reference (mirrors the PyTorch module, NHWC) for self-checking.
# ============================================================================
def _conv3x3_ref(x, w, b):
    y = jax.lax.conv_general_dilated(
        x, w, window_strides=(1, 1), padding="SAME",
        dimension_numbers=("NHWC", "HWIO", "NHWC"))
    return y + b


def _double_conv_ref(x, dc, relu):
    y = _conv3x3_ref(x, dc["w1"], dc["b1"]) * dc["s1"] + dc["sh1"]
    if relu:
        y = jnp.maximum(y, 0.0)
    y = _conv3x3_ref(y, dc["w2"], dc["b2"]) * dc["s2"] + dc["sh2"]
    if relu:
        y = jnp.maximum(y, 0.0)
    return y


def _maxpool_ref(x):
    n, h, w, c = x.shape
    return x.reshape(n, h // 2, 2, w // 2, 2, c).max(axis=(2, 4))


def _upsample_ref(x):
    n, h, w, c = x.shape
    ho, wo = 2 * h, 2 * w

    def coords(n_in, n_out):
        s = jnp.arange(n_out, dtype=jnp.float32) * (n_in - 1) / (n_out - 1)
        i0 = jnp.floor(s).astype(jnp.int32)
        i1 = jnp.minimum(i0 + 1, n_in - 1)
        return s - i0.astype(jnp.float32), i0, i1

    fy, y0, y1 = coords(h, ho)
    fx, x0, x1 = coords(w, wo)
    fx_b = fx[None, None, :, None]
    fy_b = fy[None, :, None, None]
    row0, row1 = x[:, y0], x[:, y1]
    top = row0[:, :, x0] * (1.0 - fx_b) + row0[:, :, x1] * fx_b
    bot = row1[:, :, x0] * (1.0 - fx_b) + row1[:, :, x1] * fx_b
    return top * (1.0 - fy_b) + bot * fy_b


def _up_ref(x_deep, x_skip, dc, relu):
    xu = _upsample_ref(x_deep)
    return _double_conv_ref(jnp.concatenate([x_skip, xu], axis=-1), dc, relu)


def unet_forward_ref(raw, x_nchw):
    x = jnp.transpose(x_nchw, (0, 2, 3, 1)).astype(jnp.float32)
    x1 = _double_conv_ref(x, raw["inc"], True)
    x2 = _double_conv_ref(_maxpool_ref(x1), raw["down1"], True)
    x3 = _double_conv_ref(_maxpool_ref(x2), raw["down2"], True)
    x4 = _double_conv_ref(_maxpool_ref(x3), raw["down3"], True)
    u = _up_ref(x4, x3, raw["up1"], True)
    u = _up_ref(u, x2, raw["up2"], True)
    u = _up_ref(u, x1, raw["up3"], False)
    logits = jnp.einsum("nhwc,co->nhwo", u, raw["outc_w"]) + raw["outc_b"]
    return jnp.transpose(jax.nn.sigmoid(logits), (0, 3, 1, 2))


# ============================================================================
# Main
# ============================================================================
if __name__ == "__main__":
    key = jax.random.PRNGKey(0)
    k_par, k_inp = jax.random.split(key)

    n_channels, n_classes = 3, 1
    batch, b_blk = 16, 8          # 2 grid steps -> both v7x TensorCores busy

    raw = init_unet_raw(k_par, n_channels, n_classes)
    arrays, meta = pack_unet_params(raw, b_blk)
    x = jax.random.normal(k_inp, (batch, n_channels, _IMG, _IMG), jnp.float32)

    fwd = jax.jit(lambda a, xx: unet_forward_pallas(a, meta, xx))
    out = jax.block_until_ready(fwd(arrays, x))

    assert out.shape == (batch, n_classes, _IMG, _IMG), out.shape
    assert bool(jnp.all(jnp.isfinite(out)))
    assert bool(jnp.all((out >= 0.0) & (out <= 1.0)))   # sigmoid output range

    # Self-check against a pure-JAX f32 reference (bf16 matmuls -> loose tol).
    ref = jax.block_until_ready(jax.jit(unet_forward_ref)(raw, x))
    max_err = float(jnp.max(jnp.abs(out - ref)))
    assert max_err < 5e-2, f"max |pallas - reference| = {max_err}"

    print("KERNEL_OK")
</pallas_src>

<mosaic_0001>
module attributes {stable_mosaic.version = 11 : i64} {
  func.func @kernel(%arg0: i32, %arg1: memref<128x128xf32, #tpu.memory_space<vmem>>, %arg2: memref<7232x128xbf16, #tpu.memory_space<vmem>>, %arg3: memref<16x128xf32, #tpu.memory_space<vmem>>, %arg4: memref<3x128x64xbf16, #tpu.memory_space<vmem>>, %arg5: memref<3x128x64xbf16, #tpu.memory_space<vmem>>, %arg6: memref<3x64x128xbf16, #tpu.memory_space<vmem>>, %arg7: memref<3x64x128xbf16, #tpu.memory_space<vmem>>, %arg8: memref<3x128x64xbf16, #tpu.memory_space<vmem>>, %arg9: memref<3x128x256xbf16, #tpu.memory_space<vmem>>, %arg10: memref<128x128xf32, #tpu.memory_space<vmem>>, %arg11: memref<136x256xf32, #tpu.memory_space<vmem>>) attributes {dimension_semantics = [#tpu.dimension_semantics<parallel>], iteration_bounds = array<i64: 2>, scalar_prefetch = 0 : i64, scratch_operands = 1 : i64, tpu.core_type = #tpu.core_type<tc>, window_params = [{transform_indices = @transform_0, window_bounds = array<i64: 128, 128>}, {pipeline_mode = #tpu.pipeline_mode<synchronous>, transform_indices = @transform_1, window_bounds = array<i64: 7232, 128>}, {pipeline_mode = #tpu.pipeline_mode<synchronous>, transform_indices = @transform_2, window_bounds = array<i64: 16, 128>}, {pipeline_mode = #tpu.pipeline_mode<synchronous>, transform_indices = @transform_3, window_bounds = array<i64: 3, 128, 64>}, {pipeline_mode = #tpu.pipeline_mode<synchronous>, transform_indices = @transform_4, window_bounds = array<i64: 3, 128, 64>}, {pipeline_mode = #tpu.pipeline_mode<synchronous>, transform_indices = @transform_5, window_bounds = array<i64: 3, 64, 128>}, {pipeline_mode = #tpu.pipeline_mode<synchronous>, transform_indices = @transform_6, window_bounds = array<i64: 3, 64, 128>}, {pipeline_mode = #tpu.pipeline_mode<synchronous>, transform_indices = @transform_7, window_bounds = array<i64: 3, 128, 64>}, {pipeline_mode = #tpu.pipeline_mode<synchronous>, transform_indices = @transform_8, window_bounds = array<i64: 3, 128, 256>}, {transform_indices = @transform_9, window_bounds = array<i64: 128, 128>}]} {
    %c0 = arith.constant 0 : index
    %c0_0 = arith.constant 0 : index
    %0 = vector.load %arg1[%c0, %c0_0] : memref<128x128xf32, #tpu.memory_space<vmem>>, vector<128x128xf32>
    %cst = arith.constant 0.000000e+00 : f32
    %1 = vector.broadcast %cst : f32 to vector<1x128xf32>
    %c0_1 = arith.constant 0 : index
    %c0_2 = arith.constant 0 : index
    %2 = vector.load %arg11[%c0_1, %c0_2] : memref<136x256xf32, #tpu.memory_space<vmem>>, vector<1x128xf32>
    tpu.vector_store %arg11[%c0_1, %c0_2], %1 {strides = array<i32>} : memref<136x256xf32, #tpu.memory_space<vmem>>, vector<1x128xf32>,
    %cst_3 = arith.constant 0.000000e+00 : f32
    %3 = vector.broadcast %cst_3 : f32 to vector<1x128xf32>
    %c129 = arith.constant 129 : index
    %c0_4 = arith.constant 0 : index
    %4 = vector.load %arg11[%c129, %c0_4] : memref<136x256xf32, #tpu.memory_space<vmem>>, vector<1x128xf32>
    tpu.vector_store %arg11[%c129, %c0_4], %3 {strides = array<i32>} : memref<136x256xf32, #tpu.memory_space<vmem>>, vector<1x128xf32>,
    %c1 = arith.constant 1 : index
    %c0_5 = arith.constant 0 : index
    %5 = vector.load %arg11[%c1, %c0_5] : memref<136x256xf32, #tpu.memory_space<vmem>>, vector<128x128xf32>
    tpu.vector_store %arg11[%c1, %c0_5], %0 {strides = array<i32>} : memref<136x256xf32, #tpu.memory_space<vmem>>, vector<128x128xf32>,
    %c0_6 = arith.constant 0 : index
    %c0_7 = arith.constant 0 : index
    %6 = vector.load %arg11[%c0_6, %c0_7] : memref<136x256xf32, #tpu.memory_space<vmem>>, vector<128x128xf32>
    %c2 = arith.constant 2 : index
    %c0_8 = arith.constant 0 : index
    %7 = vector.load %arg11[%c2, %c0_8] : memref<136x256xf32, #tpu.memory_space<vmem>>, vector<128x128xf32>
    %8 = tpu.iota {dimensions = array<i32: 0>} : vector<128x128xi32>
    %c15_i32 = arith.constant 15 : i32
    %9 = vector.broadcast %c15_i32 : i32 to vector<128x128xi32>
    %10 = arith.andi %8, %9 : vector<128x128xi32>
    %c0_i32 = arith.constant 0 : i32
    %11 = vector.broadcast %c0_i32 : i32 to vector<128x128xi32>
    %12 = arith.cmpi eq, %10, %11 : vector<128x128xi32>
    %cst_9 = arith.constant 0.000000e+00 : f32
    %13 = vector.broadcast %cst_9 : f32 to vector<128x128xf32>
    %14 = arith.select %12, %13, %6 : vector<128x128xi1>, vector<128x128xf32>
    %c15_i32_10 = arith.constant 15 : i32
    %15 = vector.broadcast %c15_i32_10 : i32 to vector<128x128xi32>
    %16 = arith.cmpi eq, %10, %15 : vector<128x128xi32>
    %cst_11 = arith.constant 0.000000e+00 : f32
    %17 = vector.broadcast %cst_11 : f32 to vector<128x128xf32>
    %18 = arith.select %16, %17, %7 : vector<128x128xi1>, vector<128x128xf32>
    %19 = tpu.concatenate %14, %0, %18 in 1 : vector<128x128xf32>, vector<128x128xf32>, vector<128x128xf32> -> vector<128x384xf32>
    %20 = arith.truncf %19 : vector<128x384xf32> to vector<128x384xbf16>
    %c0_12 = arith.constant 0 : index
    %c0_13 = arith.constant 0 : index
    %21 = vector.load %arg2[%c0_12, %c0_13] : memref<7232x128xbf16, #tpu.memory_space<vmem>>, vector<384x128xbf16>
    %cst_14 = arith.constant dense<0.000000e+00> : vector<128x128xf32>
    %22 = tpu.matmul %20, %21, %cst_14 {dimension_numbers = #tpu.dot_dimension_numbers<[1], [0], [0], [1], [0, 0, 1, 1], [], []>} : vector<128x384xbf16>, vector<384x128xbf16>, vector<128x128xf32> -> vector<128x128xf32>
    %c0_15 = arith.constant 0 : index
    %c0_16 = arith.constant 0 : index
    %23 = vector.load %arg3[%c0_15, %c0_16] : memref<16x128xf32, #tpu.memory_space<vmem>>, vector<1x128xf32>
    %24 = vector.broadcast %23 : vector<1x128xf32> to vector<128x128xf32>
    %25 = arith.addf %22, %24 : vector<128x128xf32>
    %cst_17 = arith.constant 0.000000e+00 : f32
    %26 = vector.broadcast %cst_17 : f32 to vector<128x128xf32>
    %27 = arith.maximumf %25, %26 : vector<128x128xf32>
    %cst_18 = arith.constant 0.000000e+00 : f32
    %28 = vector.broadcast %cst_18 : f32 to vector<1x128xf32>
    %c0_19 = arith.constant 0 : index
    %c0_20 = arith.constant 0 : index
    %29 = vector.load %arg11[%c0_19, %c0_20] : memref<136x256xf32, #tpu.memory_space<vmem>>, vector<1x128xf32>
    tpu.vector_store %arg11[%c0_19, %c0_20], %28 {strides = array<i32>} : memref<136x256xf32, #tpu.memory_space<vmem>>, vector<1x128xf32>,
    %cst_21 = arith.constant 0.000000e+00 : f32
    %30 = vector.broadcast %cst_21 : f32 to vector<1x128xf32>
    %c129_22 = arith.constant 129 : index
    %c0_23 = arith.constant 0 : index
    %31 = vector.load %arg11[%c129_22, %c0_23] : memref<136x256xf32, #tpu.memory_space<vmem>>, vector<1x128xf32>
    tpu.vector_store %arg11[%c129_22, %c0_23], %30 {strides = array<i32>} : memref<136x256xf32, #tpu.memory_space<vmem>>, vector<1x128xf32>,
    %c1_24 = arith.constant 1 : index
    %c0_25 = arith.constant 0 : index
    %32 = vector.load %arg11[%c1_24, %c0_25] : memref<136x256xf32, #tpu.memory_space<vmem>>, vector<128x128xf32>
    tpu.vector_store %arg11[%c1_24, %c0_25], %27 {strides = array<i32>} : memref<136x256xf32, #tpu.memory_space<vmem>>, vector<128x128xf32>,
    %c0_26 = arith.constant 0 : index
    %c0_27 = arith.constant 0 : index
    %33 = vector.load %arg11[%c0_26, %c0_27] : memref<136x256xf32, #tpu.memory_space<vmem>>, vector<128x128xf32>
    %c2_28 = arith.constant 2 : index
    %c0_29 = arith.constant 0 : index
    %34 = vector.load %arg11[%c2_28, %c0_29] : memref<136x256xf32, #tpu.memory_space<vmem>>, vector<128x128xf32>
    %35 = tpu.iota {dimensions = array<i32: 0>} : vector<128x128xi32>
    %c15_i32_30 = arith.constant 15 : i32
    %36 = vector.broadcast %c15_i32_30 : i32 to vector<128x128xi32>
    %37 = arith.andi %35, %36 : vector<128x128xi32>
    %c0_i32_31 = arith.constant 0 : i32
    %38 = vector.broadcast %c0_i32_31 : i32 to vector<128x128xi32>
    %39 = arith.cmpi eq, %37, %38 : vector<128x128xi32>
    %cst_32 = arith.constant 0.000000e+00 : f32
    %40 = vector.broadcast %cst_32 : f32 to vector<128x128xf32>
    %41 = arith.select %39, %40, %33 : vector<128x128xi1>, vector<128x128xf32>
    %c15_i32_33 = arith.constant 15 : i32
    %42 = vector.broadcast %c15_i32_33 : i32 to vector<128x128xi32>
    %43 = arith.cmpi eq, %37, %42 : vector<128x128xi32>
    %cst_34 = arith.constant 0.000000e+00 : f32
    %44 = vector.broadcast %cst_34 : f32 to vector<128x128xf32>
    %45 = arith.select %43, %44, %34 : vector<128x128xi1>, vector<128x128xf32>
    %46 = tpu.concatenate %41, %27, %45 in 1 : vector<128x128xf32>, vector<128x128xf32>, vector<128x128xf32> -> vector<128x384xf32>
    %47 = arith.truncf %46 : vector<128x384xf32> to vector<128x384xbf16>
    %c384 = arith.constant 384 : index
    %c0_35 = arith.constant 0 : index
    %48 = vector.load %arg2[%c384, %c0_35] : memref<7232x128xbf16, #tpu.memory_space<vmem>>, vector<384x128xbf16>
    %cst_36 = arith.constant dense<0.000000e+00> : vector<128x128xf32>
    %49 = tpu.matmul %47, %48, %cst_36 {dimension_numbers = #tpu.dot_dimension_numbers<[1], [0], [0], [1], [0, 0, 1, 1], [], []>} : vector<128x384xbf16>, vector<384x128xbf16>, vector<128x128xf32> -> vector<128x128xf32>
    %c1_37 = arith.constant 1 : index
    %c0_38 = arith.constant 0 : index
    %50 = vector.load %arg3[%c1_37, %c0_38] : memref<16x128xf32, #tpu.memory_space<vmem>>, vector<1x128xf32>
    %51 = vector.broadcast %50 : vector<1x128xf32> to vector<128x128xf32>
    %52 = arith.addf %49, %51 : vector<128x128xf32>
    %cst_39 = arith.constant 0.000000e+00 : f32
    %53 = vector.broadcast %cst_39 : f32 to vector<128x128xf32>
    %54 = arith.maximumf %52, %53 : vector<128x128xf32>
    %55 = arith.truncf %54 : vector<128x128xf32> to vector<128x128xbf16>
    %c0_40 = arith.constant 0 : index
    %c0_41 = arith.constant 0 : index
    %c0_42 = arith.constant 0 : index
    %56 = vector.load %arg4[%c0_40, %c0_41, %c0_42] : memref<3x128x64xbf16, #tpu.memory_space<vmem>>, vector<1x128x64xbf16>
    %57 = vector.shape_cast %56 : vector<1x128x64xbf16> to vector<128x64xbf16>
    %cst_43 = arith.constant dense<0.000000e+00> : vector<128x64xf32>
    %58 = tpu.matmul %55, %57, %cst_43 {dimension_numbers = #tpu.dot_dimension_numbers<[1], [0], [0], [1], [0, 0, 1, 1], [], []>} : vector<128x128xbf16>, vector<128x64xbf16>, vector<128x64xf32> -> vector<128x64xf32>
    %c0_44 = arith.constant 0 : index
    %c0_45 = arith.constant 0 : index
    %c0_46 = arith.constant 0 : index
    %59 = vector.load %arg5[%c0_44, %c0_45, %c0_46] : memref<3x128x64xbf16, #tpu.memory_space<vmem>>, vector<1x128x64xbf16>
    %60 = vector.shape_cast %59 : vector<1x128x64xbf16> to vector<128x64xbf16>
    %cst_47 = arith.constant dense<0.000000e+00> : vector<128x64xf32>
    %61 = tpu.matmul %55, %60, %cst_47 {dimension_numbers = #tpu.dot_dimension_numbers<[1], [0], [0], [1], [0, 0, 1, 1], [], []>} : vector<128x128xbf16>, vector<128x64xbf16>, vector<128x64xf32> -> vector<128x64xf32>
    %62 = arith.maximumf %58, %61 : vector<128x64xf32>
    %63 = arith.truncf %62 : vector<128x64xf32> to vector<128x64xbf16>
    %c0_48 = arith.constant 0 : index
    %c0_49 = arith.constant 0 : index
    %c0_50 = arith.constant 0 : index
    %64 = vector.load %arg6[%c0_48, %c0_49, %c0_50] : memref<3x64x128xbf16, #tpu.memory_space<vmem>>, vector<1x64x128xbf16>
    %65 = vector.shape_cast %64 : vector<1x64x128xbf16> to vector<64x128xbf16>
    %c0_51 = arith.constant 0 : index
    %c0_52 = arith.constant 0 : index
    %c0_53 = arith.constant 0 : index
    %66 = vector.load %arg7[%c0_51, %c0_52, %c0_53] : memref<3x64x128xbf16, #tpu.memory_space<vmem>>, vector<1x64x128xbf16>
    %67 = vector.shape_cast %66 : vector<1x64x128xbf16> to vector<64x128xbf16>
    %cst_54 = arith.constant dense<0.000000e+00> : vector<64x64xf32>
    %68 = tpu.matmul %65, %63, %cst_54 {dimension_numbers = #tpu.dot_dimension_numbers<[1], [0], [0], [1], [0, 0, 1, 1], [], []>} : vector<64x128xbf16>, vector<128x64xbf16>, vector<64x64xf32> -> vector<64x64xf32>
    %cst_55 = arith.constant dense<0.000000e+00> : vector<64x64xf32>
    %69 = tpu.matmul %67, %63, %cst_55 {dimension_numbers = #tpu.dot_dimension_numbers<[1], [0], [0], [1], [0, 0, 1, 1], [], []>} : vector<64x128xbf16>, vector<128x64xbf16>, vector<64x64xf32> -> vector<64x64xf32>
    %70 = arith.maximumf %68, %69 : vector<64x64xf32>
    %cst_56 = arith.constant 0.000000e+00 : f32
    %71 = vector.broadcast %cst_56 : f32 to vector<1x64xf32>
    %c0_57 = arith.constant 0 : index
    %c0_58 = arith.constant 0 : index
    %72 = vector.load %arg11[%c0_57, %c0_58] : memref<136x256xf32, #tpu.memory_space<vmem>>, vector<1x64xf32>
    tpu.vector_store %arg11[%c0_57, %c0_58], %71 {strides = array<i32>} : memref<136x256xf32, #tpu.memory_space<vmem>>, vector<1x64xf32>,
    %cst_59 = arith.constant 0.000000e+00 : f32
    %73 = vector.broadcast %cst_59 : f32 to vector<1x64xf32>
    %c65 = arith.constant 65 : index
    %c0_60 = arith.constant 0 : index
    %74 = vector.load %arg11[%c65, %c0_60] : memref<136x256xf32, #tpu.memory_space<vmem>>, vector<1x64xf32>
    tpu.vector_store %arg11[%c65, %c0_60], %73 {strides = array<i32>} : memref<136x256xf32, #tpu.memory_space<vmem>>, vector<1x64xf32>,
    %c1_61 = arith.constant 1 : index
    %c0_62 = arith.constant 0 : index
    %75 = vector.load %arg11[%c1_61, %c0_62] : memref<136x256xf32, #tpu.memory_space<vmem>>, vector<64x64xf32>
    tpu.vector_store %arg11[%c1_61, %c0_62], %70 {strides = array<i32>} : memref<136x256xf32, #tpu.memory_space<vmem>>, vector<64x64xf32>,
    %c0_63 = arith.constant 0 : index
    %c0_64 = arith.constant 0 : index
    %76 = vector.load %arg11[%c0_63, %c0_64] : memref<136x256xf32, #tpu.memory_space<vmem>>, vector<64x64xf32>
    %c2_65 = arith.constant 2 : index
    %c0_66 = arith.constant 0 : index
    %77 = vector.load %arg11[%c2_65, %c0_66] : memref<136x256xf32, #tpu.memory_space<vmem>>, vector<64x64xf32>
    %78 = tpu.iota {dimensions = array<i32: 0>} : vector<64x64xi32>
    %c7_i32 = arith.constant 7 : i32
    %79 = vector.broadcast %c7_i32 : i32 to vector<64x64xi32>
    %80 = arith.andi %78, %79 : vector<64x64xi32>
    %c0_i32_67 = arith.constant 0 : i32
    %81 = vector.broadcast %c0_i32_67 : i32 to vector<64x64xi32>
    %82 = arith.cmpi eq, %80, %81 : vector<64x64xi32>
    %cst_68 = arith.constant 0.000000e+00 : f32
    %83 = vector.broadcast %cst_68 : f32 to vector<64x64xf32>
    %84 = arith.select %82, %83, %76 : vector<64x64xi1>, vector<64x64xf32>
    %c7_i32_69 = arith.constant 7 : i32
    %85 = vector.broadcast %c7_i32_69 : i32 to vector<64x64xi32>
    %86 = arith.cmpi eq, %80, %85 : vector<64x64xi32>
    %cst_70 = arith.constant 0.000000e+00 : f32
    %87 = vector.broadcast %cst_70 : f32 to vector<64x64xf32>
    %88 = arith.select %86, %87, %77 : vector<64x64xi1>, vector<64x64xf32>
    %89 = tpu.concatenate %84, %70, %88 in 1 : vector<64x64xf32>, vector<64x64xf32>, vector<64x64xf32> -> vector<64x192xf32>
    %90 = arith.truncf %89 : vector<64x192xf32> to vector<64x192xbf16>
    %c768 = arith.constant 768 : index
    %c0_71 = arith.constant 0 : index
    %91 = vector.load %arg2[%c768, %c0_71] : memref<7232x128xbf16, #tpu.memory_space<vmem>>, vector<192x128xbf16>
    %cst_72 = arith.constant dense<0.000000e+00> : vector<64x128xf32>
    %92 = tpu.matmul %90, %91, %cst_72 {dimension_numbers = #tpu.dot_dimension_numbers<[1], [0], [0], [1], [0, 0, 1, 1], [], []>} : vector<64x192xbf16>, vector<192x128xbf16>, vector<64x128xf32> -> vector<64x128xf32>
    %c2_73 = arith.constant 2 : index
    %c0_74 = arith.constant 0 : index
    %93 = vector.load %arg3[%c2_73, %c0_74] : memref<16x128xf32, #tpu.memory_space<vmem>>, vector<1x128xf32>
    %94 = vector.broadcast %93 : vector<1x128xf32> to vector<64x128xf32>
    %95 = arith.addf %92, %94 : vector<64x128xf32>
    %cst_75 = arith.constant 0.000000e+00 : f32
    %96 = vector.broadcast %cst_75 : f32 to vector<64x128xf32>
    %97 = arith.maximumf %95, %96 : vector<64x128xf32>
    %cst_76 = arith.constant 0.000000e+00 : f32
    %98 = vector.broadcast %cst_76 : f32 to vector<1x128xf32>
    %c0_77 = arith.constant 0 : index
    %c0_78 = arith.constant 0 : index
    %99 = vector.load %arg11[%c0_77, %c0_78] : memref<136x256xf32, #tpu.memory_space<vmem>>, vector<1x128xf32>
    tpu.vector_store %arg11[%c0_77, %c0_78], %98 {strides = array<i32>} : memref<136x256xf32, #tpu.memory_space<vmem>>, vector<1x128xf32>,
    %cst_79 = arith.constant 0.000000e+00 : f32
    %100 = vector.broadcast %cst_79 : f32 to vector<1x128xf32>
    %c65_80 = arith.constant 65 : index
    %c0_81 = arith.constant 0 : index
    %101 = vector.load %arg11[%c65_80, %c0_81] : memref<136x256xf32, #tpu.memory_space<vmem>>, vector<1x128xf32>
    tpu.vector_store %arg11[%c65_80, %c0_81], %100 {strides = array<i32>} : memref<136x256xf32, #tpu.memory_space<vmem>>, vector<1x128xf32>,
    %c1_82 = arith.constant 1 : index
    %c0_83 = arith.constant 0 : index
    %102 = vector.load %arg11[%c1_82, %c0_83] : memref<136x256xf32, #tpu.memory_space<vmem>>, vector<64x128xf32>
    tpu.vector_store %arg11[%c1_82, %c0_83], %97 {strides = array<i32>} : memref<136x256xf32, #tpu.memory_space<vmem>>, vector<64x128xf32>,
    %c0_84 = arith.constant 0 : index
    %c0_85 = arith.constant 0 : index
    %103 = vector.load %arg11[%c0_84, %c0_85] : memref<136x256xf32, #tpu.memory_space<vmem>>, vector<64x128xf32>
    %c2_86 = arith.constant 2 : index
    %c0_87 = arith.constant 0 : index
    %104 = vector.load %arg11[%c2_86, %c0_87] : memref<136x256xf32, #tpu.memory_space<vmem>>, vector<64x128xf32>
    %105 = tpu.iota {dimensions = array<i32: 0>} : vector<64x128xi32>
    %c7_i32_88 = arith.constant 7 : i32
    %106 = vector.broadcast %c7_i32_88 : i32 to vector<64x128xi32>
    %107 = arith.andi %105, %106 : vector<64x128xi32>
    %c0_i32_89 = arith.constant 0 : i32
    %108 = vector.broadcast %c0_i32_89 : i32 to vector<64x128xi32>
    %109 = arith.cmpi eq, %107, %108 : vector<64x128xi32>
    %cst_90 = arith.constant 0.000000e+00 : f32
    %110 = vector.broadcast %cst_90 : f32 to vector<64x128xf32>
    %111 = arith.select %109, %110, %103 : vector<64x128xi1>, vector<64x128xf32>
    %c7_i32_91 = arith.constant 7 : i32
    %112 = vector.broadcast %c7_i32_91 : i32 to vector<64x128xi32>
    %113 = arith.cmpi eq, %107, %112 : vector<64x128xi32>
    %cst_92 = arith.constant 0.000000e+00 : f32
    %114 = vector.broadcast %cst_92 : f32 to vector<64x128xf32>
    %115 = arith.select %113, %114, %104 : vector<64x128xi1>, vector<64x128xf32>
    %116 = tpu.concatenate %111, %97, %115 in 1 : vector<64x128xf32>, vector<64x128xf32>, vector<64x128xf32> -> vector<64x384xf32>
    %117 = arith.truncf %116 : vector<64x384xf32> to vector<64x384xbf16>
    %c960 = arith.constant 960 : index
    %c0_93 = arith.constant 0 : index
    %118 = vector.load %arg2[%c960, %c0_93] : memref<7232x128xbf16, #tpu.memory_space<vmem>>, vector<384x128xbf16>
    %cst_94 = arith.constant dense<0.000000e+00> : vector<64x128xf32>
    %119 = tpu.matmul %117, %118, %cst_94 {dimension_numbers = #tpu.dot_dimension_numbers<[1], [0], [0], [1], [0, 0, 1, 1], [], []>} : vector<64x384xbf16>, vector<384x128xbf16>, vector<64x128xf32> -> vector<64x128xf32>
    %c3 = arith.constant 3 : index
    %c0_95 = arith.constant 0 : index
    %120 = vector.load %arg3[%c3, %c0_95] : memref<16x128xf32, #tpu.memory_space<vmem>>, vector<1x128xf32>
    %121 = vector.broadcast %120 : vector<1x128xf32> to vector<64x128xf32>
    %122 = arith.addf %119, %121 : vector<64x128xf32>
    %cst_96 = arith.constant 0.000000e+00 : f32
    %123 = vector.broadcast %cst_96 : f32 to vector<64x128xf32>
    %124 = arith.maximumf %122, %123 : vector<64x128xf32>
    %125 = arith.truncf %124 : vector<64x128xf32> to vector<64x128xbf16>
    %c1_97 = arith.constant 1 : index
    %c0_98 = arith.constant 0 : index
    %c0_99 = arith.constant 0 : index
    %126 = vector.load %arg4[%c1_97, %c0_98, %c0_99] : memref<3x128x64xbf16, #tpu.memory_space<vmem>>, vector<1x128x64xbf16>
    %127 = vector.shape_cast %126 : vector<1x128x64xbf16> to vector<128x64xbf16>
    %cst_100 = arith.constant dense<0.000000e+00> : vector<64x64xf32>
    %128 = tpu.matmul %125, %127, %cst_100 {dimension_numbers = #tpu.dot_dimension_numbers<[1], [0], [0], [1], [0, 0, 1, 1], [], []>} : vector<64x128xbf16>, vector<128x64xbf16>, vector<64x64xf32> -> vector<64x64xf32>
    %c1_101 = arith.constant 1 : index
    %c0_102 = arith.constant 0 : index
    %c0_103 = arith.constant 0 : index
    %129 = vector.load %arg5[%c1_101, %c0_102, %c0_103] : memref<3x128x64xbf16, #tpu.memory_space<vmem>>, vector<1x128x64xbf16>
    %130 = vector.shape_cast %129 : vector<1x128x64xbf16> to vector<128x64xbf16>
    %cst_104 = arith.constant dense<0.000000e+00> : vector<64x64xf32>
    %131 = tpu.matmul %125, %130, %cst_104 {dimension_numbers = #tpu.dot_dimension_numbers<[1], [0], [0], [1], [0, 0, 1, 1], [], []>} : vector<64x128xbf16>, vector<128x64xbf16>, vector<64x64xf32> -> vector<64x64xf32>
    %132 = arith.maximumf %128, %131 : vector<64x64xf32>
    %133 = arith.truncf %132 : vector<64x64xf32> to vector<64x64xbf16>
    %c1_105 = arith.constant 1 : index
    %c0_106 = arith.constant 0 : index
    %c0_107 = arith.constant 0 : index
    %134 = vector.load %arg6[%c1_105, %c0_106, %c0_107] : memref<3x64x128xbf16, #tpu.memory_space<vmem>>, vector<1x64x128xbf16>
    %135 = vector.shape_cast %134 : vector<1x64x128xbf16> to vector<64x128xbf16>
    %136 = vector.extract_strided_slice %135 {offsets = [0, 0], sizes = [32, 64], strides = [1, 1]} : vector<64x128xbf16> to vector<32x64xbf16>
    %c1_108 = arith.constant 1 : index
    %c0_109 = arith.constant 0 : index
    %c0_110 = arith.constant 0 : index
    %137 = vector.load %arg7[%c1_108, %c0_109, %c0_110] : memref<3x64x128xbf16, #tpu.memory_space<vmem>>, vector<1x64x128xbf16>
    %138 = vector.shape_cast %137 : vector<1x64x128xbf16> to vector<64x128xbf16>
    %139 = vector.extract_strided_slice %138 {offsets = [0, 0], sizes = [32, 64], strides = [1, 1]} : vector<64x128xbf16> to vector<32x64xbf16>
    %cst_111 = arith.constant dense<0.000000e+00> : vector<32x64xf32>
    %140 = tpu.matmul %136, %133, %cst_111 {dimension_numbers = #tpu.dot_dimension_numbers<[1], [0], [0], [1], [0, 0, 1, 1], [], []>} : vector<32x64xbf16>, vector<64x64xbf16>, vector<32x64xf32> -> vector<32x64xf32>
    %cst_112 = arith.constant dense<0.000000e+00> : vector<32x64xf32>
    %141 = tpu.matmul %139, %133, %cst_112 {dimension_numbers = #tpu.dot_dimension_numbers<[1], [0], [0], [1], [0, 0, 1, 1], [], []>} : vector<32x64xbf16>, vector<64x64xbf16>, vector<32x64xf32> -> vector<32x64xf32>
    %142 = arith.maximumf %140, %141 : vector<32x64xf32>
    %cst_113 = arith.constant 0.000000e+00 : f32
    %143 = vector.broadcast %cst_113 : f32 to vector<1x64xf32>
    %c0_114 = arith.constant 0 : index
    %c0_115 = arith.constant 0 : index
    %144 = vector.load %arg11[%c0_114, %c0_115] : memref<136x256xf32, #tpu.memory_space<vmem>>, vector<1x64xf32>
    tpu.vector_store %arg11[%c0_114, %c0_115], %143 {strides = array<i32>} : memref<136x256xf32, #tpu.memory_space<vmem>>, vector<1x64xf32>,
    %cst_116 = arith.constant 0.000000e+00 : f32
    %145 = vector.broadcast %cst_116 : f32 to vector<1x64xf32>
    %c33 = arith.constant 33 : index
    %c0_117 = arith.constant 0 : index
    %146 = vector.load %arg11[%c33, %c0_117] : memref<136x256xf32, #tpu.memory_space<vmem>>, vector<1x64xf32>
    tpu.vector_store %arg11[%c33, %c0_117], %145 {strides = array<i32>} : memref<136x256xf32, #tpu.memory_space<vmem>>, vector<1x64xf32>,
    %c1_118 = arith.constant 1 : index
    %c0_119 = arith.constant 0 : index
    %147 = vector.load %arg11[%c1_118, %c0_119] : memref<136x256xf32, #tpu.memory_space<vmem>>, vector<32x64xf32>
    tpu.vector_store %arg11[%c1_118, %c0_119], %142 {strides = array<i32>} : memref<136x256xf32, #tpu.memory_space<vmem>>, vector<32x64xf32>,
    %c0_120 = arith.constant 0 : index
    %c0_121 = arith.constant 0 : index
    %148 = vector.load %arg11[%c0_120, %c0_121] : memref<136x256xf32, #tpu.memory_space<vmem>>, vector<32x64xf32>
    %c2_122 = arith.constant 2 : index
    %c0_123 = arith.constant 0 : index
    %149 = vector.load %arg11[%c2_122, %c0_123] : memref<136x256xf32, #tpu.memory_space<vmem>>, vector<32x64xf32>
    %150 = tpu.iota {dimensions = array<i32: 0>} : vector<32x64xi32>
    %c3_i32 = arith.constant 3 : i32
    %151 = vector.broadcast %c3_i32 : i32 to vector<32x64xi32>
    %152 = arith.andi %150, %151 : vector<32x64xi32>
    %c0_i32_124 = arith.constant 0 : i32
    %153 = vector.broadcast %c0_i32_124 : i32 to vector<32x64xi32>
    %154 = arith.cmpi eq, %152, %153 : vector<32x64xi32>
    %cst_125 = arith.constant 0.000000e+00 : f32
    %155 = vector.broadcast %cst_125 : f32 to vector<32x64xf32>
    %156 = arith.select %154, %155, %148 : vector<32x64xi1>, vector<32x64xf32>
    %c3_i32_126 = arith.constant 3 : i32
    %157 = vector.broadcast %c3_i32_126 : i32 to vector<32x64xi32>
    %158 = arith.cmpi eq, %152, %157 : vector<32x64xi32>
    %cst_127 = arith.constant 0.000000e+00 : f32
    %159 = vector.broadcast %cst_127 : f32 to vector<32x64xf32>
    %160 = arith.select %158, %159, %149 : vector<32x64xi1>, vector<32x64xf32>
    %161 = tpu.concatenate %156, %142, %160 in 1 : vector<32x64xf32>, vector<32x64xf32>, vector<32x64xf32> -> vector<32x192xf32>
    %162 = arith.truncf %161 : vector<32x192xf32> to vector<32x192xbf16>
    %c1344 = arith.constant 1344 : index
    %c0_128 = arith.constant 0 : index
    %163 = vector.load %arg2[%c1344, %c0_128] : memref<7232x128xbf16, #tpu.memory_space<vmem>>, vector<192x128xbf16>
    %cst_129 = arith.constant dense<0.000000e+00> : vector<32x128xf32>
    %164 = tpu.matmul %162, %163, %cst_129 {dimension_numbers = #tpu.dot_dimension_numbers<[1], [0], [0], [1], [0, 0, 1, 1], [], []>} : vector<32x192xbf16>, vector<192x128xbf16>, vector<32x128xf32> -> vector<32x128xf32>
    %c4 = arith.constant 4 : index
    %c0_130 = arith.constant 0 : index
    %165 = vector.load %arg3[%c4, %c0_130] : memref<16x128xf32, #tpu.memory_space<vmem>>, vector<1x128xf32>
    %166 = vector.broadcast %165 : vector<1x128xf32> to vector<32x128xf32>
    %167 = arith.addf %164, %166 : vector<32x128xf32>
    %cst_131 = arith.constant 0.000000e+00 : f32
    %168 = vector.broadcast %cst_131 : f32 to vector<32x128xf32>
    %169 = arith.maximumf %167, %168 : vector<32x128xf32>
    %cst_132 = arith.constant 0.000000e+00 : f32
    %170 = vector.broadcast %cst_132 : f32 to vector<1x128xf32>
    %c0_133 = arith.constant 0 : index
    %c0_134 = arith.constant 0 : index
    %171 = vector.load %arg11[%c0_133, %c0_134] : memref<136x256xf32, #tpu.memory_space<vmem>>, vector<1x128xf32>
    tpu.vector_store %arg11[%c0_133, %c0_134], %170 {strides = array<i32>} : memref<136x256xf32, #tpu.memory_space<vmem>>, vector<1x128xf32>,
    %cst_135 = arith.constant 0.000000e+00 : f32
    %172 = vector.broadcast %cst_135 : f32 to vector<1x128xf32>
    %c33_136 = arith.constant 33 : index
    %c0_137 = arith.constant 0 : index
    %173 = vector.load %arg11[%c33_136, %c0_137] : memref<136x256xf32, #tpu.memory_space<vmem>>, vector<1x128xf32>
    tpu.vector_store %arg11[%c33_136, %c0_137], %172 {strides = array<i32>} : memref<136x256xf32, #tpu.memory_space<vmem>>, vector<1x128xf32>,
    %c1_138 = arith.constant 1 : index
    %c0_139 = arith.constant 0 : index
    %174 = vector.load %arg11[%c1_138, %c0_139] : memref<136x256xf32, #tpu.memory_space<vmem>>, vector<32x128xf32>
    tpu.vector_store %arg11[%c1_138, %c0_139], %169 {strides = array<i32>} : memref<136x256xf32, #tpu.memory_space<vmem>>, vector<32x128xf32>,
    %c0_140 = arith.constant 0 : index
    %c0_141 = arith.constant 0 : index
    %175 = vector.load %arg11[%c0_140, %c0_141] : memref<136x256xf32, #tpu.memory_space<vmem>>, vector<32x128xf32>
    %c2_142 = arith.constant 2 : index
    %c0_143 = arith.constant 0 : index
    %176 = vector.load %arg11[%c2_142, %c0_143] : memref<136x256xf32, #tpu.memory_space<vmem>>, vector<32x128xf32>
    %177 = tpu.iota {dimensions = array<i32: 0>} : vector<32x128xi32>
    %c3_i32_144 = arith.constant 3 : i32
    %178 = vector.broadcast %c3_i32_144 : i32 to vector<32x128xi32>
    %179 = arith.andi %177, %178 : vector<32x128xi32>
    %c0_i32_145 = arith.constant 0 : i32
    %180 = vector.broadcast %c0_i32_145 : i32 to vector<32x128xi32>
    %181 = arith.cmpi eq, %179, %180 : vector<32x128xi32>
    %cst_146 = arith.constant 0.000000e+00 : f32
    %182 = vector.broadcast %cst_146 : f32 to vector<32x128xf32>
    %183 = arith.select %181, %182, %175 : vector<32x128xi1>, vector<32x128xf32>
    %c3_i32_147 = arith.constant 3 : i32
    %184 = vector.broadcast %c3_i32_147 : i32 to vector<32x128xi32>
    %185 = arith.cmpi eq, %179, %184 : vector<32x128xi32>
    %cst_148 = arith.constant 0.000000e+00 : f32
    %186 = vector.broadcast %cst_148 : f32 to vector<32x128xf32>
    %187 = arith.select %185, %186, %176 : vector<32x128xi1>, vector<32x128xf32>
    %188 = tpu.concatenate %183, %169, %187 in 1 : vector<32x128xf32>, vector<32x128xf32>, vector<32x128xf32> -> vector<32x384xf32>
    %189 = arith.truncf %188 : vector<32x384xf32> to vector<32x384xbf16>
    %c1536 = arith.constant 1536 : index
    %c0_149 = arith.constant 0 : index
    %190 = vector.load %arg2[%c1536, %c0_149] : memref<7232x128xbf16, #tpu.memory_space<vmem>>, vector<384x128xbf16>
    %cst_150 = arith.constant dense<0.000000e+00> : vector<32x128xf32>
    %191 = tpu.matmul %189, %190, %cst_150 {dimension_numbers = #tpu.dot_dimension_numbers<[1], [0], [0], [1], [0, 0, 1, 1], [], []>} : vector<32x384xbf16>, vector<384x128xbf16>, vector<32x128xf32> -> vector<32x128xf32>
    %c5 = arith.constant 5 : index
    %c0_151 = arith.constant 0 : index
    %192 = vector.load %arg3[%c5, %c0_151] : memref<16x128xf32, #tpu.memory_space<vmem>>, vector<1x128xf32>
    %193 = vector.broadcast %192 : vector<1x128xf32> to vector<32x128xf32>
    %194 = arith.addf %191, %193 : vector<32x128xf32>
    %cst_152 = arith.constant 0.000000e+00 : f32
    %195 = vector.broadcast %cst_152 : f32 to vector<32x128xf32>
    %196 = arith.maximumf %194, %195 : vector<32x128xf32>
    %197 = arith.truncf %196 : vector<32x128xf32> to vector<32x128xbf16>
    %c2_153 = arith.constant 2 : index
    %c0_154 = arith.constant 0 : index
    %c0_155 = arith.constant 0 : index
    %198 = vector.load %arg4[%c2_153, %c0_154, %c0_155] : memref<3x128x64xbf16, #tpu.memory_space<vmem>>, vector<1x128x64xbf16>
    %199 = vector.shape_cast %198 : vector<1x128x64xbf16> to vector<128x64xbf16>
    %cst_156 = arith.constant dense<0.000000e+00> : vector<32x64xf32>
    %200 = tpu.matmul %197, %199, %cst_156 {dimension_numbers = #tpu.dot_dimension_numbers<[1], [0], [0], [1], [0, 0, 1, 1], [], []>} : vector<32x128xbf16>, vector<128x64xbf16>, vector<32x64xf32> -> vector<32x64xf32>
    %c2_157 = arith.constant 2 : index
    %c0_158 = arith.constant 0 : index
    %c0_159 = arith.constant 0 : index
    %201 = vector.load %arg5[%c2_157, %c0_158, %c0_159] : memref<3x128x64xbf16, #tpu.memory_space<vmem>>, vector<1x128x64xbf16>
    %202 = vector.shape_cast %201 : vector<1x128x64xbf16> to vector<128x64xbf16>
    %cst_160 = arith.constant dense<0.000000e+00> : vector<32x64xf32>
    %203 = tpu.matmul %197, %202, %cst_160 {dimension_numbers = #tpu.dot_dimension_numbers<[1], [0], [0], [1], [0, 0, 1, 1], [], []>} : vector<32x128xbf16>, vector<128x64xbf16>, vector<32x64xf32> -> vector<32x64xf32>
    %204 = arith.maximumf %200, %203 : vector<32x64xf32>
    %205 = arith.truncf %204 : vector<32x64xf32> to vector<32x64xbf16>
    %c2_161 = arith.constant 2 : index
    %c0_162 = arith.constant 0 : index
    %c0_163 = arith.constant 0 : index
    %206 = vector.load %arg6[%c2_161, %c0_162, %c0_163] : memref<3x64x128xbf16, #tpu.memory_space<vmem>>, vector<1x64x128xbf16>
    %207 = vector.shape_cast %206 : vector<1x64x128xbf16> to vector<64x128xbf16>
    %208 = vector.extract_strided_slice %207 {offsets = [0, 0], sizes = [16, 32], strides = [1, 1]} : vector<64x128xbf16> to vector<16x32xbf16>
    %c2_164 = arith.constant 2 : index
    %c0_165 = arith.constant 0 : index
    %c0_166 = arith.constant 0 : index
    %209 = vector.load %arg7[%c2_164, %c0_165, %c0_166] : memref<3x64x128xbf16, #tpu.memory_space<vmem>>, vector<1x64x128xbf16>
    %210 = vector.shape_cast %209 : vector<1x64x128xbf16> to vector<64x128xbf16>
    %211 = vector.extract_strided_slice %210 {offsets = [0, 0], sizes = [16, 32], strides = [1, 1]} : vector<64x128xbf16> to vector<16x32xbf16>
    %cst_167 = arith.constant dense<0.000000e+00> : vector<16x64xf32>
    %212 = tpu.matmul %208, %205, %cst_167 {dimension_numbers = #tpu.dot_dimension_numbers<[1], [0], [0], [1], [0, 0, 1, 1], [], []>} : vector<16x32xbf16>, vector<32x64xbf16>, vector<16x64xf32> -> vector<16x64xf32>
    %cst_168 = arith.constant dense<0.000000e+00> : vector<16x64xf32>
    %213 = tpu.matmul %211, %205, %cst_168 {dimension_numbers = #tpu.dot_dimension_numbers<[1], [0], [0], [1], [0, 0, 1, 1], [], []>} : vector<16x32xbf16>, vector<32x64xbf16>, vector<16x64xf32> -> vector<16x64xf32>
    %214 = arith.maximumf %212, %213 : vector<16x64xf32>
    %cst_169 = arith.constant 0.000000e+00 : f32
    %215 = vector.broadcast %cst_169 : f32 to vector<1x64xf32>
    %c0_170 = arith.constant 0 : index
    %c0_171 = arith.constant 0 : index
    %216 = vector.load %arg11[%c0_170, %c0_171] : memref<136x256xf32, #tpu.memory_space<vmem>>, vector<1x64xf32>
    tpu.vector_store %arg11[%c0_170, %c0_171], %215 {strides = array<i32>} : memref<136x256xf32, #tpu.memory_space<vmem>>, vector<1x64xf32>,
    %cst_172 = arith.constant 0.000000e+00 : f32
    %217 = vector.broadcast %cst_172 : f32 to vector<1x64xf32>
    %c17 = arith.constant 17 : index
    %c0_173 = arith.constant 0 : index
    %218 = vector.load %arg11[%c17, %c0_173] : memref<136x256xf32, #tpu.memory_space<vmem>>, vector<1x64xf32>
    tpu.vector_store %arg11[%c17, %c0_173], %217 {strides = array<i32>} : memref<136x256xf32, #tpu.memory_space<vmem>>, vector<1x64xf32>,
    %c1_174 = arith.constant 1 : index
    %c0_175 = arith.constant 0 : index
    %219 = vector.load %arg11[%c1_174, %c0_175] : memref<136x256xf32, #tpu.memory_space<vmem>>, vector<16x64xf32>
    tpu.vector_store %arg11[%c1_174, %c0_175], %214 {strides = array<i32>} : memref<136x256xf32, #tpu.memory_space<vmem>>, vector<16x64xf32>,
    %c0_176 = arith.constant 0 : index
    %c0_177 = arith.constant 0 : index
    %220 = vector.load %arg11[%c0_176, %c0_177] : memref<136x256xf32, #tpu.memory_space<vmem>>, vector<16x64xf32>
    %c2_178 = arith.constant 2 : index
    %c0_179 = arith.constant 0 : index
    %221 = vector.load %arg11[%c2_178, %c0_179] : memref<136x256xf32, #tpu.memory_space<vmem>>, vector<16x64xf32>
    %222 = tpu.iota {dimensions = array<i32: 0>} : vector<16x64xi32>
    %c1_i32 = arith.constant 1 : i32
    %223 = vector.broadcast %c1_i32 : i32 to vector<16x64xi32>
    %224 = arith.andi %222, %223 : vector<16x64xi32>
    %c0_i32_180 = arith.constant 0 : i32
    %225 = vector.broadcast %c0_i32_180 : i32 to vector<16x64xi32>
    %226 = arith.cmpi eq, %224, %225 : vector<16x64xi32>
    %cst_181 = arith.constant 0.000000e+00 : f32
    %227 = vector.broadcast %cst_181 : f32 to vector<16x64xf32>
    %228 = arith.select %226, %227, %220 : vector<16x64xi1>, vector<16x64xf32>
    %c1_i32_182 = arith.constant 1 : i32
    %229 = vector.broadcast %c1_i32_182 : i32 to vector<16x64xi32>
    %230 = arith.cmpi eq, %224, %229 : vector<16x64xi32>
    %cst_183 = arith.constant 0.000000e+00 : f32
    %231 = vector.broadcast %cst_183 : f32 to vector<16x64xf32>
    %232 = arith.select %230, %231, %221 : vector<16x64xi1>, vector<16x64xf32>
    %233 = tpu.concatenate %228, %214, %232 in 1 : vector<16x64xf32>, vector<16x64xf32>, vector<16x64xf32> -> vector<16x192xf32>
    %234 = arith.truncf %233 : vector<16x192xf32> to vector<16x192xbf16>
    %c1920 = arith.constant 1920 : index
    %c0_184 = arith.constant 0 : index
    %235 = vector.load %arg2[%c1920, %c0_184] : memref<7232x128xbf16, #tpu.memory_space<vmem>>, vector<192x128xbf16>
    %cst_185 = arith.constant dense<0.000000e+00> : vector<16x128xf32>
    %236 = tpu.matmul %234, %235, %cst_185 {dimension_numbers = #tpu.dot_dimension_numbers<[1], [0], [0], [1], [0, 0, 1, 1], [], []>} : vector<16x192xbf16>, vector<192x128xbf16>, vector<16x128xf32> -> vector<16x128xf32>
    %c6 = arith.constant 6 : index
    %c0_186 = arith.constant 0 : index
    %237 = vector.load %arg3[%c6, %c0_186] : memref<16x128xf32, #tpu.memory_space<vmem>>, vector<1x128xf32>
    %238 = vector.broadcast %237 : vector<1x128xf32> to vector<16x128xf32>
    %239 = arith.addf %236, %238 : vector<16x128xf32>
    %cst_187 = arith.constant 0.000000e+00 : f32
    %240 = vector.broadcast %cst_187 : f32 to vector<16x128xf32>
    %241 = arith.maximumf %239, %240 : vector<16x128xf32>
    %cst_188 = arith.constant 0.000000e+00 : f32
    %242 = vector.broadcast %cst_188 : f32 to vector<1x128xf32>
    %c0_189 = arith.constant 0 : index
    %c0_190 = arith.constant 0 : index
    %243 = vector.load %arg11[%c0_189, %c0_190] : memref<136x256xf32, #tpu.memory_space<vmem>>, vector<1x128xf32>
    tpu.vector_store %arg11[%c0_189, %c0_190], %242 {strides = array<i32>} : memref<136x256xf32, #tpu.memory_space<vmem>>, vector<1x128xf32>,
    %cst_191 = arith.constant 0.000000e+00 : f32
    %244 = vector.broadcast %cst_191 : f32 to vector<1x128xf32>
    %c17_192 = arith.constant 17 : index
    %c0_193 = arith.constant 0 : index
    %245 = vector.load %arg11[%c17_192, %c0_193] : memref<136x256xf32, #tpu.memory_space<vmem>>, vector<1x128xf32>
    tpu.vector_store %arg11[%c17_192, %c0_193], %244 {strides = array<i32>} : memref<136x256xf32, #tpu.memory_space<vmem>>, vector<1x128xf32>,
    %c1_194 = arith.constant 1 : index
    %c0_195 = arith.constant 0 : index
    %246 = vector.load %arg11[%c1_194, %c0_195] : memref<136x256xf32, #tpu.memory_space<vmem>>, vector<16x128xf32>
    tpu.vector_store %arg11[%c1_194, %c0_195], %241 {strides = array<i32>} : memref<136x256xf32, #tpu.memory_space<vmem>>, vector<16x128xf32>,
    %c0_196 = arith.constant 0 : index
    %c0_197 = arith.constant 0 : index
    %247 = vector.load %arg11[%c0_196, %c0_197] : memref<136x256xf32, #tpu.memory_space<vmem>>, vector<16x128xf32>
    %c2_198 = arith.constant 2 : index
    %c0_199 = arith.constant 0 : index
    %248 = vector.load %arg11[%c2_198, %c0_199] : memref<136x256xf32, #tpu.memory_space<vmem>>, vector<16x128xf32>
    %249 = tpu.iota {dimensions = array<i32: 0>} : vector<16x128xi32>
    %c1_i32_200 = arith.constant 1 : i32
    %250 = vector.broadcast %c1_i32_200 : i32 to vector<16x128xi32>
    %251 = arith.andi %249, %250 : vector<16x128xi32>
    %c0_i32_201 = arith.constant 0 : i32
    %252 = vector.broadcast %c0_i32_201 : i32 to vector<16x128xi32>
    %253 = arith.cmpi eq, %251, %252 : vector<16x128xi32>
    %cst_202 = arith.constant 0.000000e+00 : f32
    %254 = vector.broadcast %cst_202 : f32 to vector<16x128xf32>
    %255 = arith.select %253, %254, %247 : vector<16x128xi1>, vector<16x128xf32>
    %c1_i32_203 = arith.constant 1 : i32
    %256 = vector.broadcast %c1_i32_203 : i32 to vector<16x128xi32>
    %257 = arith.cmpi eq, %251, %256 : vector<16x128xi32>
    %cst_204 = arith.constant 0.000000e+00 : f32
    %258 = vector.broadcast %cst_204 : f32 to vector<16x128xf32>
    %259 = arith.select %257, %258, %248 : vector<16x128xi1>, vector<16x128xf32>
    %260 = tpu.concatenate %255, %241, %259 in 1 : vector<16x128xf32>, vector<16x128xf32>, vector<16x128xf32> -> vector<16x384xf32>
    %261 = arith.truncf %260 : vector<16x384xf32> to vector<16x384xbf16>
    %c2112 = arith.constant 2112 : index
    %c0_205 = arith.constant 0 : index
    %262 = vector.load %arg2[%c2112, %c0_205] : memref<7232x128xbf16, #tpu.memory_space<vmem>>, vector<384x128xbf16>
    %cst_206 = arith.constant dense<0.000000e+00> : vector<16x128xf32>
    %263 = tpu.matmul %261, %262, %cst_206 {dimension_numbers = #tpu.dot_dimension_numbers<[1], [0], [0], [1], [0, 0, 1, 1], [], []>} : vector<16x384xbf16>, vector<384x128xbf16>, vector<16x128xf32> -> vector<16x128xf32>
    %c7 = arith.constant 7 : index
    %c0_207 = arith.constant 0 : index
    %264 = vector.load %arg3[%c7, %c0_207] : memref<16x128xf32, #tpu.memory_space<vmem>>, vector<1x128xf32>
    %265 = vector.broadcast %264 : vector<1x128xf32> to vector<16x128xf32>
    %266 = arith.addf %263, %265 : vector<16x128xf32>
    %cst_208 = arith.constant 0.000000e+00 : f32
    %267 = vector.broadcast %cst_208 : f32 to vector<16x128xf32>
    %268 = arith.maximumf %266, %267 : vector<16x128xf32>
    %c0_209 = arith.constant 0 : index
    %c0_210 = arith.constant 0 : index
    %c0_211 = arith.constant 0 : index
    %269 = vector.load %arg8[%c0_209, %c0_210, %c0_211] : memref<3x128x64xbf16, #tpu.memory_space<vmem>>, vector<1x128x64xbf16>
    %270 = vector.shape_cast %269 : vector<1x128x64xbf16> to vector<128x64xbf16>
    %271 = vector.extract_strided_slice %270 {offsets = [0, 0], sizes = [32, 16], strides = [1, 1]} : vector<128x64xbf16> to vector<32x16xbf16>
    %272 = arith.truncf %268 : vector<16x128xf32> to vector<16x128xbf16>
    %cst_212 = arith.constant dense<0.000000e+00> : vector<32x128xf32>
    %273 = tpu.matmul %271, %272, %cst_212 {dimension_numbers = #tpu.dot_dimension_numbers<[1], [0], [0], [1], [0, 0, 1, 1], [], []>} : vector<32x16xbf16>, vector<16x128xbf16>, vector<32x128xf32> -> vector<32x128xf32>
    %274 = arith.truncf %273 : vector<32x128xf32> to vector<32x128xbf16>
    %c0_213 = arith.constant 0 : index
    %c0_214 = arith.constant 0 : index
    %c0_215 = arith.constant 0 : index
    %275 = vector.load %arg9[%c0_213, %c0_214, %c0_215] : memref<3x128x256xbf16, #tpu.memory_space<vmem>>, vector<1x128x256xbf16>
    %276 = vector.shape_cast %275 : vector<1x128x256xbf16> to vector<128x256xbf16>
    %cst_216 = arith.constant dense<0.000000e+00> : vector<32x256xf32>
    %277 = tpu.matmul %274, %276, %cst_216 {dimension_numbers = #tpu.dot_dimension_numbers<[1], [0], [0], [1], [0, 0, 1, 1], [], []>} : vector<32x128xbf16>, vector<128x256xbf16>, vector<32x256xf32> -> vector<32x256xf32>
    %cst_217 = arith.constant 0.000000e+00 : f32
    %278 = vector.broadcast %cst_217 : f32 to vector<1x128xf32>
    %c0_218 = arith.constant 0 : index
    %c0_219 = arith.constant 0 : index
    %279 = vector.load %arg11[%c0_218, %c0_219] : memref<136x256xf32, #tpu.memory_space<vmem>>, vector<1x128xf32>
    tpu.vector_store %arg11[%c0_218, %c0_219], %278 {strides = array<i32>} : memref<136x256xf32, #tpu.memory_space<vmem>>, vector<1x128xf32>,
    %cst_220 = arith.constant 0.000000e+00 : f32
    %280 = vector.broadcast %cst_220 : f32 to vector<1x128xf32>
    %c33_221 = arith.constant 33 : index
    %c0_222 = arith.constant 0 : index
    %281 = vector.load %arg11[%c33_221, %c0_222] : memref<136x256xf32, #tpu.memory_space<vmem>>, vector<1x128xf32>
    tpu.vector_store %arg11[%c33_221, %c0_222], %280 {strides = array<i32>} : memref<136x256xf32, #tpu.memory_space<vmem>>, vector<1x128xf32>,
    %c1_223 = arith.constant 1 : index
    %c0_224 = arith.constant 0 : index
    %282 = vector.load %arg11[%c1_223, %c0_224] : memref<136x256xf32, #tpu.memory_space<vmem>>, vector<32x128xf32>
    tpu.vector_store %arg11[%c1_223, %c0_224], %196 {strides = array<i32>} : memref<136x256xf32, #tpu.memory_space<vmem>>, vector<32x128xf32>,
    %c0_225 = arith.constant 0 : index
    %c0_226 = arith.constant 0 : index
    %283 = vector.load %arg11[%c0_225, %c0_226] : memref<136x256xf32, #tpu.memory_space<vmem>>, vector<32x128xf32>
    %c2_227 = arith.constant 2 : index
    %c0_228 = arith.constant 0 : index
    %284 = vector.load %arg11[%c2_227, %c0_228] : memref<136x256xf32, #tpu.memory_space<vmem>>, vector<32x128xf32>
    %285 = tpu.iota {dimensions = array<i32: 0>} : vector<32x128xi32>
    %c3_i32_229 = arith.constant 3 : i32
    %286 = vector.broadcast %c3_i32_229 : i32 to vector<32x128xi32>
    %287 = arith.andi %285, %286 : vector<32x128xi32>
    %c0_i32_230 = arith.constant 0 : i32
    %288 = vector.broadcast %c0_i32_230 : i32 to vector<32x128xi32>
    %289 = arith.cmpi eq, %287, %288 : vector<32x128xi32>
    %cst_231 = arith.constant 0.000000e+00 : f32
    %290 = vector.broadcast %cst_231 : f32 to vector<32x128xf32>
    %291 = arith.select %289, %290, %283 : vector<32x128xi1>, vector<32x128xf32>
    %c3_i32_232 = arith.constant 3 : i32
    %292 = vector.broadcast %c3_i32_232 : i32 to vector<32x128xi32>
    %293 = arith.cmpi eq, %287, %292 : vector<32x128xi32>
    %cst_233 = arith.constant 0.000000e+00 : f32
    %294 = vector.broadcast %cst_233 : f32 to vector<32x128xf32>
    %295 = arith.select %293, %294, %284 : vector<32x128xi1>, vector<32x128xf32>
    %296 = tpu.concatenate %291, %196, %295 in 1 : vector<32x128xf32>, vector<32x128xf32>, vector<32x128xf32> -> vector<32x384xf32>
    %297 = arith.truncf %296 : vector<32x384xf32> to vector<32x384xbf16>
    %cst_234 = arith.constant 0.000000e+00 : f32
    %298 = vector.broadcast %cst_234 : f32 to vector<1x256xf32>
    %c0_235 = arith.constant 0 : index
    %c0_236 = arith.constant 0 : index
    %299 = vector.load %arg11[%c0_235, %c0_236] : memref<136x256xf32, #tpu.memory_space<vmem>>, vector<1x256xf32>
    tpu.vector_store %arg11[%c0_235, %c0_236], %298 {strides = array<i32>} : memref<136x256xf32, #tpu.memory_space<vmem>>, vector<1x256xf32>,
    %cst_237 = arith.constant 0.000000e+00 : f32
    %300 = vector.broadcast %cst_237 : f32 to vector<1x256xf32>
    %c33_238 = arith.constant 33 : index
    %c0_239 = arith.constant 0 : index
    %301 = vector.load %arg11[%c33_238, %c0_239] : memref<136x256xf32, #tpu.memory_space<vmem>>, vector<1x256xf32>
    tpu.vector_store %arg11[%c33_238, %c0_239], %300 {strides = array<i32>} : memref<136x256xf32, #tpu.memory_space<vmem>>, vector<1x256xf32>,
    %c1_240 = arith.constant 1 : index
    %c0_241 = arith.constant 0 : index
    %302 = vector.load %arg11[%c1_240, %c0_241] : memref<136x256xf32, #tpu.memory_space<vmem>>, vector<32x256xf32>
    tpu.vector_store %arg11[%c1_240, %c0_241], %277 {strides = array<i32>} : memref<136x256xf32, #tpu.memory_space<vmem>>, vector<32x256xf32>,
    %c0_242 = arith.constant 0 : index
    %c0_243 = arith.constant 0 : index
    %303 = vector.load %arg11[%c0_242, %c0_243] : memref<136x256xf32, #tpu.memory_space<vmem>>, vector<32x256xf32>
    %c2_244 = arith.constant 2 : index
    %c0_245 = arith.constant 0 : index
    %304 = vector.load %arg11[%c2_244, %c0_245] : memref<136x256xf32, #tpu.memory_space<vmem>>, vector<32x256xf32>
    %305 = tpu.iota {dimensions = array<i32: 0>} : vector<32x256xi32>
    %c3_i32_246 = arith.constant 3 : i32
    %306 = vector.broadcast %c3_i32_246 : i32 to vector<32x256xi32>
    %307 = arith.andi %305, %306 : vector<32x256xi32>
    %c0_i32_247 = arith.constant 0 : i32
    %308 = vector.broadcast %c0_i32_247 : i32 to vector<32x256xi32>
    %309 = arith.cmpi eq, %307, %308 : vector<32x256xi32>
    %cst_248 = arith.constant 0.000000e+00 : f32
    %310 = vector.broadcast %cst_248 : f32 to vector<32x256xf32>
    %311 = arith.select %309, %310, %303 : vector<32x256xi1>, vector<32x256xf32>
    %c3_i32_249 = arith.constant 3 : i32
    %312 = vector.broadcast %c3_i32_249 : i32 to vector<32x256xi32>
    %313 = arith.cmpi eq, %307, %312 : vector<32x256xi32>
    %cst_250 = arith.constant 0.000000e+00 : f32
    %314 = vector.broadcast %cst_250 : f32 to vector<32x256xf32>
    %315 = arith.select %313, %314, %304 : vector<32x256xi1>, vector<32x256xf32>
    %316 = tpu.concatenate %311, %277, %315 in 1 : vector<32x256xf32>, vector<32x256xf32>, vector<32x256xf32> -> vector<32x768xf32>
    %317 = arith.truncf %316 : vector<32x768xf32> to vector<32x768xbf16>
    %318 = tpu.concatenate %297, %317 in 1 : vector<32x384xbf16>, vector<32x768xbf16> -> vector<32x1152xbf16>
    %c2496 = arith.constant 2496 : index
    %c0_251 = arith.constant 0 : index
    %319 = vector.load %arg2[%c2496, %c0_251] : memref<7232x128xbf16, #tpu.memory_space<vmem>>, vector<1152x128xbf16>
    %cst_252 = arith.constant dense<0.000000e+00> : vector<32x128xf32>
    %320 = tpu.matmul %318, %319, %cst_252 {dimension_numbers = #tpu.dot_dimension_numbers<[1], [0], [0], [1], [0, 0, 1, 1], [], []>} : vector<32x1152xbf16>, vector<1152x128xbf16>, vector<32x128xf32> -> vector<32x128xf32>
    %c8 = arith.constant 8 : index
    %c0_253 = arith.constant 0 : index
    %321 = vector.load %arg3[%c8, %c0_253] : memref<16x128xf32, #tpu.memory_space<vmem>>, vector<1x128xf32>
    %322 = vector.broadcast %321 : vector<1x128xf32> to vector<32x128xf32>
    %323 = arith.addf %320, %322 : vector<32x128xf32>
    %cst_254 = arith.constant 0.000000e+00 : f32
    %324 = vector.broadcast %cst_254 : f32 to vector<32x128xf32>
    %325 = arith.maximumf %323, %324 : vector<32x128xf32>
    %cst_255 = arith.constant 0.000000e+00 : f32
    %326 = vector.broadcast %cst_255 : f32 to vector<1x128xf32>
    %c0_256 = arith.constant 0 : index
    %c0_257 = arith.constant 0 : index
    %327 = vector.load %arg11[%c0_256, %c0_257] : memref<136x256xf32, #tpu.memory_space<vmem>>, vector<1x128xf32>
    tpu.vector_store %arg11[%c0_256, %c0_257], %326 {strides = array<i32>} : memref<136x256xf32, #tpu.memory_space<vmem>>, vector<1x128xf32>,
    %cst_258 = arith.constant 0.000000e+00 : f32
    %328 = vector.broadcast %cst_258 : f32 to vector<1x128xf32>
    %c33_259 = arith.constant 33 : index
    %c0_260 = arith.constant 0 : index
    %329 = vector.load %arg11[%c33_259, %c0_260] : memref<136x256xf32, #tpu.memory_space<vmem>>, vector<1x128xf32>
    tpu.vector_store %arg11[%c33_259, %c0_260], %328 {strides = array<i32>} : memref<136x256xf32, #tpu.memory_space<vmem>>, vector<1x128xf32>,
    %c1_261 = arith.constant 1 : index
    %c0_262 = arith.constant 0 : index
    %330 = vector.load %arg11[%c1_261, %c0_262] : memref<136x256xf32, #tpu.memory_space<vmem>>, vector<32x128xf32>
    tpu.vector_store %arg11[%c1_261, %c0_262], %325 {strides = array<i32>} : memref<136x256xf32, #tpu.memory_space<vmem>>, vector<32x128xf32>,
    %c0_263 = arith.constant 0 : index
    %c0_264 = arith.constant 0 : index
    %331 = vector.load %arg11[%c0_263, %c0_264] : memref<136x256xf32, #tpu.memory_space<vmem>>, vector<32x128xf32>
    %c2_265 = arith.constant 2 : index
    %c0_266 = arith.constant 0 : index
    %332 = vector.load %arg11[%c2_265, %c0_266] : memref<136x256xf32, #tpu.memory_space<vmem>>, vector<32x128xf32>
    %333 = tpu.iota {dimensions = array<i32: 0>} : vector<32x128xi32>
    %c3_i32_267 = arith.constant 3 : i32
    %334 = vector.broadcast %c3_i32_267 : i32 to vector<32x128xi32>
    %335 = arith.andi %333, %334 : vector<32x128xi32>
    %c0_i32_268 = arith.constant 0 : i32
    %336 = vector.broadcast %c0_i32_268 : i32 to vector<32x128xi32>
    %337 = arith.cmpi eq, %335, %336 : vector<32x128xi32>
    %cst_269 = arith.constant 0.000000e+00 : f32
    %338 = vector.broadcast %cst_269 : f32 to vector<32x128xf32>
    %339 = arith.select %337, %338, %331 : vector<32x128xi1>, vector<32x128xf32>
    %c3_i32_270 = arith.constant 3 : i32
    %340 = vector.broadcast %c3_i32_270 : i32 to vector<32x128xi32>
    %341 = arith.cmpi eq, %335, %340 : vector<32x128xi32>
    %cst_271 = arith.constant 0.000000e+00 : f32
    %342 = vector.broadcast %cst_271 : f32 to vector<32x128xf32>
    %343 = arith.select %341, %342, %332 : vector<32x128xi1>, vector<32x128xf32>
    %344 = tpu.concatenate %339, %325, %343 in 1 : vector<32x128xf32>, vector<32x128xf32>, vector<32x128xf32> -> vector<32x384xf32>
    %345 = arith.truncf %344 : vector<32x384xf32> to vector<32x384xbf16>
    %c3648 = arith.constant 3648 : index
    %c0_272 = arith.constant 0 : index
    %346 = vector.load %arg2[%c3648, %c0_272] : memref<7232x128xbf16, #tpu.memory_space<vmem>>, vector<384x128xbf16>
    %cst_273 = arith.constant dense<0.000000e+00> : vector<32x128xf32>
    %347 = tpu.matmul %345, %346, %cst_273 {dimension_numbers = #tpu.dot_dimension_numbers<[1], [0], [0], [1], [0, 0, 1, 1], [], []>} : vector<32x384xbf16>, vector<384x128xbf16>, vector<32x128xf32> -> vector<32x128xf32>
    %c9 = arith.constant 9 : index
    %c0_274 = arith.constant 0 : index
    %348 = vector.load %arg3[%c9, %c0_274] : memref<16x128xf32, #tpu.memory_space<vmem>>, vector<1x128xf32>
    %349 = vector.broadcast %348 : vector<1x128xf32> to vector<32x128xf32>
    %350 = arith.addf %347, %349 : vector<32x128xf32>
    %cst_275 = arith.constant 0.000000e+00 : f32
    %351 = vector.broadcast %cst_275 : f32 to vector<32x128xf32>
    %352 = arith.maximumf %350, %351 : vector<32x128xf32>
    %c1_276 = arith.constant 1 : index
    %c0_277 = arith.constant 0 : index
    %c0_278 = arith.constant 0 : index
    %353 = vector.load %arg8[%c1_276, %c0_277, %c0_278] : memref<3x128x64xbf16, #tpu.memory_space<vmem>>, vector<1x128x64xbf16>
    %354 = vector.shape_cast %353 : vector<1x128x64xbf16> to vector<128x64xbf16>
    %355 = vector.extract_strided_slice %354 {offsets = [0, 0], sizes = [64, 32], strides = [1, 1]} : vector<128x64xbf16> to vector<64x32xbf16>
    %356 = arith.truncf %352 : vector<32x128xf32> to vector<32x128xbf16>
    %cst_279 = arith.constant dense<0.000000e+00> : vector<64x128xf32>
    %357 = tpu.matmul %355, %356, %cst_279 {dimension_numbers = #tpu.dot_dimension_numbers<[1], [0], [0], [1], [0, 0, 1, 1], [], []>} : vector<64x32xbf16>, vector<32x128xbf16>, vector<64x128xf32> -> vector<64x128xf32>
    %358 = arith.truncf %357 : vector<64x128xf32> to vector<64x128xbf16>
    %c1_280 = arith.constant 1 : index
    %c0_281 = arith.constant 0 : index
    %c0_282 = arith.constant 0 : index
    %359 = vector.load %arg9[%c1_280, %c0_281, %c0_282] : memref<3x128x256xbf16, #tpu.memory_space<vmem>>, vector<1x128x256xbf16>
    %360 = vector.shape_cast %359 : vector<1x128x256xbf16> to vector<128x256xbf16>
    %cst_283 = arith.constant dense<0.000000e+00> : vector<64x256xf32>
    %361 = tpu.matmul %358, %360, %cst_283 {dimension_numbers = #tpu.dot_dimension_numbers<[1], [0], [0], [1], [0, 0, 1, 1], [], []>} : vector<64x128xbf16>, vector<128x256xbf16>, vector<64x256xf32> -> vector<64x256xf32>
    %cst_284 = arith.constant 0.000000e+00 : f32
    %362 = vector.broadcast %cst_284 : f32 to vector<1x128xf32>
    %c0_285 = arith.constant 0 : index
    %c0_286 = arith.constant 0 : index
    %363 = vector.load %arg11[%c0_285, %c0_286] : memref<136x256xf32, #tpu.memory_space<vmem>>, vector<1x128xf32>
    tpu.vector_store %arg11[%c0_285, %c0_286], %362 {strides = array<i32>} : memref<136x256xf32, #tpu.memory_space<vmem>>, vector<1x128xf32>,
    %cst_287 = arith.constant 0.000000e+00 : f32
    %364 = vector.broadcast %cst_287 : f32 to vector<1x128xf32>
    %c65_288 = arith.constant 65 : index
    %c0_289 = arith.constant 0 : index
    %365 = vector.load %arg11[%c65_288, %c0_289] : memref<136x256xf32, #tpu.memory_space<vmem>>, vector<1x128xf32>
    tpu.vector_store %arg11[%c65_288, %c0_289], %364 {strides = array<i32>} : memref<136x256xf32, #tpu.memory_space<vmem>>, vector<1x128xf32>,
    %c1_290 = arith.constant 1 : index
    %c0_291 = arith.constant 0 : index
    %366 = vector.load %arg11[%c1_290, %c0_291] : memref<136x256xf32, #tpu.memory_space<vmem>>, vector<64x128xf32>
    tpu.vector_store %arg11[%c1_290, %c0_291], %124 {strides = array<i32>} : memref<136x256xf32, #tpu.memory_space<vmem>>, vector<64x128xf32>,
    %c0_292 = arith.constant 0 : index
    %c0_293 = arith.constant 0 : index
    %367 = vector.load %arg11[%c0_292, %c0_293] : memref<136x256xf32, #tpu.memory_space<vmem>>, vector<64x128xf32>
    %c2_294 = arith.constant 2 : index
    %c0_295 = arith.constant 0 : index
    %368 = vector.load %arg11[%c2_294, %c0_295] : memref<136x256xf32, #tpu.memory_space<vmem>>, vector<64x128xf32>
    %369 = tpu.iota {dimensions = array<i32: 0>} : vector<64x128xi32>
    %c7_i32_296 = arith.constant 7 : i32
    %370 = vector.broadcast %c7_i32_296 : i32 to vector<64x128xi32>
    %371 = arith.andi %369, %370 : vector<64x128xi32>
    %c0_i32_297 = arith.constant 0 : i32
    %372 = vector.broadcast %c0_i32_297 : i32 to vector<64x128xi32>
    %373 = arith.cmpi eq, %371, %372 : vector<64x128xi32>
    %cst_298 = arith.constant 0.000000e+00 : f32
    %374 = vector.broadcast %cst_298 : f32 to vector<64x128xf32>
    %375 = arith.select %373, %374, %367 : vector<64x128xi1>, vector<64x128xf32>
    %c7_i32_299 = arith.constant 7 : i32
    %376 = vector.broadcast %c7_i32_299 : i32 to vector<64x128xi32>
    %377 = arith.cmpi eq, %371, %376 : vector<64x128xi32>
    %cst_300 = arith.constant 0.000000e+00 : f32
    %378 = vector.broadcast %cst_300 : f32 to vector<64x128xf32>
    %379 = arith.select %377, %378, %368 : vector<64x128xi1>, vector<64x128xf32>
    %380 = tpu.concatenate %375, %124, %379 in 1 : vector<64x128xf32>, vector<64x128xf32>, vector<64x128xf32> -> vector<64x384xf32>
    %381 = arith.truncf %380 : vector<64x384xf32> to vector<64x384xbf16>
    %cst_301 = arith.constant 0.000000e+00 : f32
    %382 = vector.broadcast %cst_301 : f32 to vector<1x256xf32>
    %c0_302 = arith.constant 0 : index
    %c0_303 = arith.constant 0 : index
    %383 = vector.load %arg11[%c0_302, %c0_303] : memref<136x256xf32, #tpu.memory_space<vmem>>, vector<1x256xf32>
    tpu.vector_store %arg11[%c0_302, %c0_303], %382 {strides = array<i32>} : memref<136x256xf32, #tpu.memory_space<vmem>>, vector<1x256xf32>,
    %cst_304 = arith.constant 0.000000e+00 : f32
    %384 = vector.broadcast %cst_304 : f32 to vector<1x256xf32>
    %c65_305 = arith.constant 65 : index
    %c0_306 = arith.constant 0 : index
    %385 = vector.load %arg11[%c65_305, %c0_306] : memref<136x256xf32, #tpu.memory_space<vmem>>, vector<1x256xf32>
    tpu.vector_store %arg11[%c65_305, %c0_306], %384 {strides = array<i32>} : memref<136x256xf32, #tpu.memory_space<vmem>>, vector<1x256xf32>,
    %c1_307 = arith.constant 1 : index
    %c0_308 = arith.constant 0 : index
    %386 = vector.load %arg11[%c1_307, %c0_308] : memref<136x256xf32, #tpu.memory_space<vmem>>, vector<64x256xf32>
    tpu.vector_store %arg11[%c1_307, %c0_308], %361 {strides = array<i32>} : memref<136x256xf32, #tpu.memory_space<vmem>>, vector<64x256xf32>,
    %c0_309 = arith.constant 0 : index
    %c0_310 = arith.constant 0 : index
    %387 = vector.load %arg11[%c0_309, %c0_310] : memref<136x256xf32, #tpu.memory_space<vmem>>, vector<64x256xf32>
    %c2_311 = arith.constant 2 : index
    %c0_312 = arith.constant 0 : index
    %388 = vector.load %arg11[%c2_311, %c0_312] : memref<136x256xf32, #tpu.memory_space<vmem>>, vector<64x256xf32>
    %389 = tpu.iota {dimensions = array<i32: 0>} : vector<64x256xi32>
    %c7_i32_313 = arith.constant 7 : i32
    %390 = vector.broadcast %c7_i32_313 : i32 to vector<64x256xi32>
    %391 = arith.andi %389, %390 : vector<64x256xi32>
    %c0_i32_314 = arith.constant 0 : i32
    %392 = vector.broadcast %c0_i32_314 : i32 to vector<64x256xi32>
    %393 = arith.cmpi eq, %391, %392 : vector<64x256xi32>
    %cst_315 = arith.constant 0.000000e+00 : f32
    %394 = vector.broadcast %cst_315 : f32 to vector<64x256xf32>
    %395 = arith.select %393, %394, %387 : vector<64x256xi1>, vector<64x256xf32>
    %c7_i32_316 = arith.constant 7 : i32
    %396 = vector.broadcast %c7_i32_316 : i32 to vector<64x256xi32>
    %397 = arith.cmpi eq, %391, %396 : vector<64x256xi32>
    %cst_317 = arith.constant 0.000000e+00 : f32
    %398 = vector.broadcast %cst_317 : f32 to vector<64x256xf32>
    %399 = arith.select %397, %398, %388 : vector<64x256xi1>, vector<64x256xf32>
    %400 = tpu.concatenate %395, %361, %399 in 1 : vector<64x256xf32>, vector<64x256xf32>, vector<64x256xf32> -> vector<64x768xf32>
    %401 = arith.truncf %400 : vector<64x768xf32> to vector<64x768xbf16>
    %402 = tpu.concatenate %381, %401 in 1 : vector<64x384xbf16>, vector<64x768xbf16> -> vector<64x1152xbf16>
    %c4032 = arith.constant 4032 : index
    %c0_318 = arith.constant 0 : index
    %403 = vector.load %arg2[%c4032, %c0_318] : memref<7232x128xbf16, #tpu.memory_space<vmem>>, vector<1152x128xbf16>
    %cst_319 = arith.constant dense<0.000000e+00> : vector<64x128xf32>
    %404 = tpu.matmul %402, %403, %cst_319 {dimension_numbers = #tpu.dot_dimension_numbers<[1], [0], [0], [1], [0, 0, 1, 1], [], []>} : vector<64x1152xbf16>, vector<1152x128xbf16>, vector<64x128xf32> -> vector<64x128xf32>
    %c10 = arith.constant 10 : index
    %c0_320 = arith.constant 0 : index
    %405 = vector.load %arg3[%c10, %c0_320] : memref<16x128xf32, #tpu.memory_space<vmem>>, vector<1x128xf32>
    %406 = vector.broadcast %405 : vector<1x128xf32> to vector<64x128xf32>
    %407 = arith.addf %404, %406 : vector<64x128xf32>
    %cst_321 = arith.constant 0.000000e+00 : f32
    %408 = vector.broadcast %cst_321 : f32 to vector<64x128xf32>
    %409 = arith.maximumf %407, %408 : vector<64x128xf32>
    %cst_322 = arith.constant 0.000000e+00 : f32
    %410 = vector.broadcast %cst_322 : f32 to vector<1x128xf32>
    %c0_323 = arith.constant 0 : index
    %c0_324 = arith.constant 0 : index
    %411 = vector.load %arg11[%c0_323, %c0_324] : memref<136x256xf32, #tpu.memory_space<vmem>>, vector<1x128xf32>
    tpu.vector_store %arg11[%c0_323, %c0_324], %410 {strides = array<i32>} : memref<136x256xf32, #tpu.memory_space<vmem>>, vector<1x128xf32>,
    %cst_325 = arith.constant 0.000000e+00 : f32
    %412 = vector.broadcast %cst_325 : f32 to vector<1x128xf32>
    %c65_326 = arith.constant 65 : index
    %c0_327 = arith.constant 0 : index
    %413 = vector.load %arg11[%c65_326, %c0_327] : memref<136x256xf32, #tpu.memory_space<vmem>>, vector<1x128xf32>
    tpu.vector_store %arg11[%c65_326, %c0_327], %412 {strides = array<i32>} : memref<136x256xf32, #tpu.memory_space<vmem>>, vector<1x128xf32>,
    %c1_328 = arith.constant 1 : index
    %c0_329 = arith.constant 0 : index
    %414 = vector.load %arg11[%c1_328, %c0_329] : memref<136x256xf32, #tpu.memory_space<vmem>>, vector<64x128xf32>
    tpu.vector_store %arg11[%c1_328, %c0_329], %409 {strides = array<i32>} : memref<136x256xf32, #tpu.memory_space<vmem>>, vector<64x128xf32>,
    %c0_330 = arith.constant 0 : index
    %c0_331 = arith.constant 0 : index
    %415 = vector.load %arg11[%c0_330, %c0_331] : memref<136x256xf32, #tpu.memory_space<vmem>>, vector<64x128xf32>
    %c2_332 = arith.constant 2 : index
    %c0_333 = arith.constant 0 : index
    %416 = vector.load %arg11[%c2_332, %c0_333] : memref<136x256xf32, #tpu.memory_space<vmem>>, vector<64x128xf32>
    %417 = tpu.iota {dimensions = array<i32: 0>} : vector<64x128xi32>
    %c7_i32_334 = arith.constant 7 : i32
    %418 = vector.broadcast %c7_i32_334 : i32 to vector<64x128xi32>
    %419 = arith.andi %417, %418 : vector<64x128xi32>
    %c0_i32_335 = arith.constant 0 : i32
    %420 = vector.broadcast %c0_i32_335 : i32 to vector<64x128xi32>
    %421 = arith.cmpi eq, %419, %420 : vector<64x128xi32>
    %cst_336 = arith.constant 0.000000e+00 : f32
    %422 = vector.broadcast %cst_336 : f32 to vector<64x128xf32>
    %423 = arith.select %421, %422, %415 : vector<64x128xi1>, vector<64x128xf32>
    %c7_i32_337 = arith.constant 7 : i32
    %424 = vector.broadcast %c7_i32_337 : i32 to vector<64x128xi32>
    %425 = arith.cmpi eq, %419, %424 : vector<64x128xi32>
    %cst_338 = arith.constant 0.000000e+00 : f32
    %426 = vector.broadcast %cst_338 : f32 to vector<64x128xf32>
    %427 = arith.select %425, %426, %416 : vector<64x128xi1>, vector<64x128xf32>
    %428 = tpu.concatenate %423, %409, %427 in 1 : vector<64x128xf32>, vector<64x128xf32>, vector<64x128xf32> -> vector<64x384xf32>
    %429 = arith.truncf %428 : vector<64x384xf32> to vector<64x384xbf16>
    %c5184 = arith.constant 5184 : index
    %c0_339 = arith.constant 0 : index
    %430 = vector.load %arg2[%c5184, %c0_339] : memref<7232x128xbf16, #tpu.memory_space<vmem>>, vector<384x128xbf16>
    %cst_340 = arith.constant dense<0.000000e+00> : vector<64x128xf32>
    %431 = tpu.matmul %429, %430, %cst_340 {dimension_numbers = #tpu.dot_dimension_numbers<[1], [0], [0], [1], [0, 0, 1, 1], [], []>} : vector<64x384xbf16>, vector<384x128xbf16>, vector<64x128xf32> -> vector<64x128xf32>
    %c11 = arith.constant 11 : index
    %c0_341 = arith.constant 0 : index
    %432 = vector.load %arg3[%c11, %c0_341] : memref<16x128xf32, #tpu.memory_space<vmem>>, vector<1x128xf32>
    %433 = vector.broadcast %432 : vector<1x128xf32> to vector<64x128xf32>
    %434 = arith.addf %431, %433 : vector<64x128xf32>
    %cst_342 = arith.constant 0.000000e+00 : f32
    %435 = vector.broadcast %cst_342 : f32 to vector<64x128xf32>
    %436 = arith.maximumf %434, %435 : vector<64x128xf32>
    %c2_343 = arith.constant 2 : index
    %c0_344 = arith.constant 0 : index
    %c0_345 = arith.constant 0 : index
    %437 = vector.load %arg8[%c2_343, %c0_344, %c0_345] : memref<3x128x64xbf16, #tpu.memory_space<vmem>>, vector<1x128x64xbf16>
    %438 = vector.shape_cast %437 : vector<1x128x64xbf16> to vector<128x64xbf16>
    %439 = arith.truncf %436 : vector<64x128xf32> to vector<64x128xbf16>
    %cst_346 = arith.constant dense<0.000000e+00> : vector<128x128xf32>
    %440 = tpu.matmul %438, %439, %cst_346 {dimension_numbers = #tpu.dot_dimension_numbers<[1], [0], [0], [1], [0, 0, 1, 1], [], []>} : vector<128x64xbf16>, vector<64x128xbf16>, vector<128x128xf32> -> vector<128x128xf32>
    %441 = arith.truncf %440 : vector<128x128xf32> to vector<128x128xbf16>
    %c2_347 = arith.constant 2 : index
    %c0_348 = arith.constant 0 : index
    %c0_349 = arith.constant 0 : index
    %442 = vector.load %arg9[%c2_347, %c0_348, %c0_349] : memref<3x128x256xbf16, #tpu.memory_space<vmem>>, vector<1x128x256xbf16>
    %443 = vector.shape_cast %442 : vector<1x128x256xbf16> to vector<128x256xbf16>
    %cst_350 = arith.constant dense<0.000000e+00> : vector<128x256xf32>
    %444 = tpu.matmul %441, %443, %cst_350 {dimension_numbers = #tpu.dot_dimension_numbers<[1], [0], [0], [1], [0, 0, 1, 1], [], []>} : vector<128x128xbf16>, vector<128x256xbf16>, vector<128x256xf32> -> vector<128x256xf32>
    %cst_351 = arith.constant 0.000000e+00 : f32
    %445 = vector.broadcast %cst_351 : f32 to vector<1x128xf32>
    %c0_352 = arith.constant 0 : index
    %c0_353 = arith.constant 0 : index
    %446 = vector.load %arg11[%c0_352, %c0_353] : memref<136x256xf32, #tpu.memory_space<vmem>>, vector<1x128xf32>
    tpu.vector_store %arg11[%c0_352, %c0_353], %445 {strides = array<i32>} : memref<136x256xf32, #tpu.memory_space<vmem>>, vector<1x128xf32>,
    %cst_354 = arith.constant 0.000000e+00 : f32
    %447 = vector.broadcast %cst_354 : f32 to vector<1x128xf32>
    %c129_355 = arith.constant 129 : index
    %c0_356 = arith.constant 0 : index
    %448 = vector.load %arg11[%c129_355, %c0_356] : memref<136x256xf32, #tpu.memory_space<vmem>>, vector<1x128xf32>
    tpu.vector_store %arg11[%c129_355, %c0_356], %447 {strides = array<i32>} : memref<136x256xf32, #tpu.memory_space<vmem>>, vector<1x128xf32>,
    %c1_357 = arith.constant 1 : index
    %c0_358 = arith.constant 0 : index
    %449 = vector.load %arg11[%c1_357, %c0_358] : memref<136x256xf32, #tpu.memory_space<vmem>>, vector<128x128xf32>
    tpu.vector_store %arg11[%c1_357, %c0_358], %54 {strides = array<i32>} : memref<136x256xf32, #tpu.memory_space<vmem>>, vector<128x128xf32>,
    %c0_359 = arith.constant 0 : index
    %c0_360 = arith.constant 0 : index
    %450 = vector.load %arg11[%c0_359, %c0_360] : memref<136x256xf32, #tpu.memory_space<vmem>>, vector<128x128xf32>
    %c2_361 = arith.constant 2 : index
    %c0_362 = arith.constant 0 : index
    %451 = vector.load %arg11[%c2_361, %c0_362] : memref<136x256xf32, #tpu.memory_space<vmem>>, vector<128x128xf32>
    %452 = tpu.iota {dimensions = array<i32: 0>} : vector<128x128xi32>
    %c15_i32_363 = arith.constant 15 : i32
    %453 = vector.broadcast %c15_i32_363 : i32 to vector<128x128xi32>
    %454 = arith.andi %452, %453 : vector<128x128xi32>
    %c0_i32_364 = arith.constant 0 : i32
    %455 = vector.broadcast %c0_i32_364 : i32 to vector<128x128xi32>
    %456 = arith.cmpi eq, %454, %455 : vector<128x128xi32>
    %cst_365 = arith.constant 0.000000e+00 : f32
    %457 = vector.broadcast %cst_365 : f32 to vector<128x128xf32>
    %458 = arith.select %456, %457, %450 : vector<128x128xi1>, vector<128x128xf32>
    %c15_i32_366 = arith.constant 15 : i32
    %459 = vector.broadcast %c15_i32_366 : i32 to vector<128x128xi32>
    %460 = arith.cmpi eq, %454, %459 : vector<128x128xi32>
    %cst_367 = arith.constant 0.000000e+00 : f32
    %461 = vector.broadcast %cst_367 : f32 to vector<128x128xf32>
    %462 = arith.select %460, %461, %451 : vector<128x128xi1>, vector<128x128xf32>
    %463 = tpu.concatenate %458, %54, %462 in 1 : vector<128x128xf32>, vector<128x128xf32>, vector<128x128xf32> -> vector<128x384xf32>
    %464 = arith.truncf %463 : vector<128x384xf32> to vector<128x384xbf16>
    %cst_368 = arith.constant 0.000000e+00 : f32
    %465 = vector.broadcast %cst_368 : f32 to vector<1x256xf32>
    %c0_369 = arith.constant 0 : index
    %c0_370 = arith.constant 0 : index
    %466 = vector.load %arg11[%c0_369, %c0_370] : memref<136x256xf32, #tpu.memory_space<vmem>>, vector<1x256xf32>
    tpu.vector_store %arg11[%c0_369, %c0_370], %465 {strides = array<i32>} : memref<136x256xf32, #tpu.memory_space<vmem>>, vector<1x256xf32>,
    %cst_371 = arith.constant 0.000000e+00 : f32
    %467 = vector.broadcast %cst_371 : f32 to vector<1x256xf32>
    %c129_372 = arith.constant 129 : index
    %c0_373 = arith.constant 0 : index
    %468 = vector.load %arg11[%c129_372, %c0_373] : memref<136x256xf32, #tpu.memory_space<vmem>>, vector<1x256xf32>
    tpu.vector_store %arg11[%c129_372, %c0_373], %467 {strides = array<i32>} : memref<136x256xf32, #tpu.memory_space<vmem>>, vector<1x256xf32>,
    %c1_374 = arith.constant 1 : index
    %c0_375 = arith.constant 0 : index
    %469 = vector.load %arg11[%c1_374, %c0_375] : memref<136x256xf32, #tpu.memory_space<vmem>>, vector<128x256xf32>
    tpu.vector_store %arg11[%c1_374, %c0_375], %444 {strides = array<i32>} : memref<136x256xf32, #tpu.memory_space<vmem>>, vector<128x256xf32>,
    %c0_376 = arith.constant 0 : index
    %c0_377 = arith.constant 0 : index
    %470 = vector.load %arg11[%c0_376, %c0_377] : memref<136x256xf32, #tpu.memory_space<vmem>>, vector<128x256xf32>
    %c2_378 = arith.constant 2 : index
    %c0_379 = arith.constant 0 : index
    %471 = vector.load %arg11[%c2_378, %c0_379] : memref<136x256xf32, #tpu.memory_space<vmem>>, vector<128x256xf32>
    %472 = tpu.iota {dimensions = array<i32: 0>} : vector<128x256xi32>
    %c15_i32_380 = arith.constant 15 : i32
    %473 = vector.broadcast %c15_i32_380 : i32 to vector<128x256xi32>
    %474 = arith.andi %472, %473 : vector<128x256xi32>
    %c0_i32_381 = arith.constant 0 : i32
    %475 = vector.broadcast %c0_i32_381 : i32 to vector<128x256xi32>
    %476 = arith.cmpi eq, %474, %475 : vector<128x256xi32>
    %cst_382 = arith.constant 0.000000e+00 : f32
    %477 = vector.broadcast %cst_382 : f32 to vector<128x256xf32>
    %478 = arith.select %476, %477, %470 : vector<128x256xi1>, vector<128x256xf32>
    %c15_i32_383 = arith.constant 15 : i32
    %479 = vector.broadcast %c15_i32_383 : i32 to vector<128x256xi32>
    %480 = arith.cmpi eq, %474, %479 : vector<128x256xi32>
    %cst_384 = arith.constant 0.000000e+00 : f32
    %481 = vector.broadcast %cst_384 : f32 to vector<128x256xf32>
    %482 = arith.select %480, %481, %471 : vector<128x256xi1>, vector<128x256xf32>
    %483 = tpu.concatenate %478, %444, %482 in 1 : vector<128x256xf32>, vector<128x256xf32>, vector<128x256xf32> -> vector<128x768xf32>
    %484 = arith.truncf %483 : vector<128x768xf32> to vector<128x768xbf16>
    %485 = tpu.concatenate %464, %484 in 1 : vector<128x384xbf16>, vector<128x768xbf16> -> vector<128x1152xbf16>
    %c5568 = arith.constant 5568 : index
    %c0_385 = arith.constant 0 : index
    %486 = vector.load %arg2[%c5568, %c0_385] : memref<7232x128xbf16, #tpu.memory_space<vmem>>, vector<1152x128xbf16>
    %cst_386 = arith.constant dense<0.000000e+00> : vector<128x128xf32>
    %487 = tpu.matmul %485, %486, %cst_386 {dimension_numbers = #tpu.dot_dimension_numbers<[1], [0], [0], [1], [0, 0, 1, 1], [], []>} : vector<128x1152xbf16>, vector<1152x128xbf16>, vector<128x128xf32> -> vector<128x128xf32>
    %c12 = arith.constant 12 : index
    %c0_387 = arith.constant 0 : index
    %488 = vector.load %arg3[%c12, %c0_387] : memref<16x128xf32, #tpu.memory_space<vmem>>, vector<1x128xf32>
    %489 = vector.broadcast %488 : vector<1x128xf32> to vector<128x128xf32>
    %490 = arith.addf %487, %489 : vector<128x128xf32>
    %cst_388 = arith.constant 0.000000e+00 : f32
    %491 = vector.broadcast %cst_388 : f32 to vector<1x128xf32>
    %c0_389 = arith.constant 0 : index
    %c0_390 = arith.constant 0 : index
    %492 = vector.load %arg11[%c0_389, %c0_390] : memref<136x256xf32, #tpu.memory_space<vmem>>, vector<1x128xf32>
    tpu.vector_store %arg11[%c0_389, %c0_390], %491 {strides = array<i32>} : memref<136x256xf32, #tpu.memory_space<vmem>>, vector<1x128xf32>,
    %cst_391 = arith.constant 0.000000e+00 : f32
    %493 = vector.broadcast %cst_391 : f32 to vector<1x128xf32>
    %c129_392 = arith.constant 129 : index
    %c0_393 = arith.constant 0 : index
    %494 = vector.load %arg11[%c129_392, %c0_393] : memref<136x256xf32, #tpu.memory_space<vmem>>, vector<1x128xf32>
    tpu.vector_store %arg11[%c129_392, %c0_393], %493 {strides = array<i32>} : memref<136x256xf32, #tpu.memory_space<vmem>>, vector<1x128xf32>,
    %c1_394 = arith.constant 1 : index
    %c0_395 = arith.constant 0 : index
    %495 = vector.load %arg11[%c1_394, %c0_395] : memref<136x256xf32, #tpu.memory_space<vmem>>, vector<128x128xf32>
    tpu.vector_store %arg11[%c1_394, %c0_395], %490 {strides = array<i32>} : memref<136x256xf32, #tpu.memory_space<vmem>>, vector<128x128xf32>,
    %c0_396 = arith.constant 0 : index
    %c0_397 = arith.constant 0 : index
    %496 = vector.load %arg11[%c0_396, %c0_397] : memref<136x256xf32, #tpu.memory_space<vmem>>, vector<128x128xf32>
    %c2_398 = arith.constant 2 : index
    %c0_399 = arith.constant 0 : index
    %497 = vector.load %arg11[%c2_398, %c0_399] : memref<136x256xf32, #tpu.memory_space<vmem>>, vector<128x128xf32>
    %498 = tpu.iota {dimensions = array<i32: 0>} : vector<128x128xi32>
    %c15_i32_400 = arith.constant 15 : i32
    %499 = vector.broadcast %c15_i32_400 : i32 to vector<128x128xi32>
    %500 = arith.andi %498, %499 : vector<128x128xi32>
    %c0_i32_401 = arith.constant 0 : i32
    %501 = vector.broadcast %c0_i32_401 : i32 to vector<128x128xi32>
    %502 = arith.cmpi eq, %500, %501 : vector<128x128xi32>
    %cst_402 = arith.constant 0.000000e+00 : f32
    %503 = vector.broadcast %cst_402 : f32 to vector<128x128xf32>
    %504 = arith.select %502, %503, %496 : vector<128x128xi1>, vector<128x128xf32>
    %c15_i32_403 = arith.constant 15 : i32
    %505 = vector.broadcast %c15_i32_403 : i32 to vector<128x128xi32>
    %506 = arith.cmpi eq, %500, %505 : vector<128x128xi32>
    %cst_404 = arith.constant 0.000000e+00 : f32
    %507 = vector.broadcast %cst_404 : f32 to vector<128x128xf32>
    %508 = arith.select %506, %507, %497 : vector<128x128xi1>, vector<128x128xf32>
    %509 = tpu.concatenate %504, %490, %508 in 1 : vector<128x128xf32>, vector<128x128xf32>, vector<128x128xf32> -> vector<128x384xf32>
    %510 = arith.truncf %509 : vector<128x384xf32> to vector<128x384xbf16>
    %c6720 = arith.constant 6720 : index
    %c0_405 = arith.constant 0 : index
    %511 = vector.load %arg2[%c6720, %c0_405] : memref<7232x128xbf16, #tpu.memory_space<vmem>>, vector<384x128xbf16>
    %cst_406 = arith.constant dense<0.000000e+00> : vector<128x128xf32>
    %512 = tpu.matmul %510, %511, %cst_406 {dimension_numbers = #tpu.dot_dimension_numbers<[1], [0], [0], [1], [0, 0, 1, 1], [], []>} : vector<128x384xbf16>, vector<384x128xbf16>, vector<128x128xf32> -> vector<128x128xf32>
    %c13 = arith.constant 13 : index
    %c0_407 = arith.constant 0 : index
    %513 = vector.load %arg3[%c13, %c0_407] : memref<16x128xf32, #tpu.memory_space<vmem>>, vector<1x128xf32>
    %514 = vector.broadcast %513 : vector<1x128xf32> to vector<128x128xf32>
    %515 = arith.addf %512, %514 : vector<128x128xf32>
    %516 = arith.truncf %515 : vector<128x128xf32> to vector<128x128xbf16>
    %c7104 = arith.constant 7104 : index
    %c0_408 = arith.constant 0 : index
    %517 = vector.load %arg2[%c7104, %c0_408] : memref<7232x128xbf16, #tpu.memory_space<vmem>>, vector<128x128xbf16>
    %cst_409 = arith.constant dense<0.000000e+00> : vector<128x128xf32>
    %518 = tpu.matmul %516, %517, %cst_409 {dimension_numbers = #tpu.dot_dimension_numbers<[1], [0], [0], [1], [0, 0, 1, 1], [], []>} : vector<128x128xbf16>, vector<128x128xbf16>, vector<128x128xf32> -> vector<128x128xf32>
    %c14 = arith.constant 14 : index
    %c0_410 = arith.constant 0 : index
    %519 = vector.load %arg3[%c14, %c0_410] : memref<16x128xf32, #tpu.memory_space<vmem>>, vector<1x128xf32>
    %520 = vector.broadcast %519 : vector<1x128xf32> to vector<128x128xf32>
    %521 = arith.addf %518, %520 : vector<128x128xf32>
    %522 = arith.negf %521 : vector<128x128xf32>
    %523 = math.exp %522 : vector<128x128xf32>
    %cst_411 = arith.constant 1.000000e+00 : f32
    %524 = vector.broadcast %cst_411 : f32 to vector<128x128xf32>
    %525 = arith.addf %524, %523 : vector<128x128xf32>
    %526 = arith.divf %524, %525 : vector<128x128xf32>
    %c0_412 = arith.constant 0 : index
    %c0_413 = arith.constant 0 : index
    %527 = vector.load %arg10[%c0_412, %c0_413] : memref<128x128xf32, #tpu.memory_space<vmem>>, vector<128x128xf32>
    tpu.vector_store %arg10[%c0_412, %c0_413], %526 {strides = array<i32>} : memref<128x128xf32, #tpu.memory_space<vmem>>, vector<128x128xf32>,
    return
  }
  func.func @transform_0(%arg0: i32) -> (i32, i32) {
    %c0_i32 = arith.constant 0 : i32
    %c0_i32_0 = arith.constant 0 : i32
    return %arg0, %c0_i32 : i32, i32
  }
  func.func @transform_1(%arg0: i32) -> (i32, i32) {
    %c0_i32 = arith.constant 0 : i32
    %c0_i32_0 = arith.constant 0 : i32
    %c0_i32_1 = arith.constant 0 : i32
    return %c0_i32, %c0_i32_0 : i32, i32
  }
  func.func @transform_2(%arg0: i32) -> (i32, i32) {
    %c0_i32 = arith.constant 0 : i32
    %c0_i32_0 = arith.constant 0 : i32
    %c0_i32_1 = arith.constant 0 : i32
    return %c0_i32, %c0_i32_0 : i32, i32
  }
  func.func @transform_3(%arg0: i32) -> (i32, i32, i32) {
    %c0_i32 = arith.constant 0 : i32
    %c0_i32_0 = arith.constant 0 : i32
    %c0_i32_1 = arith.constant 0 : i32
    %c0_i32_2 = arith.constant 0 : i32
    return %c0_i32, %c0_i32_0, %c0_i32_1 : i32, i32, i32
  }
  func.func @transform_4(%arg0: i32) -> (i32, i32, i32) {
    %c0_i32 = arith.constant 0 : i32
    %c0_i32_0 = arith.constant 0 : i32
    %c0_i32_1 = arith.constant 0 : i32
    %c0_i32_2 = arith.constant 0 : i32
    return %c0_i32, %c0_i32_0, %c0_i32_1 : i32, i32, i32
  }
  func.func @transform_5(%arg0: i32) -> (i32, i32, i32) {
    %c0_i32 = arith.constant 0 : i32
    %c0_i32_0 = arith.constant 0 : i32
    %c0_i32_1 = arith.constant 0 : i32
    %c0_i32_2 = arith.constant 0 : i32
    return %c0_i32, %c0_i32_0, %c0_i32_1 : i32, i32, i32
  }
  func.func @transform_6(%arg0: i32) -> (i32, i32, i32) {
    %c0_i32 = arith.constant 0 : i32
    %c0_i32_0 = arith.constant 0 : i32
    %c0_i32_1 = arith.constant 0 : i32
    %c0_i32_2 = arith.constant 0 : i32
    return %c0_i32, %c0_i32_0, %c0_i32_1 : i32, i32, i32
  }
  func.func @transform_7(%arg0: i32) -> (i32, i32, i32) {
    %c0_i32 = arith.constant 0 : i32
    %c0_i32_0 = arith.constant 0 : i32
    %c0_i32_1 = arith.constant 0 : i32
    %c0_i32_2 = arith.constant 0 : i32
    return %c0_i32, %c0_i32_0, %c0_i32_1 : i32, i32, i32
  }
  func.func @transform_8(%arg0: i32) -> (i32, i32, i32) {
    %c0_i32 = arith.constant 0 : i32
    %c0_i32_0 = arith.constant 0 : i32
    %c0_i32_1 = arith.constant 0 : i32
    %c0_i32_2 = arith.constant 0 : i32
    return %c0_i32, %c0_i32_0, %c0_i32_1 : i32, i32, i32
  }
  func.func @transform_9(%arg0: i32) -> (i32, i32) {
    %c0_i32 = arith.constant 0 : i32
    %c0_i32_0 = arith.constant 0 : i32
    return %arg0, %c0_i32 : i32, i32
  }
}

</mosaic_0001>

<llo_original>
// kernel: _lambda_.1
$region0: #{_lambda_.1}
  #allocation0 [shape = 'u32[]', space=smem, size = 0x4, offset = 0x4, fixed_abs, tag = 'smem constant byte address 0x4 - core index']
  #allocation1 [shape = 'u32[144,128]{1,0:T(1,128)}', space=vmem, size = 0x12000, scoped, tag = 'internal scratch']
  #allocation2 [shape = 'f32[136,256]{1,0:T(8,128)}', space=vmem, size = 0x22000, scoped, tag = 'scratch operand']
  %s0 = inlined_call_operand.vmem [shape: f32[256,128], index: 0, kind: input, shape index: {}]
  %s1 = inlined_call_operand.vmem [shape: bf16[7232,128], index: 1, kind: input, shape index: {}]
  %s2 = inlined_call_operand.vmem [shape: f32[16,128], index: 2, kind: input, shape index: {}]
  %s3 = inlined_call_operand.vmem [shape: bf16[3,128,64], index: 3, kind: input, shape index: {}]
  %s4 = inlined_call_operand.vmem [shape: bf16[3,128,64], index: 4, kind: input, shape index: {}]
  %s5 = inlined_call_operand.vmem [shape: bf16[3,64,128], index: 5, kind: input, shape index: {}]
  %s6 = inlined_call_operand.vmem [shape: bf16[3,64,128], index: 6, kind: input, shape index: {}]
  %s7 = inlined_call_operand.vmem [shape: bf16[3,128,64], index: 7, kind: input, shape index: {}]
  %s8 = inlined_call_operand.vmem [shape: bf16[3,128,256], index: 8, kind: input, shape index: {}]
  %s9 = inlined_call_operand.vmem [shape: f32[256,128], index: 9, kind: output, shape index: {}]
  %s10 = sld [smem:[#allocation0]]
  $region69: #{_lambda_.1} parent=0
    _
  %s12 = ssub.s32 1, %s10
  %s13 = scalar_select 0, %s12, %s10
  loop: start=0, step=1, limit=4
  $region2: #{_lambda_.1} parent=0 // loop_pre_header
    _
  $region3: #{_lambda_.1} parent=0 // loop_header
    %s15 = sphi 0, %s19
    %p16 = scmp.ge.s32.totalorder %s15, 4
    %s25 = sphi 0, %s27
    %s28 = sphi 0, %s25
    %s29 = sphi 0, %s28
    %s45 = sphi 0, %s29
    %s49 = sphi 0, %s49
    %s51 = sphi 0, %s49
    %s52 = sphi 0, %s51
    %s66 = sphi 0, %s52
    %s70 = sphi 0, %s70
    %s72 = sphi 0, %s70
    %s73 = sphi 0, %s72
    %s87 = sphi 0, %s73
    %s91 = sphi 0, %s91
    %s93 = sphi 0, %s91
    %s94 = sphi 0, %s93
    %s108 = sphi 0, %s94
    %s112 = sphi 0, %s112
    %s114 = sphi 0, %s112
    %s115 = sphi 0, %s114
    %s129 = sphi 0, %s115
    %s133 = sphi 0, %s133
    %s135 = sphi 0, %s133
    %s136 = sphi 0, %s135
    %s150 = sphi 0, %s136
    %s154 = sphi 0, %s154
    %s156 = sphi 0, %s154
    %s157 = sphi 0, %s156
    %s171 = sphi 0, %s157
    %s175 = sphi 0, %s175
    %s177 = sphi 0, %s175
    %s178 = sphi 0, %s177
    %s192 = sphi 0, %s178
    %s196 = sphi 0, %s196
    %s198 = sphi 0, %s196
    %s199 = sphi 0, %s198
    %s213 = sphi 0, %s199
    %s219 = sphi 0, %s221
    %s222 = sphi 0, %s219
    %s223 = sphi 0, %s222
    %s239 = sphi 0, %s223
  $region4: #{_lambda_.1} parent=0 // loop_header_branch
    %18 = sbr.rel (%p16) target = $region8
  $region5: #{_lambda_.1} parent=0 // loop_body
    %s20 = ssub.s32 %s15, 1
    %s21 = ssub.s32 %s15, 2
    %s22 = sadd.s32 %s15, 1
    %s23 = ssub.s32 %s15, %s22
    %p24 = scmp.eq.s32.totalorder %s23, 0
    %s26 = sadd.s32 %s25, 1
    %s27 = scalar_select %p24, %s25, %s26
    %p30 = pneg %p24
    %p31 = scmp.eq.s32.totalorder %s15, 1
    %p32 = por %p30, %p31
    %p33 = scmp.ne.s32.totalorder %s25, %s28
    %p34 = scmp.eq.s32.totalorder %s15, 0
    %p35 = por %p33, %p34
    %p36 = scmp.ne.s32.totalorder %s25, %s28
    %p37 = scmp.eq.s32.totalorder %s20, 1
    %p38 = por %p36, %p37
    %p39 = scmp.ne.s32.totalorder %s28, %s29
    %p40 = scmp.eq.s32.totalorder %s20, 0
    %p41 = por %p39, %p40
    %p42 = scmp.ne.s32.totalorder %s28, %s29
    %p43 = scmp.eq.s32.totalorder %s21, 1
    %p44 = por %p42, %p43
    %p46 = scmp.ne.s32.totalorder %s29, %s45
    %p47 = scmp.eq.s32.totalorder %s21, 0
    %p48 = por %p46, %p47
    %s50 = sadd.s32 %s49, 1
    %p53 = scmp.eq.s32.totalorder %s15, 1
    %p54 = scmp.ne.s32.totalorder %s49, %s51
    %p55 = scmp.eq.s32.totalorder %s15, 0
    %p56 = por %p54, %p55
    %p57 = scmp.ne.s32.totalorder %s49, %s51
    %p58 = scmp.eq.s32.totalorder %s20, 1
    %p59 = por %p57, %p58
    %p60 = scmp.ne.s32.totalorder %s51, %s52
    %p61 = scmp.eq.s32.totalorder %s20, 0
    %p62 = por %p60, %p61
    %p63 = scmp.ne.s32.totalorder %s51, %s52
    %p64 = scmp.eq.s32.totalorder %s21, 1
    %p65 = por %p63, %p64
    %p67 = scmp.ne.s32.totalorder %s52, %s66
    %p68 = scmp.eq.s32.totalorder %s21, 0
    %p69 = por %p67, %p68
    %s71 = sadd.s32 %s70, 1
    %p74 = scmp.eq.s32.totalorder %s15, 1
    %p75 = scmp.ne.s32.totalorder %s70, %s72
    %p76 = scmp.eq.s32.totalorder %s15, 0
    %p77 = por %p75, %p76
    %p78 = scmp.ne.s32.totalorder %s70, %s72
    %p79 = scmp.eq.s32.totalorder %s20, 1
    %p80 = por %p78, %p79
    %p81 = scmp.ne.s32.totalorder %s72, %s73
    %p82 = scmp.eq.s32.totalorder %s20, 0
    %p83 = por %p81, %p82
    %p84 = scmp.ne.s32.totalorder %s72, %s73
    %p85 = scmp.eq.s32.totalorder %s21, 1
    %p86 = por %p84, %p85
    %p88 = scmp.ne.s32.totalorder %s73, %s87
    %p89 = scmp.eq.s32.totalorder %s21, 0
    %p90 = por %p88, %p89
    %s92 = sadd.s32 %s91, 1
    %p95 = scmp.eq.s32.totalorder %s15, 1
    %p96 = scmp.ne.s32.totalorder %s91, %s93
    %p97 = scmp.eq.s32.totalorder %s15, 0
    %p98 = por %p96, %p97
    %p99 = scmp.ne.s32.totalorder %s91, %s93
    %p100 = scmp.eq.s32.totalorder %s20, 1
    %p101 = por %p99, %p100
    %p102 = scmp.ne.s32.totalorder %s93, %s94
    %p103 = scmp.eq.s32.totalorder %s20, 0
    %p104 = por %p102, %p103
    %p105 = scmp.ne.s32.totalorder %s93, %s94
    %p106 = scmp.eq.s32.totalorder %s21, 1
    %p107 = por %p105, %p106
    %p109 = scmp.ne.s32.totalorder %s94, %s108
    %p110 = scmp.eq.s32.totalorder %s21, 0
    %p111 = por %p109, %p110
    %s113 = sadd.s32 %s112, 1
    %p116 = scmp.eq.s32.totalorder %s15, 1
    %p117 = scmp.ne.s32.totalorder %s112, %s114
    %p118 = scmp.eq.s32.totalorder %s15, 0
    %p119 = por %p117, %p118
    %p120 = scmp.ne.s32.totalorder %s112, %s114
    %p121 = scmp.eq.s32.totalorder %s20, 1
    %p122 = por %p120, %p121
    %p123 = scmp.ne.s32.totalorder %s114, %s115
    %p124 = scmp.eq.s32.totalorder %s20, 0
    %p125 = por %p123, %p124
    %p126 = scmp.ne.s32.totalorder %s114, %s115
    %p127 = scmp.eq.s32.totalorder %s21, 1
    %p128 = por %p126, %p127
    %p130 = scmp.ne.s32.totalorder %s115, %s129
    %p131 = scmp.eq.s32.totalorder %s21, 0
    %p132 = por %p130, %p131
    %s134 = sadd.s32 %s133, 1
    %p137 = scmp.eq.s32.totalorder %s15, 1
    %p138 = scmp.ne.s32.totalorder %s133, %s135
    %p139 = scmp.eq.s32.totalorder %s15, 0
    %p140 = por %p138, %p139
    %p141 = scmp.ne.s32.totalorder %s133, %s135
    %p142 = scmp.eq.s32.totalorder %s20, 1
    %p143 = por %p141, %p142
    %p144 = scmp.ne.s32.totalorder %s135, %s136
    %p145 = scmp.eq.s32.totalorder %s20, 0
    %p146 = por %p144, %p145
    %p147 = scmp.ne.s32.totalorder %s135, %s136
    %p148 = scmp.eq.s32.totalorder %s21, 1
    %p149 = por %p147, %p148
    %p151 = scmp.ne.s32.totalorder %s136, %s150
    %p152 = scmp.eq.s32.totalorder %s21, 0
    %p153 = por %p151, %p152
    %s155 = sadd.s32 %s154, 1
    %p158 = scmp.eq.s32.totalorder %s15, 1
    %p159 = scmp.ne.s32.totalorder %s154, %s156
    %p160 = scmp.eq.s32.totalorder %s15, 0
    %p161 = por %p159, %p160
    %p162 = scmp.ne.s32.totalorder %s154, %s156
    %p163 = scmp.eq.s32.totalorder %s20, 1
    %p164 = por %p162, %p163
    %p165 = scmp.ne.s32.totalorder %s156, %s157
    %p166 = scmp.eq.s32.totalorder %s20, 0
    %p167 = por %p165, %p166
    %p168 = scmp.ne.s32.totalorder %s156, %s157
    %p169 = scmp.eq.s32.totalorder %s21, 1
    %p170 = por %p168, %p169
    %p172 = scmp.ne.s32.totalorder %s157, %s171
    %p173 = scmp.eq.s32.totalorder %s21, 0
    %p174 = por %p172, %p173
    %s176 = sadd.s32 %s175, 1
    %p179 = scmp.eq.s32.totalorder %s15, 1
    %p180 = scmp.ne.s32.totalorder %s175, %s177
    %p181 = scmp.eq.s32.totalorder %s15, 0
    %p182 = por %p180, %p181
    %p183 = scmp.ne.s32.totalorder %s175, %s177
    %p184 = scmp.eq.s32.totalorder %s20, 1
    %p185 = por %p183, %p184
    %p186 = scmp.ne.s32.totalorder %s177, %s178
    %p187 = scmp.eq.s32.totalorder %s20, 0
    %p188 = por %p186, %p187
    %p189 = scmp.ne.s32.totalorder %s177, %s178
    %p190 = scmp.eq.s32.totalorder %s21, 1
    %p191 = por %p189, %p190
    %p193 = scmp.ne.s32.totalorder %s178, %s192
    %p194 = scmp.eq.s32.totalorder %s21, 0
    %p195 = por %p193, %p194
    %s197 = sadd.s32 %s196, 1
    %p200 = scmp.eq.s32.totalorder %s15, 1
    %p201 = scmp.ne.s32.totalorder %s196, %s198
    %p202 = scmp.eq.s32.totalorder %s15, 0
    %p203 = por %p201, %p202
    %p204 = scmp.ne.s32.totalorder %s196, %s198
    %p205 = scmp.eq.s32.totalorder %s20, 1
    %p206 = por %p204, %p205
    %p207 = scmp.ne.s32.totalorder %s198, %s199
    %p208 = scmp.eq.s32.totalorder %s20, 0
    %p209 = por %p207, %p208
    %p210 = scmp.ne.s32.totalorder %s198, %s199
    %p211 = scmp.eq.s32.totalorder %s21, 1
    %p212 = por %p210, %p211
    %p214 = scmp.ne.s32.totalorder %s199, %s213
    %p215 = scmp.eq.s32.totalorder %s21, 0
    %p216 = por %p214, %p215
    %s217 = ssub.s32 %s15, %s22
    %p218 = scmp.eq.s32.totalorder %s217, 0
    %s220 = sadd.s32 %s219, 1
    %s221 = scalar_select %p218, %s219, %s220
    %p224 = pneg %p218
    %p225 = scmp.eq.s32.totalorder %s15, 1
    %p226 = por %p224, %p225
    %p227 = scmp.ne.s32.totalorder %s219, %s222
    %p228 = scmp.eq.s32.totalorder %s15, 0
    %p229 = por %p227, %p228
    %p230 = scmp.ne.s32.totalorder %s219, %s222
    %p231 = scmp.eq.s32.totalorder %s20, 1
    %p232 = por %p230, %p231
    %p233 = scmp.ne.s32.totalorder %s222, %s223
    %p234 = scmp.eq.s32.totalorder %s20, 0
    %p235 = por %p233, %p234
    %p236 = scmp.ne.s32.totalorder %s222, %s223
    %p237 = scmp.eq.s32.totalorder %s21, 1
    %p238 = por %p236, %p237
    %p240 = scmp.ne.s32.totalorder %s223, %s239
    %p241 = scmp.eq.s32.totalorder %s21, 0
    %p242 = por %p240, %p241
    %p243 = scmp.le.s32.totalorder 1, %s15
    %p244 = scmp.lt.s32.totalorder %s15, 3
    %p245 = pnand %p243, %p244
    %p246 = pneg %p245
    // Predicated region
    $region9: #{_lambda_.1} parent=5 // pred_check
      _
    $region10: #{_lambda_.1} parent=5 // pred_check_branch
      %248 = sbr.rel (%p245) target = $region12
    $region11: #{_lambda_.1} parent=5 // pred_region
      %s249 = ssub.s32 %s15, 1
      // Predicated region
      $region13: #{_lambda_.1} parent=11 // pred_check
        %p250 = pneg %p62
      $region14: #{_lambda_.1} parent=11 // pred_check_branch
        %252 = sbr.rel (%p250) target = $region16
      $region15: #{_lambda_.1} parent=11 // pred_region
        _
      $region16: #{_lambda_.1} parent=11 // pred_fallthru
        _
      // Predicated region
      $region17: #{_lambda_.1} parent=11 // pred_check
        %p253 = pneg %p83
      $region18: #{_lambda_.1} parent=11 // pred_check_branch
        %255 = sbr.rel (%p253) target = $region20
      $region19: #{_lambda_.1} parent=11 // pred_region
        _
      $region20: #{_lambda_.1} parent=11 // pred_fallthru
        _
      // Predicated region
      $region21: #{_lambda_.1} parent=11 // pred_check
        %p256 = pneg %p104
      $region22: #{_lambda_.1} parent=11 // pred_check_branch
        %258 = sbr.rel (%p256) target = $region24
      $region23: #{_lambda_.1} parent=11 // pred_region
        _
      $region24: #{_lambda_.1} parent=11 // pred_fallthru
        _
      // Predicated region
      $region25: #{_lambda_.1} parent=11 // pred_check
        %p259 = pneg %p125
      $region26: #{_lambda_.1} parent=11 // pred_check_branch
        %261 = sbr.rel (%p259) target = $region28
      $region27: #{_lambda_.1} parent=11 // pred_region
        _
      $region28: #{_lambda_.1} parent=11 // pred_fallthru
        _
      // Predicated region
      $region29: #{_lambda_.1} parent=11 // pred_check
        %p262 = pneg %p146
      $region30: #{_lambda_.1} parent=11 // pred_check_branch
        %264 = sbr.rel (%p262) target = $region32
      $region31: #{_lambda_.1} parent=11 // pred_region
        _
      $region32: #{_lambda_.1} parent=11 // pred_fallthru
        _
      // Predicated region
      $region33: #{_lambda_.1} parent=11 // pred_check
        %p265 = pneg %p167
      $region34: #{_lambda_.1} parent=11 // pred_check_branch
        %267 = sbr.rel (%p265) target = $region36
      $region35: #{_lambda_.1} parent=11 // pred_region
        _
      $region36: #{_lambda_.1} parent=11 // pred_fallthru
        _
      // Predicated region
      $region37: #{_lambda_.1} parent=11 // pred_check
        %p268 = pneg %p188
      $region38: #{_lambda_.1} parent=11 // pred_check_branch
        %270 = sbr.rel (%p268) target = $region40
      $region39: #{_lambda_.1} parent=11 // pred_region
        _
      $region40: #{_lambda_.1} parent=11 // pred_fallthru
        _
      // Predicated region
      $region41: #{_lambda_.1} parent=11 // pred_check
        %p271 = pneg %p209
      $region42: #{_lambda_.1} parent=11 // pred_check_branch
        %273 = sbr.rel (%p271) target = $region44
      $region43: #{_lambda_.1} parent=11 // pred_region
        _
      $region44: #{_lambda_.1} parent=11 // pred_fallthru
        _
    $region12: #{_lambda_.1} parent=5 // pred_fallthru
      _
    %p274 = scmp.lt.s32.totalorder %s15, 2
    // Predicated region
    $region45: #{_lambda_.1} parent=5 // pred_check
      %p275 = pneg %p274
    $region46: #{_lambda_.1} parent=5 // pred_check_branch
      %277 = sbr.rel (%p275) target = $region48
    $region47: #{_lambda_.1} parent=5 // pred_region
      // Predicated region
      $region49: #{_lambda_.1} parent=47 // pred_check
        %p278 = pneg %p35
      $region50: #{_lambda_.1} parent=47 // pred_check_branch
        %280 = sbr.rel (%p278) target = $region52
      $region51: #{_lambda_.1} parent=47 // pred_region
        %s281 = smul.u32 16, %s15
        %p282 = scmp.lt.s32.totalorder %s281, 31
        %s283 = scalar_select %p282, %s281, 31
        %s284 = smul.addr %s283, 8
        %s285 = scalar_lea.vmem %s0, %s284
        %s286 = smul.u32 16, %s15
      $region52: #{_lambda_.1} parent=47 // pred_fallthru
        _
    $region48: #{_lambda_.1} parent=5 // pred_fallthru
      _
    %p287 = scmp.le.s32.totalorder 1, %s15
    %p288 = scmp.lt.s32.totalorder %s15, 3
    %p289 = pnand %p287, %p288
    %p290 = pneg %p289
    // Predicated region
    $region53: #{_lambda_.1} parent=5 // pred_check
      _
    $region54: #{_lambda_.1} parent=5 // pred_check_branch
      %292 = sbr.rel (%p289) target = $region56
    $region55: #{_lambda_.1} parent=5 // pred_region
      %s293 = ssub.s32 %s15, 1
      %s294 = smul.u32 16, %s20
      %p295 = scmp.lt.s32.totalorder %s294, 31
      %s296 = scalar_select %p295, %s294, 31
      %s297 = smul.addr %s296, 8
      %s298 = scalar_lea.vmem %s0, %s297
      %p299 = pneg %p41
      %p300 = pneg %p38
      %p301 = pneg %p62
      %p302 = pneg %p59
      %p303 = pneg %p83
      %p304 = pneg %p80
      %p305 = pneg %p104
      %p306 = pneg %p101
      %p307 = pneg %p125
      %p308 = pneg %p122
      %p309 = pneg %p146
      %p310 = pneg %p143
      %p311 = pneg %p167
      %p312 = pneg %p164
      %p313 = pneg %p188
      %p314 = pneg %p185
      %p315 = pneg %p209
      %p316 = pneg %p206
      %p317 = pneg %p235
      %p318 = pneg %p232
      %s319 = smul.u32 16, %s20
      %p320 = scmp.lt.s32.totalorder %s319, 31
      %s321 = scalar_select %p320, %s319, 31
      %s322 = smul.addr %s321, 8
      %s323 = scalar_lea.vmem %s9, %s322
      %s324 = smul.u32 16, %s20
      %p325 = scmp.lt.s32.totalorder %s324, 31
      %s326 = scalar_select %p325, %s324, 31
      %s327 = smul.addr %s326, 8
      %s328 = scalar_lea.vmem %s0, %s327
      %s329 = smul.u32 16, %s20
      %s330 = smul.u32 16, %s20
      %p331 = scmp.lt.s32.totalorder %s330, 31
      %s332 = scalar_select %p331, %s330, 31
      %s333 = smul.addr %s332, 8
      %s334 = scalar_lea.vmem %s9, %s333
      %s335 = smul.u32 16, %s20
      %v337 = vld [vmem:[%s328] sm:$0xff]
      %v338 = vld [vmem:[%s328 + $0x8] sm:$0xff]
      %v339 = vld [vmem:[%s328 + $0x10] sm:$0xff]
      %v340 = vld [vmem:[%s328 + $0x18] sm:$0xff]
      %v341 = vld [vmem:[%s328 + $0x20] sm:$0xff]
      %v342 = vld [vmem:[%s328 + $0x28] sm:$0xff]
      %v343 = vld [vmem:[%s328 + $0x30] sm:$0xff]
      %v344 = vld [vmem:[%s328 + $0x38] sm:$0xff]
      %v345 = vld [vmem:[%s328 + $0x40] sm:$0xff]
      %v346 = vld [vmem:[%s328 + $0x48] sm:$0xff]
      %v347 = vld [vmem:[%s328 + $0x50] sm:$0xff]
      %v348 = vld [vmem:[%s328 + $0x58] sm:$0xff]
      %v349 = vld [vmem:[%s328 + $0x60] sm:$0xff]
      %v350 = vld [vmem:[%s328 + $0x68] sm:$0xff]
      %v351 = vld [vmem:[%s328 + $0x70] sm:$0xff]
      %v352 = vld [vmem:[%s328 + $0x78] sm:$0xff]
      %353 = vst [vmem:[#allocation2] sm:$0x1] 0.0
      %354 = vst [vmem:[#allocation2 + $0x101] sm:$0x1] 0.0
      %vm371 = vcmask 1040384
      %v372 = vrot.slane %v337, 7
      %v373 = vrot.slane %v338, 7
      %v374 = vsel %vm371, %v372, %v373
      %v375 = vrot.slane %v339, 7
      %v376 = vsel %vm371, %v373, %v375
      %v377 = vrot.slane %v340, 7
      %v378 = vsel %vm371, %v375, %v377
      %v379 = vrot.slane %v341, 7
      %v380 = vsel %vm371, %v377, %v379
      %v381 = vrot.slane %v342, 7
      %v382 = vsel %vm371, %v379, %v381
      %v383 = vrot.slane %v343, 7
      %v384 = vsel %vm371, %v381, %v383
      %v385 = vrot.slane %v344, 7
      %v386 = vsel %vm371, %v383, %v385
      %v387 = vrot.slane %v345, 7
      %v388 = vsel %vm371, %v385, %v387
      %v389 = vrot.slane %v346, 7
      %v390 = vsel %vm371, %v387, %v389
      %v391 = vrot.slane %v347, 7
      %v392 = vsel %vm371, %v389, %v391
      %v393 = vrot.slane %v348, 7
      %v394 = vsel %vm371, %v391, %v393
      %v395 = vrot.slane %v349, 7
      %v396 = vsel %vm371, %v393, %v395
      %v397 = vrot.slane %v350, 7
      %v398 = vsel %vm371, %v395, %v397
      %v399 = vrot.slane %v351, 7
      %v400 = vsel %vm371, %v397, %v399
      %v401 = vrot.slane %v352, 7
      %v402 = vsel %vm371, %v399, %v401
      %420 = vst [vmem:[#allocation2] sm:$0xfe] %v372
      %421 = vst [vmem:[#allocation2 + $0x10] sm:$0xff] %v374
      %422 = vst [vmem:[#allocation2 + $0x20] sm:$0xff] %v376
      %423 = vst [vmem:[#allocation2 + $0x30] sm:$0xff] %v378
      %424 = vst [vmem:[#allocation2 + $0x40] sm:$0xff] %v380
      %425 = vst [vmem:[#allocation2 + $0x50] sm:$0xff] %v382
      %426 = vst [vmem:[#allocation2 + $0x60] sm:$0xff] %v384
      %427 = vst [vmem:[#allocation2 + $0x70] sm:$0xff] %v386
      %428 = vst [vmem:[#allocation2 + $0x80] sm:$0xff] %v388
      %429 = vst [vmem:[#allocation2 + $0x90] sm:$0xff] %v390
      %430 = vst [vmem:[#allocation2 + $0xa0] sm:$0xff] %v392
      %431 = vst [vmem:[#allocation2 + $0xb0] sm:$0xff] %v394
      %432 = vst [vmem:[#allocation2 + $0xc0] sm:$0xff] %v396
      %433 = vst [vmem:[#allocation2 + $0xd0] sm:$0xff] %v398
      %434 = vst [vmem:[#allocation2 + $0xe0] sm:$0xff] %v400
      %435 = vst [vmem:[#allocation2 + $0xf0] sm:$0xff] %v402
      %436 = vst [vmem:[#allocation2 + $0x100] sm:$0x1] %v401
      %v437 = vld [vmem:[#allocation2] sm:$0xff]
      %v438 = vld [vmem:[#allocation2 + $0x10] sm:$0xff]
      %v439 = vld [vmem:[#allocation2 + $0x20] sm:$0xff]
      %v440 = vld [vmem:[#allocation2 + $0x30] sm:$0xff]
      %v441 = vld [vmem:[#allocation2 + $0x40] sm:$0xff]
      %v442 = vld [vmem:[#allocation2 + $0x50] sm:$0xff]
      %v443 = vld [vmem:[#allocation2 + $0x60] sm:$0xff]
      %v444 = vld [vmem:[#allocation2 + $0x70] sm:$0xff]
      %v445 = vld [vmem:[#allocation2 + $0x80] sm:$0xff]
      %v446 = vld [vmem:[#allocation2 + $0x90] sm:$0xff]
      %v447 = vld [vmem:[#allocation2 + $0xa0] sm:$0xff]
      %v448 = vld [vmem:[#allocation2 + $0xb0] sm:$0xff]
      %v449 = vld [vmem:[#allocation2 + $0xc0] sm:$0xff]
      %v450 = vld [vmem:[#allocation2 + $0xd0] sm:$0xff]
      %v451 = vld [vmem:[#allocation2 + $0xe0] sm:$0xff]
      %v452 = vld [vmem:[#allocation2 + $0xf0] sm:$0xff]
      %v453 = vld [vmem:[#allocation2] sm:$0xfc]
      %v454 = vld [vmem:[#allocation2 + $0x100] sm:$0x3]
      %v455 = vlaneseq
      %v456 = vshrl.u32 %v455, 7
      %v457 = vadd.s32 %v456, 8
      %v458 = vadd.s32 %v456, 16
      %v459 = vadd.s32 %v456, 24
      %v460 = vadd.s32 %v456, 32
      %v461 = vadd.s32 %v456, 40
      %v462 = vadd.s32 %v456, 48
      %v463 = vadd.s32 %v456, 56
      %v464 = vadd.s32 %v456, 64
      %v465 = vadd.s32 %v456, 72
      %v466 = vadd.s32 %v456, 80
      %v467 = vadd.s32 %v456, 88
      %v468 = vadd.s32 %v456, 96
      %v469 = vadd.s32 %v456, 104
      %v470 = vadd.s32 %v456, 112
      %v471 = vadd.s32 %v456, 120
      %v472 = vand.u32 %v456, 15
      %v473 = vand.u32 %v457, 15
      %v474 = vand.u32 %v458, 15
      %v475 = vand.u32 %v459, 15
      %v476 = vand.u32 %v460, 15
      %v477 = vand.u32 %v461, 15
      %v478 = vand.u32 %v462, 15
      %v479 = vand.u32 %v463, 15
      %v480 = vand.u32 %v464, 15
      %v481 = vand.u32 %v465, 15
      %v482 = vand.u32 %v466, 15
      %v483 = vand.u32 %v467, 15
      %v484 = vand.u32 %v468, 15
      %v485 = vand.u32 %v469, 15
      %v486 = vand.u32 %v470, 15
      %v487 = vand.u32 %v471, 15
      %vm488 = vcmp.eq.s32.totalorder %v472, 0
      %vm489 = vcmp.eq.s32.totalorder %v473, 0
      %vm490 = vcmp.eq.s32.totalorder %v474, 0
      %vm491 = vcmp.eq.s32.totalorder %v475, 0
      %vm492 = vcmp.eq.s32.totalorder %v476, 0
      %vm493 = vcmp.eq.s32.totalorder %v477, 0
      %vm494 = vcmp.eq.s32.totalorder %v478, 0
      %vm495 = vcmp.eq.s32.totalorder %v479, 0
      %vm496 = vcmp.eq.s32.totalorder %v480, 0
      %vm497 = vcmp.eq.s32.totalorder %v481, 0
      %vm498 = vcmp.eq.s32.totalorder %v482, 0
      %vm499 = vcmp.eq.s32.totalorder %v483, 0
      %vm500 = vcmp.eq.s32.totalorder %v484, 0
      %vm501 = vcmp.eq.s32.totalorder %v485, 0
      %vm502 = vcmp.eq.s32.totalorder %v486, 0
      %vm503 = vcmp.eq.s32.totalorder %v487, 0
      %v504 = vsel %vm488, 0.0, %v437
      %v505 = vsel %vm489, 0.0, %v438
      %v506 = vsel %vm490, 0.0, %v439
      %v507 = vsel %vm491, 0.0, %v440
      %v508 = vsel %vm492, 0.0, %v441
      %v509 = vsel %vm493, 0.0, %v442
      %v510 = vsel %vm494, 0.0, %v443
      %v511 = vsel %vm495, 0.0, %v444
      %v512 = vsel %vm496, 0.0, %v445
      %v513 = vsel %vm497, 0.0, %v446
      %v514 = vsel %vm498, 0.0, %v447
      %v515 = vsel %vm499, 0.0, %v448
      %v516 = vsel %vm500, 0.0, %v449
      %v517 = vsel %vm501, 0.0, %v450
      %v518 = vsel %vm502, 0.0, %v451
      %v519 = vsel %vm503, 0.0, %v452
      %vm520 = vcmp.eq.s32.totalorder %v472, 15
      %vm521 = vcmp.eq.s32.totalorder %v473, 15
      %vm522 = vcmp.eq.s32.totalorder %v474, 15
      %vm523 = vcmp.eq.s32.totalorder %v475, 15
      %vm524 = vcmp.eq.s32.totalorder %v476, 15
      %vm525 = vcmp.eq.s32.totalorder %v477, 15
      %vm526 = vcmp.eq.s32.totalorder %v478, 15
      %vm527 = vcmp.eq.s32.totalorder %v479, 15
      %vm528 = vcmp.eq.s32.totalorder %v480, 15
      %vm529 = vcmp.eq.s32.totalorder %v481, 15
      %vm530 = vcmp.eq.s32.totalorder %v482, 15
      %vm531 = vcmp.eq.s32.totalorder %v483, 15
      %vm532 = vcmp.eq.s32.totalorder %v484, 15
      %vm533 = vcmp.eq.s32.totalorder %v485, 15
      %vm534 = vcmp.eq.s32.totalorder %v486, 15
      %vm535 = vcmp.eq.s32.totalorder %v487, 15
      %vm553 = vcmask 1045504
      %v554 = vrot.slane %v453, 2
      %v555 = vrot.slane %v438, 2
      %v556 = vsel %vm553, %v554, %v555
      %v557 = vrot.slane %v439, 2
      %v558 = vsel %vm553, %v555, %v557
      %v559 = vrot.slane %v440, 2
      %v560 = vsel %vm553, %v557, %v559
      %v561 = vrot.slane %v441, 2
      %v562 = vsel %vm553, %v559, %v561
      %v563 = vrot.slane %v442, 2
      %v564 = vsel %vm553, %v561, %v563
      %v565 = vrot.slane %v443, 2
      %v566 = vsel %vm553, %v563, %v565
      %v567 = vrot.slane %v444, 2
      %v568 = vsel %vm553, %v565, %v567
      %v569 = vrot.slane %v445, 2
      %v570 = vsel %vm553, %v567, %v569
      %v571 = vrot.slane %v446, 2
      %v572 = vsel %vm553, %v569, %v571
      %v573 = vrot.slane %v447, 2
      %v574 = vsel %vm553, %v571, %v573
      %v575 = vrot.slane %v448, 2
      %v576 = vsel %vm553, %v573, %v575
      %v577 = vrot.slane %v449, 2
      %v578 = vsel %vm553, %v575, %v577
      %v579 = vrot.slane %v450, 2
      %v580 = vsel %vm553, %v577, %v579
      %v581 = vrot.slane %v451, 2
      %v582 = vsel %vm553, %v579, %v581
      %v583 = vrot.slane %v452, 2
      %v584 = vsel %vm553, %v581, %v583
      %v585 = vrot.slane %v454, 2
      %v586 = vsel %vm553, %v583, %v585
      %v603 = vsel %vm520, 0.0, %v556
      %v604 = vsel %vm521, 0.0, %v558
      %v605 = vsel %vm522, 0.0, %v560
      %v606 = vsel %vm523, 0.0, %v562
      %v607 = vsel %vm524, 0.0, %v564
      %v608 = vsel %vm525, 0.0, %v566
      %v609 = vsel %vm526, 0.0, %v568
      %v610 = vsel %vm527, 0.0, %v570
      %v611 = vsel %vm528, 0.0, %v572
      %v612 = vsel %vm529, 0.0, %v574
      %v613 = vsel %vm530, 0.0, %v576
      %v614 = vsel %vm531, 0.0, %v578
      %v615 = vsel %vm532, 0.0, %v580
      %v616 = vsel %vm533, 0.0, %v582
      %v617 = vsel %vm534, 0.0, %v584
      %v618 = vsel %vm535, 0.0, %v586
      %v619 = vpack.c.bf16 %v505, %v504
      %v620 = vpack.c.bf16 %v338, %v337
      %v621 = vpack.c.bf16 %v604, %v603
      %v622 = vpack.c.bf16 %v507, %v506
      %v623 = vpack.c.bf16 %v340, %v339
      %v624 = vpack.c.bf16 %v606, %v605
      %v625 = vpack.c.bf16 %v509, %v508
      %v626 = vpack.c.bf16 %v342, %v341
      %v627 = vpack.c.bf16 %v608, %v607
      %v628 = vpack.c.bf16 %v511, %v510
      %v629 = vpack.c.bf16 %v344, %v343
      %v630 = vpack.c.bf16 %v610, %v609
      %v631 = vpack.c.bf16 %v513, %v512
      %v632 = vpack.c.bf16 %v346, %v345
      %v633 = vpack.c.bf16 %v612, %v611
      %v634 = vpack.c.bf16 %v515, %v514
      %v635 = vpack.c.bf16 %v348, %v347
      %v636 = vpack.c.bf16 %v614, %v613
      %v637 = vpack.c.bf16 %v517, %v516
      %v638 = vpack.c.bf16 %v350, %v349
      %v639 = vpack.c.bf16 %v616, %v615
      %v640 = vpack.c.bf16 %v519, %v518
      %v641 = vpack.c.bf16 %v352, %v351
      %v642 = vpack.c.bf16 %v618, %v617
      %v643 = vld [vmem:[%s1] sm:$0xf]
      %v644 = vld [vmem:[%s1 + $0x4] sm:$0xf]
      %v645 = vld [vmem:[%s1 + $0x8] sm:$0xf]
      %v646 = vld [vmem:[%s1 + $0xc] sm:$0xf]
      %v647 = vld [vmem:[%s1 + $0x10] sm:$0xf]
      %v648 = vld [vmem:[%s1 + $0x14] sm:$0xf]
      %v649 = vld [vmem:[%s1 + $0x18] sm:$0xf]
      %v650 = vld [vmem:[%s1 + $0x1c] sm:$0xf]
      %v651 = vld [vmem:[%s1 + $0x20] sm:$0xf]
      %v652 = vld [vmem:[%s1 + $0x24] sm:$0xf]
      %v653 = vld [vmem:[%s1 + $0x28] sm:$0xf]
      %v654 = vld [vmem:[%s1 + $0x2c] sm:$0xf]
      %v655 = vld [vmem:[%s1 + $0x30] sm:$0xf]
      %v656 = vld [vmem:[%s1 + $0x34] sm:$0xf]
      %v657 = vld [vmem:[%s1 + $0x38] sm:$0xf]
      %v658 = vld [vmem:[%s1 + $0x3c] sm:$0xf]
      %v659 = vld [vmem:[%s1 + $0x40] sm:$0xf]
      %v660 = vld [vmem:[%s1 + $0x44] sm:$0xf]
      %v661 = vld [vmem:[%s1 + $0x48] sm:$0xf]
      %v662 = vld [vmem:[%s1 + $0x4c] sm:$0xf]
      %v663 = vld [vmem:[%s1 + $0x50] sm:$0xf]
      %v664 = vld [vmem:[%s1 + $0x54] sm:$0xf]
      %v665 = vld [vmem:[%s1 + $0x58] sm:$0xf]
      %v666 = vld [vmem:[%s1 + $0x5c] sm:$0xf]
      %v667 = vld [vmem:[%s1 + $0x60] sm:$0xf]
      %v668 = vld [vmem:[%s1 + $0x64] sm:$0xf]
      %v669 = vld [vmem:[%s1 + $0x68] sm:$0xf]
      %v670 = vld [vmem:[%s1 + $0x6c] sm:$0xf]
      %v671 = vld [vmem:[%s1 + $0x70] sm:$0xf]
      %v672 = vld [vmem:[%s1 + $0x74] sm:$0xf]
      %v673 = vld [vmem:[%s1 + $0x78] sm:$0xf]
      %v674 = vld [vmem:[%s1 + $0x7c] sm:$0xf]
      %v675 = vld [vmem:[%s1 + $0x80] sm:$0xf]
      %v676 = vld [vmem:[%s1 + $0x84] sm:$0xf]
      %v677 = vld [vmem:[%s1 + $0x88] sm:$0xf]
      %v678 = vld [vmem:[%s1 + $0x8c] sm:$0xf]
      %v679 = vld [vmem:[%s1 + $0x90] sm:$0xf]
      %v680 = vld [vmem:[%s1 + $0x94] sm:$0xf]
      %v681 = vld [vmem:[%s1 + $0x98] sm:$0xf]
      %v682 = vld [vmem:[%s1 + $0x9c] sm:$0xf]
      %v683 = vld [vmem:[%s1 + $0xa0] sm:$0xf]
      %v684 = vld [vmem:[%s1 + $0xa4] sm:$0xf]
      %v685 = vld [vmem:[%s1 + $0xa8] sm:$0xf]
      %v686 = vld [vmem:[%s1 + $0xac] sm:$0xf]
      %v687 = vld [vmem:[%s1 + $0xb0] sm:$0xf]
      %v688 = vld [vmem:[%s1 + $0xb4] sm:$0xf]
      %v689 = vld [vmem:[%s1 + $0xb8] sm:$0xf]
      %v690 = vld [vmem:[%s1 + $0xbc] sm:$0xf]
      %v691 = vld [vmem:[%s2] sm:$0x1]
      %v692 = vlaneseq
      %v693 = vshrl.u32 %v692, 7
      %v694 = vsub.s32 0, %v693
      %v695 = vrot.slane %v691, %v694
      %v744 = vunpack.c.l.b16 %v643
      %v745 = vunpack.c.l.b16 %v644
      %v746 = vunpack.c.l.b16 %v645
      %v747 = vunpack.c.l.b16 %v646
      %v748 = vunpack.c.l.b16 %v647
      %v749 = vunpack.c.l.b16 %v648
      %v750 = vunpack.c.l.b16 %v649
      %v751 = vunpack.c.l.b16 %v650
      %v752 = vunpack.c.l.b16 %v651
      %v753 = vunpack.c.l.b16 %v652
      %v754 = vunpack.c.l.b16 %v653
      %v755 = vunpack.c.l.b16 %v654
      %v756 = vunpack.c.l.b16 %v655
      %v757 = vunpack.c.l.b16 %v656
      %v758 = vunpack.c.l.b16 %v657
      %v759 = vunpack.c.l.b16 %v658
      %v760 = vunpack.c.l.b16 %v659
      %v761 = vunpack.c.l.b16 %v660
      %v762 = vunpack.c.l.b16 %v661
      %v763 = vunpack.c.l.b16 %v662
      %v764 = vunpack.c.l.b16 %v663
      %v765 = vunpack.c.l.b16 %v664
      %v766 = vunpack.c.l.b16 %v665
      %v767 = vunpack.c.l.b16 %v666
      %v768 = vunpack.c.l.b16 %v667
      %v769 = vunpack.c.l.b16 %v668
      %v770 = vunpack.c.l.b16 %v669
      %v771 = vunpack.c.l.b16 %v670
      %v772 = vunpack.c.l.b16 %v671
      %v773 = vunpack.c.l.b16 %v672
      %v774 = vunpack.c.l.b16 %v673
      %v775 = vunpack.c.l.b16 %v674
      %v776 = vunpack.c.l.b16 %v675
      %v777 = vunpack.c.l.b16 %v676
      %v778 = vunpack.c.l.b16 %v677
      %v779 = vunpack.c.l.b16 %v678
      %v780 = vunpack.c.l.b16 %v679
      %v781 = vunpack.c.l.b16 %v680
      %v782 = vunpack.c.l.b16 %v681
      %v783 = vunpack.c.l.b16 %v682
      %v784 = vunpack.c.l.b16 %v683
      %v785 = vunpack.c.l.b16 %v684
      %v786 = vunpack.c.l.b16 %v685
      %v787 = vunpack.c.l.b16 %v686
      %v788 = vunpack.c.l.b16 %v687
      %v789 = vunpack.c.l.b16 %v688
      %v790 = vunpack.c.l.b16 %v689
      %v791 = vunpack.c.l.b16 %v690
      %v792 = vpack.c.b16 %v745, %v744
      %v793 = vpack.c.b16 %v747, %v746
      %v794 = vpack.c.b16 %v749, %v748
      %v795 = vpack.c.b16 %v751, %v750
      %v796 = vpack.c.b16 %v753, %v752
      %v797 = vpack.c.b16 %v755, %v754
      %v798 = vpack.c.b16 %v757, %v756
      %v799 = vpack.c.b16 %v759, %v758
      %v800 = vpack.c.b16 %v761, %v760
      %v801 = vpack.c.b16 %v763, %v762
      %v802 = vpack.c.b16 %v765, %v764
      %v803 = vpack.c.b16 %v767, %v766
      %v804 = vpack.c.b16 %v769, %v768
      %v805 = vpack.c.b16 %v771, %v770
      %v806 = vpack.c.b16 %v773, %v772
      %v807 = vpack.c.b16 %v775, %v774
      %v808 = vpack.c.b16 %v777, %v776
      %v809 = vpack.c.b16 %v779, %v778
      %v810 = vpack.c.b16 %v781, %v780
      %v811 = vpack.c.b16 %v783, %v782
      %v812 = vpack.c.b16 %v785, %v784
      %v813 = vpack.c.b16 %v787, %v786
      %v814 = vpack.c.b16 %v789, %v788
      %v815 = vpack.c.b16 %v791, %v790
      %840 = vmatprep.subr.bf16.mxu0 0
      %841 = vmatpush1.bf16.msra.mxu0 %v792
      %842 = vmatprep.subr.bf16.mxu0 0
      %843 = vmatpush1.bf16.msra.mxu0 %v793
      %844 = vmatprep.subr.bf16.mxu0 0
      %845 = vmatpush1.bf16.msra.mxu0 %v794
      %846 = vmatprep.subr.bf16.mxu0 0
      %847 = vmatpush1.bf16.msra.mxu0 %v795
      %848 = vmatprep.subr.bf16.mxu0 0
      %849 = vmatpush1.bf16.msra.mxu0 %v796
      %850 = vmatprep.subr.bf16.mxu0 0
      %851 = vmatpush1.bf16.msra.mxu0 %v797
      %852 = vmatprep.subr.bf16.mxu0 0
      %853 = vmatpush1.bf16.msra.mxu0 %v798
      %854 = vmatprep.subr.bf16.mxu0 0
      %855 = vmatpush1.bf16.msra.mxu0 %v799
      %856 = vmatprep.subr.bf16.mxu0 0
      %857 = vmatpush1.bf16.msra.mxu0 %v800
      %858 = vmatprep.subr.bf16.mxu0 0
      %859 = vmatpush1.bf16.msra.mxu0 %v801
      %860 = vmatprep.subr.bf16.mxu0 0
      %861 = vmatpush1.bf16.msra.mxu0 %v802
      %862 = vmatprep.subr.bf16.mxu0 0
      %863 = vmatpush1.bf16.msra.mxu0 %v803
      %864 = vmatprep.subr.bf16.mxu0 0
      %865 = vmatpush1.bf16.msra.mxu0 %v804
      %866 = vmatprep.subr.bf16.mxu0 0
      %867 = vmatpush1.bf16.msra.mxu0 %v805
      %868 = vmatprep.subr.bf16.mxu0 0
      %869 = vmatpush1.bf16.msra.mxu0 %v806
      %870 = vmatprep.subr.bf16.mxu0 0
      %871 = vmatpush1.bf16.msra.mxu0 %v807
      %872 = vmatprep.mubr.bf16.mxu0 %v620
      %873 = vmatmul.mubr.bf16.gmra.mrb[0].mxu0 %v619
      %v874 = vpop.f32.mrb[0].mxu0
      %v875 = vadd.f32 %v695, %v874
      %v876 = vpop.f32.mrb[0].mxu0
      %v877 = vpop.f32.mrb[0].mxu0
      %v878 = vadd.f32 %v695, %v877
      %v879 = vpop.f32.mrb[0].mxu0
      %880 = vmatprep.mubr.bf16.mxu0 %v623
      %881 = vmatmul.mubr.bf16.gmra.mrb[0].mxu0 %v622
      %v882 = vpop.f32.mrb[0].mxu0
      %v883 = vadd.f32 %v695, %v882
      %v884 = vpop.f32.mrb[0].mxu0
      %v885 = vpop.f32.mrb[0].mxu0
      %v886 = vadd.f32 %v695, %v885
      %v887 = vpop.f32.mrb[0].mxu0
      %888 = vmatprep.mubr.bf16.mxu0 %v626
      %889 = vmatmul.mubr.bf16.gmra.mrb[0].mxu0 %v625
      %v890 = vpop.f32.mrb[0].mxu0
      %v891 = vadd.f32 %v695, %v890
      %v892 = vpop.f32.mrb[0].mxu0
      %v893 = vpop.f32.mrb[0].mxu0
      %v894 = vadd.f32 %v695, %v893
      %v895 = vpop.f32.mrb[0].mxu0
      %896 = vmatprep.mubr.bf16.mxu0 %v629
      %897 = vmatmul.mubr.bf16.gmra.mrb[0].mxu0 %v628
      %v898 = vpop.f32.mrb[0].mxu0
      %v899 = vadd.f32 %v695, %v898
      %v900 = vpop.f32.mrb[0].mxu0
      %v901 = vpop.f32.mrb[0].mxu0
      %v902 = vadd.f32 %v695, %v901
      %v903 = vpop.f32.mrb[0].mxu0
      %904 = vmatprep.mubr.bf16.mxu0 %v632
      %905 = vmatmul.mubr.bf16.gmra.mrb[0].mxu0 %v631
      %v906 = vpop.f32.mrb[0].mxu0
      %v907 = vadd.f32 %v695, %v906
      %v908 = vpop.f32.mrb[0].mxu0
      %v909 = vpop.f32.mrb[0].mxu0
      %v910 = vadd.f32 %v695, %v909
      %v911 = vpop.f32.mrb[0].mxu0
      %912 = vmatprep.mubr.bf16.mxu0 %v635
      %913 = vmatmul.mubr.bf16.gmra.mrb[0].mxu0 %v634
      %v914 = vpop.f32.mrb[0].mxu0
      %v915 = vadd.f32 %v695, %v914
      %v916 = vpop.f32.mrb[0].mxu0
      %v917 = vpop.f32.mrb[0].mxu0
      %v918 = vadd.f32 %v695, %v917
      %v919 = vpop.f32.mrb[0].mxu0
      %920 = vmatprep.mubr.bf16.mxu0 %v638
      %921 = vmatmul.mubr.bf16.gmra.mrb[0].mxu0 %v637
      %v922 = vpop.f32.mrb[0].mxu0
      %v923 = vadd.f32 %v695, %v922
      %v924 = vpop.f32.mrb[0].mxu0
      %v925 = vpop.f32.mrb[0].mxu0
      %v926 = vadd.f32 %v695, %v925
      %v927 = vpop.f32.mrb[0].mxu0
      %928 = vmatprep.mubr.bf16.mxu0 %v641
      %929 = vmatmul.mubr.bf16.gmra.mrb[0].mxu0 %v640
      %v930 = vpop.f32.mrb[0].mxu0
      %v931 = vadd.f32 %v695, %v930
      %v932 = vpop.f32.mrb[0].mxu0
      %v933 = vpop.f32.mrb[0].mxu0
      %v934 = vadd.f32 %v695, %v933
      %v935 = vpop.f32.mrb[0].mxu0
      %936 = vdwg.mxu0
      %937 = vmatprep.subr.bf16.mxu0 0
      %938 = vmatpush1.bf16.msra.mxu0 %v808
      %939 = vmatprep.subr.bf16.mxu0 0
      %940 = vmatpush1.bf16.msra.mxu0 %v809
      %941 = vmatprep.subr.bf16.mxu0 0
      %942 = vmatpush1.bf16.msra.mxu0 %v810
      %943 = vmatprep.subr.bf16.mxu0 0
      %944 = vmatpush1.bf16.msra.mxu0 %v811
      %945 = vmatprep.subr.bf16.mxu0 0
      %946 = vmatpush1.bf16.msra.mxu0 %v812
      %947 = vmatprep.subr.bf16.mxu0 0
      %948 = vmatpush1.bf16.msra.mxu0 %v813
      %949 = vmatprep.subr.bf16.mxu0 0
      %950 = vmatpush1.bf16.msra.mxu0 %v814
      %951 = vmatprep.subr.bf16.mxu0 0
      %952 = vmatpush1.bf16.msra.mxu0 %v815
      %953 = vmatprep.subr.bf16.mxu0 0
      %954 = vmatpush1.bf16.msra.mxu0 0
      %955 = vmatprep.subr.bf16.mxu0 0
      %956 = vmatpush1.bf16.msra.mxu0 0
      %957 = vmatprep.subr.bf16.mxu0 0
      %958 = vmatpush1.bf16.msra.mxu0 0
      %959 = vmatprep.subr.bf16.mxu0 0
      %960 = vmatpush1.bf16.msra.mxu0 0
      %961 = vmatprep.subr.bf16.mxu0 0
      %962 = vmatpush1.bf16.msra.mxu0 0
      %963 = vmatprep.subr.bf16.mxu0 0
      %964 = vmatpush1.bf16.msra.mxu0 0
      %965 = vmatprep.subr.bf16.mxu0 0
      %966 = vmatpush1.bf16.msra.mxu0 0
      %967 = vmatprep.subr.bf16.mxu0 0
      %968 = vmatpush1.bf16.msra.mxu0 0
      %969 = vmatprep.mubr.bf16.mxu0 0
      %970 = vmatmul.mubr.bf16.gmra.mrb[0].mxu0 %v621
      %v971 = vpop.f32.mrb[0].mxu0
      %v972 = vadd.f32 %v875, %v971
      %v973 = vpop.f32.mrb[0].mxu0
      %v974 = vpop.f32.mrb[0].mxu0
      %v975 = vadd.f32 %v878, %v974
      %v976 = vpop.f32.mrb[0].mxu0
      %977 = vmatprep.mubr.bf16.mxu0 0
      %978 = vmatmul.mubr.bf16.gmra.mrb[0].mxu0 %v624
      %v979 = vpop.f32.mrb[0].mxu0
      %v980 = vadd.f32 %v883, %v979
      %v981 = vpop.f32.mrb[0].mxu0
      %v982 = vpop.f32.mrb[0].mxu0
      %v983 = vadd.f32 %v886, %v982
      %v984 = vpop.f32.mrb[0].mxu0
      %985 = vmatprep.mubr.bf16.mxu0 0
      %986 = vmatmul.mubr.bf16.gmra.mrb[0].mxu0 %v627
      %v987 = vpop.f32.mrb[0].mxu0
      %v988 = vadd.f32 %v891, %v987
      %v989 = vpop.f32.mrb[0].mxu0
      %v990 = vpop.f32.mrb[0].mxu0
      %v991 = vadd.f32 %v894, %v990
      %v992 = vpop.f32.mrb[0].mxu0
      %993 = vmatprep.mubr.bf16.mxu0 0
      %994 = vmatmul.mubr.bf16.gmra.mrb[0].mxu0 %v630
      %v995 = vpop.f32.mrb[0].mxu0
      %v996 = vadd.f32 %v899, %v995
      %v997 = vpop.f32.mrb[0].mxu0
      %v998 = vpop.f32.mrb[0].mxu0
      %v999 = vadd.f32 %v902, %v998
      %v1000 = vpop.f32.mrb[0].mxu0
      %1001 = vmatprep.mubr.bf16.mxu0 0
      %1002 = vmatmul.mubr.bf16.gmra.mrb[0].mxu0 %v633
      %v1003 = vpop.f32.mrb[0].mxu0
      %v1004 = vadd.f32 %v907, %v1003
      %v1005 = vpop.f32.mrb[0].mxu0
      %v1006 = vpop.f32.mrb[0].mxu0
      %v1007 = vadd.f32 %v910, %v1006
      %v1008 = vpop.f32.mrb[0].mxu0
      %1009 = vmatprep.mubr.bf16.mxu0 0
      %1010 = vmatmul.mubr.bf16.gmra.mrb[0].mxu0 %v636
      %v1011 = vpop.f32.mrb[0].mxu0
      %v1012 = vadd.f32 %v915, %v1011
      %v1013 = vpop.f32.mrb[0].mxu0
      %v1014 = vpop.f32.mrb[0].mxu0
      %v1015 = vadd.f32 %v918, %v1014
      %v1016 = vpop.f32.mrb[0].mxu0
      %1017 = vmatprep.mubr.bf16.mxu0 0
      %1018 = vmatmul.mubr.bf16.gmra.mrb[0].mxu0 %v639
      %v1019 = vpop.f32.mrb[0].mxu0
      %v1020 = vadd.f32 %v923, %v1019
      %v1021 = vpop.f32.mrb[0].mxu0
      %v1022 = vpop.f32.mrb[0].mxu0
      %v1023 = vadd.f32 %v926, %v1022
      %v1024 = vpop.f32.mrb[0].mxu0
      %1025 = vmatprep.mubr.bf16.mxu0 0
      %1026 = vmatmul.mubr.bf16.gmra.mrb[0].mxu0 %v642
      %v1027 = vpop.f32.mrb[0].mxu0
      %v1028 = vadd.f32 %v931, %v1027
      %v1029 = vpop.f32.mrb[0].mxu0
      %v1030 = vpop.f32.mrb[0].mxu0
      %v1031 = vadd.f32 %v934, %v1030
      %v1032 = vpop.f32.mrb[0].mxu0
      %1033 = vdwg.mxu0
      %v1034 = vmax.f32 %v972, 0.0
      %v1035 = vmax.f32 %v975, 0.0
      %v1036 = vmax.f32 %v980, 0.0
      %v1037 = vmax.f32 %v983, 0.0
      %v1038 = vmax.f32 %v988, 0.0
      %v1039 = vmax.f32 %v991, 0.0
      %v1040 = vmax.f32 %v996, 0.0
      %v1041 = vmax.f32 %v999, 0.0
      %v1042 = vmax.f32 %v1004, 0.0
      %v1043 = vmax.f32 %v1007, 0.0
      %v1044 = vmax.f32 %v1012, 0.0
      %v1045 = vmax.f32 %v1015, 0.0
      %v1046 = vmax.f32 %v1020, 0.0
      %v1047 = vmax.f32 %v1023, 0.0
      %v1048 = vmax.f32 %v1028, 0.0
      %v1049 = vmax.f32 %v1031, 0.0
      %1050 = vst [vmem:[#allocation2] sm:$0x1] 0.0
      %1051 = vst [vmem:[#allocation2 + $0x101] sm:$0x1] 0.0
      %v1068 = vrot.slane %v1034, 7
      %v1069 = vrot.slane %v1035, 7
      %v1070 = vsel %vm371, %v1068, %v1069
      %v1071 = vrot.slane %v1036, 7
      %v1072 = vsel %vm371, %v1069, %v1071
      %v1073 = vrot.slane %v1037, 7
      %v1074 = vsel %vm371, %v1071, %v1073
      %v1075 = vrot.slane %v1038, 7
      %v1076 = vsel %vm371, %v1073, %v1075
      %v1077 = vrot.slane %v1039, 7
      %v1078 = vsel %vm371, %v1075, %v1077
      %v1079 = vrot.slane %v1040, 7
      %v1080 = vsel %vm371, %v1077, %v1079
      %v1081 = vrot.slane %v1041, 7
      %v1082 = vsel %vm371, %v1079, %v1081
      %v1083 = vrot.slane %v1042, 7
      %v1084 = vsel %vm371, %v1081, %v1083
      %v1085 = vrot.slane %v1043, 7
      %v1086 = vsel %vm371, %v1083, %v1085
      %v1087 = vrot.slane %v1044, 7
      %v1088 = vsel %vm371, %v1085, %v1087
      %v1089 = vrot.slane %v1045, 7
      %v1090 = vsel %vm371, %v1087, %v1089
      %v1091 = vrot.slane %v1046, 7
      %v1092 = vsel %vm371, %v1089, %v1091
      %v1093 = vrot.slane %v1047, 7
      %v1094 = vsel %vm371, %v1091, %v1093
      %v1095 = vrot.slane %v1048, 7
      %v1096 = vsel %vm371, %v1093, %v1095
      %v1097 = vrot.slane %v1049, 7
      %v1098 = vsel %vm371, %v1095, %v1097
      %1116 = vst [vmem:[#allocation2] sm:$0xfe] %v1068
      %1117 = vst [vmem:[#allocation2 + $0x10] sm:$0xff] %v1070
      %1118 = vst [vmem:[#allocation2 + $0x20] sm:$0xff] %v1072
      %1119 = vst [vmem:[#allocation2 + $0x30] sm:$0xff] %v1074
      %1120 = vst [vmem:[#allocation2 + $0x40] sm:$0xff] %v1076
      %1121 = vst [vmem:[#allocation2 + $0x50] sm:$0xff] %v1078
      %1122 = vst [vmem:[#allocation2 + $0x60] sm:$0xff] %v1080
      %1123 = vst [vmem:[#allocation2 + $0x70] sm:$0xff] %v1082
      %1124 = vst [vmem:[#allocation2 + $0x80] sm:$0xff] %v1084
      %1125 = vst [vmem:[#allocation2 + $0x90] sm:$0xff] %v1086
      %1126 = vst [vmem:[#allocation2 + $0xa0] sm:$0xff] %v1088
      %1127 = vst [vmem:[#allocation2 + $0xb0] sm:$0xff] %v1090
      %1128 = vst [vmem:[#allocation2 + $0xc0] sm:$0xff] %v1092
      %1129 = vst [vmem:[#allocation2 + $0xd0] sm:$0xff] %v1094
      %1130 = vst [vmem:[#allocation2 + $0xe0] sm:$0xff] %v1096
      %1131 = vst [vmem:[#allocation2 + $0xf0] sm:$0xff] %v1098
      %1132 = vst [vmem:[#allocation2 + $0x100] sm:$0x1] %v1097
      %v1133 = vld [vmem:[#allocation2] sm:$0xff]
      %v1134 = vld [vmem:[#allocation2 + $0x10] sm:$0xff]
      %v1135 = vld [vmem:[#allocation2 + $0x20] sm:$0xff]
      %v1136 = vld [vmem:[#allocation2 + $0x30] sm:$0xff]
      %v1137 = vld [vmem:[#allocation2 + $0x40] sm:$0xff]
      %v1138 = vld [vmem:[#allocation2 + $0x50] sm:$0xff]
      %v1139 = vld [vmem:[#allocation2 + $0x60] sm:$0xff]
      %v1140 = vld [vmem:[#allocation2 + $0x70] sm:$0xff]
      %v1141 = vld [vmem:[#allocation2 + $0x80] sm:$0xff]
      %v1142 = vld [vmem:[#allocation2 + $0x90] sm:$0xff]
      %v1143 = vld [vmem:[#allocation2 + $0xa0] sm:$0xff]
      %v1144 = vld [vmem:[#allocation2 + $0xb0] sm:$0xff]
      %v1145 = vld [vmem:[#allocation2 + $0xc0] sm:$0xff]
      %v1146 = vld [vmem:[#allocation2 + $0xd0] sm:$0xff]
      %v1147 = vld [vmem:[#allocation2 + $0xe0] sm:$0xff]
      %v1148 = vld [vmem:[#allocation2 + $0xf0] sm:$0xff]
      %v1149 = vld [vmem:[#allocation2] sm:$0xfc]
      %v1150 = vld [vmem:[#allocation2 + $0x100] sm:$0x3]
      %v1151 = vsel %vm488, 0.0, %v1133
      %v1152 = vsel %vm489, 0.0, %v1134
      %v1153 = vsel %vm490, 0.0, %v1135
      %v1154 = vsel %vm491, 0.0, %v1136
      %v1155 = vsel %vm492, 0.0, %v1137
      %v1156 = vsel %vm493, 0.0, %v1138
      %v1157 = vsel %vm494, 0.0, %v1139
      %v1158 = vsel %vm495, 0.0, %v1140
      %v1159 = vsel %vm496, 0.0, %v1141
      %v1160 = vsel %vm497, 0.0, %v1142
      %v1161 = vsel %vm498, 0.0, %v1143
      %v1162 = vsel %vm499, 0.0, %v1144
      %v1163 = vsel %vm500, 0.0, %v1145
      %v1164 = vsel %vm501, 0.0, %v1146
      %v1165 = vsel %vm502, 0.0, %v1147
      %v1166 = vsel %vm503, 0.0, %v1148
      %v1184 = vrot.slane %v1149, 2
      %v1185 = vrot.slane %v1134, 2
      %v1186 = vsel %vm553, %v1184, %v1185
      %v1187 = vrot.slane %v1135, 2
      %v1188 = vsel %vm553, %v1185, %v1187
      %v1189 = vrot.slane %v1136, 2
      %v1190 = vsel %vm553, %v1187, %v1189
      %v1191 = vrot.slane %v1137, 2
      %v1192 = vsel %vm553, %v1189, %v1191
      %v1193 = vrot.slane %v1138, 2
      %v1194 = vsel %vm553, %v1191, %v1193
      %v1195 = vrot.slane %v1139, 2
      %v1196 = vsel %vm553, %v1193, %v1195
      %v1197 = vrot.slane %v1140, 2
      %v1198 = vsel %vm553, %v1195, %v1197
      %v1199 = vrot.slane %v1141, 2
      %v1200 = vsel %vm553, %v1197, %v1199
      %v1201 = vrot.slane %v1142, 2
      %v1202 = vsel %vm553, %v1199, %v1201
      %v1203 = vrot.slane %v1143, 2
      %v1204 = vsel %vm553, %v1201, %v1203
      %v1205 = vrot.slane %v1144, 2
      %v1206 = vsel %vm553, %v1203, %v1205
      %v1207 = vrot.slane %v1145, 2
      %v1208 = vsel %vm553, %v1205, %v1207
      %v1209 = vrot.slane %v1146, 2
      %v1210 = vsel %vm553, %v1207, %v1209
      %v1211 = vrot.slane %v1147, 2
      %v1212 = vsel %vm553, %v1209, %v1211
      %v1213 = vrot.slane %v1148, 2
      %v1214 = vsel %vm553, %v1211, %v1213
      %v1215 = vrot.slane %v1150, 2
      %v1216 = vsel %vm553, %v1213, %v1215
      %v1233 = vsel %vm520, 0.0, %v1186
      %v1234 = vsel %vm521, 0.0, %v1188
      %v1235 = vsel %vm522, 0.0, %v1190
      %v1236 = vsel %vm523, 0.0, %v1192
      %v1237 = vsel %vm524, 0.0, %v1194
      %v1238 = vsel %vm525, 0.0, %v1196
      %v1239 = vsel %vm526, 0.0, %v1198
      %v1240 = vsel %vm527, 0.0, %v1200
      %v1241 = vsel %vm528, 0.0, %v1202
      %v1242 = vsel %vm529, 0.0, %v1204
      %v1243 = vsel %vm530, 0.0, %v1206
      %v1244 = vsel %vm531, 0.0, %v1208
      %v1245 = vsel %vm532, 0.0, %v1210
      %v1246 = vsel %vm533, 0.0, %v1212
      %v1247 = vsel %vm534, 0.0, %v1214
      %v1248 = vsel %vm535, 0.0, %v1216
      %v1249 = vpack.c.bf16 %v1152, %v1151
      %v1250 = vpack.c.bf16 %v1035, %v1034
      %v1251 = vpack.c.bf16 %v1234, %v1233
      %v1252 = vpack.c.bf16 %v1154, %v1153
      %v1253 = vpack.c.bf16 %v1037, %v1036
      %v1254 = vpack.c.bf16 %v1236, %v1235
      %v1255 = vpack.c.bf16 %v1156, %v1155
      %v1256 = vpack.c.bf16 %v1039, %v1038
      %v1257 = vpack.c.bf16 %v1238, %v1237
      %v1258 = vpack.c.bf16 %v1158, %v1157
      %v1259 = vpack.c.bf16 %v1041, %v1040
      %v1260 = vpack.c.bf16 %v1240, %v1239
      %v1261 = vpack.c.bf16 %v1160, %v1159
      %v1262 = vpack.c.bf16 %v1043, %v1042
      %v1263 = vpack.c.bf16 %v1242, %v1241
      %v1264 = vpack.c.bf16 %v1162, %v1161
      %v1265 = vpack.c.bf16 %v1045, %v1044
      %v1266 = vpack.c.bf16 %v1244, %v1243
      %v1267 = vpack.c.bf16 %v1164, %v1163
      %v1268 = vpack.c.bf16 %v1047, %v1046
      %v1269 = vpack.c.bf16 %v1246, %v1245
      %v1270 = vpack.c.bf16 %v1166, %v1165
      %v1271 = vpack.c.bf16 %v1049, %v1048
      %v1272 = vpack.c.bf16 %v1248, %v1247
      %v1273 = vld [vmem:[%s1 + $0xc0] sm:$0xf]
      %v1274 = vld [vmem:[%s1 + $0xc4] sm:$0xf]
      %v1275 = vld [vmem:[%s1 + $0xc8] sm:$0xf]
      %v1276 = vld [vmem:[%s1 + $0xcc] sm:$0xf]
      %v1277 = vld [vmem:[%s1 + $0xd0] sm:$0xf]
      %v1278 = vld [vmem:[%s1 + $0xd4] sm:$0xf]
      %v1279 = vld [vmem:[%s1 + $0xd8] sm:$0xf]
      %v1280 = vld [vmem:[%s1 + $0xdc] sm:$0xf]
      %v1281 = vld [vmem:[%s1 + $0xe0] sm:$0xf]
      %v1282 = vld [vmem:[%s1 + $0xe4] sm:$0xf]
      %v1283 = vld [vmem:[%s1 + $0xe8] sm:$0xf]
      %v1284 = vld [vmem:[%s1 + $0xec] sm:$0xf]
      %v1285 = vld [vmem:[%s1 + $0xf0] sm:$0xf]
      %v1286 = vld [vmem:[%s1 + $0xf4] sm:$0xf]
      %v1287 = vld [vmem:[%s1 + $0xf8] sm:$0xf]
      %v1288 = vld [vmem:[%s1 + $0xfc] sm:$0xf]
      %v1289 = vld [vmem:[%s1 + $0x100] sm:$0xf]
      %v1290 = vld [vmem:[%s1 + $0x104] sm:$0xf]
      %v1291 = vld [vmem:[%s1 + $0x108] sm:$0xf]
      %v1292 = vld [vmem:[%s1 + $0x10c] sm:$0xf]
      %v1293 = vld [vmem:[%s1 + $0x110] sm:$0xf]
      %v1294 = vld [vmem:[%s1 + $0x114] sm:$0xf]
      %v1295 = vld [vmem:[%s1 + $0x118] sm:$0xf]
      %v1296 = vld [vmem:[%s1 + $0x11c] sm:$0xf]
      %v1297 = vld [vmem:[%s1 + $0x120] sm:$0xf]
      %v1298 = vld [vmem:[%s1 + $0x124] sm:$0xf]
      %v1299 = vld [vmem:[%s1 + $0x128] sm:$0xf]
      %v1300 = vld [vmem:[%s1 + $0x12c] sm:$0xf]
      %v1301 = vld [vmem:[%s1 + $0x130] sm:$0xf]
      %v1302 = vld [vmem:[%s1 + $0x134] sm:$0xf]
      %v1303 = vld [vmem:[%s1 + $0x138] sm:$0xf]
      %v1304 = vld [vmem:[%s1 + $0x13c] sm:$0xf]
      %v1305 = vld [vmem:[%s1 + $0x140] sm:$0xf]
      %v1306 = vld [vmem:[%s1 + $0x144] sm:$0xf]
      %v1307 = vld [vmem:[%s1 + $0x148] sm:$0xf]
      %v1308 = vld [vmem:[%s1 + $0x14c] sm:$0xf]
      %v1309 = vld [vmem:[%s1 + $0x150] sm:$0xf]
      %v1310 = vld [vmem:[%s1 + $0x154] sm:$0xf]
      %v1311 = vld [vmem:[%s1 + $0x158] sm:$0xf]
      %v1312 = vld [vmem:[%s1 + $0x15c] sm:$0xf]
      %v1313 = vld [vmem:[%s1 + $0x160] sm:$0xf]
      %v1314 = vld [vmem:[%s1 + $0x164] sm:$0xf]
      %v1315 = vld [vmem:[%s1 + $0x168] sm:$0xf]
      %v1316 = vld [vmem:[%s1 + $0x16c] sm:$0xf]
      %v1317 = vld [vmem:[%s1 + $0x170] sm:$0xf]
      %v1318 = vld [vmem:[%s1 + $0x174] sm:$0xf]
      %v1319 = vld [vmem:[%s1 + $0x178] sm:$0xf]
      %v1320 = vld [vmem:[%s1 + $0x17c] sm:$0xf]
      %v1321 = vld [vmem:[%s2 + $0x1] sm:$0x1]
      %v1322 = vlaneseq
      %v1323 = vshrl.u32 %v1322, 7
      %v1324 = vsub.s32 0, %v1323
      %v1325 = vrot.slane %v1321, %v1324
      %v1374 = vunpack.c.l.b16 %v1273
      %v1375 = vunpack.c.l.b16 %v1274
      %v1376 = vunpack.c.l.b16 %v1275
      %v1377 = vunpack.c.l.b16 %v1276
      %v1378 = vunpack.c.l.b16 %v1277
      %v1379 = vunpack.c.l.b16 %v1278
      %v1380 = vunpack.c.l.b16 %v1279
      %v1381 = vunpack.c.l.b16 %v1280
      %v1382 = vunpack.c.l.b16 %v1281
      %v1383 = vunpack.c.l.b16 %v1282
      %v1384 = vunpack.c.l.b16 %v1283
      %v1385 = vunpack.c.l.b16 %v1284
      %v1386 = vunpack.c.l.b16 %v1285
      %v1387 = vunpack.c.l.b16 %v1286
      %v1388 = vunpack.c.l.b16 %v1287
      %v1389 = vunpack.c.l.b16 %v1288
      %v1390 = vunpack.c.l.b16 %v1289
      %v1391 = vunpack.c.l.b16 %v1290
      %v1392 = vunpack.c.l.b16 %v1291
      %v1393 = vunpack.c.l.b16 %v1292
      %v1394 = vunpack.c.l.b16 %v1293
      %v1395 = vunpack.c.l.b16 %v1294
      %v1396 = vunpack.c.l.b16 %v1295
      %v1397 = vunpack.c.l.b16 %v1296
      %v1398 = vunpack.c.l.b16 %v1297
      %v1399 = vunpack.c.l.b16 %v1298
      %v1400 = vunpack.c.l.b16 %v1299
      %v1401 = vunpack.c.l.b16 %v1300
      %v1402 = vunpack.c.l.b16 %v1301
      %v1403 = vunpack.c.l.b16 %v1302
      %v1404 = vunpack.c.l.b16 %v1303
      %v1405 = vunpack.c.l.b16 %v1304
      %v1406 = vunpack.c.l.b16 %v1305
      %v1407 = vunpack.c.l.b16 %v1306
      %v1408 = vunpack.c.l.b16 %v1307
      %v1409 = vunpack.c.l.b16 %v1308
      %v1410 = vunpack.c.l.b16 %v1309
      %v1411 = vunpack.c.l.b16 %v1310
      %v1412 = vunpack.c.l.b16 %v1311
      %v1413 = vunpack.c.l.b16 %v1312
      %v1414 = vunpack.c.l.b16 %v1313
      %v1415 = vunpack.c.l.b16 %v1314
      %v1416 = vunpack.c.l.b16 %v1315
      %v1417 = vunpack.c.l.b16 %v1316
      %v1418 = vunpack.c.l.b16 %v1317
      %v1419 = vunpack.c.l.b16 %v1318
      %v1420 = vunpack.c.l.b16 %v1319
      %v1421 = vunpack.c.l.b16 %v1320
      %v1422 = vpack.c.b16 %v1375, %v1374
      %v1423 = vpack.c.b16 %v1377, %v1376
      %v1424 = vpack.c.b16 %v1379, %v1378
      %v1425 = vpack.c.b16 %v1381, %v1380
      %v1426 = vpack.c.b16 %v1383, %v1382
      %v1427 = vpack.c.b16 %v1385, %v1384
      %v1428 = vpack.c.b16 %v1387, %v1386
      %v1429 = vpack.c.b16 %v1389, %v1388
      %v1430 = vpack.c.b16 %v1391, %v1390
      %v1431 = vpack.c.b16 %v1393, %v1392
      %v1432 = vpack.c.b16 %v1395, %v1394
      %v1433 = vpack.c.b16 %v1397, %v1396
      %v1434 = vpack.c.b16 %v1399, %v1398
      %v1435 = vpack.c.b16 %v1401, %v1400
      %v1436 = vpack.c.b16 %v1403, %v1402
      %v1437 = vpack.c.b16 %v1405, %v1404
      %v1438 = vpack.c.b16 %v1407, %v1406
      %v1439 = vpack.c.b16 %v1409, %v1408
      %v1440 = vpack.c.b16 %v1411, %v1410
      %v1441 = vpack.c.b16 %v1413, %v1412
      %v1442 = vpack.c.b16 %v1415, %v1414
      %v1443 = vpack.c.b16 %v1417, %v1416
      %v1444 = vpack.c.b16 %v1419, %v1418
      %v1445 = vpack.c.b16 %v1421, %v1420
      %1470 = vmatprep.subr.bf16.mxu0 0
      %1471 = vmatpush1.bf16.msra.mxu0 %v1422
      %1472 = vmatprep.subr.bf16.mxu0 0
      %1473 = vmatpush1.bf16.msra.mxu0 %v1423
      %1474 = vmatprep.subr.bf16.mxu0 0
      %1475 = vmatpush1.bf16.msra.mxu0 %v1424
      %1476 = vmatprep.subr.bf16.mxu0 0
      %1477 = vmatpush1.bf16.msra.mxu0 %v1425
      %1478 = vmatprep.subr.bf16.mxu0 0
      %1479 = vmatpush1.bf16.msra.mxu0 %v1426
      %1480 = vmatprep.subr.bf16.mxu0 0
      %1481 = vmatpush1.bf16.msra.mxu0 %v1427
      %1482 = vmatprep.subr.bf16.mxu0 0
      %1483 = vmatpush1.bf16.msra.mxu0 %v1428
      %1484 = vmatprep.subr.bf16.mxu0 0
      %1485 = vmatpush1.bf16.msra.mxu0 %v1429
      %1486 = vmatprep.subr.bf16.mxu0 0
      %1487 = vmatpush1.bf16.msra.mxu0 %v1430
      %1488 = vmatprep.subr.bf16.mxu0 0
      %1489 = vmatpush1.bf16.msra.mxu0 %v1431
      %1490 = vmatprep.subr.bf16.mxu0 0
      %1491 = vmatpush1.bf16.msra.mxu0 %v1432
      %1492 = vmatprep.subr.bf16.mxu0 0
      %1493 = vmatpush1.bf16.msra.mxu0 %v1433
      %1494 = vmatprep.subr.bf16.mxu0 0
      %1495 = vmatpush1.bf16.msra.mxu0 %v1434
      %1496 = vmatprep.subr.bf16.mxu0 0
      %1497 = vmatpush1.bf16.msra.mxu0 %v1435
      %1498 = vmatprep.subr.bf16.mxu0 0
      %1499 = vmatpush1.bf16.msra.mxu0 %v1436
      %1500 = vmatprep.subr.bf16.mxu0 0
      %1501 = vmatpush1.bf16.msra.mxu0 %v1437
      %1502 = vmatprep.mubr.bf16.mxu0 %v1250
      %1503 = vmatmul.mubr.bf16.gmra.mrb[0].mxu0 %v1249
      %v1504 = vpop.f32.mrb[0].mxu0
      %v1505 = vadd.f32 %v1325, %v1504
      %v1506 = vpop.f32.mrb[0].mxu0
      %v1507 = vpop.f32.mrb[0].mxu0
      %v1508 = vadd.f32 %v1325, %v1507
      %v1509 = vpop.f32.mrb[0].mxu0
      %1510 = vmatprep.mubr.bf16.mxu0 %v1253
      %1511 = vmatmul.mubr.bf16.gmra.mrb[0].mxu0 %v1252
      %v1512 = vpop.f32.mrb[0].mxu0
      %v1513 = vadd.f32 %v1325, %v1512
      %v1514 = vpop.f32.mrb[0].mxu0
      %v1515 = vpop.f32.mrb[0].mxu0
      %v1516 = vadd.f32 %v1325, %v1515
      %v1517 = vpop.f32.mrb[0].mxu0
      %1518 = vmatprep.mubr.bf16.mxu0 %v1256
      %1519 = vmatmul.mubr.bf16.gmra.mrb[0].mxu0 %v1255
      %v1520 = vpop.f32.mrb[0].mxu0
      %v1521 = vadd.f32 %v1325, %v1520
      %v1522 = vpop.f32.mrb[0].mxu0
      %v1523 = vpop.f32.mrb[0].mxu0
      %v1524 = vadd.f32 %v1325, %v1523
      %v1525 = vpop.f32.mrb[0].mxu0
      %1526 = vmatprep.mubr.bf16.mxu0 %v1259
      %1527 = vmatmul.mubr.bf16.gmra.mrb[0].mxu0 %v1258
      %v1528 = vpop.f32.mrb[0].mxu0
      %v1529 = vadd.f32 %v1325, %v1528
      %v1530 = vpop.f32.mrb[0].mxu0
      %v1531 = vpop.f32.mrb[0].mxu0
      %v1532 = vadd.f32 %v1325, %v1531
      %v1533 = vpop.f32.mrb[0].mxu0
      %1534 = vmatprep.mubr.bf16.mxu0 %v1262
      %1535 = vmatmul.mubr.bf16.gmra.mrb[0].mxu0 %v1261
      %v1536 = vpop.f32.mrb[0].mxu0
      %v1537 = vadd.f32 %v1325, %v1536
      %v1538 = vpop.f32.mrb[0].mxu0
      %v1539 = vpop.f32.mrb[0].mxu0
      %v1540 = vadd.f32 %v1325, %v1539
      %v1541 = vpop.f32.mrb[0].mxu0
      %1542 = vmatprep.mubr.bf16.mxu0 %v1265
      %1543 = vmatmul.mubr.bf16.gmra.mrb[0].mxu0 %v1264
      %v1544 = vpop.f32.mrb[0].mxu0
      %v1545 = vadd.f32 %v1325, %v1544
      %v1546 = vpop.f32.mrb[0].mxu0
      %v1547 = vpop.f32.mrb[0].mxu0
      %v1548 = vadd.f32 %v1325, %v1547
      %v1549 = vpop.f32.mrb[0].mxu0
      %1550 = vmatprep.mubr.bf16.mxu0 %v1268
      %1551 = vmatmul.mubr.bf16.gmra.mrb[0].mxu0 %v1267
      %v1552 = vpop.f32.mrb[0].mxu0
      %v1553 = vadd.f32 %v1325, %v1552
      %v1554 = vpop.f32.mrb[0].mxu0
      %v1555 = vpop.f32.mrb[0].mxu0
      %v1556 = vadd.f32 %v1325, %v1555
      %v1557 = vpop.f32.mrb[0].mxu0
      %1558 = vmatprep.mubr.bf16.mxu0 %v1271
      %1559 = vmatmul.mubr.bf16.gmra.mrb[0].mxu0 %v1270
      %v1560 = vpop.f32.mrb[0].mxu0
      %v1561 = vadd.f32 %v1325, %v1560
      %v1562 = vpop.f32.mrb[0].mxu0
      %v1563 = vpop.f32.mrb[0].mxu0
      %v1564 = vadd.f32 %v1325, %v1563
      %v1565 = vpop.f32.mrb[0].mxu0
      %1566 = vdwg.mxu0
      %1567 = vmatprep.subr.bf16.mxu0 0
      %1568 = vmatpush1.bf16.msra.mxu0 %v1438
      %1569 = vmatprep.subr.bf16.mxu0 0
      %1570 = vmatpush1.bf16.msra.mxu0 %v1439
      %1571 = vmatprep.subr.bf16.mxu0 0
      %1572 = vmatpush1.bf16.msra.mxu0 %v1440
      %1573 = vmatprep.subr.bf16.mxu0 0
      %1574 = vmatpush1.bf16.msra.mxu0 %v1441
      %1575 = vmatprep.subr.bf16.mxu0 0
      %1576 = vmatpush1.bf16.msra.mxu0 %v1442
      %1577 = vmatprep.subr.bf16.mxu0 0
      %1578 = vmatpush1.bf16.msra.mxu0 %v1443
      %1579 = vmatprep.subr.bf16.mxu0 0
      %1580 = vmatpush1.bf16.msra.mxu0 %v1444
      %1581 = vmatprep.subr.bf16.mxu0 0
      %1582 = vmatpush1.bf16.msra.mxu0 %v1445
      %1583 = vmatprep.subr.bf16.mxu0 0
      %1584 = vmatpush1.bf16.msra.mxu0 0
      %1585 = vmatprep.subr.bf16.mxu0 0
      %1586 = vmatpush1.bf16.msra.mxu0 0
      %1587 = vmatprep.subr.bf16.mxu0 0
      %1588 = vmatpush1.bf16.msra.mxu0 0
      %1589 = vmatprep.subr.bf16.mxu0 0
      %1590 = vmatpush1.bf16.msra.mxu0 0
      %1591 = vmatprep.subr.bf16.mxu0 0
      %1592 = vmatpush1.bf16.msra.mxu0 0
      %1593 = vmatprep.subr.bf16.mxu0 0
      %1594 = vmatpush1.bf16.msra.mxu0 0
      %1595 = vmatprep.subr.bf16.mxu0 0
      %1596 = vmatpush1.bf16.msra.mxu0 0
      %1597 = vmatprep.subr.bf16.mxu0 0
      %1598 = vmatpush1.bf16.msra.mxu0 0
      %1599 = vmatprep.mubr.bf16.mxu0 0
      %1600 = vmatmul.mubr.bf16.gmra.mrb[0].mxu0 %v1251
      %v1601 = vpop.f32.mrb[0].mxu0
      %v1602 = vadd.f32 %v1505, %v1601
      %v1603 = vpop.f32.mrb[0].mxu0
      %v1604 = vpop.f32.mrb[0].mxu0
      %v1605 = vadd.f32 %v1508, %v1604
      %v1606 = vpop.f32.mrb[0].mxu0
      %1607 = vmatprep.mubr.bf16.mxu0 0
      %1608 = vmatmul.mubr.bf16.gmra.mrb[0].mxu0 %v1254
      %v1609 = vpop.f32.mrb[0].mxu0
      %v1610 = vadd.f32 %v1513, %v1609
      %v1611 = vpop.f32.mrb[0].mxu0
      %v1612 = vpop.f32.mrb[0].mxu0
      %v1613 = vadd.f32 %v1516, %v1612
      %v1614 = vpop.f32.mrb[0].mxu0
      %1615 = vmatprep.mubr.bf16.mxu0 0
      %1616 = vmatmul.mubr.bf16.gmra.mrb[0].mxu0 %v1257
      %v1617 = vpop.f32.mrb[0].mxu0
      %v1618 = vadd.f32 %v1521, %v1617
      %v1619 = vpop.f32.mrb[0].mxu0
      %v1620 = vpop.f32.mrb[0].mxu0
      %v1621 = vadd.f32 %v1524, %v1620
      %v1622 = vpop.f32.mrb[0].mxu0
      %1623 = vmatprep.mubr.bf16.mxu0 0
      %1624 = vmatmul.mubr.bf16.gmra.mrb[0].mxu0 %v1260
      %v1625 = vpop.f32.mrb[0].mxu0
      %v1626 = vadd.f32 %v1529, %v1625
      %v1627 = vpop.f32.mrb[0].mxu0
      %v1628 = vpop.f32.mrb[0].mxu0
      %v1629 = vadd.f32 %v1532, %v1628
      %v1630 = vpop.f32.mrb[0].mxu0
      %1631 = vmatprep.mubr.bf16.mxu0 0
      %1632 = vmatmul.mubr.bf16.gmra.mrb[0].mxu0 %v1263
      %v1633 = vpop.f32.mrb[0].mxu0
      %v1634 = vadd.f32 %v1537, %v1633
      %v1635 = vpop.f32.mrb[0].mxu0
      %v1636 = vpop.f32.mrb[0].mxu0
      %v1637 = vadd.f32 %v1540, %v1636
      %v1638 = vpop.f32.mrb[0].mxu0
      %1639 = vmatprep.mubr.bf16.mxu0 0
      %1640 = vmatmul.mubr.bf16.gmra.mrb[0].mxu0 %v1266
      %v1641 = vpop.f32.mrb[0].mxu0
      %v1642 = vadd.f32 %v1545, %v1641
      %v1643 = vpop.f32.mrb[0].mxu0
      %v1644 = vpop.f32.mrb[0].mxu0
      %v1645 = vadd.f32 %v1548, %v1644
      %v1646 = vpop.f32.mrb[0].mxu0
      %1647 = vmatprep.mubr.bf16.mxu0 0
      %1648 = vmatmul.mubr.bf16.gmra.mrb[0].mxu0 %v1269
      %v1649 = vpop.f32.mrb[0].mxu0
      %v1650 = vadd.f32 %v1553, %v1649
      %v1651 = vpop.f32.mrb[0].mxu0
      %v1652 = vpop.f32.mrb[0].mxu0
      %v1653 = vadd.f32 %v1556, %v1652
      %v1654 = vpop.f32.mrb[0].mxu0
      %1655 = vmatprep.mubr.bf16.mxu0 0
      %1656 = vmatmul.mubr.bf16.gmra.mrb[0].mxu0 %v1272
      %v1657 = vpop.f32.mrb[0].mxu0
      %v1658 = vadd.f32 %v1561, %v1657
      %v1659 = vpop.f32.mrb[0].mxu0
      %v1660 = vpop.f32.mrb[0].mxu0
      %v1661 = vadd.f32 %v1564, %v1660
      %v1662 = vpop.f32.mrb[0].mxu0
      %1663 = vdwg.mxu0
      %v1664 = vmax.f32 %v1602, 0.0
      %v1665 = vmax.f32 %v1605, 0.0
      %v1666 = vmax.f32 %v1610, 0.0
      %v1667 = vmax.f32 %v1613, 0.0
      %v1668 = vmax.f32 %v1618, 0.0
      %v1669 = vmax.f32 %v1621, 0.0
      %v1670 = vmax.f32 %v1626, 0.0
      %v1671 = vmax.f32 %v1629, 0.0
      %v1672 = vmax.f32 %v1634, 0.0
      %v1673 = vmax.f32 %v1637, 0.0
      %v1674 = vmax.f32 %v1642, 0.0
      %v1675 = vmax.f32 %v1645, 0.0
      %v1676 = vmax.f32 %v1650, 0.0
      %v1677 = vmax.f32 %v1653, 0.0
      %v1678 = vmax.f32 %v1658, 0.0
      %v1679 = vmax.f32 %v1661, 0.0
      %v1680 = vpack.c.bf16 %v1665, %v1664
      %v1681 = vpack.c.bf16 %v1667, %v1666
      %v1682 = vpack.c.bf16 %v1669, %v1668
      %v1683 = vpack.c.bf16 %v1671, %v1670
      %v1684 = vpack.c.bf16 %v1673, %v1672
      %v1685 = vpack.c.bf16 %v1675, %v1674
      %v1686 = vpack.c.bf16 %v1677, %v1676
      %v1687 = vpack.c.bf16 %v1679, %v1678
      %v1688 = vld [vmem:[%s3] sm:$0xf]
      %v1689 = vld [vmem:[%s3 + $0x4] sm:$0xf]
      %v1690 = vld [vmem:[%s3 + $0x8] sm:$0xf]
      %v1691 = vld [vmem:[%s3 + $0xc] sm:$0xf]
      %v1692 = vld [vmem:[%s3 + $0x10] sm:$0xf]
      %v1693 = vld [vmem:[%s3 + $0x14] sm:$0xf]
      %v1694 = vld [vmem:[%s3 + $0x18] sm:$0xf]
      %v1695 = vld [vmem:[%s3 + $0x1c] sm:$0xf]
      %v1696 = vld [vmem:[%s3 + $0x20] sm:$0xf]
      %v1697 = vld [vmem:[%s3 + $0x24] sm:$0xf]
      %v1698 = vld [vmem:[%s3 + $0x28] sm:$0xf]
      %v1699 = vld [vmem:[%s3 + $0x2c] sm:$0xf]
      %v1700 = vld [vmem:[%s3 + $0x30] sm:$0xf]
      %v1701 = vld [vmem:[%s3 + $0x34] sm:$0xf]
      %v1702 = vld [vmem:[%s3 + $0x38] sm:$0xf]
      %v1703 = vld [vmem:[%s3 + $0x3c] sm:$0xf]
      %v1720 = vunpack.c.l.b16 %v1688
      %v1721 = vunpack.c.l.b16 %v1689
      %v1722 = vunpack.c.l.b16 %v1690
      %v1723 = vunpack.c.l.b16 %v1691
      %v1724 = vunpack.c.l.b16 %v1692
      %v1725 = vunpack.c.l.b16 %v1693
      %v1726 = vunpack.c.l.b16 %v1694
      %v1727 = vunpack.c.l.b16 %v1695
      %v1728 = vunpack.c.l.b16 %v1696
      %v1729 = vunpack.c.l.b16 %v1697
      %v1730 = vunpack.c.l.b16 %v1698
      %v1731 = vunpack.c.l.b16 %v1699
      %v1732 = vunpack.c.l.b16 %v1700
      %v1733 = vunpack.c.l.b16 %v1701
      %v1734 = vunpack.c.l.b16 %v1702
      %v1735 = vunpack.c.l.b16 %v1703
      %v1736 = vpack.c.b16 %v1721, %v1720
      %v1737 = vpack.c.b16 %v1723, %v1722
      %v1738 = vpack.c.b16 %v1725, %v1724
      %v1739 = vpack.c.b16 %v1727, %v1726
      %v1740 = vpack.c.b16 %v1729, %v1728
      %v1741 = vpack.c.b16 %v1731, %v1730
      %v1742 = vpack.c.b16 %v1733, %v1732
      %v1743 = vpack.c.b16 %v1735, %v1734
      %1752 = vmatprep.subr.bf16.mxu0 0
      %1753 = vmatpush1.bf16.msra.mxu0 %v1736
      %1754 = vmatprep.subr.bf16.mxu0 0
      %1755 = vmatpush1.bf16.msra.mxu0 %v1737
      %1756 = vmatprep.subr.bf16.mxu0 0
      %1757 = vmatpush1.bf16.msra.mxu0 %v1738
      %1758 = vmatprep.subr.bf16.mxu0 0
      %1759 = vmatpush1.bf16.msra.mxu0 %v1739
      %1760 = vmatprep.subr.bf16.mxu0 0
      %1761 = vmatpush1.bf16.msra.mxu0 %v1740
      %1762 = vmatprep.subr.bf16.mxu0 0
      %1763 = vmatpush1.bf16.msra.mxu0 %v1741
      %1764 = vmatprep.subr.bf16.mxu0 0
      %1765 = vmatpush1.bf16.msra.mxu0 %v1742
      %1766 = vmatprep.subr.bf16.mxu0 0
      %1767 = vmatpush1.bf16.msra.mxu0 %v1743
      %1768 = vmatprep.subr.bf16.mxu0 0
      %1769 = vmatpush1.bf16.msra.mxu0 0
      %1770 = vmatprep.subr.bf16.mxu0 0
      %1771 = vmatpush1.bf16.msra.mxu0 0
      %1772 = vmatprep.subr.bf16.mxu0 0
      %1773 = vmatpush1.bf16.msra.mxu0 0
      %1774 = vmatprep.subr.bf16.mxu0 0
      %1775 = vmatpush1.bf16.msra.mxu0 0
      %1776 = vmatprep.subr.bf16.mxu0 0
      %1777 = vmatpush1.bf16.msra.mxu0 0
      %1778 = vmatprep.subr.bf16.mxu0 0
      %1779 = vmatpush1.bf16.msra.mxu0 0
      %1780 = vmatprep.subr.bf16.mxu0 0
      %1781 = vmatpush1.bf16.msra.mxu0 0
      %1782 = vmatprep.subr.bf16.mxu0 0
      %1783 = vmatpush1.bf16.msra.mxu0 0
      %1784 = vmatprep.mubr.bf16.mxu0 0
      %1785 = vmatmul.mubr.bf16.gmra.mrb[0].mxu0 %v1680
      %v1786 = vpop.f32.mrb[0].mxu0
      %v1787 = vadd.f32 0.0, %v1786
      %v1788 = vpop.f32.mrb[0].mxu0
      %v1789 = vpop.f32.mrb[0].mxu0
      %v1790 = vadd.f32 0.0, %v1789
      %v1791 = vpop.f32.mrb[0].mxu0
      %1792 = vmatprep.mubr.bf16.mxu0 0
      %1793 = vmatmul.mubr.bf16.gmra.mrb[0].mxu0 %v1681
      %v1794 = vpop.f32.mrb[0].mxu0
      %v1795 = vadd.f32 0.0, %v1794
      %v1796 = vpop.f32.mrb[0].mxu0
      %v1797 = vpop.f32.mrb[0].mxu0
      %v1798 = vadd.f32 0.0, %v1797
      %v1799 = vpop.f32.mrb[0].mxu0
      %1800 = vmatprep.mubr.bf16.mxu0 0
      %1801 = vmatmul.mubr.bf16.gmra.mrb[0].mxu0 %v1682
      %v1802 = vpop.f32.mrb[0].mxu0
      %v1803 = vadd.f32 0.0, %v1802
      %v1804 = vpop.f32.mrb[0].mxu0
      %v1805 = vpop.f32.mrb[0].mxu0
      %v1806 = vadd.f32 0.0, %v1805
      %v1807 = vpop.f32.mrb[0].mxu0
      %1808 = vmatprep.mubr.bf16.mxu0 0
      %1809 = vmatmul.mubr.bf16.gmra.mrb[0].mxu0 %v1683
      %v1810 = vpop.f32.mrb[0].mxu0
      %v1811 = vadd.f32 0.0, %v1810
      %v1812 = vpop.f32.mrb[0].mxu0
      %v1813 = vpop.f32.mrb[0].mxu0
      %v1814 = vadd.f32 0.0, %v1813
      %v1815 = vpop.f32.mrb[0].mxu0
      %1816 = vmatprep.mubr.bf16.mxu0 0
      %1817 = vmatmul.mubr.bf16.gmra.mrb[0].mxu0 %v1684
      %v1818 = vpop.f32.mrb[0].mxu0
      %v1819 = vadd.f32 0.0, %v1818
      %v1820 = vpop.f32.mrb[0].mxu0
      %v1821 = vpop.f32.mrb[0].mxu0
      %v1822 = vadd.f32 0.0, %v1821
      %v1823 = vpop.f32.mrb[0].mxu0
      %1824 = vmatprep.mubr.bf16.mxu0 0
      %1825 = vmatmul.mubr.bf16.gmra.mrb[0].mxu0 %v1685
      %v1826 = vpop.f32.mrb[0].mxu0
      %v1827 = vadd.f32 0.0, %v1826
      %v1828 = vpop.f32.mrb[0].mxu0
      %v1829 = vpop.f32.mrb[0].mxu0
      %v1830 = vadd.f32 0.0, %v1829
      %v1831 = vpop.f32.mrb[0].mxu0
      %1832 = vmatprep.mubr.bf16.mxu0 0
      %1833 = vmatmul.mubr.bf16.gmra.mrb[0].mxu0 %v1686
      %v1834 = vpop.f32.mrb[0].mxu0
      %v1835 = vadd.f32 0.0, %v1834
      %v1836 = vpop.f32.mrb[0].mxu0
      %v1837 = vpop.f32.mrb[0].mxu0
      %v1838 = vadd.f32 0.0, %v1837
      %v1839 = vpop.f32.mrb[0].mxu0
      %1840 = vmatprep.mubr.bf16.mxu0 0
      %1841 = vmatmul.mubr.bf16.gmra.mrb[0].mxu0 %v1687
      %v1842 = vpop.f32.mrb[0].mxu0
      %v1843 = vadd.f32 0.0, %v1842
      %v1844 = vpop.f32.mrb[0].mxu0
      %v1845 = vpop.f32.mrb[0].mxu0
      %v1846 = vadd.f32 0.0, %v1845
      %v1847 = vpop.f32.mrb[0].mxu0
      %1848 = vdwg.mxu0
      %v1849 = vld [vmem:[%s4] sm:$0xf]
      %v1850 = vld [vmem:[%s4 + $0x4] sm:$0xf]
      %v1851 = vld [vmem:[%s4 + $0x8] sm:$0xf]
      %v1852 = vld [vmem:[%s4 + $0xc] sm:$0xf]
      %v1853 = vld [vmem:[%s4 + $0x10] sm:$0xf]
      %v1854 = vld [vmem:[%s4 + $0x14] sm:$0xf]
      %v1855 = vld [vmem:[%s4 + $0x18] sm:$0xf]
      %v1856 = vld [vmem:[%s4 + $0x1c] sm:$0xf]
      %v1857 = vld [vmem:[%s4 + $0x20] sm:$0xf]
      %v1858 = vld [vmem:[%s4 + $0x24] sm:$0xf]
      %v1859 = vld [vmem:[%s4 + $0x28] sm:$0xf]
      %v1860 = vld [vmem:[%s4 + $0x2c] sm:$0xf]
      %v1861 = vld [vmem:[%s4 + $0x30] sm:$0xf]
      %v1862 = vld [vmem:[%s4 + $0x34] sm:$0xf]
      %v1863 = vld [vmem:[%s4 + $0x38] sm:$0xf]
      %v1864 = vld [vmem:[%s4 + $0x3c] sm:$0xf]
      %v1881 = vunpack.c.l.b16 %v1849
      %v1882 = vunpack.c.l.b16 %v1850
      %v1883 = vunpack.c.l.b16 %v1851
      %v1884 = vunpack.c.l.b16 %v1852
      %v1885 = vunpack.c.l.b16 %v1853
      %v1886 = vunpack.c.l.b16 %v1854
      %v1887 = vunpack.c.l.b16 %v1855
      %v1888 = vunpack.c.l.b16 %v1856
      %v1889 = vunpack.c.l.b16 %v1857
      %v1890 = vunpack.c.l.b16 %v1858
      %v1891 = vunpack.c.l.b16 %v1859
      %v1892 = vunpack.c.l.b16 %v1860
      %v1893 = vunpack.c.l.b16 %v1861
      %v1894 = vunpack.c.l.b16 %v1862
      %v1895 = vunpack.c.l.b16 %v1863
      %v1896 = vunpack.c.l.b16 %v1864
      %v1897 = vpack.c.b16 %v1882, %v1881
      %v1898 = vpack.c.b16 %v1884, %v1883
      %v1899 = vpack.c.b16 %v1886, %v1885
      %v1900 = vpack.c.b16 %v1888, %v1887
      %v1901 = vpack.c.b16 %v1890, %v1889
      %v1902 = vpack.c.b16 %v1892, %v1891
      %v1903 = vpack.c.b16 %v1894, %v1893
      %v1904 = vpack.c.b16 %v1896, %v1895
      %1913 = vmatprep.subr.bf16.mxu0 0
      %1914 = vmatpush1.bf16.msra.mxu0 %v1897
      %1915 = vmatprep.subr.bf16.mxu0 0
      %1916 = vmatpush1.bf16.msra.mxu0 %v1898
      %1917 = vmatprep.subr.bf16.mxu0 0
      %1918 = vmatpush1.bf16.msra.mxu0 %v1899
      %1919 = vmatprep.subr.bf16.mxu0 0
      %1920 = vmatpush1.bf16.msra.mxu0 %v1900
      %1921 = vmatprep.subr.bf16.mxu0 0
      %1922 = vmatpush1.bf16.msra.mxu0 %v1901
      %1923 = vmatprep.subr.bf16.mxu0 0
      %1924 = vmatpush1.bf16.msra.mxu0 %v1902
      %1925 = vmatprep.subr.bf16.mxu0 0
      %1926 = vmatpush1.bf16.msra.mxu0 %v1903
      %1927 = vmatprep.subr.bf16.mxu0 0
      %1928 = vmatpush1.bf16.msra.mxu0 %v1904
      %1929 = vmatprep.subr.bf16.mxu0 0
      %1930 = vmatpush1.bf16.msra.mxu0 0
      %1931 = vmatprep.subr.bf16.mxu0 0
      %1932 = vmatpush1.bf16.msra.mxu0 0
      %1933 = vmatprep.subr.bf16.mxu0 0
      %1934 = vmatpush1.bf16.msra.mxu0 0
      %1935 = vmatprep.subr.bf16.mxu0 0
      %1936 = vmatpush1.bf16.msra.mxu0 0
      %1937 = vmatprep.subr.bf16.mxu0 0
      %1938 = vmatpush1.bf16.msra.mxu0 0
      %1939 = vmatprep.subr.bf16.mxu0 0
      %1940 = vmatpush1.bf16.msra.mxu0 0
      %1941 = vmatprep.subr.bf16.mxu0 0
      %1942 = vmatpush1.bf16.msra.mxu0 0
      %1943 = vmatprep.subr.bf16.mxu0 0
      %1944 = vmatpush1.bf16.msra.mxu0 0
      %1945 = vmatprep.mubr.bf16.mxu0 0
      %1946 = vmatmul.mubr.bf16.gmra.mrb[0].mxu0 %v1680
      %v1947 = vpop.f32.mrb[0].mxu0
      %v1948 = vadd.f32 0.0, %v1947
      %v1949 = vpop.f32.mrb[0].mxu0
      %v1950 = vpop.f32.mrb[0].mxu0
      %v1951 = vadd.f32 0.0, %v1950
      %v1952 = vpop.f32.mrb[0].mxu0
      %1953 = vmatprep.mubr.bf16.mxu0 0
      %1954 = vmatmul.mubr.bf16.gmra.mrb[0].mxu0 %v1681
      %v1955 = vpop.f32.mrb[0].mxu0
      %v1956 = vadd.f32 0.0, %v1955
      %v1957 = vpop.f32.mrb[0].mxu0
      %v1958 = vpop.f32.mrb[0].mxu0
      %v1959 = vadd.f32 0.0, %v1958
      %v1960 = vpop.f32.mrb[0].mxu0
      %1961 = vmatprep.mubr.bf16.mxu0 0
      %1962 = vmatmul.mubr.bf16.gmra.mrb[0].mxu0 %v1682
      %v1963 = vpop.f32.mrb[0].mxu0
      %v1964 = vadd.f32 0.0, %v1963
      %v1965 = vpop.f32.mrb[0].mxu0
      %v1966 = vpop.f32.mrb[0].mxu0
      %v1967 = vadd.f32 0.0, %v1966
      %v1968 = vpop.f32.mrb[0].mxu0
      %1969 = vmatprep.mubr.bf16.mxu0 0
      %1970 = vmatmul.mubr.bf16.gmra.mrb[0].mxu0 %v1683
      %v1971 = vpop.f32.mrb[0].mxu0
      %v1972 = vadd.f32 0.0, %v1971
      %v1973 = vpop.f32.mrb[0].mxu0
      %v1974 = vpop.f32.mrb[0].mxu0
      %v1975 = vadd.f32 0.0, %v1974
      %v1976 = vpop.f32.mrb[0].mxu0
      %1977 = vmatprep.mubr.bf16.mxu0 0
      %1978 = vmatmul.mubr.bf16.gmra.mrb[0].mxu0 %v1684
      %v1979 = vpop.f32.mrb[0].mxu0
      %v1980 = vadd.f32 0.0, %v1979
      %v1981 = vpop.f32.mrb[0].mxu0
      %v1982 = vpop.f32.mrb[0].mxu0
      %v1983 = vadd.f32 0.0, %v1982
      %v1984 = vpop.f32.mrb[0].mxu0
      %1985 = vmatprep.mubr.bf16.mxu0 0
      %1986 = vmatmul.mubr.bf16.gmra.mrb[0].mxu0 %v1685
      %v1987 = vpop.f32.mrb[0].mxu0
      %v1988 = vadd.f32 0.0, %v1987
      %v1989 = vpop.f32.mrb[0].mxu0
      %v1990 = vpop.f32.mrb[0].mxu0
      %v1991 = vadd.f32 0.0, %v1990
      %v1992 = vpop.f32.mrb[0].mxu0
      %1993 = vmatprep.mubr.bf16.mxu0 0
      %1994 = vmatmul.mubr.bf16.gmra.mrb[0].mxu0 %v1686
      %v1995 = vpop.f32.mrb[0].mxu0
      %v1996 = vadd.f32 0.0, %v1995
      %v1997 = vpop.f32.mrb[0].mxu0
      %v1998 = vpop.f32.mrb[0].mxu0
      %v1999 = vadd.f32 0.0, %v1998
      %v2000 = vpop.f32.mrb[0].mxu0
      %2001 = vmatprep.mubr.bf16.mxu0 0
      %2002 = vmatmul.mubr.bf16.gmra.mrb[0].mxu0 %v1687
      %v2003 = vpop.f32.mrb[0].mxu0
      %v2004 = vadd.f32 0.0, %v2003
      %v2005 = vpop.f32.mrb[0].mxu0
      %v2006 = vpop.f32.mrb[0].mxu0
      %v2007 = vadd.f32 0.0, %v2006
      %v2008 = vpop.f32.mrb[0].mxu0
      %2009 = vdwg.mxu0
      %v2010 = vmax.f32 %v1787, %v1948
      %v2011 = vmax.f32 %v1790, %v1951
      %v2012 = vmax.f32 %v1795, %v1956
      %v2013 = vmax.f32 %v1798, %v1959
      %v2014 = vmax.f32 %v1803, %v1964
      %v2015 = vmax.f32 %v1806, %v1967
      %v2016 = vmax.f32 %v1811, %v1972
      %v2017 = vmax.f32 %v1814, %v1975
      %v2018 = vmax.f32 %v1819, %v1980
      %v2019 = vmax.f32 %v1822, %v1983
      %v2020 = vmax.f32 %v1827, %v1988
      %v2021 = vmax.f32 %v1830, %v1991
      %v2022 = vmax.f32 %v1835, %v1996
      %v2023 = vmax.f32 %v1838, %v1999
      %v2024 = vmax.f32 %v1843, %v2004
      %v2025 = vmax.f32 %v1846, %v2007
      %v2026 = vpack.c.bf16 %v2011, %v2010
      %v2027 = vpack.c.bf16 %v2013, %v2012
      %v2028 = vpack.c.bf16 %v2015, %v2014
      %v2029 = vpack.c.bf16 %v2017, %v2016
      %v2030 = vpack.c.bf16 %v2019, %v2018
      %v2031 = vpack.c.bf16 %v2021, %v2020
      %v2032 = vpack.c.bf16 %v2023, %v2022
      %v2033 = vpack.c.bf16 %v2025, %v2024
      %v2034 = vld [vmem:[%s5] sm:$0xf]
      %v2035 = vld [vmem:[%s5 + $0x4] sm:$0xf]
      %v2036 = vld [vmem:[%s5 + $0x8] sm:$0xf]
      %v2037 = vld [vmem:[%s5 + $0xc] sm:$0xf]
      %v2038 = vld [vmem:[%s5 + $0x10] sm:$0xf]
      %v2039 = vld [vmem:[%s5 + $0x14] sm:$0xf]
      %v2040 = vld [vmem:[%s5 + $0x18] sm:$0xf]
      %v2041 = vld [vmem:[%s5 + $0x1c] sm:$0xf]
      %v2042 = vld [vmem:[%s6] sm:$0xf]
      %v2043 = vld [vmem:[%s6 + $0x4] sm:$0xf]
      %v2044 = vld [vmem:[%s6 + $0x8] sm:$0xf]
      %v2045 = vld [vmem:[%s6 + $0xc] sm:$0xf]
      %v2046 = vld [vmem:[%s6 + $0x10] sm:$0xf]
      %v2047 = vld [vmem:[%s6 + $0x14] sm:$0xf]
      %v2048 = vld [vmem:[%s6 + $0x18] sm:$0xf]
      %v2049 = vld [vmem:[%s6 + $0x1c] sm:$0xf]
      %v2058 = vunpack.c.l.b16 %v2034
      %v2059 = vunpack.c.l.b16 %v2035
      %v2060 = vunpack.c.l.b16 %v2036
      %v2061 = vunpack.c.l.b16 %v2037
      %v2062 = vunpack.c.l.b16 %v2038
      %v2063 = vunpack.c.l.b16 %v2039
      %v2064 = vunpack.c.l.b16 %v2040
      %v2065 = vunpack.c.l.b16 %v2041
      %v2066 = vpack.c.b16 %v2059, %v2058
      %v2067 = vpack.c.b16 %v2061, %v2060
      %v2068 = vpack.c.b16 %v2063, %v2062
      %v2069 = vpack.c.b16 %v2065, %v2064
      %2074 = vmatprep.subr.bf16.mxu0 0
      %2075 = vmatpush1.bf16.msra.mxu0 %v2026
      %2076 = vmatprep.subr.bf16.mxu0 0
      %2077 = vmatpush1.bf16.msra.mxu0 %v2027
      %2078 = vmatprep.subr.bf16.mxu0 0
      %2079 = vmatpush1.bf16.msra.mxu0 %v2028
      %2080 = vmatprep.subr.bf16.mxu0 0
      %2081 = vmatpush1.bf16.msra.mxu0 %v2029
      %2082 = vmatprep.subr.bf16.mxu0 0
      %2083 = vmatpush1.bf16.msra.mxu0 %v2030
      %2084 = vmatprep.subr.bf16.mxu0 0
      %2085 = vmatpush1.bf16.msra.mxu0 %v2031
      %2086 = vmatprep.subr.bf16.mxu0 0
      %2087 = vmatpush1.bf16.msra.mxu0 %v2032
      %2088 = vmatprep.subr.bf16.mxu0 0
      %2089 = vmatpush1.bf16.msra.mxu0 %v2033
      %2090 = vmatprep.subr.bf16.mxu0 0
      %2091 = vmatpush1.bf16.msra.mxu0 0
      %2092 = vmatprep.subr.bf16.mxu0 0
      %2093 = vmatpush1.bf16.msra.mxu0 0
      %2094 = vmatprep.subr.bf16.mxu0 0
      %2095 = vmatpush1.bf16.msra.mxu0 0
      %2096 = vmatprep.subr.bf16.mxu0 0
      %2097 = vmatpush1.bf16.msra.mxu0 0
      %2098 = vmatprep.subr.bf16.mxu0 0
      %2099 = vmatpush1.bf16.msra.mxu0 0
      %2100 = vmatprep.subr.bf16.mxu0 0
      %2101 = vmatpush1.bf16.msra.mxu0 0
      %2102 = vmatprep.subr.bf16.mxu0 0
      %2103 = vmatpush1.bf16.msra.mxu0 0
      %2104 = vmatprep.subr.bf16.mxu0 0
      %2105 = vmatpush1.bf16.msra.mxu0 0
      %2106 = vmatprep.mubr.bf16.mxu0 0
      %2107 = vmatmul.mubr.bf16.gmra.mrb[0].mxu0 %v2066
      %v2108 = vpop.f32.mrb[0].mxu0
      %v2109 = vadd.f32 0.0, %v2108
      %v2110 = vpop.f32.mrb[0].mxu0
      %v2111 = vpop.f32.mrb[0].mxu0
      %v2112 = vadd.f32 0.0, %v2111
      %v2113 = vpop.f32.mrb[0].mxu0
      %2114 = vmatprep.mubr.bf16.mxu0 0
      %2115 = vmatmul.mubr.bf16.gmra.mrb[0].mxu0 %v2067
      %v2116 = vpop.f32.mrb[0].mxu0
      %v2117 = vadd.f32 0.0, %v2116
      %v2118 = vpop.f32.mrb[0].mxu0
      %v2119 = vpop.f32.mrb[0].mxu0
      %v2120 = vadd.f32 0.0, %v2119
      %v2121 = vpop.f32.mrb[0].mxu0
      %2122 = vmatprep.mubr.bf16.mxu0 0
      %2123 = vmatmul.mubr.bf16.gmra.mrb[0].mxu0 %v2068
      %v2124 = vpop.f32.mrb[0].mxu0
      %v2125 = vadd.f32 0.0, %v2124
      %v2126 = vpop.f32.mrb[0].mxu0
      %v2127 = vpop.f32.mrb[0].mxu0
      %v2128 = vadd.f32 0.0, %v2127
      %v2129 = vpop.f32.mrb[0].mxu0
      %2130 = vmatprep.mubr.bf16.mxu0 0
      %2131 = vmatmul.mubr.bf16.gmra.mrb[0].mxu0 %v2069
      %v2132 = vpop.f32.mrb[0].mxu0
      %v2133 = vadd.f32 0.0, %v2132
      %v2134 = vpop.f32.mrb[0].mxu0
      %v2135 = vpop.f32.mrb[0].mxu0
      %v2136 = vadd.f32 0.0, %v2135
      %v2137 = vpop.f32.mrb[0].mxu0
      %2138 = vdwg.mxu0
      %v2147 = vunpack.c.l.b16 %v2042
      %v2148 = vunpack.c.l.b16 %v2043
      %v2149 = vunpack.c.l.b16 %v2044
      %v2150 = vunpack.c.l.b16 %v2045
      %v2151 = vunpack.c.l.b16 %v2046
      %v2152 = vunpack.c.l.b16 %v2047
      %v2153 = vunpack.c.l.b16 %v2048
      %v2154 = vunpack.c.l.b16 %v2049
      %v2155 = vpack.c.b16 %v2148, %v2147
      %v2156 = vpack.c.b16 %v2150, %v2149
      %v2157 = vpack.c.b16 %v2152, %v2151
      %v2158 = vpack.c.b16 %v2154, %v2153
      %2163 = vmatprep.subr.bf16.mxu0 0
      %2164 = vmatpush1.bf16.msra.mxu0 %v2026
      %2165 = vmatprep.subr.bf16.mxu0 0
      %2166 = vmatpush1.bf16.msra.mxu0 %v2027
      %2167 = vmatprep.subr.bf16.mxu0 0
      %2168 = vmatpush1.bf16.msra.mxu0 %v2028
      %2169 = vmatprep.subr.bf16.mxu0 0
      %2170 = vmatpush1.bf16.msra.mxu0 %v2029
      %2171 = vmatprep.subr.bf16.mxu0 0
      %2172 = vmatpush1.bf16.msra.mxu0 %v2030
      %2173 = vmatprep.subr.bf16.mxu0 0
      %2174 = vmatpush1.bf16.msra.mxu0 %v2031
      %2175 = vmatprep.subr.bf16.mxu0 0
      %2176 = vmatpush1.bf16.msra.mxu0 %v2032
      %2177 = vmatprep.subr.bf16.mxu0 0
      %2178 = vmatpush1.bf16.msra.mxu0 %v2033
      %2179 = vmatprep.subr.bf16.mxu0 0
      %2180 = vmatpush1.bf16.msra.mxu0 0
      %2181 = vmatprep.subr.bf16.mxu0 0
      %2182 = vmatpush1.bf16.msra.mxu0 0
      %2183 = vmatprep.subr.bf16.mxu0 0
      %2184 = vmatpush1.bf16.msra.mxu0 0
      %2185 = vmatprep.subr.bf16.mxu0 0
      %2186 = vmatpush1.bf16.msra.mxu0 0
      %2187 = vmatprep.subr.bf16.mxu0 0
      %2188 = vmatpush1.bf16.msra.mxu0 0
      %2189 = vmatprep.subr.bf16.mxu0 0
      %2190 = vmatpush1.bf16.msra.mxu0 0
      %2191 = vmatprep.subr.bf16.mxu0 0
      %2192 = vmatpush1.bf16.msra.mxu0 0
      %2193 = vmatprep.subr.bf16.mxu0 0
      %2194 = vmatpush1.bf16.msra.mxu0 0
      %2195 = vmatprep.mubr.bf16.mxu0 0
      %2196 = vmatmul.mubr.bf16.gmra.mrb[0].mxu0 %v2155
      %v2197 = vpop.f32.mrb[0].mxu0
      %v2198 = vadd.f32 0.0, %v2197
      %v2199 = vpop.f32.mrb[0].mxu0
      %v2200 = vpop.f32.mrb[0].mxu0
      %v2201 = vadd.f32 0.0, %v2200
      %v2202 = vpop.f32.mrb[0].mxu0
      %2203 = vmatprep.mubr.bf16.mxu0 0
      %2204 = vmatmul.mubr.bf16.gmra.mrb[0].mxu0 %v2156
      %v2205 = vpop.f32.mrb[0].mxu0
      %v2206 = vadd.f32 0.0, %v2205
      %v2207 = vpop.f32.mrb[0].mxu0
      %v2208 = vpop.f32.mrb[0].mxu0
      %v2209 = vadd.f32 0.0, %v2208
      %v2210 = vpop.f32.mrb[0].mxu0
      %2211 = vmatprep.mubr.bf16.mxu0 0
      %2212 = vmatmul.mubr.bf16.gmra.mrb[0].mxu0 %v2157
      %v2213 = vpop.f32.mrb[0].mxu0
      %v2214 = vadd.f32 0.0, %v2213
      %v2215 = vpop.f32.mrb[0].mxu0
      %v2216 = vpop.f32.mrb[0].mxu0
      %v2217 = vadd.f32 0.0, %v2216
      %v2218 = vpop.f32.mrb[0].mxu0
      %2219 = vmatprep.mubr.bf16.mxu0 0
      %2220 = vmatmul.mubr.bf16.gmra.mrb[0].mxu0 %v2158
      %v2221 = vpop.f32.mrb[0].mxu0
      %v2222 = vadd.f32 0.0, %v2221
      %v2223 = vpop.f32.mrb[0].mxu0
      %v2224 = vpop.f32.mrb[0].mxu0
      %v2225 = vadd.f32 0.0, %v2224
      %v2226 = vpop.f32.mrb[0].mxu0
      %2227 = vdwg.mxu0
      %v2228 = vmax.f32 %v2109, %v2198
      %v2229 = vmax.f32 %v2112, %v2201
      %v2230 = vmax.f32 %v2117, %v2206
      %v2231 = vmax.f32 %v2120, %v2209
      %v2232 = vmax.f32 %v2125, %v2214
      %v2233 = vmax.f32 %v2128, %v2217
      %v2234 = vmax.f32 %v2133, %v2222
      %v2235 = vmax.f32 %v2136, %v2225
      %vm2236 = vcmask 516096
      %2237 = vst.msk [vmem:[#allocation2] sm:$0x1] %vm2236, 0.0
      %2238 = vst.msk [vmem:[#allocation2 + $0x81] sm:$0x1] %vm2236, 0.0
      %v2247 = vrot.slane %v2228, 7
      %v2248 = vrot.slane %v2229, 7
      %v2249 = vsel %vm371, %v2247, %v2248
      %v2250 = vrot.slane %v2230, 7
      %v2251 = vsel %vm371, %v2248, %v2250
      %v2252 = vrot.slane %v2231, 7
      %v2253 = vsel %vm371, %v2250, %v2252
      %v2254 = vrot.slane %v2232, 7
      %v2255 = vsel %vm371, %v2252, %v2254
      %v2256 = vrot.slane %v2233, 7
      %v2257 = vsel %vm371, %v2254, %v2256
      %v2258 = vrot.slane %v2234, 7
      %v2259 = vsel %vm371, %v2256, %v2258
      %v2260 = vrot.slane %v2235, 7
      %v2261 = vsel %vm371, %v2258, %v2260
      %vm2271 = vcmask 523265
      %2272 = vst.msk [vmem:[#allocation2] sm:$0xfe] %vm2271, %v2247
      %vm2273 = vcmask 523264
      %2274 = vst.msk [vmem:[#allocation2 + $0x10] sm:$0xff] %vm2273, %v2249
      %2275 = vst.msk [vmem:[#allocation2 + $0x20] sm:$0xff] %vm2273, %v2251
      %2276 = vst.msk [vmem:[#allocation2 + $0x30] sm:$0xff] %vm2273, %v2253
      %2277 = vst.msk [vmem:[#allocation2 + $0x40] sm:$0xff] %vm2273, %v2255
      %2278 = vst.msk [vmem:[#allocation2 + $0x50] sm:$0xff] %vm2273, %v2257
      %2279 = vst.msk [vmem:[#allocation2 + $0x60] sm:$0xff] %vm2273, %v2259
      %2280 = vst.msk [vmem:[#allocation2 + $0x70] sm:$0xff] %vm2273, %v2261
      %2281 = vst.msk [vmem:[#allocation2 + $0x80] sm:$0x1] %vm2236, %v2260
      %v2282 = vld [vmem:[#allocation2] sm:$0xff]
      %v2283 = vld [vmem:[#allocation2 + $0x10] sm:$0xff]
      %v2284 = vld [vmem:[#allocation2 + $0x20] sm:$0xff]
      %v2285 = vld [vmem:[#allocation2 + $0x30] sm:$0xff]
      %v2286 = vld [vmem:[#allocation2 + $0x40] sm:$0xff]
      %v2287 = vld [vmem:[#allocation2 + $0x50] sm:$0xff]
      %v2288 = vld [vmem:[#allocation2 + $0x60] sm:$0xff]
      %v2289 = vld [vmem:[#allocation2 + $0x70] sm:$0xff]
      %v2290 = vld [vmem:[#allocation2] sm:$0xfc]
      %v2291 = vld [vmem:[#allocation2 + $0x80] sm:$0x3]
      %v2292 = vand.u32 %v456, 7
      %v2293 = vand.u32 %v457, 7
      %v2294 = vand.u32 %v458, 7
      %v2295 = vand.u32 %v459, 7
      %v2296 = vand.u32 %v460, 7
      %v2297 = vand.u32 %v461, 7
      %v2298 = vand.u32 %v462, 7
      %v2299 = vand.u32 %v463, 7
      %vm2300 = vcmp.eq.s32.totalorder %v2292, 0
      %vm2301 = vcmp.eq.s32.totalorder %v2293, 0
      %vm2302 = vcmp.eq.s32.totalorder %v2294, 0
      %vm2303 = vcmp.eq.s32.totalorder %v2295, 0
      %vm2304 = vcmp.eq.s32.totalorder %v2296, 0
      %vm2305 = vcmp.eq.s32.totalorder %v2297, 0
      %vm2306 = vcmp.eq.s32.totalorder %v2298, 0
      %vm2307 = vcmp.eq.s32.totalorder %v2299, 0
      %v2308 = vsel %vm2300, 0.0, %v2282
      %v2309 = vsel %vm2301, 0.0, %v2283
      %v2310 = vsel %vm2302, 0.0, %v2284
      %v2311 = vsel %vm2303, 0.0, %v2285
      %v2312 = vsel %vm2304, 0.0, %v2286
      %v2313 = vsel %vm2305, 0.0, %v2287
      %v2314 = vsel %vm2306, 0.0, %v2288
      %v2315 = vsel %vm2307, 0.0, %v2289
      %vm2316 = vcmp.eq.s32.totalorder %v2292, 7
      %vm2317 = vcmp.eq.s32.totalorder %v2293, 7
      %vm2318 = vcmp.eq.s32.totalorder %v2294, 7
      %vm2319 = vcmp.eq.s32.totalorder %v2295, 7
      %vm2320 = vcmp.eq.s32.totalorder %v2296, 7
      %vm2321 = vcmp.eq.s32.totalorder %v2297, 7
      %vm2322 = vcmp.eq.s32.totalorder %v2298, 7
      %vm2323 = vcmp.eq.s32.totalorder %v2299, 7
      %v2333 = vrot.slane %v2290, 2
      %v2334 = vrot.slane %v2283, 2
      %v2335 = vsel %vm553, %v2333, %v2334
      %v2336 = vrot.slane %v2284, 2
      %v2337 = vsel %vm553, %v2334, %v2336
      %v2338 = vrot.slane %v2285, 2
      %v2339 = vsel %vm553, %v2336, %v2338
      %v2340 = vrot.slane %v2286, 2
      %v2341 = vsel %vm553, %v2338, %v2340
      %v2342 = vrot.slane %v2287, 2
      %v2343 = vsel %vm553, %v2340, %v2342
      %v2344 = vrot.slane %v2288, 2
      %v2345 = vsel %vm553, %v2342, %v2344
      %v2346 = vrot.slane %v2289, 2
      %v2347 = vsel %vm553, %v2344, %v2346
      %v2348 = vrot.slane %v2291, 2
      %v2349 = vsel %vm553, %v2346, %v2348
      %v2358 = vsel %vm2316, 0.0, %v2335
      %v2359 = vsel %vm2317, 0.0, %v2337
      %v2360 = vsel %vm2318, 0.0, %v2339
      %v2361 = vsel %vm2319, 0.0, %v2341
      %v2362 = vsel %vm2320, 0.0, %v2343
      %v2363 = vsel %vm2321, 0.0, %v2345
      %v2364 = vsel %vm2322, 0.0, %v2347
      %v2365 = vsel %vm2323, 0.0, %v2349
      %2366 = vrot.lane.b32.xlu0 %v2228, 64
      %v2367 = vpop.permute.xlu0 %2366
      %2368 = vrot.lane.b32.xlu0 %v2229, 64
      %v2369 = vpop.permute.xlu0 %2368
      %2370 = vrot.lane.b32.xlu0 %v2230, 64
      %v2371 = vpop.permute.xlu0 %2370
      %2372 = vrot.lane.b32.xlu0 %v2231, 64
      %v2373 = vpop.permute.xlu0 %2372
      %2374 = vrot.lane.b32.xlu0 %v2232, 64
      %v2375 = vpop.permute.xlu0 %2374
      %2376 = vrot.lane.b32.xlu0 %v2233, 64
      %v2377 = vpop.permute.xlu0 %2376
      %2378 = vrot.lane.b32.xlu0 %v2234, 64
      %v2379 = vpop.permute.xlu0 %2378
      %2380 = vrot.lane.b32.xlu0 %v2235, 64
      %v2381 = vpop.permute.xlu0 %2380
      %v2390 = vsel %vm2273, %v2308, %v2367
      %v2391 = vsel %vm2273, %v2309, %v2369
      %v2392 = vsel %vm2273, %v2310, %v2371
      %v2393 = vsel %vm2273, %v2311, %v2373
      %v2394 = vsel %vm2273, %v2312, %v2375
      %v2395 = vsel %vm2273, %v2313, %v2377
      %v2396 = vsel %vm2273, %v2314, %v2379
      %v2397 = vsel %vm2273, %v2315, %v2381
      %v2398 = vpack.c.bf16 %v2391, %v2390
      %v2399 = vpack.c.bf16 %v2359, %v2358
      %v2400 = vpack.c.bf16 %v2393, %v2392
      %v2401 = vpack.c.bf16 %v2361, %v2360
      %v2402 = vpack.c.bf16 %v2395, %v2394
      %v2403 = vpack.c.bf16 %v2363, %v2362
      %v2404 = vpack.c.bf16 %v2397, %v2396
      %v2405 = vpack.c.bf16 %v2365, %v2364
      %v2406 = vld [vmem:[%s1 + $0x180] sm:$0xf]
      %v2407 = vld [vmem:[%s1 + $0x184] sm:$0xf]
      %v2408 = vld [vmem:[%s1 + $0x188] sm:$0xf]
      %v2409 = vld [vmem:[%s1 + $0x18c] sm:$0xf]
      %v2410 = vld [vmem:[%s1 + $0x190] sm:$0xf]
      %v2411 = vld [vmem:[%s1 + $0x194] sm:$0xf]
      %v2412 = vld [vmem:[%s1 + $0x198] sm:$0xf]
      %v2413 = vld [vmem:[%s1 + $0x19c] sm:$0xf]
      %v2414 = vld [vmem:[%s1 + $0x1a0] sm:$0xf]
      %v2415 = vld [vmem:[%s1 + $0x1a4] sm:$0xf]
      %v2416 = vld [vmem:[%s1 + $0x1a8] sm:$0xf]
      %v2417 = vld [vmem:[%s1 + $0x1ac] sm:$0xf]
      %v2418 = vld [vmem:[%s1 + $0x1b0] sm:$0xf]
      %v2419 = vld [vmem:[%s1 + $0x1b4] sm:$0xf]
      %v2420 = vld [vmem:[%s1 + $0x1b8] sm:$0xf]
      %v2421 = vld [vmem:[%s1 + $0x1bc] sm:$0xf]
      %v2422 = vld [vmem:[%s1 + $0x1c0] sm:$0xf]
      %v2423 = vld [vmem:[%s1 + $0x1c4] sm:$0xf]
      %v2424 = vld [vmem:[%s1 + $0x1c8] sm:$0xf]
      %v2425 = vld [vmem:[%s1 + $0x1cc] sm:$0xf]
      %v2426 = vld [vmem:[%s1 + $0x1d0] sm:$0xf]
      %v2427 = vld [vmem:[%s1 + $0x1d4] sm:$0xf]
      %v2428 = vld [vmem:[%s1 + $0x1d8] sm:$0xf]
      %v2429 = vld [vmem:[%s1 + $0x1dc] sm:$0xf]
      %v2430 = vld [vmem:[%s2 + $0x2] sm:$0x1]
      %v2431 = vlaneseq
      %v2432 = vshrl.u32 %v2431, 7
      %v2433 = vsub.s32 0, %v2432
      %v2434 = vrot.slane %v2430, %v2433
      %v2459 = vunpack.c.l.b16 %v2406
      %v2460 = vunpack.c.l.b16 %v2407
      %v2461 = vunpack.c.l.b16 %v2408
      %v2462 = vunpack.c.l.b16 %v2409
      %v2463 = vunpack.c.l.b16 %v2410
      %v2464 = vunpack.c.l.b16 %v2411
      %v2465 = vunpack.c.l.b16 %v2412
      %v2466 = vunpack.c.l.b16 %v2413
      %v2467 = vunpack.c.l.b16 %v2414
      %v2468 = vunpack.c.l.b16 %v2415
      %v2469 = vunpack.c.l.b16 %v2416
      %v2470 = vunpack.c.l.b16 %v2417
      %v2471 = vunpack.c.l.b16 %v2418
      %v2472 = vunpack.c.l.b16 %v2419
      %v2473 = vunpack.c.l.b16 %v2420
      %v2474 = vunpack.c.l.b16 %v2421
      %v2475 = vunpack.c.l.b16 %v2422
      %v2476 = vunpack.c.l.b16 %v2423
      %v2477 = vunpack.c.l.b16 %v2424
      %v2478 = vunpack.c.l.b16 %v2425
      %v2479 = vunpack.c.l.b16 %v2426
      %v2480 = vunpack.c.l.b16 %v2427
      %v2481 = vunpack.c.l.b16 %v2428
      %v2482 = vunpack.c.l.b16 %v2429
      %v2483 = vpack.c.b16 %v2460, %v2459
      %v2484 = vpack.c.b16 %v2462, %v2461
      %v2485 = vpack.c.b16 %v2464, %v2463
      %v2486 = vpack.c.b16 %v2466, %v2465
      %v2487 = vpack.c.b16 %v2468, %v2467
      %v2488 = vpack.c.b16 %v2470, %v2469
      %v2489 = vpack.c.b16 %v2472, %v2471
      %v2490 = vpack.c.b16 %v2474, %v2473
      %v2491 = vpack.c.b16 %v2476, %v2475
      %v2492 = vpack.c.b16 %v2478, %v2477
      %v2493 = vpack.c.b16 %v2480, %v2479
      %v2494 = vpack.c.b16 %v2482, %v2481
      %v2508 = vsel %vm2273, %v2399, 0
      %v2511 = vsel %vm2273, %v2401, 0
      %v2514 = vsel %vm2273, %v2403, 0
      %v2517 = vsel %vm2273, %v2405, 0
      %2519 = vmatprep.subr.bf16.mxu0 0
      %2520 = vmatpush1.bf16.msra.mxu0 %v2483
      %2521 = vmatprep.subr.bf16.mxu0 0
      %2522 = vmatpush1.bf16.msra.mxu0 %v2484
      %2523 = vmatprep.subr.bf16.mxu0 0
      %2524 = vmatpush1.bf16.msra.mxu0 %v2485
      %2525 = vmatprep.subr.bf16.mxu0 0
      %2526 = vmatpush1.bf16.msra.mxu0 %v2486
      %2527 = vmatprep.subr.bf16.mxu0 0
      %2528 = vmatpush1.bf16.msra.mxu0 %v2487
      %2529 = vmatprep.subr.bf16.mxu0 0
      %2530 = vmatpush1.bf16.msra.mxu0 %v2488
      %2531 = vmatprep.subr.bf16.mxu0 0
      %2532 = vmatpush1.bf16.msra.mxu0 %v2489
      %2533 = vmatprep.subr.bf16.mxu0 0
      %2534 = vmatpush1.bf16.msra.mxu0 %v2490
      %2535 = vmatprep.subr.bf16.mxu0 0
      %2536 = vmatpush1.bf16.msra.mxu0 %v2491
      %2537 = vmatprep.subr.bf16.mxu0 0
      %2538 = vmatpush1.bf16.msra.mxu0 %v2492
      %2539 = vmatprep.subr.bf16.mxu0 0
      %2540 = vmatpush1.bf16.msra.mxu0 %v2493
      %2541 = vmatprep.subr.bf16.mxu0 0
      %2542 = vmatpush1.bf16.msra.mxu0 %v2494
      %2543 = vmatprep.subr.bf16.mxu0 0
      %2544 = vmatpush1.bf16.msra.mxu0 0
      %2545 = vmatprep.subr.bf16.mxu0 0
      %2546 = vmatpush1.bf16.msra.mxu0 0
      %2547 = vmatprep.subr.bf16.mxu0 0
      %2548 = vmatpush1.bf16.msra.mxu0 0
      %2549 = vmatprep.subr.bf16.mxu0 0
      %2550 = vmatpush1.bf16.msra.mxu0 0
      %2551 = vmatprep.mubr.bf16.mxu0 %v2508
      %2552 = vmatmul.mubr.bf16.gmra.mrb[0].mxu0 %v2398
      %v2553 = vpop.f32.mrb[0].mxu0
      %v2554 = vadd.f32 %v2434, %v2553
      %v2555 = vpop.f32.mrb[0].mxu0
      %v2556 = vpop.f32.mrb[0].mxu0
      %v2557 = vadd.f32 %v2434, %v2556
      %v2558 = vpop.f32.mrb[0].mxu0
      %2559 = vmatprep.mubr.bf16.mxu0 %v2511
      %2560 = vmatmul.mubr.bf16.gmra.mrb[0].mxu0 %v2400
      %v2561 = vpop.f32.mrb[0].mxu0
      %v2562 = vadd.f32 %v2434, %v2561
      %v2563 = vpop.f32.mrb[0].mxu0
      %v2564 = vpop.f32.mrb[0].mxu0
      %v2565 = vadd.f32 %v2434, %v2564
      %v2566 = vpop.f32.mrb[0].mxu0
      %2567 = vmatprep.mubr.bf16.mxu0 %v2514
      %2568 = vmatmul.mubr.bf16.gmra.mrb[0].mxu0 %v2402
      %v2569 = vpop.f32.mrb[0].mxu0
      %v2570 = vadd.f32 %v2434, %v2569
      %v2571 = vpop.f32.mrb[0].mxu0
      %v2572 = vpop.f32.mrb[0].mxu0
      %v2573 = vadd.f32 %v2434, %v2572
      %v2574 = vpop.f32.mrb[0].mxu0
      %2575 = vmatprep.mubr.bf16.mxu0 %v2517
      %2576 = vmatmul.mubr.bf16.gmra.mrb[0].mxu0 %v2404
      %v2577 = vpop.f32.mrb[0].mxu0
      %v2578 = vadd.f32 %v2434, %v2577
      %v2579 = vpop.f32.mrb[0].mxu0
      %v2580 = vpop.f32.mrb[0].mxu0
      %v2581 = vadd.f32 %v2434, %v2580
      %v2582 = vpop.f32.mrb[0].mxu0
      %2583 = vdwg.mxu0
      %v2584 = vmax.f32 %v2554, 0.0
      %v2585 = vmax.f32 %v2557, 0.0
      %v2586 = vmax.f32 %v2562, 0.0
      %v2587 = vmax.f32 %v2565, 0.0
      %v2588 = vmax.f32 %v2570, 0.0
      %v2589 = vmax.f32 %v2573, 0.0
      %v2590 = vmax.f32 %v2578, 0.0
      %v2591 = vmax.f32 %v2581, 0.0
      %2592 = vst [vmem:[#allocation2] sm:$0x1] 0.0
      %2593 = vst [vmem:[#allocation2 + $0x81] sm:$0x1] 0.0
      %v2602 = vrot.slane %v2584, 7
      %v2603 = vrot.slane %v2585, 7
      %v2604 = vsel %vm371, %v2602, %v2603
      %v2605 = vrot.slane %v2586, 7
      %v2606 = vsel %vm371, %v2603, %v2605
      %v2607 = vrot.slane %v2587, 7
      %v2608 = vsel %vm371, %v2605, %v2607
      %v2609 = vrot.slane %v2588, 7
      %v2610 = vsel %vm371, %v2607, %v2609
      %v2611 = vrot.slane %v2589, 7
      %v2612 = vsel %vm371, %v2609, %v2611
      %v2613 = vrot.slane %v2590, 7
      %v2614 = vsel %vm371, %v2611, %v2613
      %v2615 = vrot.slane %v2591, 7
      %v2616 = vsel %vm371, %v2613, %v2615
      %2626 = vst [vmem:[#allocation2] sm:$0xfe] %v2602
      %2627 = vst [vmem:[#allocation2 + $0x10] sm:$0xff] %v2604
      %2628 = vst [vmem:[#allocation2 + $0x20] sm:$0xff] %v2606
      %2629 = vst [vmem:[#allocation2 + $0x30] sm:$0xff] %v2608
      %2630 = vst [vmem:[#allocation2 + $0x40] sm:$0xff] %v2610
      %2631 = vst [vmem:[#allocation2 + $0x50] sm:$0xff] %v2612
      %2632 = vst [vmem:[#allocation2 + $0x60] sm:$0xff] %v2614
      %2633 = vst [vmem:[#allocation2 + $0x70] sm:$0xff] %v2616
      %2634 = vst [vmem:[#allocation2 + $0x80] sm:$0x1] %v2615
      %v2635 = vld [vmem:[#allocation2] sm:$0xff]
      %v2636 = vld [vmem:[#allocation2 + $0x10] sm:$0xff]
      %v2637 = vld [vmem:[#allocation2 + $0x20] sm:$0xff]
      %v2638 = vld [vmem:[#allocation2 + $0x30] sm:$0xff]
      %v2639 = vld [vmem:[#allocation2 + $0x40] sm:$0xff]
      %v2640 = vld [vmem:[#allocation2 + $0x50] sm:$0xff]
      %v2641 = vld [vmem:[#allocation2 + $0x60] sm:$0xff]
      %v2642 = vld [vmem:[#allocation2 + $0x70] sm:$0xff]
      %v2643 = vld [vmem:[#allocation2] sm:$0xfc]
      %v2644 = vld [vmem:[#allocation2 + $0x80] sm:$0x3]
      %v2645 = vsel %vm2300, 0.0, %v2635
      %v2646 = vsel %vm2301, 0.0, %v2636
      %v2647 = vsel %vm2302, 0.0, %v2637
      %v2648 = vsel %vm2303, 0.0, %v2638
      %v2649 = vsel %vm2304, 0.0, %v2639
      %v2650 = vsel %vm2305, 0.0, %v2640
      %v2651 = vsel %vm2306, 0.0, %v2641
      %v2652 = vsel %vm2307, 0.0, %v2642
      %v2662 = vrot.slane %v2643, 2
      %v2663 = vrot.slane %v2636, 2
      %v2664 = vsel %vm553, %v2662, %v2663
      %v2665 = vrot.slane %v2637, 2
      %v2666 = vsel %vm553, %v2663, %v2665
      %v2667 = vrot.slane %v2638, 2
      %v2668 = vsel %vm553, %v2665, %v2667
      %v2669 = vrot.slane %v2639, 2
      %v2670 = vsel %vm553, %v2667, %v2669
      %v2671 = vrot.slane %v2640, 2
      %v2672 = vsel %vm553, %v2669, %v2671
      %v2673 = vrot.slane %v2641, 2
      %v2674 = vsel %vm553, %v2671, %v2673
      %v2675 = vrot.slane %v2642, 2
      %v2676 = vsel %vm553, %v2673, %v2675
      %v2677 = vrot.slane %v2644, 2
      %v2678 = vsel %vm553, %v2675, %v2677
      %v2687 = vsel %vm2316, 0.0, %v2664
      %v2688 = vsel %vm2317, 0.0, %v2666
      %v2689 = vsel %vm2318, 0.0, %v2668
      %v2690 = vsel %vm2319, 0.0, %v2670
      %v2691 = vsel %vm2320, 0.0, %v2672
      %v2692 = vsel %vm2321, 0.0, %v2674
      %v2693 = vsel %vm2322, 0.0, %v2676
      %v2694 = vsel %vm2323, 0.0, %v2678
      %v2695 = vpack.c.bf16 %v2646, %v2645
      %v2696 = vpack.c.bf16 %v2585, %v2584
      %v2697 = vpack.c.bf16 %v2688, %v2687
      %v2698 = vpack.c.bf16 %v2648, %v2647
      %v2699 = vpack.c.bf16 %v2587, %v2586
      %v2700 = vpack.c.bf16 %v2690, %v2689
      %v2701 = vpack.c.bf16 %v2650, %v2649
      %v2702 = vpack.c.bf16 %v2589, %v2588
      %v2703 = vpack.c.bf16 %v2692, %v2691
      %v2704 = vpack.c.bf16 %v2652, %v2651
      %v2705 = vpack.c.bf16 %v2591, %v2590
      %v2706 = vpack.c.bf16 %v2694, %v2693
      %v2707 = vld [vmem:[%s1 + $0x1e0] sm:$0xf]
      %v2708 = vld [vmem:[%s1 + $0x1e4] sm:$0xf]
      %v2709 = vld [vmem:[%s1 + $0x1e8] sm:$0xf]
      %v2710 = vld [vmem:[%s1 + $0x1ec] sm:$0xf]
      %v2711 = vld [vmem:[%s1 + $0x1f0] sm:$0xf]
      %v2712 = vld [vmem:[%s1 + $0x1f4] sm:$0xf]
      %v2713 = vld [vmem:[%s1 + $0x1f8] sm:$0xf]
      %v2714 = vld [vmem:[%s1 + $0x1fc] sm:$0xf]
      %v2715 = vld [vmem:[%s1 + $0x200] sm:$0xf]
      %v2716 = vld [vmem:[%s1 + $0x204] sm:$0xf]
      %v2717 = vld [vmem:[%s1 + $0x208] sm:$0xf]
      %v2718 = vld [vmem:[%s1 + $0x20c] sm:$0xf]
      %v2719 = vld [vmem:[%s1 + $0x210] sm:$0xf]
      %v2720 = vld [vmem:[%s1 + $0x214] sm:$0xf]
      %v2721 = vld [vmem:[%s1 + $0x218] sm:$0xf]
      %v2722 = vld [vmem:[%s1 + $0x21c] sm:$0xf]
      %v2723 = vld [vmem:[%s1 + $0x220] sm:$0xf]
      %v2724 = vld [vmem:[%s1 + $0x224] sm:$0xf]
      %v2725 = vld [vmem:[%s1 + $0x228] sm:$0xf]
      %v2726 = vld [vmem:[%s1 + $0x22c] sm:$0xf]
      %v2727 = vld [vmem:[%s1 + $0x230] sm:$0xf]
      %v2728 = vld [vmem:[%s1 + $0x234] sm:$0xf]
      %v2729 = vld [vmem:[%s1 + $0x238] sm:$0xf]
      %v2730 = vld [vmem:[%s1 + $0x23c] sm:$0xf]
      %v2731 = vld [vmem:[%s1 + $0x240] sm:$0xf]
      %v2732 = vld [vmem:[%s1 + $0x244] sm:$0xf]
      %v2733 = vld [vmem:[%s1 + $0x248] sm:$0xf]
      %v2734 = vld [vmem:[%s1 + $0x24c] sm:$0xf]
      %v2735 = vld [vmem:[%s1 + $0x250] sm:$0xf]
      %v2736 = vld [vmem:[%s1 + $0x254] sm:$0xf]
      %v2737 = vld [vmem:[%s1 + $0x258] sm:$0xf]
      %v2738 = vld [vmem:[%s1 + $0x25c] sm:$0xf]
      %v2739 = vld [vmem:[%s1 + $0x260] sm:$0xf]
      %v2740 = vld [vmem:[%s1 + $0x264] sm:$0xf]
      %v2741 = vld [vmem:[%s1 + $0x268] sm:$0xf]
      %v2742 = vld [vmem:[%s1 + $0x26c] sm:$0xf]
      %v2743 = vld [vmem:[%s1 + $0x270] sm:$0xf]
      %v2744 = vld [vmem:[%s1 + $0x274] sm:$0xf]
      %v2745 = vld [vmem:[%s1 + $0x278] sm:$0xf]
      %v2746 = vld [vmem:[%s1 + $0x27c] sm:$0xf]
      %v2747 = vld [vmem:[%s1 + $0x280] sm:$0xf]
      %v2748 = vld [vmem:[%s1 + $0x284] sm:$0xf]
      %v2749 = vld [vmem:[%s1 + $0x288] sm:$0xf]
      %v2750 = vld [vmem:[%s1 + $0x28c] sm:$0xf]
      %v2751 = vld [vmem:[%s1 + $0x290] sm:$0xf]
      %v2752 = vld [vmem:[%s1 + $0x294] sm:$0xf]
      %v2753 = vld [vmem:[%s1 + $0x298] sm:$0xf]
      %v2754 = vld [vmem:[%s1 + $0x29c] sm:$0xf]
      %v2755 = vld [vmem:[%s2 + $0x3] sm:$0x1]
      %v2756 = vlaneseq
      %v2757 = vshrl.u32 %v2756, 7
      %v2758 = vsub.s32 0, %v2757
      %v2759 = vrot.slane %v2755, %v2758
      %v2808 = vunpack.c.l.b16 %v2707
      %v2809 = vunpack.c.l.b16 %v2708
      %v2810 = vunpack.c.l.b16 %v2709
      %v2811 = vunpack.c.l.b16 %v2710
      %v2812 = vunpack.c.l.b16 %v2711
      %v2813 = vunpack.c.l.b16 %v2712
      %v2814 = vunpack.c.l.b16 %v2713
      %v2815 = vunpack.c.l.b16 %v2714
      %v2816 = vunpack.c.l.b16 %v2715
      %v2817 = vunpack.c.l.b16 %v2716
      %v2818 = vunpack.c.l.b16 %v2717
      %v2819 = vunpack.c.l.b16 %v2718
      %v2820 = vunpack.c.l.b16 %v2719
      %v2821 = vunpack.c.l.b16 %v2720
      %v2822 = vunpack.c.l.b16 %v2721
      %v2823 = vunpack.c.l.b16 %v2722
      %v2824 = vunpack.c.l.b16 %v2723
      %v2825 = vunpack.c.l.b16 %v2724
      %v2826 = vunpack.c.l.b16 %v2725
      %v2827 = vunpack.c.l.b16 %v2726
      %v2828 = vunpack.c.l.b16 %v2727
      %v2829 = vunpack.c.l.b16 %v2728
      %v2830 = vunpack.c.l.b16 %v2729
      %v2831 = vunpack.c.l.b16 %v2730
      %v2832 = vunpack.c.l.b16 %v2731
      %v2833 = vunpack.c.l.b16 %v2732
      %v2834 = vunpack.c.l.b16 %v2733
      %v2835 = vunpack.c.l.b16 %v2734
      %v2836 = vunpack.c.l.b16 %v2735
      %v2837 = vunpack.c.l.b16 %v2736
      %v2838 = vunpack.c.l.b16 %v2737
      %v2839 = vunpack.c.l.b16 %v2738
      %v2840 = vunpack.c.l.b16 %v2739
      %v2841 = vunpack.c.l.b16 %v2740
      %v2842 = vunpack.c.l.b16 %v2741
      %v2843 = vunpack.c.l.b16 %v2742
      %v2844 = vunpack.c.l.b16 %v2743
      %v2845 = vunpack.c.l.b16 %v2744
      %v2846 = vunpack.c.l.b16 %v2745
      %v2847 = vunpack.c.l.b16 %v2746
      %v2848 = vunpack.c.l.b16 %v2747
      %v2849 = vunpack.c.l.b16 %v2748
      %v2850 = vunpack.c.l.b16 %v2749
      %v2851 = vunpack.c.l.b16 %v2750
      %v2852 = vunpack.c.l.b16 %v2751
      %v2853 = vunpack.c.l.b16 %v2752
      %v2854 = vunpack.c.l.b16 %v2753
      %v2855 = vunpack.c.l.b16 %v2754
      %v2856 = vpack.c.b16 %v2809, %v2808
      %v2857 = vpack.c.b16 %v2811, %v2810
      %v2858 = vpack.c.b16 %v2813, %v2812
      %v2859 = vpack.c.b16 %v2815, %v2814
      %v2860 = vpack.c.b16 %v2817, %v2816
      %v2861 = vpack.c.b16 %v2819, %v2818
      %v2862 = vpack.c.b16 %v2821, %v2820
      %v2863 = vpack.c.b16 %v2823, %v2822
      %v2864 = vpack.c.b16 %v2825, %v2824
      %v2865 = vpack.c.b16 %v2827, %v2826
      %v2866 = vpack.c.b16 %v2829, %v2828
      %v2867 = vpack.c.b16 %v2831, %v2830
      %v2868 = vpack.c.b16 %v2833, %v2832
      %v2869 = vpack.c.b16 %v2835, %v2834
      %v2870 = vpack.c.b16 %v2837, %v2836
      %v2871 = vpack.c.b16 %v2839, %v2838
      %v2872 = vpack.c.b16 %v2841, %v2840
      %v2873 = vpack.c.b16 %v2843, %v2842
      %v2874 = vpack.c.b16 %v2845, %v2844
      %v2875 = vpack.c.b16 %v2847, %v2846
      %v2876 = vpack.c.b16 %v2849, %v2848
      %v2877 = vpack.c.b16 %v2851, %v2850
      %v2878 = vpack.c.b16 %v2853, %v2852
      %v2879 = vpack.c.b16 %v2855, %v2854
      %2904 = vmatprep.subr.bf16.mxu0 0
      %2905 = vmatpush1.bf16.msra.mxu0 %v2856
      %2906 = vmatprep.subr.bf16.mxu0 0
      %2907 = vmatpush1.bf16.msra.mxu0 %v2857
      %2908 = vmatprep.subr.bf16.mxu0 0
      %2909 = vmatpush1.bf16.msra.mxu0 %v2858
      %2910 = vmatprep.subr.bf16.mxu0 0
      %2911 = vmatpush1.bf16.msra.mxu0 %v2859
      %2912 = vmatprep.subr.bf16.mxu0 0
      %2913 = vmatpush1.bf16.msra.mxu0 %v2860
      %2914 = vmatprep.subr.bf16.mxu0 0
      %2915 = vmatpush1.bf16.msra.mxu0 %v2861
      %2916 = vmatprep.subr.bf16.mxu0 0
      %2917 = vmatpush1.bf16.msra.mxu0 %v2862
      %2918 = vmatprep.subr.bf16.mxu0 0
      %2919 = vmatpush1.bf16.msra.mxu0 %v2863
      %2920 = vmatprep.subr.bf16.mxu0 0
      %2921 = vmatpush1.bf16.msra.mxu0 %v2864
      %2922 = vmatprep.subr.bf16.mxu0 0
      %2923 = vmatpush1.bf16.msra.mxu0 %v2865
      %2924 = vmatprep.subr.bf16.mxu0 0
      %2925 = vmatpush1.bf16.msra.mxu0 %v2866
      %2926 = vmatprep.subr.bf16.mxu0 0
      %2927 = vmatpush1.bf16.msra.mxu0 %v2867
      %2928 = vmatprep.subr.bf16.mxu0 0
      %2929 = vmatpush1.bf16.msra.mxu0 %v2868
      %2930 = vmatprep.subr.bf16.mxu0 0
      %2931 = vmatpush1.bf16.msra.mxu0 %v2869
      %2932 = vmatprep.subr.bf16.mxu0 0
      %2933 = vmatpush1.bf16.msra.mxu0 %v2870
      %2934 = vmatprep.subr.bf16.mxu0 0
      %2935 = vmatpush1.bf16.msra.mxu0 %v2871
      %2936 = vmatprep.mubr.bf16.mxu0 %v2696
      %2937 = vmatmul.mubr.bf16.gmra.mrb[0].mxu0 %v2695
      %v2938 = vpop.f32.mrb[0].mxu0
      %v2939 = vadd.f32 %v2759, %v2938
      %v2940 = vpop.f32.mrb[0].mxu0
      %v2941 = vpop.f32.mrb[0].mxu0
      %v2942 = vadd.f32 %v2759, %v2941
      %v2943 = vpop.f32.mrb[0].mxu0
      %2944 = vmatprep.mubr.bf16.mxu0 %v2699
      %2945 = vmatmul.mubr.bf16.gmra.mrb[0].mxu0 %v2698
      %v2946 = vpop.f32.mrb[0].mxu0
      %v2947 = vadd.f32 %v2759, %v2946
      %v2948 = vpop.f32.mrb[0].mxu0
      %v2949 = vpop.f32.mrb[0].mxu0
      %v2950 = vadd.f32 %v2759, %v2949
      %v2951 = vpop.f32.mrb[0].mxu0
      %2952 = vmatprep.mubr.bf16.mxu0 %v2702
      %2953 = vmatmul.mubr.bf16.gmra.mrb[0].mxu0 %v2701
      %v2954 = vpop.f32.mrb[0].mxu0
      %v2955 = vadd.f32 %v2759, %v2954
      %v2956 = vpop.f32.mrb[0].mxu0
      %v2957 = vpop.f32.mrb[0].mxu0
      %v2958 = vadd.f32 %v2759, %v2957
      %v2959 = vpop.f32.mrb[0].mxu0
      %2960 = vmatprep.mubr.bf16.mxu0 %v2705
      %2961 = vmatmul.mubr.bf16.gmra.mrb[0].mxu0 %v2704
      %v2962 = vpop.f32.mrb[0].mxu0
      %v2963 = vadd.f32 %v2759, %v2962
      %v2964 = vpop.f32.mrb[0].mxu0
      %v2965 = vpop.f32.mrb[0].mxu0
      %v2966 = vadd.f32 %v2759, %v2965
      %v2967 = vpop.f32.mrb[0].mxu0
      %2968 = vdwg.mxu0
      %2969 = vmatprep.subr.bf16.mxu0 0
      %2970 = vmatpush1.bf16.msra.mxu0 %v2872
      %2971 = vmatprep.subr.bf16.mxu0 0
      %2972 = vmatpush1.bf16.msra.mxu0 %v2873
      %2973 = vmatprep.subr.bf16.mxu0 0
      %2974 = vmatpush1.bf16.msra.mxu0 %v2874
      %2975 = vmatprep.subr.bf16.mxu0 0
      %2976 = vmatpush1.bf16.msra.mxu0 %v2875
      %2977 = vmatprep.subr.bf16.mxu0 0
      %2978 = vmatpush1.bf16.msra.mxu0 %v2876
      %2979 = vmatprep.subr.bf16.mxu0 0
      %2980 = vmatpush1.bf16.msra.mxu0 %v2877
      %2981 = vmatprep.subr.bf16.mxu0 0
      %2982 = vmatpush1.bf16.msra.mxu0 %v2878
      %2983 = vmatprep.subr.bf16.mxu0 0
      %2984 = vmatpush1.bf16.msra.mxu0 %v2879
      %2985 = vmatprep.subr.bf16.mxu0 0
      %2986 = vmatpush1.bf16.msra.mxu0 0
      %2987 = vmatprep.subr.bf16.mxu0 0
      %2988 = vmatpush1.bf16.msra.mxu0 0
      %2989 = vmatprep.subr.bf16.mxu0 0
      %2990 = vmatpush1.bf16.msra.mxu0 0
      %2991 = vmatprep.subr.bf16.mxu0 0
      %2992 = vmatpush1.bf16.msra.mxu0 0
      %2993 = vmatprep.subr.bf16.mxu0 0
      %2994 = vmatpush1.bf16.msra.mxu0 0
      %2995 = vmatprep.subr.bf16.mxu0 0
      %2996 = vmatpush1.bf16.msra.mxu0 0
      %2997 = vmatprep.subr.bf16.mxu0 0
      %2998 = vmatpush1.bf16.msra.mxu0 0
      %2999 = vmatprep.subr.bf16.mxu0 0
      %3000 = vmatpush1.bf16.msra.mxu0 0
      %3001 = vmatprep.mubr.bf16.mxu0 0
      %3002 = vmatmul.mubr.bf16.gmra.mrb[0].mxu0 %v2697
      %v3003 = vpop.f32.mrb[0].mxu0
      %v3004 = vadd.f32 %v2939, %v3003
      %v3005 = vpop.f32.mrb[0].mxu0
      %v3006 = vpop.f32.mrb[0].mxu0
      %v3007 = vadd.f32 %v2942, %v3006
      %v3008 = vpop.f32.mrb[0].mxu0
      %3009 = vmatprep.mubr.bf16.mxu0 0
      %3010 = vmatmul.mubr.bf16.gmra.mrb[0].mxu0 %v2700
      %v3011 = vpop.f32.mrb[0].mxu0
      %v3012 = vadd.f32 %v2947, %v3011
      %v3013 = vpop.f32.mrb[0].mxu0
      %v3014 = vpop.f32.mrb[0].mxu0
      %v3015 = vadd.f32 %v2950, %v3014
      %v3016 = vpop.f32.mrb[0].mxu0
      %3017 = vmatprep.mubr.bf16.mxu0 0
      %3018 = vmatmul.mubr.bf16.gmra.mrb[0].mxu0 %v2703
      %v3019 = vpop.f32.mrb[0].mxu0
      %v3020 = vadd.f32 %v2955, %v3019
      %v3021 = vpop.f32.mrb[0].mxu0
      %v3022 = vpop.f32.mrb[0].mxu0
      %v3023 = vadd.f32 %v2958, %v3022
      %v3024 = vpop.f32.mrb[0].mxu0
      %3025 = vmatprep.mubr.bf16.mxu0 0
      %3026 = vmatmul.mubr.bf16.gmra.mrb[0].mxu0 %v2706
      %v3027 = vpop.f32.mrb[0].mxu0
      %v3028 = vadd.f32 %v2963, %v3027
      %v3029 = vpop.f32.mrb[0].mxu0
      %v3030 = vpop.f32.mrb[0].mxu0
      %v3031 = vadd.f32 %v2966, %v3030
      %v3032 = vpop.f32.mrb[0].mxu0
      %3033 = vdwg.mxu0
      %v3034 = vmax.f32 %v3004, 0.0
      %v3035 = vmax.f32 %v3007, 0.0
      %v3036 = vmax.f32 %v3012, 0.0
      %v3037 = vmax.f32 %v3015, 0.0
      %v3038 = vmax.f32 %v3020, 0.0
      %v3039 = vmax.f32 %v3023, 0.0
      %v3040 = vmax.f32 %v3028, 0.0
      %v3041 = vmax.f32 %v3031, 0.0
      %v3042 = vpack.c.bf16 %v3035, %v3034
      %v3043 = vpack.c.bf16 %v3037, %v3036
      %v3044 = vpack.c.bf16 %v3039, %v3038
      %v3045 = vpack.c.bf16 %v3041, %v3040
      %s3046 = scalar_lea.vmem %s3, 64
      %v3047 = vld [vmem:[%s3046] sm:$0xf]
      %v3048 = vld [vmem:[%s3046 + $0x4] sm:$0xf]
      %v3049 = vld [vmem:[%s3046 + $0x8] sm:$0xf]
      %v3050 = vld [vmem:[%s3046 + $0xc] sm:$0xf]
      %v3051 = vld [vmem:[%s3046 + $0x10] sm:$0xf]
      %v3052 = vld [vmem:[%s3046 + $0x14] sm:$0xf]
      %v3053 = vld [vmem:[%s3046 + $0x18] sm:$0xf]
      %v3054 = vld [vmem:[%s3046 + $0x1c] sm:$0xf]
      %v3055 = vld [vmem:[%s3046 + $0x20] sm:$0xf]
      %v3056 = vld [vmem:[%s3046 + $0x24] sm:$0xf]
      %v3057 = vld [vmem:[%s3046 + $0x28] sm:$0xf]
      %v3058 = vld [vmem:[%s3046 + $0x2c] sm:$0xf]
      %v3059 = vld [vmem:[%s3046 + $0x30] sm:$0xf]
      %v3060 = vld [vmem:[%s3046 + $0x34] sm:$0xf]
      %v3061 = vld [vmem:[%s3046 + $0x38] sm:$0xf]
      %v3062 = vld [vmem:[%s3046 + $0x3c] sm:$0xf]
      %v3079 = vunpack.c.l.b16 %v3047
      %v3080 = vunpack.c.l.b16 %v3048
      %v3081 = vunpack.c.l.b16 %v3049
      %v3082 = vunpack.c.l.b16 %v3050
      %v3083 = vunpack.c.l.b16 %v3051
      %v3084 = vunpack.c.l.b16 %v3052
      %v3085 = vunpack.c.l.b16 %v3053
      %v3086 = vunpack.c.l.b16 %v3054
      %v3087 = vunpack.c.l.b16 %v3055
      %v3088 = vunpack.c.l.b16 %v3056
      %v3089 = vunpack.c.l.b16 %v3057
      %v3090 = vunpack.c.l.b16 %v3058
      %v3091 = vunpack.c.l.b16 %v3059
      %v3092 = vunpack.c.l.b16 %v3060
      %v3093 = vunpack.c.l.b16 %v3061
      %v3094 = vunpack.c.l.b16 %v3062
      %v3095 = vpack.c.b16 %v3080, %v3079
      %v3096 = vpack.c.b16 %v3082, %v3081
      %v3097 = vpack.c.b16 %v3084, %v3083
      %v3098 = vpack.c.b16 %v3086, %v3085
      %v3099 = vpack.c.b16 %v3088, %v3087
      %v3100 = vpack.c.b16 %v3090, %v3089
      %v3101 = vpack.c.b16 %v3092, %v3091
      %v3102 = vpack.c.b16 %v3094, %v3093
      %3111 = vmatprep.subr.bf16.mxu0 0
      %3112 = vmatpush1.bf16.msra.mxu0 %v3095
      %3113 = vmatprep.subr.bf16.mxu0 0
      %3114 = vmatpush1.bf16.msra.mxu0 %v3096
      %3115 = vmatprep.subr.bf16.mxu0 0
      %3116 = vmatpush1.bf16.msra.mxu0 %v3097
      %3117 = vmatprep.subr.bf16.mxu0 0
      %3118 = vmatpush1.bf16.msra.mxu0 %v3098
      %3119 = vmatprep.subr.bf16.mxu0 0
      %3120 = vmatpush1.bf16.msra.mxu0 %v3099
      %3121 = vmatprep.subr.bf16.mxu0 0
      %3122 = vmatpush1.bf16.msra.mxu0 %v3100
      %3123 = vmatprep.subr.bf16.mxu0 0
      %3124 = vmatpush1.bf16.msra.mxu0 %v3101
      %3125 = vmatprep.subr.bf16.mxu0 0
      %3126 = vmatpush1.bf16.msra.mxu0 %v3102
      %3127 = vmatprep.subr.bf16.mxu0 0
      %3128 = vmatpush1.bf16.msra.mxu0 0
      %3129 = vmatprep.subr.bf16.mxu0 0
      %3130 = vmatpush1.bf16.msra.mxu0 0
      %3131 = vmatprep.subr.bf16.mxu0 0
      %3132 = vmatpush1.bf16.msra.mxu0 0
      %3133 = vmatprep.subr.bf16.mxu0 0
      %3134 = vmatpush1.bf16.msra.mxu0 0
      %3135 = vmatprep.subr.bf16.mxu0 0
      %3136 = vmatpush1.bf16.msra.mxu0 0
      %3137 = vmatprep.subr.bf16.mxu0 0
      %3138 = vmatpush1.bf16.msra.mxu0 0
      %3139 = vmatprep.subr.bf16.mxu0 0
      %3140 = vmatpush1.bf16.msra.mxu0 0
      %3141 = vmatprep.subr.bf16.mxu0 0
      %3142 = vmatpush1.bf16.msra.mxu0 0
      %3143 = vmatprep.mubr.bf16.mxu0 0
      %3144 = vmatmul.mubr.bf16.gmra.mrb[0].mxu0 %v3042
      %v3145 = vpop.f32.mrb[0].mxu0
      %v3146 = vadd.f32 0.0, %v3145
      %v3147 = vpop.f32.mrb[0].mxu0
      %v3148 = vpop.f32.mrb[0].mxu0
      %v3149 = vadd.f32 0.0, %v3148
      %v3150 = vpop.f32.mrb[0].mxu0
      %3151 = vmatprep.mubr.bf16.mxu0 0
      %3152 = vmatmul.mubr.bf16.gmra.mrb[0].mxu0 %v3043
      %v3153 = vpop.f32.mrb[0].mxu0
      %v3154 = vadd.f32 0.0, %v3153
      %v3155 = vpop.f32.mrb[0].mxu0
      %v3156 = vpop.f32.mrb[0].mxu0
      %v3157 = vadd.f32 0.0, %v3156
      %v3158 = vpop.f32.mrb[0].mxu0
      %3159 = vmatprep.mubr.bf16.mxu0 0
      %3160 = vmatmul.mubr.bf16.gmra.mrb[0].mxu0 %v3044
      %v3161 = vpop.f32.mrb[0].mxu0
      %v3162 = vadd.f32 0.0, %v3161
      %v3163 = vpop.f32.mrb[0].mxu0
      %v3164 = vpop.f32.mrb[0].mxu0
      %v3165 = vadd.f32 0.0, %v3164
      %v3166 = vpop.f32.mrb[0].mxu0
      %3167 = vmatprep.mubr.bf16.mxu0 0
      %3168 = vmatmul.mubr.bf16.gmra.mrb[0].mxu0 %v3045
      %v3169 = vpop.f32.mrb[0].mxu0
      %v3170 = vadd.f32 0.0, %v3169
      %v3171 = vpop.f32.mrb[0].mxu0
      %v3172 = vpop.f32.mrb[0].mxu0
      %v3173 = vadd.f32 0.0, %v3172
      %v3174 = vpop.f32.mrb[0].mxu0
      %3175 = vdwg.mxu0
      %s3176 = scalar_lea.vmem %s4, 64
      %v3177 = vld [vmem:[%s3176] sm:$0xf]
      %v3178 = vld [vmem:[%s3176 + $0x4] sm:$0xf]
      %v3179 = vld [vmem:[%s3176 + $0x8] sm:$0xf]
      %v3180 = vld [vmem:[%s3176 + $0xc] sm:$0xf]
      %v3181 = vld [vmem:[%s3176 + $0x10] sm:$0xf]
      %v3182 = vld [vmem:[%s3176 + $0x14] sm:$0xf]
      %v3183 = vld [vmem:[%s3176 + $0x18] sm:$0xf]
      %v3184 = vld [vmem:[%s3176 + $0x1c] sm:$0xf]
      %v3185 = vld [vmem:[%s3176 + $0x20] sm:$0xf]
      %v3186 = vld [vmem:[%s3176 + $0x24] sm:$0xf]
      %v3187 = vld [vmem:[%s3176 + $0x28] sm:$0xf]
      %v3188 = vld [vmem:[%s3176 + $0x2c] sm:$0xf]
      %v3189 = vld [vmem:[%s3176 + $0x30] sm:$0xf]
      %v3190 = vld [vmem:[%s3176 + $0x34] sm:$0xf]
      %v3191 = vld [vmem:[%s3176 + $0x38] sm:$0xf]
      %v3192 = vld [vmem:[%s3176 + $0x3c] sm:$0xf]
      %v3209 = vunpack.c.l.b16 %v3177
      %v3210 = vunpack.c.l.b16 %v3178
      %v3211 = vunpack.c.l.b16 %v3179
      %v3212 = vunpack.c.l.b16 %v3180
      %v3213 = vunpack.c.l.b16 %v3181
      %v3214 = vunpack.c.l.b16 %v3182
      %v3215 = vunpack.c.l.b16 %v3183
      %v3216 = vunpack.c.l.b16 %v3184
      %v3217 = vunpack.c.l.b16 %v3185
      %v3218 = vunpack.c.l.b16 %v3186
      %v3219 = vunpack.c.l.b16 %v3187
      %v3220 = vunpack.c.l.b16 %v3188
      %v3221 = vunpack.c.l.b16 %v3189
      %v3222 = vunpack.c.l.b16 %v3190
      %v3223 = vunpack.c.l.b16 %v3191
      %v3224 = vunpack.c.l.b16 %v3192
      %v3225 = vpack.c.b16 %v3210, %v3209
      %v3226 = vpack.c.b16 %v3212, %v3211
      %v3227 = vpack.c.b16 %v3214, %v3213
      %v3228 = vpack.c.b16 %v3216, %v3215
      %v3229 = vpack.c.b16 %v3218, %v3217
      %v3230 = vpack.c.b16 %v3220, %v3219
      %v3231 = vpack.c.b16 %v3222, %v3221
      %v3232 = vpack.c.b16 %v3224, %v3223
      %3241 = vmatprep.subr.bf16.mxu0 0
      %3242 = vmatpush1.bf16.msra.mxu0 %v3225
      %3243 = vmatprep.subr.bf16.mxu0 0
      %3244 = vmatpush1.bf16.msra.mxu0 %v3226
      %3245 = vmatprep.subr.bf16.mxu0 0
      %3246 = vmatpush1.bf16.msra.mxu0 %v3227
      %3247 = vmatprep.subr.bf16.mxu0 0
      %3248 = vmatpush1.bf16.msra.mxu0 %v3228
      %3249 = vmatprep.subr.bf16.mxu0 0
      %3250 = vmatpush1.bf16.msra.mxu0 %v3229
      %3251 = vmatprep.subr.bf16.mxu0 0
      %3252 = vmatpush1.bf16.msra.mxu0 %v3230
      %3253 = vmatprep.subr.bf16.mxu0 0
      %3254 = vmatpush1.bf16.msra.mxu0 %v3231
      %3255 = vmatprep.subr.bf16.mxu0 0
      %3256 = vmatpush1.bf16.msra.mxu0 %v3232
      %3257 = vmatprep.subr.bf16.mxu0 0
      %3258 = vmatpush1.bf16.msra.mxu0 0
      %3259 = vmatprep.subr.bf16.mxu0 0
      %3260 = vmatpush1.bf16.msra.mxu0 0
      %3261 = vmatprep.subr.bf16.mxu0 0
      %3262 = vmatpush1.bf16.msra.mxu0 0
      %3263 = vmatprep.subr.bf16.mxu0 0
      %3264 = vmatpush1.bf16.msra.mxu0 0
      %3265 = vmatprep.subr.bf16.mxu0 0
      %3266 = vmatpush1.bf16.msra.mxu0 0
      %3267 = vmatprep.subr.bf16.mxu0 0
      %3268 = vmatpush1.bf16.msra.mxu0 0
      %3269 = vmatprep.subr.bf16.mxu0 0
      %3270 = vmatpush1.bf16.msra.mxu0 0
      %3271 = vmatprep.subr.bf16.mxu0 0
      %3272 = vmatpush1.bf16.msra.mxu0 0
      %3273 = vmatprep.mubr.bf16.mxu0 0
      %3274 = vmatmul.mubr.bf16.gmra.mrb[0].mxu0 %v3042
      %v3275 = vpop.f32.mrb[0].mxu0
      %v3276 = vadd.f32 0.0, %v3275
      %v3277 = vpop.f32.mrb[0].mxu0
      %v3278 = vpop.f32.mrb[0].mxu0
      %v3279 = vadd.f32 0.0, %v3278
      %v3280 = vpop.f32.mrb[0].mxu0
      %3281 = vmatprep.mubr.bf16.mxu0 0
      %3282 = vmatmul.mubr.bf16.gmra.mrb[0].mxu0 %v3043
      %v3283 = vpop.f32.mrb[0].mxu0
      %v3284 = vadd.f32 0.0, %v3283
      %v3285 = vpop.f32.mrb[0].mxu0
      %v3286 = vpop.f32.mrb[0].mxu0
      %v3287 = vadd.f32 0.0, %v3286
      %v3288 = vpop.f32.mrb[0].mxu0
      %3289 = vmatprep.mubr.bf16.mxu0 0
      %3290 = vmatmul.mubr.bf16.gmra.mrb[0].mxu0 %v3044
      %v3291 = vpop.f32.mrb[0].mxu0
      %v3292 = vadd.f32 0.0, %v3291
      %v3293 = vpop.f32.mrb[0].mxu0
      %v3294 = vpop.f32.mrb[0].mxu0
      %v3295 = vadd.f32 0.0, %v3294
      %v3296 = vpop.f32.mrb[0].mxu0
      %3297 = vmatprep.mubr.bf16.mxu0 0
      %3298 = vmatmul.mubr.bf16.gmra.mrb[0].mxu0 %v3045
      %v3299 = vpop.f32.mrb[0].mxu0
      %v3300 = vadd.f32 0.0, %v3299
      %v3301 = vpop.f32.mrb[0].mxu0
      %v3302 = vpop.f32.mrb[0].mxu0
      %v3303 = vadd.f32 0.0, %v3302
      %v3304 = vpop.f32.mrb[0].mxu0
      %3305 = vdwg.mxu0
      %v3306 = vmax.f32 %v3146, %v3276
      %v3307 = vmax.f32 %v3149, %v3279
      %v3308 = vmax.f32 %v3154, %v3284
      %v3309 = vmax.f32 %v3157, %v3287
      %v3310 = vmax.f32 %v3162, %v3292
      %v3311 = vmax.f32 %v3165, %v3295
      %v3312 = vmax.f32 %v3170, %v3300
      %v3313 = vmax.f32 %v3173, %v3303
      %v3314 = vpack.c.bf16 %v3307, %v3306
      %v3315 = vpack.c.bf16 %v3309, %v3308
      %v3316 = vpack.c.bf16 %v3311, %v3310
      %v3317 = vpack.c.bf16 %v3313, %v3312
      %s3318 = scalar_lea.vmem %s5, 32
      %v3319 = vld [vmem:[%s3318] sm:$0xf]
      %v3320 = vld [vmem:[%s3318 + $0x4] sm:$0xf]
      %v3321 = vld [vmem:[%s3318 + $0x8] sm:$0xf]
      %v3322 = vld [vmem:[%s3318 + $0xc] sm:$0xf]
      %s3323 = scalar_lea.vmem %s6, 32
      %v3324 = vld [vmem:[%s3323] sm:$0xf]
      %v3325 = vld [vmem:[%s3323 + $0x4] sm:$0xf]
      %v3326 = vld [vmem:[%s3323 + $0x8] sm:$0xf]
      %v3327 = vld [vmem:[%s3323 + $0xc] sm:$0xf]
      %v3332 = vunpack.c.l.b16 %v3319
      %v3333 = vunpack.c.l.b16 %v3320
      %v3334 = vunpack.c.l.b16 %v3321
      %v3335 = vunpack.c.l.b16 %v3322
      %v3336 = vpack.c.b16 %v3333, %v3332
      %v3337 = vpack.c.b16 %v3335, %v3334
      %v3339 = vsel %vm2273, %v3336, 0
      %v3342 = vsel %vm2273, %v3337, 0
      %3344 = vmatprep.subr.bf16.mxu0 0
      %3345 = vmatpush1.bf16.msra.mxu0 %v3314
      %3346 = vmatprep.subr.bf16.mxu0 0
      %3347 = vmatpush1.bf16.msra.mxu0 %v3315
      %3348 = vmatprep.subr.bf16.mxu0 0
      %3349 = vmatpush1.bf16.msra.mxu0 %v3316
      %3350 = vmatprep.subr.bf16.mxu0 0
      %3351 = vmatpush1.bf16.msra.mxu0 %v3317
      %3352 = vmatprep.subr.bf16.mxu0 0
      %3353 = vmatpush1.bf16.msra.mxu0 0
      %3354 = vmatprep.subr.bf16.mxu0 0
      %3355 = vmatpush1.bf16.msra.mxu0 0
      %3356 = vmatprep.subr.bf16.mxu0 0
      %3357 = vmatpush1.bf16.msra.mxu0 0
      %3358 = vmatprep.subr.bf16.mxu0 0
      %3359 = vmatpush1.bf16.msra.mxu0 0
      %3360 = vmatprep.subr.bf16.mxu0 0
      %3361 = vmatpush1.bf16.msra.mxu0 0
      %3362 = vmatprep.subr.bf16.mxu0 0
      %3363 = vmatpush1.bf16.msra.mxu0 0
      %3364 = vmatprep.subr.bf16.mxu0 0
      %3365 = vmatpush1.bf16.msra.mxu0 0
      %3366 = vmatprep.subr.bf16.mxu0 0
      %3367 = vmatpush1.bf16.msra.mxu0 0
      %3368 = vmatprep.subr.bf16.mxu0 0
      %3369 = vmatpush1.bf16.msra.mxu0 0
      %3370 = vmatprep.subr.bf16.mxu0 0
      %3371 = vmatpush1.bf16.msra.mxu0 0
      %3372 = vmatprep.subr.bf16.mxu0 0
      %3373 = vmatpush1.bf16.msra.mxu0 0
      %3374 = vmatprep.subr.bf16.mxu0 0
      %3375 = vmatpush1.bf16.msra.mxu0 0
      %3376 = vmatprep.mubr.bf16.mxu0 0
      %3377 = vmatmul.mubr.bf16.gmra.mrb[0].mxu0 %v3339
      %v3378 = vpop.f32.mrb[0].mxu0
      %v3379 = vadd.f32 0.0, %v3378
      %v3380 = vpop.f32.mrb[0].mxu0
      %v3381 = vpop.f32.mrb[0].mxu0
      %v3382 = vadd.f32 0.0, %v3381
      %v3383 = vpop.f32.mrb[0].mxu0
      %3384 = vmatprep.mubr.bf16.mxu0 0
      %3385 = vmatmul.mubr.bf16.gmra.mrb[0].mxu0 %v3342
      %v3386 = vpop.f32.mrb[0].mxu0
      %v3387 = vadd.f32 0.0, %v3386
      %v3388 = vpop.f32.mrb[0].mxu0
      %v3389 = vpop.f32.mrb[0].mxu0
      %v3390 = vadd.f32 0.0, %v3389
      %v3391 = vpop.f32.mrb[0].mxu0
      %3392 = vdwg.mxu0
      %v3397 = vunpack.c.l.b16 %v3324
      %v3398 = vunpack.c.l.b16 %v3325
      %v3399 = vunpack.c.l.b16 %v3326
      %v3400 = vunpack.c.l.b16 %v3327
      %v3401 = vpack.c.b16 %v3398, %v3397
      %v3402 = vpack.c.b16 %v3400, %v3399
      %v3404 = vsel %vm2273, %v3401, 0
      %v3407 = vsel %vm2273, %v3402, 0
      %3409 = vmatprep.subr.bf16.mxu0 0
      %3410 = vmatpush1.bf16.msra.mxu0 %v3314
      %3411 = vmatprep.subr.bf16.mxu0 0
      %3412 = vmatpush1.bf16.msra.mxu0 %v3315
      %3413 = vmatprep.subr.bf16.mxu0 0
      %3414 = vmatpush1.bf16.msra.mxu0 %v3316
      %3415 = vmatprep.subr.bf16.mxu0 0
      %3416 = vmatpush1.bf16.msra.mxu0 %v3317
      %3417 = vmatprep.subr.bf16.mxu0 0
      %3418 = vmatpush1.bf16.msra.mxu0 0
      %3419 = vmatprep.subr.bf16.mxu0 0
      %3420 = vmatpush1.bf16.msra.mxu0 0
      %3421 = vmatprep.subr.bf16.mxu0 0
      %3422 = vmatpush1.bf16.msra.mxu0 0
      %3423 = vmatprep.subr.bf16.mxu0 0
      %3424 = vmatpush1.bf16.msra.mxu0 0
      %3425 = vmatprep.subr.bf16.mxu0 0
      %3426 = vmatpush1.bf16.msra.mxu0 0
      %3427 = vmatprep.subr.bf16.mxu0 0
      %3428 = vmatpush1.bf16.msra.mxu0 0
      %3429 = vmatprep.subr.bf16.mxu0 0
      %3430 = vmatpush1.bf16.msra.mxu0 0
      %3431 = vmatprep.subr.bf16.mxu0 0
      %3432 = vmatpush1.bf16.msra.mxu0 0
      %3433 = vmatprep.subr.bf16.mxu0 0
      %3434 = vmatpush1.bf16.msra.mxu0 0
      %3435 = vmatprep.subr.bf16.mxu0 0
      %3436 = vmatpush1.bf16.msra.mxu0 0
      %3437 = vmatprep.subr.bf16.mxu0 0
      %3438 = vmatpush1.bf16.msra.mxu0 0
      %3439 = vmatprep.subr.bf16.mxu0 0
      %3440 = vmatpush1.bf16.msra.mxu0 0
      %3441 = vmatprep.mubr.bf16.mxu0 0
      %3442 = vmatmul.mubr.bf16.gmra.mrb[0].mxu0 %v3404
      %v3443 = vpop.f32.mrb[0].mxu0
      %v3444 = vadd.f32 0.0, %v3443
      %v3445 = vpop.f32.mrb[0].mxu0
      %v3446 = vpop.f32.mrb[0].mxu0
      %v3447 = vadd.f32 0.0, %v3446
      %v3448 = vpop.f32.mrb[0].mxu0
      %3449 = vmatprep.mubr.bf16.mxu0 0
      %3450 = vmatmul.mubr.bf16.gmra.mrb[0].mxu0 %v3407
      %v3451 = vpop.f32.mrb[0].mxu0
      %v3452 = vadd.f32 0.0, %v3451
      %v3453 = vpop.f32.mrb[0].mxu0
      %v3454 = vpop.f32.mrb[0].mxu0
      %v3455 = vadd.f32 0.0, %v3454
      %v3456 = vpop.f32.mrb[0].mxu0
      %3457 = vdwg.mxu0
      %v3458 = vmax.f32 %v3379, %v3444
      %v3459 = vmax.f32 %v3382, %v3447
      %v3460 = vmax.f32 %v3387, %v3452
      %v3461 = vmax.f32 %v3390, %v3455
      %3462 = vst.msk [vmem:[#allocation2] sm:$0x1] %vm2236, 0.0
      %3463 = vst.msk [vmem:[#allocation2 + $0x41] sm:$0x1] %vm2236, 0.0
      %v3468 = vrot.slane %v3458, 7
      %v3469 = vrot.slane %v3459, 7
      %v3470 = vsel %vm371, %v3468, %v3469
      %v3471 = vrot.slane %v3460, 7
      %v3472 = vsel %vm371, %v3469, %v3471
      %v3473 = vrot.slane %v3461, 7
      %v3474 = vsel %vm371, %v3471, %v3473
      %3480 = vst.msk [vmem:[#allocation2] sm:$0xfe] %vm2271, %v3468
      %3481 = vst.msk [vmem:[#allocation2 + $0x10] sm:$0xff] %vm2273, %v3470
      %3482 = vst.msk [vmem:[#allocation2 + $0x20] sm:$0xff] %vm2273, %v3472
      %3483 = vst.msk [vmem:[#allocation2 + $0x30] sm:$0xff] %vm2273, %v3474
      %3484 = vst.msk [vmem:[#allocation2 + $0x40] sm:$0x1] %vm2236, %v3473
      %v3485 = vld [vmem:[#allocation2] sm:$0xff]
      %v3486 = vld [vmem:[#allocation2 + $0x10] sm:$0xff]
      %v3487 = vld [vmem:[#allocation2 + $0x20] sm:$0xff]
      %v3488 = vld [vmem:[#allocation2 + $0x30] sm:$0xff]
      %v3489 = vld [vmem:[#allocation2] sm:$0xfc]
      %v3490 = vld [vmem:[#allocation2 + $0x40] sm:$0x3]
      %v3491 = vand.u32 %v456, 3
      %v3492 = vand.u32 %v457, 3
      %v3493 = vand.u32 %v458, 3
      %v3494 = vand.u32 %v459, 3
      %vm3495 = vcmp.eq.s32.totalorder %v3491, 0
      %vm3496 = vcmp.eq.s32.totalorder %v3492, 0
      %vm3497 = vcmp.eq.s32.totalorder %v3493, 0
      %vm3498 = vcmp.eq.s32.totalorder %v3494, 0
      %v3499 = vsel %vm3495, 0.0, %v3485
      %v3500 = vsel %vm3496, 0.0, %v3486
      %v3501 = vsel %vm3497, 0.0, %v3487
      %v3502 = vsel %vm3498, 0.0, %v3488
      %vm3503 = vcmp.eq.s32.totalorder %v3491, 3
      %vm3504 = vcmp.eq.s32.totalorder %v3492, 3
      %vm3505 = vcmp.eq.s32.totalorder %v3493, 3
      %vm3506 = vcmp.eq.s32.totalorder %v3494, 3
      %v3512 = vrot.slane %v3489, 2
      %v3513 = vrot.slane %v3486, 2
      %v3514 = vsel %vm553, %v3512, %v3513
      %v3515 = vrot.slane %v3487, 2
      %v3516 = vsel %vm553, %v3513, %v3515
      %v3517 = vrot.slane %v3488, 2
      %v3518 = vsel %vm553, %v3515, %v3517
      %v3519 = vrot.slane %v3490, 2
      %v3520 = vsel %vm553, %v3517, %v3519
      %v3525 = vsel %vm3503, 0.0, %v3514
      %v3526 = vsel %vm3504, 0.0, %v3516
      %v3527 = vsel %vm3505, 0.0, %v3518
      %v3528 = vsel %vm3506, 0.0, %v3520
      %3529 = vrot.lane.b32.xlu0 %v3458, 64
      %v3530 = vpop.permute.xlu0 %3529
      %3531 = vrot.lane.b32.xlu0 %v3459, 64
      %v3532 = vpop.permute.xlu0 %3531
      %3533 = vrot.lane.b32.xlu0 %v3460, 64
      %v3534 = vpop.permute.xlu0 %3533
      %3535 = vrot.lane.b32.xlu0 %v3461, 64
      %v3536 = vpop.permute.xlu0 %3535
      %v3541 = vsel %vm2273, %v3499, %v3530
      %v3542 = vsel %vm2273, %v3500, %v3532
      %v3543 = vsel %vm2273, %v3501, %v3534
      %v3544 = vsel %vm2273, %v3502, %v3536
      %v3545 = vpack.c.bf16 %v3542, %v3541
      %v3546 = vpack.c.bf16 %v3526, %v3525
      %v3547 = vpack.c.bf16 %v3544, %v3543
      %v3548 = vpack.c.bf16 %v3528, %v3527
      %v3549 = vld [vmem:[%s1 + $0x2a0] sm:$0xf]
      %v3550 = vld [vmem:[%s1 + $0x2a4] sm:$0xf]
      %v3551 = vld [vmem:[%s1 + $0x2a8] sm:$0xf]
      %v3552 = vld [vmem:[%s1 + $0x2ac] sm:$0xf]
      %v3553 = vld [vmem:[%s1 + $0x2b0] sm:$0xf]
      %v3554 = vld [vmem:[%s1 + $0x2b4] sm:$0xf]
      %v3555 = vld [vmem:[%s1 + $0x2b8] sm:$0xf]
      %v3556 = vld [vmem:[%s1 + $0x2bc] sm:$0xf]
      %v3557 = vld [vmem:[%s1 + $0x2c0] sm:$0xf]
      %v3558 = vld [vmem:[%s1 + $0x2c4] sm:$0xf]
      %v3559 = vld [vmem:[%s1 + $0x2c8] sm:$0xf]
      %v3560 = vld [vmem:[%s1 + $0x2cc] sm:$0xf]
      %v3561 = vld [vmem:[%s1 + $0x2d0] sm:$0xf]
      %v3562 = vld [vmem:[%s1 + $0x2d4] sm:$0xf]
      %v3563 = vld [vmem:[%s1 + $0x2d8] sm:$0xf]
      %v3564 = vld [vmem:[%s1 + $0x2dc] sm:$0xf]
      %v3565 = vld [vmem:[%s1 + $0x2e0] sm:$0xf]
      %v3566 = vld [vmem:[%s1 + $0x2e4] sm:$0xf]
      %v3567 = vld [vmem:[%s1 + $0x2e8] sm:$0xf]
      %v3568 = vld [vmem:[%s1 + $0x2ec] sm:$0xf]
      %v3569 = vld [vmem:[%s1 + $0x2f0] sm:$0xf]
      %v3570 = vld [vmem:[%s1 + $0x2f4] sm:$0xf]
      %v3571 = vld [vmem:[%s1 + $0x2f8] sm:$0xf]
      %v3572 = vld [vmem:[%s1 + $0x2fc] sm:$0xf]
      %v3573 = vld [vmem:[%s2 + $0x4] sm:$0x1]
      %v3574 = vlaneseq
      %v3575 = vshrl.u32 %v3574, 7
      %v3576 = vsub.s32 0, %v3575
      %v3577 = vrot.slane %v3573, %v3576
      %v3602 = vunpack.c.l.b16 %v3549
      %v3603 = vunpack.c.l.b16 %v3550
      %v3604 = vunpack.c.l.b16 %v3551
      %v3605 = vunpack.c.l.b16 %v3552
      %v3606 = vunpack.c.l.b16 %v3553
      %v3607 = vunpack.c.l.b16 %v3554
      %v3608 = vunpack.c.l.b16 %v3555
      %v3609 = vunpack.c.l.b16 %v3556
      %v3610 = vunpack.c.l.b16 %v3557
      %v3611 = vunpack.c.l.b16 %v3558
      %v3612 = vunpack.c.l.b16 %v3559
      %v3613 = vunpack.c.l.b16 %v3560
      %v3614 = vunpack.c.l.b16 %v3561
      %v3615 = vunpack.c.l.b16 %v3562
      %v3616 = vunpack.c.l.b16 %v3563
      %v3617 = vunpack.c.l.b16 %v3564
      %v3618 = vunpack.c.l.b16 %v3565
      %v3619 = vunpack.c.l.b16 %v3566
      %v3620 = vunpack.c.l.b16 %v3567
      %v3621 = vunpack.c.l.b16 %v3568
      %v3622 = vunpack.c.l.b16 %v3569
      %v3623 = vunpack.c.l.b16 %v3570
      %v3624 = vunpack.c.l.b16 %v3571
      %v3625 = vunpack.c.l.b16 %v3572
      %v3626 = vpack.c.b16 %v3603, %v3602
      %v3627 = vpack.c.b16 %v3605, %v3604
      %v3628 = vpack.c.b16 %v3607, %v3606
      %v3629 = vpack.c.b16 %v3609, %v3608
      %v3630 = vpack.c.b16 %v3611, %v3610
      %v3631 = vpack.c.b16 %v3613, %v3612
      %v3632 = vpack.c.b16 %v3615, %v3614
      %v3633 = vpack.c.b16 %v3617, %v3616
      %v3634 = vpack.c.b16 %v3619, %v3618
      %v3635 = vpack.c.b16 %v3621, %v3620
      %v3636 = vpack.c.b16 %v3623, %v3622
      %v3637 = vpack.c.b16 %v3625, %v3624
      %v3651 = vsel %vm2273, %v3546, 0
      %v3654 = vsel %vm2273, %v3548, 0
      %3656 = vmatprep.subr.bf16.mxu0 0
      %3657 = vmatpush1.bf16.msra.mxu0 %v3626
      %3658 = vmatprep.subr.bf16.mxu0 0
      %3659 = vmatpush1.bf16.msra.mxu0 %v3627
      %3660 = vmatprep.subr.bf16.mxu0 0
      %3661 = vmatpush1.bf16.msra.mxu0 %v3628
      %3662 = vmatprep.subr.bf16.mxu0 0
      %3663 = vmatpush1.bf16.msra.mxu0 %v3629
      %3664 = vmatprep.subr.bf16.mxu0 0
      %3665 = vmatpush1.bf16.msra.mxu0 %v3630
      %3666 = vmatprep.subr.bf16.mxu0 0
      %3667 = vmatpush1.bf16.msra.mxu0 %v3631
      %3668 = vmatprep.subr.bf16.mxu0 0
      %3669 = vmatpush1.bf16.msra.mxu0 %v3632
      %3670 = vmatprep.subr.bf16.mxu0 0
      %3671 = vmatpush1.bf16.msra.mxu0 %v3633
      %3672 = vmatprep.subr.bf16.mxu0 0
      %3673 = vmatpush1.bf16.msra.mxu0 %v3634
      %3674 = vmatprep.subr.bf16.mxu0 0
      %3675 = vmatpush1.bf16.msra.mxu0 %v3635
      %3676 = vmatprep.subr.bf16.mxu0 0
      %3677 = vmatpush1.bf16.msra.mxu0 %v3636
      %3678 = vmatprep.subr.bf16.mxu0 0
      %3679 = vmatpush1.bf16.msra.mxu0 %v3637
      %3680 = vmatprep.subr.bf16.mxu0 0
      %3681 = vmatpush1.bf16.msra.mxu0 0
      %3682 = vmatprep.subr.bf16.mxu0 0
      %3683 = vmatpush1.bf16.msra.mxu0 0
      %3684 = vmatprep.subr.bf16.mxu0 0
      %3685 = vmatpush1.bf16.msra.mxu0 0
      %3686 = vmatprep.subr.bf16.mxu0 0
      %3687 = vmatpush1.bf16.msra.mxu0 0
      %3688 = vmatprep.mubr.bf16.mxu0 %v3651
      %3689 = vmatmul.mubr.bf16.gmra.mrb[0].mxu0 %v3545
      %v3690 = vpop.f32.mrb[0].mxu0
      %v3691 = vadd.f32 %v3577, %v3690
      %v3692 = vpop.f32.mrb[0].mxu0
      %v3693 = vpop.f32.mrb[0].mxu0
      %v3694 = vadd.f32 %v3577, %v3693
      %v3695 = vpop.f32.mrb[0].mxu0
      %3696 = vmatprep.mubr.bf16.mxu0 %v3654
      %3697 = vmatmul.mubr.bf16.gmra.mrb[0].mxu0 %v3547
      %v3698 = vpop.f32.mrb[0].mxu0
      %v3699 = vadd.f32 %v3577, %v3698
      %v3700 = vpop.f32.mrb[0].mxu0
      %v3701 = vpop.f32.mrb[0].mxu0
      %v3702 = vadd.f32 %v3577, %v3701
      %v3703 = vpop.f32.mrb[0].mxu0
      %3704 = vdwg.mxu0
      %v3705 = vmax.f32 %v3691, 0.0
      %v3706 = vmax.f32 %v3694, 0.0
      %v3707 = vmax.f32 %v3699, 0.0
      %v3708 = vmax.f32 %v3702, 0.0
      %3709 = vst [vmem:[#allocation2] sm:$0x1] 0.0
      %3710 = vst [vmem:[#allocation2 + $0x41] sm:$0x1] 0.0
      %v3715 = vrot.slane %v3705, 7
      %v3716 = vrot.slane %v3706, 7
      %v3717 = vsel %vm371, %v3715, %v3716
      %v3718 = vrot.slane %v3707, 7
      %v3719 = vsel %vm371, %v3716, %v3718
      %v3720 = vrot.slane %v3708, 7
      %v3721 = vsel %vm371, %v3718, %v3720
      %3727 = vst [vmem:[#allocation2] sm:$0xfe] %v3715
      %3728 = vst [vmem:[#allocation2 + $0x10] sm:$0xff] %v3717
      %3729 = vst [vmem:[#allocation2 + $0x20] sm:$0xff] %v3719
      %3730 = vst [vmem:[#allocation2 + $0x30] sm:$0xff] %v3721
      %3731 = vst [vmem:[#allocation2 + $0x40] sm:$0x1] %v3720
      %v3732 = vld [vmem:[#allocation2] sm:$0xff]
      %v3733 = vld [vmem:[#allocation2 + $0x10] sm:$0xff]
      %v3734 = vld [vmem:[#allocation2 + $0x20] sm:$0xff]
      %v3735 = vld [vmem:[#allocation2 + $0x30] sm:$0xff]
      %v3736 = vld [vmem:[#allocation2] sm:$0xfc]
      %v3737 = vld [vmem:[#allocation2 + $0x40] sm:$0x3]
      %v3738 = vsel %vm3495, 0.0, %v3732
      %v3739 = vsel %vm3496, 0.0, %v3733
      %v3740 = vsel %vm3497, 0.0, %v3734
      %v3741 = vsel %vm3498, 0.0, %v3735
      %v3747 = vrot.slane %v3736, 2
      %v3748 = vrot.slane %v3733, 2
      %v3749 = vsel %vm553, %v3747, %v3748
      %v3750 = vrot.slane %v3734, 2
      %v3751 = vsel %vm553, %v3748, %v3750
      %v3752 = vrot.slane %v3735, 2
      %v3753 = vsel %vm553, %v3750, %v3752
      %v3754 = vrot.slane %v3737, 2
      %v3755 = vsel %vm553, %v3752, %v3754
      %v3760 = vsel %vm3503, 0.0, %v3749
      %v3761 = vsel %vm3504, 0.0, %v3751
      %v3762 = vsel %vm3505, 0.0, %v3753
      %v3763 = vsel %vm3506, 0.0, %v3755
      %v3764 = vpack.c.bf16 %v3739, %v3738
      %v3765 = vpack.c.bf16 %v3706, %v3705
      %v3766 = vpack.c.bf16 %v3761, %v3760
      %v3767 = vpack.c.bf16 %v3741, %v3740
      %v3768 = vpack.c.bf16 %v3708, %v3707
      %v3769 = vpack.c.bf16 %v3763, %v3762
      %v3770 = vld [vmem:[%s1 + $0x300] sm:$0xf]
      %v3771 = vld [vmem:[%s1 + $0x304] sm:$0xf]
      %v3772 = vld [vmem:[%s1 + $0x308] sm:$0xf]
      %v3773 = vld [vmem:[%s1 + $0x30c] sm:$0xf]
      %v3774 = vld [vmem:[%s1 + $0x310] sm:$0xf]
      %v3775 = vld [vmem:[%s1 + $0x314] sm:$0xf]
      %v3776 = vld [vmem:[%s1 + $0x318] sm:$0xf]
      %v3777 = vld [vmem:[%s1 + $0x31c] sm:$0xf]
      %v3778 = vld [vmem:[%s1 + $0x320] sm:$0xf]
      %v3779 = vld [vmem:[%s1 + $0x324] sm:$0xf]
      %v3780 = vld [vmem:[%s1 + $0x328] sm:$0xf]
      %v3781 = vld [vmem:[%s1 + $0x32c] sm:$0xf]
      %v3782 = vld [vmem:[%s1 + $0x330] sm:$0xf]
      %v3783 = vld [vmem:[%s1 + $0x334] sm:$0xf]
      %v3784 = vld [vmem:[%s1 + $0x338] sm:$0xf]
      %v3785 = vld [vmem:[%s1 + $0x33c] sm:$0xf]
      %v3786 = vld [vmem:[%s1 + $0x340] sm:$0xf]
      %v3787 = vld [vmem:[%s1 + $0x344] sm:$0xf]
      %v3788 = vld [vmem:[%s1 + $0x348] sm:$0xf]
      %v3789 = vld [vmem:[%s1 + $0x34c] sm:$0xf]
      %v3790 = vld [vmem:[%s1 + $0x350] sm:$0xf]
      %v3791 = vld [vmem:[%s1 + $0x354] sm:$0xf]
      %v3792 = vld [vmem:[%s1 + $0x358] sm:$0xf]
      %v3793 = vld [vmem:[%s1 + $0x35c] sm:$0xf]
      %v3794 = vld [vmem:[%s1 + $0x360] sm:$0xf]
      %v3795 = vld [vmem:[%s1 + $0x364] sm:$0xf]
      %v3796 = vld [vmem:[%s1 + $0x368] sm:$0xf]
      %v3797 = vld [vmem:[%s1 + $0x36c] sm:$0xf]
      %v3798 = vld [vmem:[%s1 + $0x370] sm:$0xf]
      %v3799 = vld [vmem:[%s1 + $0x374] sm:$0xf]
      %v3800 = vld [vmem:[%s1 + $0x378] sm:$0xf]
      %v3801 = vld [vmem:[%s1 + $0x37c] sm:$0xf]
      %v3802 = vld [vmem:[%s1 + $0x380] sm:$0xf]
      %v3803 = vld [vmem:[%s1 + $0x384] sm:$0xf]
      %v3804 = vld [vmem:[%s1 + $0x388] sm:$0xf]
      %v3805 = vld [vmem:[%s1 + $0x38c] sm:$0xf]
      %v3806 = vld [vmem:[%s1 + $0x390] sm:$0xf]
      %v3807 = vld [vmem:[%s1 + $0x394] sm:$0xf]
      %v3808 = vld [vmem:[%s1 + $0x398] sm:$0xf]
      %v3809 = vld [vmem:[%s1 + $0x39c] sm:$0xf]
      %v3810 = vld [vmem:[%s1 + $0x3a0] sm:$0xf]
      %v3811 = vld [vmem:[%s1 + $0x3a4] sm:$0xf]
      %v3812 = vld [vmem:[%s1 + $0x3a8] sm:$0xf]
      %v3813 = vld [vmem:[%s1 + $0x3ac] sm:$0xf]
      %v3814 = vld [vmem:[%s1 + $0x3b0] sm:$0xf]
      %v3815 = vld [vmem:[%s1 + $0x3b4] sm:$0xf]
      %v3816 = vld [vmem:[%s1 + $0x3b8] sm:$0xf]
      %v3817 = vld [vmem:[%s1 + $0x3bc] sm:$0xf]
      %v3818 = vld [vmem:[%s2 + $0x5] sm:$0x1]
      %v3819 = vlaneseq
      %v3820 = vshrl.u32 %v3819, 7
      %v3821 = vsub.s32 0, %v3820
      %v3822 = vrot.slane %v3818, %v3821
      %v3871 = vunpack.c.l.b16 %v3770
      %v3872 = vunpack.c.l.b16 %v3771
      %v3873 = vunpack.c.l.b16 %v3772
      %v3874 = vunpack.c.l.b16 %v3773
      %v3875 = vunpack.c.l.b16 %v3774
      %v3876 = vunpack.c.l.b16 %v3775
      %v3877 = vunpack.c.l.b16 %v3776
      %v3878 = vunpack.c.l.b16 %v3777
      %v3879 = vunpack.c.l.b16 %v3778
      %v3880 = vunpack.c.l.b16 %v3779
      %v3881 = vunpack.c.l.b16 %v3780
      %v3882 = vunpack.c.l.b16 %v3781
      %v3883 = vunpack.c.l.b16 %v3782
      %v3884 = vunpack.c.l.b16 %v3783
      %v3885 = vunpack.c.l.b16 %v3784
      %v3886 = vunpack.c.l.b16 %v3785
      %v3887 = vunpack.c.l.b16 %v3786
      %v3888 = vunpack.c.l.b16 %v3787
      %v3889 = vunpack.c.l.b16 %v3788
      %v3890 = vunpack.c.l.b16 %v3789
      %v3891 = vunpack.c.l.b16 %v3790
      %v3892 = vunpack.c.l.b16 %v3791
      %v3893 = vunpack.c.l.b16 %v3792
      %v3894 = vunpack.c.l.b16 %v3793
      %v3895 = vunpack.c.l.b16 %v3794
      %v3896 = vunpack.c.l.b16 %v3795
      %v3897 = vunpack.c.l.b16 %v3796
      %v3898 = vunpack.c.l.b16 %v3797
      %v3899 = vunpack.c.l.b16 %v3798
      %v3900 = vunpack.c.l.b16 %v3799
      %v3901 = vunpack.c.l.b16 %v3800
      %v3902 = vunpack.c.l.b16 %v3801
      %v3903 = vunpack.c.l.b16 %v3802
      %v3904 = vunpack.c.l.b16 %v3803
      %v3905 = vunpack.c.l.b16 %v3804
      %v3906 = vunpack.c.l.b16 %v3805
      %v3907 = vunpack.c.l.b16 %v3806
      %v3908 = vunpack.c.l.b16 %v3807
      %v3909 = vunpack.c.l.b16 %v3808
      %v3910 = vunpack.c.l.b16 %v3809
      %v3911 = vunpack.c.l.b16 %v3810
      %v3912 = vunpack.c.l.b16 %v3811
      %v3913 = vunpack.c.l.b16 %v3812
      %v3914 = vunpack.c.l.b16 %v3813
      %v3915 = vunpack.c.l.b16 %v3814
      %v3916 = vunpack.c.l.b16 %v3815
      %v3917 = vunpack.c.l.b16 %v3816
      %v3918 = vunpack.c.l.b16 %v3817
      %v3919 = vpack.c.b16 %v3872, %v3871
      %v3920 = vpack.c.b16 %v3874, %v3873
      %v3921 = vpack.c.b16 %v3876, %v3875
      %v3922 = vpack.c.b16 %v3878, %v3877
      %v3923 = vpack.c.b16 %v3880, %v3879
      %v3924 = vpack.c.b16 %v3882, %v3881
      %v3925 = vpack.c.b16 %v3884, %v3883
      %v3926 = vpack.c.b16 %v3886, %v3885
      %v3927 = vpack.c.b16 %v3888, %v3887
      %v3928 = vpack.c.b16 %v3890, %v3889
      %v3929 = vpack.c.b16 %v3892, %v3891
      %v3930 = vpack.c.b16 %v3894, %v3893
      %v3931 = vpack.c.b16 %v3896, %v3895
      %v3932 = vpack.c.b16 %v3898, %v3897
      %v3933 = vpack.c.b16 %v3900, %v3899
      %v3934 = vpack.c.b16 %v3902, %v3901
      %v3935 = vpack.c.b16 %v3904, %v3903
      %v3936 = vpack.c.b16 %v3906, %v3905
      %v3937 = vpack.c.b16 %v3908, %v3907
      %v3938 = vpack.c.b16 %v3910, %v3909
      %v3939 = vpack.c.b16 %v3912, %v3911
      %v3940 = vpack.c.b16 %v3914, %v3913
      %v3941 = vpack.c.b16 %v3916, %v3915
      %v3942 = vpack.c.b16 %v3918, %v3917
      %3967 = vmatprep.subr.bf16.mxu0 0
      %3968 = vmatpush1.bf16.msra.mxu0 %v3919
      %3969 = vmatprep.subr.bf16.mxu0 0
      %3970 = vmatpush1.bf16.msra.mxu0 %v3920
      %3971 = vmatprep.subr.bf16.mxu0 0
      %3972 = vmatpush1.bf16.msra.mxu0 %v3921
      %3973 = vmatprep.subr.bf16.mxu0 0
      %3974 = vmatpush1.bf16.msra.mxu0 %v3922
      %3975 = vmatprep.subr.bf16.mxu0 0
      %3976 = vmatpush1.bf16.msra.mxu0 %v3923
      %3977 = vmatprep.subr.bf16.mxu0 0
      %3978 = vmatpush1.bf16.msra.mxu0 %v3924
      %3979 = vmatprep.subr.bf16.mxu0 0
      %3980 = vmatpush1.bf16.msra.mxu0 %v3925
      %3981 = vmatprep.subr.bf16.mxu0 0
      %3982 = vmatpush1.bf16.msra.mxu0 %v3926
      %3983 = vmatprep.subr.bf16.mxu0 0
      %3984 = vmatpush1.bf16.msra.mxu0 %v3927
      %3985 = vmatprep.subr.bf16.mxu0 0
      %3986 = vmatpush1.bf16.msra.mxu0 %v3928
      %3987 = vmatprep.subr.bf16.mxu0 0
      %3988 = vmatpush1.bf16.msra.mxu0 %v3929
      %3989 = vmatprep.subr.bf16.mxu0 0
      %3990 = vmatpush1.bf16.msra.mxu0 %v3930
      %3991 = vmatprep.subr.bf16.mxu0 0
      %3992 = vmatpush1.bf16.msra.mxu0 %v3931
      %3993 = vmatprep.subr.bf16.mxu0 0
      %3994 = vmatpush1.bf16.msra.mxu0 %v3932
      %3995 = vmatprep.subr.bf16.mxu0 0
      %3996 = vmatpush1.bf16.msra.mxu0 %v3933
      %3997 = vmatprep.subr.bf16.mxu0 0
      %3998 = vmatpush1.bf16.msra.mxu0 %v3934
      %3999 = vmatprep.mubr.bf16.mxu0 %v3765
      %4000 = vmatmul.mubr.bf16.gmra.mrb[0].mxu0 %v3764
      %v4001 = vpop.f32.mrb[0].mxu0
      %v4002 = vadd.f32 %v3822, %v4001
      %v4003 = vpop.f32.mrb[0].mxu0
      %v4004 = vpop.f32.mrb[0].mxu0
      %v4005 = vadd.f32 %v3822, %v4004
      %v4006 = vpop.f32.mrb[0].mxu0
      %4007 = vmatprep.mubr.bf16.mxu0 %v3768
      %4008 = vmatmul.mubr.bf16.gmra.mrb[0].mxu0 %v3767
      %v4009 = vpop.f32.mrb[0].mxu0
      %v4010 = vadd.f32 %v3822, %v4009
      %v4011 = vpop.f32.mrb[0].mxu0
      %v4012 = vpop.f32.mrb[0].mxu0
      %v4013 = vadd.f32 %v3822, %v4012
      %v4014 = vpop.f32.mrb[0].mxu0
      %4015 = vdwg.mxu0
      %4016 = vmatprep.subr.bf16.mxu0 0
      %4017 = vmatpush1.bf16.msra.mxu0 %v3935
      %4018 = vmatprep.subr.bf16.mxu0 0
      %4019 = vmatpush1.bf16.msra.mxu0 %v3936
      %4020 = vmatprep.subr.bf16.mxu0 0
      %4021 = vmatpush1.bf16.msra.mxu0 %v3937
      %4022 = vmatprep.subr.bf16.mxu0 0
      %4023 = vmatpush1.bf16.msra.mxu0 %v3938
      %4024 = vmatprep.subr.bf16.mxu0 0
      %4025 = vmatpush1.bf16.msra.mxu0 %v3939
      %4026 = vmatprep.subr.bf16.mxu0 0
      %4027 = vmatpush1.bf16.msra.mxu0 %v3940
      %4028 = vmatprep.subr.bf16.mxu0 0
      %4029 = vmatpush1.bf16.msra.mxu0 %v3941
      %4030 = vmatprep.subr.bf16.mxu0 0
      %4031 = vmatpush1.bf16.msra.mxu0 %v3942
      %4032 = vmatprep.subr.bf16.mxu0 0
      %4033 = vmatpush1.bf16.msra.mxu0 0
      %4034 = vmatprep.subr.bf16.mxu0 0
      %4035 = vmatpush1.bf16.msra.mxu0 0
      %4036 = vmatprep.subr.bf16.mxu0 0
      %4037 = vmatpush1.bf16.msra.mxu0 0
      %4038 = vmatprep.subr.bf16.mxu0 0
      %4039 = vmatpush1.bf16.msra.mxu0 0
      %4040 = vmatprep.subr.bf16.mxu0 0
      %4041 = vmatpush1.bf16.msra.mxu0 0
      %4042 = vmatprep.subr.bf16.mxu0 0
      %4043 = vmatpush1.bf16.msra.mxu0 0
      %4044 = vmatprep.subr.bf16.mxu0 0
      %4045 = vmatpush1.bf16.msra.mxu0 0
      %4046 = vmatprep.subr.bf16.mxu0 0
      %4047 = vmatpush1.bf16.msra.mxu0 0
      %4048 = vmatprep.mubr.bf16.mxu0 0
      %4049 = vmatmul.mubr.bf16.gmra.mrb[0].mxu0 %v3766
      %v4050 = vpop.f32.mrb[0].mxu0
      %v4051 = vadd.f32 %v4002, %v4050
      %v4052 = vpop.f32.mrb[0].mxu0
      %v4053 = vpop.f32.mrb[0].mxu0
      %v4054 = vadd.f32 %v4005, %v4053
      %v4055 = vpop.f32.mrb[0].mxu0
      %4056 = vmatprep.mubr.bf16.mxu0 0
      %4057 = vmatmul.mubr.bf16.gmra.mrb[0].mxu0 %v3769
      %v4058 = vpop.f32.mrb[0].mxu0
      %v4059 = vadd.f32 %v4010, %v4058
      %v4060 = vpop.f32.mrb[0].mxu0
      %v4061 = vpop.f32.mrb[0].mxu0
      %v4062 = vadd.f32 %v4013, %v4061
      %v4063 = vpop.f32.mrb[0].mxu0
      %4064 = vdwg.mxu0
      %v4065 = vmax.f32 %v4051, 0.0
      %v4066 = vmax.f32 %v4054, 0.0
      %v4067 = vmax.f32 %v4059, 0.0
      %v4068 = vmax.f32 %v4062, 0.0
      %v4069 = vpack.c.bf16 %v4066, %v4065
      %v4070 = vpack.c.bf16 %v4068, %v4067
      %s4071 = scalar_lea.vmem %s3, 128
      %v4072 = vld [vmem:[%s4071] sm:$0xf]
      %v4073 = vld [vmem:[%s4071 + $0x4] sm:$0xf]
      %v4074 = vld [vmem:[%s4071 + $0x8] sm:$0xf]
      %v4075 = vld [vmem:[%s4071 + $0xc] sm:$0xf]
      %v4076 = vld [vmem:[%s4071 + $0x10] sm:$0xf]
      %v4077 = vld [vmem:[%s4071 + $0x14] sm:$0xf]
      %v4078 = vld [vmem:[%s4071 + $0x18] sm:$0xf]
      %v4079 = vld [vmem:[%s4071 + $0x1c] sm:$0xf]
      %v4080 = vld [vmem:[%s4071 + $0x20] sm:$0xf]
      %v4081 = vld [vmem:[%s4071 + $0x24] sm:$0xf]
      %v4082 = vld [vmem:[%s4071 + $0x28] sm:$0xf]
      %v4083 = vld [vmem:[%s4071 + $0x2c] sm:$0xf]
      %v4084 = vld [vmem:[%s4071 + $0x30] sm:$0xf]
      %v4085 = vld [vmem:[%s4071 + $0x34] sm:$0xf]
      %v4086 = vld [vmem:[%s4071 + $0x38] sm:$0xf]
      %v4087 = vld [vmem:[%s4071 + $0x3c] sm:$0xf]
      %v4104 = vunpack.c.l.b16 %v4072
      %v4105 = vunpack.c.l.b16 %v4073
      %v4106 = vunpack.c.l.b16 %v4074
      %v4107 = vunpack.c.l.b16 %v4075
      %v4108 = vunpack.c.l.b16 %v4076
      %v4109 = vunpack.c.l.b16 %v4077
      %v4110 = vunpack.c.l.b16 %v4078
      %v4111 = vunpack.c.l.b16 %v4079
      %v4112 = vunpack.c.l.b16 %v4080
      %v4113 = vunpack.c.l.b16 %v4081
      %v4114 = vunpack.c.l.b16 %v4082
      %v4115 = vunpack.c.l.b16 %v4083
      %v4116 = vunpack.c.l.b16 %v4084
      %v4117 = vunpack.c.l.b16 %v4085
      %v4118 = vunpack.c.l.b16 %v4086
      %v4119 = vunpack.c.l.b16 %v4087
      %v4120 = vpack.c.b16 %v4105, %v4104
      %v4121 = vpack.c.b16 %v4107, %v4106
      %v4122 = vpack.c.b16 %v4109, %v4108
      %v4123 = vpack.c.b16 %v4111, %v4110
      %v4124 = vpack.c.b16 %v4113, %v4112
      %v4125 = vpack.c.b16 %v4115, %v4114
      %v4126 = vpack.c.b16 %v4117, %v4116
      %v4127 = vpack.c.b16 %v4119, %v4118
      %4136 = vmatprep.subr.bf16.mxu0 0
      %4137 = vmatpush1.bf16.msra.mxu0 %v4120
      %4138 = vmatprep.subr.bf16.mxu0 0
      %4139 = vmatpush1.bf16.msra.mxu0 %v4121
      %4140 = vmatprep.subr.bf16.mxu0 0
      %4141 = vmatpush1.bf16.msra.mxu0 %v4122
      %4142 = vmatprep.subr.bf16.mxu0 0
      %4143 = vmatpush1.bf16.msra.mxu0 %v4123
      %4144 = vmatprep.subr.bf16.mxu0 0
      %4145 = vmatpush1.bf16.msra.mxu0 %v4124
      %4146 = vmatprep.subr.bf16.mxu0 0
      %4147 = vmatpush1.bf16.msra.mxu0 %v4125
      %4148 = vmatprep.subr.bf16.mxu0 0
      %4149 = vmatpush1.bf16.msra.mxu0 %v4126
      %4150 = vmatprep.subr.bf16.mxu0 0
      %4151 = vmatpush1.bf16.msra.mxu0 %v4127
      %4152 = vmatprep.subr.bf16.mxu0 0
      %4153 = vmatpush1.bf16.msra.mxu0 0
      %4154 = vmatprep.subr.bf16.mxu0 0
      %4155 = vmatpush1.bf16.msra.mxu0 0
      %4156 = vmatprep.subr.bf16.mxu0 0
      %4157 = vmatpush1.bf16.msra.mxu0 0
      %4158 = vmatprep.subr.bf16.mxu0 0
      %4159 = vmatpush1.bf16.msra.mxu0 0
      %4160 = vmatprep.subr.bf16.mxu0 0
      %4161 = vmatpush1.bf16.msra.mxu0 0
      %4162 = vmatprep.subr.bf16.mxu0 0
      %4163 = vmatpush1.bf16.msra.mxu0 0
      %4164 = vmatprep.subr.bf16.mxu0 0
      %4165 = vmatpush1.bf16.msra.mxu0 0
      %4166 = vmatprep.subr.bf16.mxu0 0
      %4167 = vmatpush1.bf16.msra.mxu0 0
      %4168 = vmatprep.mubr.bf16.mxu0 0
      %4169 = vmatmul.mubr.bf16.gmra.mrb[0].mxu0 %v4069
      %v4170 = vpop.f32.mrb[0].mxu0
      %v4171 = vadd.f32 0.0, %v4170
      %v4172 = vpop.f32.mrb[0].mxu0
      %v4173 = vpop.f32.mrb[0].mxu0
      %v4174 = vadd.f32 0.0, %v4173
      %v4175 = vpop.f32.mrb[0].mxu0
      %4176 = vmatprep.mubr.bf16.mxu0 0
      %4177 = vmatmul.mubr.bf16.gmra.mrb[0].mxu0 %v4070
      %v4178 = vpop.f32.mrb[0].mxu0
      %v4179 = vadd.f32 0.0, %v4178
      %v4180 = vpop.f32.mrb[0].mxu0
      %v4181 = vpop.f32.mrb[0].mxu0
      %v4182 = vadd.f32 0.0, %v4181
      %v4183 = vpop.f32.mrb[0].mxu0
      %4184 = vdwg.mxu0
      %s4185 = scalar_lea.vmem %s4, 128
      %v4186 = vld [vmem:[%s4185] sm:$0xf]
      %v4187 = vld [vmem:[%s4185 + $0x4] sm:$0xf]
      %v4188 = vld [vmem:[%s4185 + $0x8] sm:$0xf]
      %v4189 = vld [vmem:[%s4185 + $0xc] sm:$0xf]
      %v4190 = vld [vmem:[%s4185 + $0x10] sm:$0xf]
      %v4191 = vld [vmem:[%s4185 + $0x14] sm:$0xf]
      %v4192 = vld [vmem:[%s4185 + $0x18] sm:$0xf]
      %v4193 = vld [vmem:[%s4185 + $0x1c] sm:$0xf]
      %v4194 = vld [vmem:[%s4185 + $0x20] sm:$0xf]
      %v4195 = vld [vmem:[%s4185 + $0x24] sm:$0xf]
      %v4196 = vld [vmem:[%s4185 + $0x28] sm:$0xf]
      %v4197 = vld [vmem:[%s4185 + $0x2c] sm:$0xf]
      %v4198 = vld [vmem:[%s4185 + $0x30] sm:$0xf]
      %v4199 = vld [vmem:[%s4185 + $0x34] sm:$0xf]
      %v4200 = vld [vmem:[%s4185 + $0x38] sm:$0xf]
      %v4201 = vld [vmem:[%s4185 + $0x3c] sm:$0xf]
      %v4218 = vunpack.c.l.b16 %v4186
      %v4219 = vunpack.c.l.b16 %v4187
      %v4220 = vunpack.c.l.b16 %v4188
      %v4221 = vunpack.c.l.b16 %v4189
      %v4222 = vunpack.c.l.b16 %v4190
      %v4223 = vunpack.c.l.b16 %v4191
      %v4224 = vunpack.c.l.b16 %v4192
      %v4225 = vunpack.c.l.b16 %v4193
      %v4226 = vunpack.c.l.b16 %v4194
      %v4227 = vunpack.c.l.b16 %v4195
      %v4228 = vunpack.c.l.b16 %v4196
      %v4229 = vunpack.c.l.b16 %v4197
      %v4230 = vunpack.c.l.b16 %v4198
      %v4231 = vunpack.c.l.b16 %v4199
      %v4232 = vunpack.c.l.b16 %v4200
      %v4233 = vunpack.c.l.b16 %v4201
      %v4234 = vpack.c.b16 %v4219, %v4218
      %v4235 = vpack.c.b16 %v4221, %v4220
      %v4236 = vpack.c.b16 %v4223, %v4222
      %v4237 = vpack.c.b16 %v4225, %v4224
      %v4238 = vpack.c.b16 %v4227, %v4226
      %v4239 = vpack.c.b16 %v4229, %v4228
      %v4240 = vpack.c.b16 %v4231, %v4230
      %v4241 = vpack.c.b16 %v4233, %v4232
      %4250 = vmatprep.subr.bf16.mxu0 0
      %4251 = vmatpush1.bf16.msra.mxu0 %v4234
      %4252 = vmatprep.subr.bf16.mxu0 0
      %4253 = vmatpush1.bf16.msra.mxu0 %v4235
      %4254 = vmatprep.subr.bf16.mxu0 0
      %4255 = vmatpush1.bf16.msra.mxu0 %v4236
      %4256 = vmatprep.subr.bf16.mxu0 0
      %4257 = vmatpush1.bf16.msra.mxu0 %v4237
      %4258 = vmatprep.subr.bf16.mxu0 0
      %4259 = vmatpush1.bf16.msra.mxu0 %v4238
      %4260 = vmatprep.subr.bf16.mxu0 0
      %4261 = vmatpush1.bf16.msra.mxu0 %v4239
      %4262 = vmatprep.subr.bf16.mxu0 0
      %4263 = vmatpush1.bf16.msra.mxu0 %v4240
      %4264 = vmatprep.subr.bf16.mxu0 0
      %4265 = vmatpush1.bf16.msra.mxu0 %v4241
      %4266 = vmatprep.subr.bf16.mxu0 0
      %4267 = vmatpush1.bf16.msra.mxu0 0
      %4268 = vmatprep.subr.bf16.mxu0 0
      %4269 = vmatpush1.bf16.msra.mxu0 0
      %4270 = vmatprep.subr.bf16.mxu0 0
      %4271 = vmatpush1.bf16.msra.mxu0 0
      %4272 = vmatprep.subr.bf16.mxu0 0
      %4273 = vmatpush1.bf16.msra.mxu0 0
      %4274 = vmatprep.subr.bf16.mxu0 0
      %4275 = vmatpush1.bf16.msra.mxu0 0
      %4276 = vmatprep.subr.bf16.mxu0 0
      %4277 = vmatpush1.bf16.msra.mxu0 0
      %4278 = vmatprep.subr.bf16.mxu0 0
      %4279 = vmatpush1.bf16.msra.mxu0 0
      %4280 = vmatprep.subr.bf16.mxu0 0
      %4281 = vmatpush1.bf16.msra.mxu0 0
      %4282 = vmatprep.mubr.bf16.mxu0 0
      %4283 = vmatmul.mubr.bf16.gmra.mrb[0].mxu0 %v4069
      %v4284 = vpop.f32.mrb[0].mxu0
      %v4285 = vadd.f32 0.0, %v4284
      %v4286 = vpop.f32.mrb[0].mxu0
      %v4287 = vpop.f32.mrb[0].mxu0
      %v4288 = vadd.f32 0.0, %v4287
      %v4289 = vpop.f32.mrb[0].mxu0
      %4290 = vmatprep.mubr.bf16.mxu0 0
      %4291 = vmatmul.mubr.bf16.gmra.mrb[0].mxu0 %v4070
      %v4292 = vpop.f32.mrb[0].mxu0
      %v4293 = vadd.f32 0.0, %v4292
      %v4294 = vpop.f32.mrb[0].mxu0
      %v4295 = vpop.f32.mrb[0].mxu0
      %v4296 = vadd.f32 0.0, %v4295
      %v4297 = vpop.f32.mrb[0].mxu0
      %4298 = vdwg.mxu0
      %v4299 = vmax.f32 %v4171, %v4285
      %v4300 = vmax.f32 %v4174, %v4288
      %v4301 = vmax.f32 %v4179, %v4293
      %v4302 = vmax.f32 %v4182, %v4296
      %v4303 = vpack.c.bf16 %v4300, %v4299
      %v4304 = vpack.c.bf16 %v4302, %v4301
      %s4305 = scalar_lea.vmem %s5, 64
      %v4306 = vld [vmem:[%s4305] sm:$0xf]
      %v4307 = vld [vmem:[%s4305 + $0x4] sm:$0xf]
      %s4308 = scalar_lea.vmem %s6, 64
      %v4309 = vld [vmem:[%s4308] sm:$0xf]
      %v4310 = vld [vmem:[%s4308 + $0x4] sm:$0xf]
      %v4313 = vunpack.c.l.b16 %v4306
      %v4314 = vunpack.c.l.b16 %v4307
      %v4315 = vpack.c.b16 %v4314, %v4313
      %vm4316 = vcmask 261120
      %v4318 = vsel %vm4316, %v4315, 0
      %4320 = vmatprep.subr.bf16.mxu0 0
      %4321 = vmatpush1.bf16.msra.mxu0 %v4303
      %4322 = vmatprep.subr.bf16.mxu0 0
      %4323 = vmatpush1.bf16.msra.mxu0 %v4304
      %4324 = vmatprep.subr.bf16.mxu0 0
      %4325 = vmatpush1.bf16.msra.mxu0 0
      %4326 = vmatprep.subr.bf16.mxu0 0
      %4327 = vmatpush1.bf16.msra.mxu0 0
      %4328 = vmatprep.subr.bf16.mxu0 0
      %4329 = vmatpush1.bf16.msra.mxu0 0
      %4330 = vmatprep.subr.bf16.mxu0 0
      %4331 = vmatpush1.bf16.msra.mxu0 0
      %4332 = vmatprep.subr.bf16.mxu0 0
      %4333 = vmatpush1.bf16.msra.mxu0 0
      %4334 = vmatprep.subr.bf16.mxu0 0
      %4335 = vmatpush1.bf16.msra.mxu0 0
      %4336 = vmatprep.subr.bf16.mxu0 0
      %4337 = vmatpush1.bf16.msra.mxu0 0
      %4338 = vmatprep.subr.bf16.mxu0 0
      %4339 = vmatpush1.bf16.msra.mxu0 0
      %4340 = vmatprep.subr.bf16.mxu0 0
      %4341 = vmatpush1.bf16.msra.mxu0 0
      %4342 = vmatprep.subr.bf16.mxu0 0
      %4343 = vmatpush1.bf16.msra.mxu0 0
      %4344 = vmatprep.subr.bf16.mxu0 0
      %4345 = vmatpush1.bf16.msra.mxu0 0
      %4346 = vmatprep.subr.bf16.mxu0 0
      %4347 = vmatpush1.bf16.msra.mxu0 0
      %4348 = vmatprep.subr.bf16.mxu0 0
      %4349 = vmatpush1.bf16.msra.mxu0 0
      %4350 = vmatprep.subr.bf16.mxu0 0
      %4351 = vmatpush1.bf16.msra.mxu0 0
      %4352 = vmatprep.mubr.bf16.mxu0 0
      %4353 = vmatmul.mubr.bf16.gmra.mrb[0].mxu0 %v4318
      %v4354 = vpop.f32.mrb[0].mxu0
      %v4355 = vadd.f32 0.0, %v4354
      %v4356 = vpop.f32.mrb[0].mxu0
      %v4357 = vpop.f32.mrb[0].mxu0
      %v4358 = vadd.f32 0.0, %v4357
      %v4359 = vpop.f32.mrb[0].mxu0
      %4360 = vdwg.mxu0
      %v4363 = vunpack.c.l.b16 %v4309
      %v4364 = vunpack.c.l.b16 %v4310
      %v4365 = vpack.c.b16 %v4364, %v4363
      %v4367 = vsel %vm4316, %v4365, 0
      %4369 = vmatprep.subr.bf16.mxu0 0
      %4370 = vmatpush1.bf16.msra.mxu0 %v4303
      %4371 = vmatprep.subr.bf16.mxu0 0
      %4372 = vmatpush1.bf16.msra.mxu0 %v4304
      %4373 = vmatprep.subr.bf16.mxu0 0
      %4374 = vmatpush1.bf16.msra.mxu0 0
      %4375 = vmatprep.subr.bf16.mxu0 0
      %4376 = vmatpush1.bf16.msra.mxu0 0
      %4377 = vmatprep.subr.bf16.mxu0 0
      %4378 = vmatpush1.bf16.msra.mxu0 0
      %4379 = vmatprep.subr.bf16.mxu0 0
      %4380 = vmatpush1.bf16.msra.mxu0 0
      %4381 = vmatprep.subr.bf16.mxu0 0
      %4382 = vmatpush1.bf16.msra.mxu0 0
      %4383 = vmatprep.subr.bf16.mxu0 0
      %4384 = vmatpush1.bf16.msra.mxu0 0
      %4385 = vmatprep.subr.bf16.mxu0 0
      %4386 = vmatpush1.bf16.msra.mxu0 0
      %4387 = vmatprep.subr.bf16.mxu0 0
      %4388 = vmatpush1.bf16.msra.mxu0 0
      %4389 = vmatprep.subr.bf16.mxu0 0
      %4390 = vmatpush1.bf16.msra.mxu0 0
      %4391 = vmatprep.subr.bf16.mxu0 0
      %4392 = vmatpush1.bf16.msra.mxu0 0
      %4393 = vmatprep.subr.bf16.mxu0 0
      %4394 = vmatpush1.bf16.msra.mxu0 0
      %4395 = vmatprep.subr.bf16.mxu0 0
      %4396 = vmatpush1.bf16.msra.mxu0 0
      %4397 = vmatprep.subr.bf16.mxu0 0
      %4398 = vmatpush1.bf16.msra.mxu0 0
      %4399 = vmatprep.subr.bf16.mxu0 0
      %4400 = vmatpush1.bf16.msra.mxu0 0
      %4401 = vmatprep.mubr.bf16.mxu0 0
      %4402 = vmatmul.mubr.bf16.gmra.mrb[0].mxu0 %v4367
      %v4403 = vpop.f32.mrb[0].mxu0
      %v4404 = vadd.f32 0.0, %v4403
      %v4405 = vpop.f32.mrb[0].mxu0
      %v4406 = vpop.f32.mrb[0].mxu0
      %v4407 = vadd.f32 0.0, %v4406
      %v4408 = vpop.f32.mrb[0].mxu0
      %4409 = vdwg.mxu0
      %v4410 = vmax.f32 %v4355, %v4404
      %v4411 = vmax.f32 %v4358, %v4407
      %4412 = vst.msk [vmem:[#allocation2] sm:$0x1] %vm2236, 0.0
      %4413 = vst.msk [vmem:[#allocation2 + $0x21] sm:$0x1] %vm2236, 0.0
      %v4416 = vrot.slane %v4410, 7
      %v4417 = vrot.slane %v4411, 7
      %v4418 = vsel %vm371, %v4416, %v4417
      %4422 = vst.msk [vmem:[#allocation2] sm:$0xfe] %vm2271, %v4416
      %4423 = vst.msk [vmem:[#allocation2 + $0x10] sm:$0xff] %vm2273, %v4418
      %4424 = vst.msk [vmem:[#allocation2 + $0x20] sm:$0x1] %vm2236, %v4417
      %v4425 = vld [vmem:[#allocation2] sm:$0xff]
      %v4426 = vld [vmem:[#allocation2 + $0x10] sm:$0xff]
      %v4427 = vld [vmem:[#allocation2] sm:$0xfc]
      %v4428 = vld [vmem:[#allocation2 + $0x20] sm:$0x3]
      %v4429 = vand.u32 %v456, 1
      %v4430 = vand.u32 %v457, 1
      %vm4431 = vcmp.eq.s32.totalorder %v4429, 0
      %vm4432 = vcmp.eq.s32.totalorder %v4430, 0
      %v4433 = vsel %vm4431, 0.0, %v4425
      %v4434 = vsel %vm4432, 0.0, %v4426
      %vm4435 = vcmp.eq.s32.totalorder %v4429, 1
      %vm4436 = vcmp.eq.s32.totalorder %v4430, 1
      %v4440 = vrot.slane %v4427, 2
      %v4441 = vrot.slane %v4426, 2
      %v4442 = vsel %vm553, %v4440, %v4441
      %v4443 = vrot.slane %v4428, 2
      %v4444 = vsel %vm553, %v4441, %v4443
      %v4447 = vsel %vm4435, 0.0, %v4442
      %v4448 = vsel %vm4436, 0.0, %v4444
      %4449 = vrot.lane.b32.xlu0 %v4410, 64
      %v4450 = vpop.permute.xlu0 %4449
      %4451 = vrot.lane.b32.xlu0 %v4411, 64
      %v4452 = vpop.permute.xlu0 %4451
      %v4455 = vsel %vm2273, %v4433, %v4450
      %v4456 = vsel %vm2273, %v4434, %v4452
      %v4457 = vpack.c.bf16 %v4456, %v4455
      %v4458 = vpack.c.bf16 %v4448, %v4447
      %v4459 = vld [vmem:[%s1 + $0x3c0] sm:$0xf]
      %v4460 = vld [vmem:[%s1 + $0x3c4] sm:$0xf]
      %v4461 = vld [vmem:[%s1 + $0x3c8] sm:$0xf]
      %v4462 = vld [vmem:[%s1 + $0x3cc] sm:$0xf]
      %v4463 = vld [vmem:[%s1 + $0x3d0] sm:$0xf]
      %v4464 = vld [vmem:[%s1 + $0x3d4] sm:$0xf]
      %v4465 = vld [vmem:[%s1 + $0x3d8] sm:$0xf]
      %v4466 = vld [vmem:[%s1 + $0x3dc] sm:$0xf]
      %v4467 = vld [vmem:[%s1 + $0x3e0] sm:$0xf]
      %v4468 = vld [vmem:[%s1 + $0x3e4] sm:$0xf]
      %v4469 = vld [vmem:[%s1 + $0x3e8] sm:$0xf]
      %v4470 = vld [vmem:[%s1 + $0x3ec] sm:$0xf]
      %v4471 = vld [vmem:[%s1 + $0x3f0] sm:$0xf]
      %v4472 = vld [vmem:[%s1 + $0x3f4] sm:$0xf]
      %v4473 = vld [vmem:[%s1 + $0x3f8] sm:$0xf]
      %v4474 = vld [vmem:[%s1 + $0x3fc] sm:$0xf]
      %v4475 = vld [vmem:[%s1 + $0x400] sm:$0xf]
      %v4476 = vld [vmem:[%s1 + $0x404] sm:$0xf]
      %v4477 = vld [vmem:[%s1 + $0x408] sm:$0xf]
      %v4478 = vld [vmem:[%s1 + $0x40c] sm:$0xf]
      %v4479 = vld [vmem:[%s1 + $0x410] sm:$0xf]
      %v4480 = vld [vmem:[%s1 + $0x414] sm:$0xf]
      %v4481 = vld [vmem:[%s1 + $0x418] sm:$0xf]
      %v4482 = vld [vmem:[%s1 + $0x41c] sm:$0xf]
      %v4483 = vld [vmem:[%s2 + $0x6] sm:$0x1]
      %v4484 = vlaneseq
      %v4485 = vshrl.u32 %v4484, 7
      %v4486 = vsub.s32 0, %v4485
      %v4487 = vrot.slane %v4483, %v4486
      %v4512 = vunpack.c.l.b16 %v4459
      %v4513 = vunpack.c.l.b16 %v4460
      %v4514 = vunpack.c.l.b16 %v4461
      %v4515 = vunpack.c.l.b16 %v4462
      %v4516 = vunpack.c.l.b16 %v4463
      %v4517 = vunpack.c.l.b16 %v4464
      %v4518 = vunpack.c.l.b16 %v4465
      %v4519 = vunpack.c.l.b16 %v4466
      %v4520 = vunpack.c.l.b16 %v4467
      %v4521 = vunpack.c.l.b16 %v4468
      %v4522 = vunpack.c.l.b16 %v4469
      %v4523 = vunpack.c.l.b16 %v4470
      %v4524 = vunpack.c.l.b16 %v4471
      %v4525 = vunpack.c.l.b16 %v4472
      %v4526 = vunpack.c.l.b16 %v4473
      %v4527 = vunpack.c.l.b16 %v4474
      %v4528 = vunpack.c.l.b16 %v4475
      %v4529 = vunpack.c.l.b16 %v4476
      %v4530 = vunpack.c.l.b16 %v4477
      %v4531 = vunpack.c.l.b16 %v4478
      %v4532 = vunpack.c.l.b16 %v4479
      %v4533 = vunpack.c.l.b16 %v4480
      %v4534 = vunpack.c.l.b16 %v4481
      %v4535 = vunpack.c.l.b16 %v4482
      %v4536 = vpack.c.b16 %v4513, %v4512
      %v4537 = vpack.c.b16 %v4515, %v4514
      %v4538 = vpack.c.b16 %v4517, %v4516
      %v4539 = vpack.c.b16 %v4519, %v4518
      %v4540 = vpack.c.b16 %v4521, %v4520
      %v4541 = vpack.c.b16 %v4523, %v4522
      %v4542 = vpack.c.b16 %v4525, %v4524
      %v4543 = vpack.c.b16 %v4527, %v4526
      %v4544 = vpack.c.b16 %v4529, %v4528
      %v4545 = vpack.c.b16 %v4531, %v4530
      %v4546 = vpack.c.b16 %v4533, %v4532
      %v4547 = vpack.c.b16 %v4535, %v4534
      %v4561 = vsel %vm2273, %v4458, 0
      %4563 = vmatprep.subr.bf16.mxu0 0
      %4564 = vmatpush1.bf16.msra.mxu0 %v4536
      %4565 = vmatprep.subr.bf16.mxu0 0
      %4566 = vmatpush1.bf16.msra.mxu0 %v4537
      %4567 = vmatprep.subr.bf16.mxu0 0
      %4568 = vmatpush1.bf16.msra.mxu0 %v4538
      %4569 = vmatprep.subr.bf16.mxu0 0
      %4570 = vmatpush1.bf16.msra.mxu0 %v4539
      %4571 = vmatprep.subr.bf16.mxu0 0
      %4572 = vmatpush1.bf16.msra.mxu0 %v4540
      %4573 = vmatprep.subr.bf16.mxu0 0
      %4574 = vmatpush1.bf16.msra.mxu0 %v4541
      %4575 = vmatprep.subr.bf16.mxu0 0
      %4576 = vmatpush1.bf16.msra.mxu0 %v4542
      %4577 = vmatprep.subr.bf16.mxu0 0
      %4578 = vmatpush1.bf16.msra.mxu0 %v4543
      %4579 = vmatprep.subr.bf16.mxu0 0
      %4580 = vmatpush1.bf16.msra.mxu0 %v4544
      %4581 = vmatprep.subr.bf16.mxu0 0
      %4582 = vmatpush1.bf16.msra.mxu0 %v4545
      %4583 = vmatprep.subr.bf16.mxu0 0
      %4584 = vmatpush1.bf16.msra.mxu0 %v4546
      %4585 = vmatprep.subr.bf16.mxu0 0
      %4586 = vmatpush1.bf16.msra.mxu0 %v4547
      %4587 = vmatprep.subr.bf16.mxu0 0
      %4588 = vmatpush1.bf16.msra.mxu0 0
      %4589 = vmatprep.subr.bf16.mxu0 0
      %4590 = vmatpush1.bf16.msra.mxu0 0
      %4591 = vmatprep.subr.bf16.mxu0 0
      %4592 = vmatpush1.bf16.msra.mxu0 0
      %4593 = vmatprep.subr.bf16.mxu0 0
      %4594 = vmatpush1.bf16.msra.mxu0 0
      %4595 = vmatprep.mubr.bf16.mxu0 %v4561
      %4596 = vmatmul.mubr.bf16.gmra.mrb[0].mxu0 %v4457
      %v4597 = vpop.f32.mrb[0].mxu0
      %v4598 = vadd.f32 %v4487, %v4597
      %v4599 = vpop.f32.mrb[0].mxu0
      %v4600 = vpop.f32.mrb[0].mxu0
      %v4601 = vadd.f32 %v4487, %v4600
      %v4602 = vpop.f32.mrb[0].mxu0
      %4603 = vdwg.mxu0
      %v4604 = vmax.f32 %v4598, 0.0
      %v4605 = vmax.f32 %v4601, 0.0
      %4606 = vst [vmem:[#allocation2] sm:$0x1] 0.0
      %4607 = vst [vmem:[#allocation2 + $0x21] sm:$0x1] 0.0
      %v4610 = vrot.slane %v4604, 7
      %v4611 = vrot.slane %v4605, 7
      %v4612 = vsel %vm371, %v4610, %v4611
      %4616 = vst [vmem:[#allocation2] sm:$0xfe] %v4610
      %4617 = vst [vmem:[#allocation2 + $0x10] sm:$0xff] %v4612
      %4618 = vst [vmem:[#allocation2 + $0x20] sm:$0x1] %v4611
      %v4619 = vld [vmem:[#allocation2] sm:$0xff]
      %v4620 = vld [vmem:[#allocation2 + $0x10] sm:$0xff]
      %v4621 = vld [vmem:[#allocation2] sm:$0xfc]
      %v4622 = vld [vmem:[#allocation2 + $0x20] sm:$0x3]
      %v4623 = vsel %vm4431, 0.0, %v4619
      %v4624 = vsel %vm4432, 0.0, %v4620
      %v4628 = vrot.slane %v4621, 2
      %v4629 = vrot.slane %v4620, 2
      %v4630 = vsel %vm553, %v4628, %v4629
      %v4631 = vrot.slane %v4622, 2
      %v4632 = vsel %vm553, %v4629, %v4631
      %v4635 = vsel %vm4435, 0.0, %v4630
      %v4636 = vsel %vm4436, 0.0, %v4632
      %v4637 = vpack.c.bf16 %v4624, %v4623
      %v4638 = vpack.c.bf16 %v4605, %v4604
      %v4639 = vpack.c.bf16 %v4636, %v4635
      %v4640 = vld [vmem:[%s1 + $0x420] sm:$0xf]
      %v4641 = vld [vmem:[%s1 + $0x424] sm:$0xf]
      %v4642 = vld [vmem:[%s1 + $0x428] sm:$0xf]
      %v4643 = vld [vmem:[%s1 + $0x42c] sm:$0xf]
      %v4644 = vld [vmem:[%s1 + $0x430] sm:$0xf]
      %v4645 = vld [vmem:[%s1 + $0x434] sm:$0xf]
      %v4646 = vld [vmem:[%s1 + $0x438] sm:$0xf]
      %v4647 = vld [vmem:[%s1 + $0x43c] sm:$0xf]
      %v4648 = vld [vmem:[%s1 + $0x440] sm:$0xf]
      %v4649 = vld [vmem:[%s1 + $0x444] sm:$0xf]
      %v4650 = vld [vmem:[%s1 + $0x448] sm:$0xf]
      %v4651 = vld [vmem:[%s1 + $0x44c] sm:$0xf]
      %v4652 = vld [vmem:[%s1 + $0x450] sm:$0xf]
      %v4653 = vld [vmem:[%s1 + $0x454] sm:$0xf]
      %v4654 = vld [vmem:[%s1 + $0x458] sm:$0xf]
      %v4655 = vld [vmem:[%s1 + $0x45c] sm:$0xf]
      %v4656 = vld [vmem:[%s1 + $0x460] sm:$0xf]
      %v4657 = vld [vmem:[%s1 + $0x464] sm:$0xf]
      %v4658 = vld [vmem:[%s1 + $0x468] sm:$0xf]
      %v4659 = vld [vmem:[%s1 + $0x46c] sm:$0xf]
      %v4660 = vld [vmem:[%s1 + $0x470] sm:$0xf]
      %v4661 = vld [vmem:[%s1 + $0x474] sm:$0xf]
      %v4662 = vld [vmem:[%s1 + $0x478] sm:$0xf]
      %v4663 = vld [vmem:[%s1 + $0x47c] sm:$0xf]
      %v4664 = vld [vmem:[%s1 + $0x480] sm:$0xf]
      %v4665 = vld [vmem:[%s1 + $0x484] sm:$0xf]
      %v4666 = vld [vmem:[%s1 + $0x488] sm:$0xf]
      %v4667 = vld [vmem:[%s1 + $0x48c] sm:$0xf]
      %v4668 = vld [vmem:[%s1 + $0x490] sm:$0xf]
      %v4669 = vld [vmem:[%s1 + $0x494] sm:$0xf]
      %v4670 = vld [vmem:[%s1 + $0x498] sm:$0xf]
      %v4671 = vld [vmem:[%s1 + $0x49c] sm:$0xf]
      %v4672 = vld [vmem:[%s1 + $0x4a0] sm:$0xf]
      %v4673 = vld [vmem:[%s1 + $0x4a4] sm:$0xf]
      %v4674 = vld [vmem:[%s1 + $0x4a8] sm:$0xf]
      %v4675 = vld [vmem:[%s1 + $0x4ac] sm:$0xf]
      %v4676 = vld [vmem:[%s1 + $0x4b0] sm:$0xf]
      %v4677 = vld [vmem:[%s1 + $0x4b4] sm:$0xf]
      %v4678 = vld [vmem:[%s1 + $0x4b8] sm:$0xf]
      %v4679 = vld [vmem:[%s1 + $0x4bc] sm:$0xf]
      %v4680 = vld [vmem:[%s1 + $0x4c0] sm:$0xf]
      %v4681 = vld [vmem:[%s1 + $0x4c4] sm:$0xf]
      %v4682 = vld [vmem:[%s1 + $0x4c8] sm:$0xf]
      %v4683 = vld [vmem:[%s1 + $0x4cc] sm:$0xf]
      %v4684 = vld [vmem:[%s1 + $0x4d0] sm:$0xf]
      %v4685 = vld [vmem:[%s1 + $0x4d4] sm:$0xf]
      %v4686 = vld [vmem:[%s1 + $0x4d8] sm:$0xf]
      %v4687 = vld [vmem:[%s1 + $0x4dc] sm:$0xf]
      %v4688 = vld [vmem:[%s2 + $0x7] sm:$0x1]
      %v4689 = vlaneseq
      %v4690 = vshrl.u32 %v4689, 7
      %v4691 = vsub.s32 0, %v4690
      %v4692 = vrot.slane %v4688, %v4691
      %v4741 = vunpack.c.l.b16 %v4640
      %v4742 = vunpack.c.l.b16 %v4641
      %v4743 = vunpack.c.l.b16 %v4642
      %v4744 = vunpack.c.l.b16 %v4643
      %v4745 = vunpack.c.l.b16 %v4644
      %v4746 = vunpack.c.l.b16 %v4645
      %v4747 = vunpack.c.l.b16 %v4646
      %v4748 = vunpack.c.l.b16 %v4647
      %v4749 = vunpack.c.l.b16 %v4648
      %v4750 = vunpack.c.l.b16 %v4649
      %v4751 = vunpack.c.l.b16 %v4650
      %v4752 = vunpack.c.l.b16 %v4651
      %v4753 = vunpack.c.l.b16 %v4652
      %v4754 = vunpack.c.l.b16 %v4653
      %v4755 = vunpack.c.l.b16 %v4654
      %v4756 = vunpack.c.l.b16 %v4655
      %v4757 = vunpack.c.l.b16 %v4656
      %v4758 = vunpack.c.l.b16 %v4657
      %v4759 = vunpack.c.l.b16 %v4658
      %v4760 = vunpack.c.l.b16 %v4659
      %v4761 = vunpack.c.l.b16 %v4660
      %v4762 = vunpack.c.l.b16 %v4661
      %v4763 = vunpack.c.l.b16 %v4662
      %v4764 = vunpack.c.l.b16 %v4663
      %v4765 = vunpack.c.l.b16 %v4664
      %v4766 = vunpack.c.l.b16 %v4665
      %v4767 = vunpack.c.l.b16 %v4666
      %v4768 = vunpack.c.l.b16 %v4667
      %v4769 = vunpack.c.l.b16 %v4668
      %v4770 = vunpack.c.l.b16 %v4669
      %v4771 = vunpack.c.l.b16 %v4670
      %v4772 = vunpack.c.l.b16 %v4671
      %v4773 = vunpack.c.l.b16 %v4672
      %v4774 = vunpack.c.l.b16 %v4673
      %v4775 = vunpack.c.l.b16 %v4674
      %v4776 = vunpack.c.l.b16 %v4675
      %v4777 = vunpack.c.l.b16 %v4676
      %v4778 = vunpack.c.l.b16 %v4677
      %v4779 = vunpack.c.l.b16 %v4678
      %v4780 = vunpack.c.l.b16 %v4679
      %v4781 = vunpack.c.l.b16 %v4680
      %v4782 = vunpack.c.l.b16 %v4681
      %v4783 = vunpack.c.l.b16 %v4682
      %v4784 = vunpack.c.l.b16 %v4683
      %v4785 = vunpack.c.l.b16 %v4684
      %v4786 = vunpack.c.l.b16 %v4685
      %v4787 = vunpack.c.l.b16 %v4686
      %v4788 = vunpack.c.l.b16 %v4687
      %v4789 = vpack.c.b16 %v4742, %v4741
      %v4790 = vpack.c.b16 %v4744, %v4743
      %v4791 = vpack.c.b16 %v4746, %v4745
      %v4792 = vpack.c.b16 %v4748, %v4747
      %v4793 = vpack.c.b16 %v4750, %v4749
      %v4794 = vpack.c.b16 %v4752, %v4751
      %v4795 = vpack.c.b16 %v4754, %v4753
      %v4796 = vpack.c.b16 %v4756, %v4755
      %v4797 = vpack.c.b16 %v4758, %v4757
      %v4798 = vpack.c.b16 %v4760, %v4759
      %v4799 = vpack.c.b16 %v4762, %v4761
      %v4800 = vpack.c.b16 %v4764, %v4763
      %v4801 = vpack.c.b16 %v4766, %v4765
      %v4802 = vpack.c.b16 %v4768, %v4767
      %v4803 = vpack.c.b16 %v4770, %v4769
      %v4804 = vpack.c.b16 %v4772, %v4771
      %v4805 = vpack.c.b16 %v4774, %v4773
      %v4806 = vpack.c.b16 %v4776, %v4775
      %v4807 = vpack.c.b16 %v4778, %v4777
      %v4808 = vpack.c.b16 %v4780, %v4779
      %v4809 = vpack.c.b16 %v4782, %v4781
      %v4810 = vpack.c.b16 %v4784, %v4783
      %v4811 = vpack.c.b16 %v4786, %v4785
      %v4812 = vpack.c.b16 %v4788, %v4787
      %4837 = vmatprep.subr.bf16.mxu0 0
      %4838 = vmatpush1.bf16.msra.mxu0 %v4789
      %4839 = vmatprep.subr.bf16.mxu0 0
      %4840 = vmatpush1.bf16.msra.mxu0 %v4790
      %4841 = vmatprep.subr.bf16.mxu0 0
      %4842 = vmatpush1.bf16.msra.mxu0 %v4791
      %4843 = vmatprep.subr.bf16.mxu0 0
      %4844 = vmatpush1.bf16.msra.mxu0 %v4792
      %4845 = vmatprep.subr.bf16.mxu0 0
      %4846 = vmatpush1.bf16.msra.mxu0 %v4793
      %4847 = vmatprep.subr.bf16.mxu0 0
      %4848 = vmatpush1.bf16.msra.mxu0 %v4794
      %4849 = vmatprep.subr.bf16.mxu0 0
      %4850 = vmatpush1.bf16.msra.mxu0 %v4795
      %4851 = vmatprep.subr.bf16.mxu0 0
      %4852 = vmatpush1.bf16.msra.mxu0 %v4796
      %4853 = vmatprep.subr.bf16.mxu0 0
      %4854 = vmatpush1.bf16.msra.mxu0 %v4797
      %4855 = vmatprep.subr.bf16.mxu0 0
      %4856 = vmatpush1.bf16.msra.mxu0 %v4798
      %4857 = vmatprep.subr.bf16.mxu0 0
      %4858 = vmatpush1.bf16.msra.mxu0 %v4799
      %4859 = vmatprep.subr.bf16.mxu0 0
      %4860 = vmatpush1.bf16.msra.mxu0 %v4800
      %4861 = vmatprep.subr.bf16.mxu0 0
      %4862 = vmatpush1.bf16.msra.mxu0 %v4801
      %4863 = vmatprep.subr.bf16.mxu0 0
      %4864 = vmatpush1.bf16.msra.mxu0 %v4802
      %4865 = vmatprep.subr.bf16.mxu0 0
      %4866 = vmatpush1.bf16.msra.mxu0 %v4803
      %4867 = vmatprep.subr.bf16.mxu0 0
      %4868 = vmatpush1.bf16.msra.mxu0 %v4804
      %4869 = vmatprep.mubr.bf16.mxu0 %v4638
      %4870 = vmatmul.mubr.bf16.gmra.mrb[0].mxu0 %v4637
      %v4871 = vpop.f32.mrb[0].mxu0
      %v4872 = vadd.f32 %v4692, %v4871
      %v4873 = vpop.f32.mrb[0].mxu0
      %v4874 = vpop.f32.mrb[0].mxu0
      %v4875 = vadd.f32 %v4692, %v4874
      %v4876 = vpop.f32.mrb[0].mxu0
      %4877 = vdwg.mxu0
      %4878 = vmatprep.subr.bf16.mxu0 0
      %4879 = vmatpush1.bf16.msra.mxu0 %v4805
      %4880 = vmatprep.subr.bf16.mxu0 0
      %4881 = vmatpush1.bf16.msra.mxu0 %v4806
      %4882 = vmatprep.subr.bf16.mxu0 0
      %4883 = vmatpush1.bf16.msra.mxu0 %v4807
      %4884 = vmatprep.subr.bf16.mxu0 0
      %4885 = vmatpush1.bf16.msra.mxu0 %v4808
      %4886 = vmatprep.subr.bf16.mxu0 0
      %4887 = vmatpush1.bf16.msra.mxu0 %v4809
      %4888 = vmatprep.subr.bf16.mxu0 0
      %4889 = vmatpush1.bf16.msra.mxu0 %v4810
      %4890 = vmatprep.subr.bf16.mxu0 0
      %4891 = vmatpush1.bf16.msra.mxu0 %v4811
      %4892 = vmatprep.subr.bf16.mxu0 0
      %4893 = vmatpush1.bf16.msra.mxu0 %v4812
      %4894 = vmatprep.subr.bf16.mxu0 0
      %4895 = vmatpush1.bf16.msra.mxu0 0
      %4896 = vmatprep.subr.bf16.mxu0 0
      %4897 = vmatpush1.bf16.msra.mxu0 0
      %4898 = vmatprep.subr.bf16.mxu0 0
      %4899 = vmatpush1.bf16.msra.mxu0 0
      %4900 = vmatprep.subr.bf16.mxu0 0
      %4901 = vmatpush1.bf16.msra.mxu0 0
      %4902 = vmatprep.subr.bf16.mxu0 0
      %4903 = vmatpush1.bf16.msra.mxu0 0
      %4904 = vmatprep.subr.bf16.mxu0 0
      %4905 = vmatpush1.bf16.msra.mxu0 0
      %4906 = vmatprep.subr.bf16.mxu0 0
      %4907 = vmatpush1.bf16.msra.mxu0 0
      %4908 = vmatprep.subr.bf16.mxu0 0
      %4909 = vmatpush1.bf16.msra.mxu0 0
      %4910 = vmatprep.mubr.bf16.mxu0 0
      %4911 = vmatmul.mubr.bf16.gmra.mrb[0].mxu0 %v4639
      %v4912 = vpop.f32.mrb[0].mxu0
      %v4913 = vadd.f32 %v4872, %v4912
      %v4914 = vpop.f32.mrb[0].mxu0
      %v4915 = vpop.f32.mrb[0].mxu0
      %v4916 = vadd.f32 %v4875, %v4915
      %v4917 = vpop.f32.mrb[0].mxu0
      %4918 = vdwg.mxu0
      %v4919 = vmax.f32 %v4913, 0.0
      %v4920 = vmax.f32 %v4916, 0.0
      %v4921 = vld [vmem:[%s7] sm:$0xf]
      %v4922 = vld [vmem:[%s7 + $0x4] sm:$0xf]
      %v4923 = vld [vmem:[%s7 + $0x8] sm:$0xf]
      %v4924 = vld [vmem:[%s7 + $0xc] sm:$0xf]
      %v4925 = vpack.c.bf16 %v4920, %v4919
      %v4930 = vunpack.c.l.b16 %v4921
      %v4931 = vunpack.c.l.b16 %v4922
      %v4932 = vunpack.c.l.b16 %v4923
      %v4933 = vunpack.c.l.b16 %v4924
      %v4934 = vpack.c.b16 %v4931, %v4930
      %v4935 = vpack.c.b16 %v4933, %v4932
      %vm4936 = vcmask 130048
      %v4938 = vsel %vm4936, %v4934, 0
      %v4941 = vsel %vm4936, %v4935, 0
      %4943 = vmatprep.subr.bf16.mxu0 0
      %4944 = vmatpush1.bf16.msra.mxu0 %v4925
      %4945 = vmatprep.subr.bf16.mxu0 0
      %4946 = vmatpush1.bf16.msra.mxu0 0
      %4947 = vmatprep.subr.bf16.mxu0 0
      %4948 = vmatpush1.bf16.msra.mxu0 0
      %4949 = vmatprep.subr.bf16.mxu0 0
      %4950 = vmatpush1.bf16.msra.mxu0 0
      %4951 = vmatprep.subr.bf16.mxu0 0
      %4952 = vmatpush1.bf16.msra.mxu0 0
      %4953 = vmatprep.subr.bf16.mxu0 0
      %4954 = vmatpush1.bf16.msra.mxu0 0
      %4955 = vmatprep.subr.bf16.mxu0 0
      %4956 = vmatpush1.bf16.msra.mxu0 0
      %4957 = vmatprep.subr.bf16.mxu0 0
      %4958 = vmatpush1.bf16.msra.mxu0 0
      %4959 = vmatprep.subr.bf16.mxu0 0
      %4960 = vmatpush1.bf16.msra.mxu0 0
      %4961 = vmatprep.subr.bf16.mxu0 0
      %4962 = vmatpush1.bf16.msra.mxu0 0
      %4963 = vmatprep.subr.bf16.mxu0 0
      %4964 = vmatpush1.bf16.msra.mxu0 0
      %4965 = vmatprep.subr.bf16.mxu0 0
      %4966 = vmatpush1.bf16.msra.mxu0 0
      %4967 = vmatprep.subr.bf16.mxu0 0
      %4968 = vmatpush1.bf16.msra.mxu0 0
      %4969 = vmatprep.subr.bf16.mxu0 0
      %4970 = vmatpush1.bf16.msra.mxu0 0
      %4971 = vmatprep.subr.bf16.mxu0 0
      %4972 = vmatpush1.bf16.msra.mxu0 0
      %4973 = vmatprep.subr.bf16.mxu0 0
      %4974 = vmatpush1.bf16.msra.mxu0 0
      %4975 = vmatprep.mubr.bf16.mxu0 0
      %4976 = vmatmul.mubr.bf16.gmra.mrb[0].mxu0 %v4938
      %v4977 = vpop.f32.mrb[0].mxu0
      %v4978 = vadd.f32 0.0, %v4977
      %v4979 = vpop.f32.mrb[0].mxu0
      %v4980 = vpop.f32.mrb[0].mxu0
      %v4981 = vadd.f32 0.0, %v4980
      %v4982 = vpop.f32.mrb[0].mxu0
      %4983 = vmatprep.mubr.bf16.mxu0 0
      %4984 = vmatmul.mubr.bf16.gmra.mrb[0].mxu0 %v4941
      %v4985 = vpop.f32.mrb[0].mxu0
      %v4986 = vadd.f32 0.0, %v4985
      %v4987 = vpop.f32.mrb[0].mxu0
      %v4988 = vpop.f32.mrb[0].mxu0
      %v4989 = vadd.f32 0.0, %v4988
      %v4990 = vpop.f32.mrb[0].mxu0
      %4991 = vdwg.mxu0
      %v4992 = vpack.c.bf16 %v4981, %v4978
      %v4993 = vpack.c.bf16 %v4989, %v4986
      %v4994 = vld [vmem:[%s8] sm:$0xff]
      %v4995 = vld [vmem:[%s8 + $0x8] sm:$0xff]
      %v4996 = vld [vmem:[%s8 + $0x10] sm:$0xff]
      %v4997 = vld [vmem:[%s8 + $0x18] sm:$0xff]
      %v4998 = vld [vmem:[%s8 + $0x20] sm:$0xff]
      %v4999 = vld [vmem:[%s8 + $0x28] sm:$0xff]
      %v5000 = vld [vmem:[%s8 + $0x30] sm:$0xff]
      %v5001 = vld [vmem:[%s8 + $0x38] sm:$0xff]
      %v5002 = vld [vmem:[%s8 + $0x40] sm:$0xff]
      %v5003 = vld [vmem:[%s8 + $0x48] sm:$0xff]
      %v5004 = vld [vmem:[%s8 + $0x50] sm:$0xff]
      %v5005 = vld [vmem:[%s8 + $0x58] sm:$0xff]
      %v5006 = vld [vmem:[%s8 + $0x60] sm:$0xff]
      %v5007 = vld [vmem:[%s8 + $0x68] sm:$0xff]
      %v5008 = vld [vmem:[%s8 + $0x70] sm:$0xff]
      %v5009 = vld [vmem:[%s8 + $0x78] sm:$0xff]
      %v5026 = vunpack.c.l.b16 %v4994
      %v5027 = vunpack.c.h.b16 %v4994
      %v5028 = vunpack.c.l.b16 %v4995
      %v5029 = vunpack.c.h.b16 %v4995
      %v5030 = vunpack.c.l.b16 %v4996
      %v5031 = vunpack.c.h.b16 %v4996
      %v5032 = vunpack.c.l.b16 %v4997
      %v5033 = vunpack.c.h.b16 %v4997
      %v5034 = vunpack.c.l.b16 %v4998
      %v5035 = vunpack.c.h.b16 %v4998
      %v5036 = vunpack.c.l.b16 %v4999
      %v5037 = vunpack.c.h.b16 %v4999
      %v5038 = vunpack.c.l.b16 %v5000
      %v5039 = vunpack.c.h.b16 %v5000
      %v5040 = vunpack.c.l.b16 %v5001
      %v5041 = vunpack.c.h.b16 %v5001
      %v5042 = vunpack.c.l.b16 %v5002
      %v5043 = vunpack.c.h.b16 %v5002
      %v5044 = vunpack.c.l.b16 %v5003
      %v5045 = vunpack.c.h.b16 %v5003
      %v5046 = vunpack.c.l.b16 %v5004
      %v5047 = vunpack.c.h.b16 %v5004
      %v5048 = vunpack.c.l.b16 %v5005
      %v5049 = vunpack.c.h.b16 %v5005
      %v5050 = vunpack.c.l.b16 %v5006
      %v5051 = vunpack.c.h.b16 %v5006
      %v5052 = vunpack.c.l.b16 %v5007
      %v5053 = vunpack.c.h.b16 %v5007
      %v5054 = vunpack.c.l.b16 %v5008
      %v5055 = vunpack.c.h.b16 %v5008
      %v5056 = vunpack.c.l.b16 %v5009
      %v5057 = vunpack.c.h.b16 %v5009
      %v5058 = vpack.c.b16 %v5028, %v5026
      %v5059 = vpack.c.b16 %v5029, %v5027
      %v5060 = vpack.c.b16 %v5032, %v5030
      %v5061 = vpack.c.b16 %v5033, %v5031
      %v5062 = vpack.c.b16 %v5036, %v5034
      %v5063 = vpack.c.b16 %v5037, %v5035
      %v5064 = vpack.c.b16 %v5040, %v5038
      %v5065 = vpack.c.b16 %v5041, %v5039
      %v5066 = vpack.c.b16 %v5044, %v5042
      %v5067 = vpack.c.b16 %v5045, %v5043
      %v5068 = vpack.c.b16 %v5048, %v5046
      %v5069 = vpack.c.b16 %v5049, %v5047
      %v5070 = vpack.c.b16 %v5052, %v5050
      %v5071 = vpack.c.b16 %v5053, %v5051
      %v5072 = vpack.c.b16 %v5056, %v5054
      %v5073 = vpack.c.b16 %v5057, %v5055
      %5090 = vmatprep.subr.bf16.mxu0 %v5059
      %5091 = vmatpush1.bf16.msra.mxu0 %v5058
      %5092 = vmatprep.subr.bf16.mxu0 %v5061
      %5093 = vmatpush1.bf16.msra.mxu0 %v5060
      %5094 = vmatprep.subr.bf16.mxu0 %v5063
      %5095 = vmatpush1.bf16.msra.mxu0 %v5062
      %5096 = vmatprep.subr.bf16.mxu0 %v5065
      %5097 = vmatpush1.bf16.msra.mxu0 %v5064
      %5098 = vmatprep.subr.bf16.mxu0 %v5067
      %5099 = vmatpush1.bf16.msra.mxu0 %v5066
      %5100 = vmatprep.subr.bf16.mxu0 %v5069
      %5101 = vmatpush1.bf16.msra.mxu0 %v5068
      %5102 = vmatprep.subr.bf16.mxu0 %v5071
      %5103 = vmatpush1.bf16.msra.mxu0 %v5070
      %5104 = vmatprep.subr.bf16.mxu0 %v5073
      %5105 = vmatpush1.bf16.msra.mxu0 %v5072
      %5106 = vmatprep.subr.bf16.mxu0 0
      %5107 = vmatpush1.bf16.msra.mxu0 0
      %5108 = vmatprep.subr.bf16.mxu0 0
      %5109 = vmatpush1.bf16.msra.mxu0 0
      %5110 = vmatprep.subr.bf16.mxu0 0
      %5111 = vmatpush1.bf16.msra.mxu0 0
      %5112 = vmatprep.subr.bf16.mxu0 0
      %5113 = vmatpush1.bf16.msra.mxu0 0
      %5114 = vmatprep.subr.bf16.mxu0 0
      %5115 = vmatpush1.bf16.msra.mxu0 0
      %5116 = vmatprep.subr.bf16.mxu0 0
      %5117 = vmatpush1.bf16.msra.mxu0 0
      %5118 = vmatprep.subr.bf16.mxu0 0
      %5119 = vmatpush1.bf16.msra.mxu0 0
      %5120 = vmatprep.subr.bf16.mxu0 0
      %5121 = vmatpush1.bf16.msra.mxu0 0
      %5122 = vmatprep.mubr.bf16.mxu0 0
      %5123 = vmatmul.mubr.bf16.gmra.mrb[0].mxu0 %v4992
      %v5124 = vpop.f32.mrb[0].mxu0
      %v5125 = vadd.f32 0.0, %v5124
      %v5126 = vpop.f32.mrb[0].mxu0
      %v5127 = vadd.f32 0.0, %v5126
      %v5128 = vpop.f32.mrb[0].mxu0
      %v5129 = vadd.f32 0.0, %v5128
      %v5130 = vpop.f32.mrb[0].mxu0
      %v5131 = vadd.f32 0.0, %v5130
      %5132 = vmatprep.mubr.bf16.mxu0 0
      %5133 = vmatmul.mubr.bf16.gmra.mrb[0].mxu0 %v4993
      %v5134 = vpop.f32.mrb[0].mxu0
      %v5135 = vadd.f32 0.0, %v5134
      %v5136 = vpop.f32.mrb[0].mxu0
      %v5137 = vadd.f32 0.0, %v5136
      %v5138 = vpop.f32.mrb[0].mxu0
      %v5139 = vadd.f32 0.0, %v5138
      %v5140 = vpop.f32.mrb[0].mxu0
      %v5141 = vadd.f32 0.0, %v5140
      %5142 = vdwg.mxu0
      %5143 = vst [vmem:[#allocation2] sm:$0x1] 0.0
      %5144 = vst [vmem:[#allocation2 + $0x41] sm:$0x1] 0.0
      %v5149 = vrot.slane %v4065, 7
      %v5150 = vrot.slane %v4066, 7
      %v5151 = vsel %vm371, %v5149, %v5150
      %v5152 = vrot.slane %v4067, 7
      %v5153 = vsel %vm371, %v5150, %v5152
      %v5154 = vrot.slane %v4068, 7
      %v5155 = vsel %vm371, %v5152, %v5154
      %5161 = vst [vmem:[#allocation2] sm:$0xfe] %v5149
      %5162 = vst [vmem:[#allocation2 + $0x10] sm:$0xff] %v5151
      %5163 = vst [vmem:[#allocation2 + $0x20] sm:$0xff] %v5153
      %5164 = vst [vmem:[#allocation2 + $0x30] sm:$0xff] %v5155
      %5165 = vst [vmem:[#allocation2 + $0x40] sm:$0x1] %v5154
      %v5166 = vld [vmem:[#allocation2] sm:$0xff]
      %v5167 = vld [vmem:[#allocation2 + $0x10] sm:$0xff]
      %v5168 = vld [vmem:[#allocation2 + $0x20] sm:$0xff]
      %v5169 = vld [vmem:[#allocation2 + $0x30] sm:$0xff]
      %v5170 = vld [vmem:[#allocation2] sm:$0xfc]
      %v5171 = vld [vmem:[#allocation2 + $0x40] sm:$0x3]
      %v5172 = vsel %vm3495, 0.0, %v5166
      %v5173 = vsel %vm3496, 0.0, %v5167
      %v5174 = vsel %vm3497, 0.0, %v5168
      %v5175 = vsel %vm3498, 0.0, %v5169
      %v5181 = vrot.slane %v5170, 2
      %v5182 = vrot.slane %v5167, 2
      %v5183 = vsel %vm553, %v5181, %v5182
      %v5184 = vrot.slane %v5168, 2
      %v5185 = vsel %vm553, %v5182, %v5184
      %v5186 = vrot.slane %v5169, 2
      %v5187 = vsel %vm553, %v5184, %v5186
      %v5188 = vrot.slane %v5171, 2
      %v5189 = vsel %vm553, %v5186, %v5188
      %v5194 = vsel %vm3503, 0.0, %v5183
      %v5195 = vsel %vm3504, 0.0, %v5185
      %v5196 = vsel %vm3505, 0.0, %v5187
      %v5197 = vsel %vm3506, 0.0, %v5189
      %v5198 = vpack.c.bf16 %v5173, %v5172
      %v5199 = vpack.c.bf16 %v5195, %v5194
      %v5200 = vpack.c.bf16 %v5175, %v5174
      %v5201 = vpack.c.bf16 %v5197, %v5196
      %v5202 = vlaneseq
      %vm5203 = vcmp.ge.s32.totalorder %v5202, 0
      %vm5204 = vcmp.lt.s32.totalorder %v5202, 256
      %vm5205 = vmand %vm5203, %vm5204
      %5206 = vst.msk [vmem:[#allocation2] ss:$8 sm:$0x3] %vm5205, 0.0
      %5207 = vst.msk [vmem:[#allocation2] ss:$8 sm:$0x0] %vm5205, 0.0
      %s5208 = scalar_lea.vmem [#allocation2], 65
      %5209 = vst.msk [vmem:[%s5208] ss:$8 sm:$0x3] %vm5205, 0.0
      %5210 = vst.msk [vmem:[%s5208] ss:$8 sm:$0x0] %vm5205, 0.0
      %v5219 = vrot.slane %v5125, 7
      %v5220 = vrot.slane %v5127, 7
      %v5221 = vrot.slane %v5129, 7
      %v5222 = vsel %vm371, %v5219, %v5221
      %v5223 = vrot.slane %v5131, 7
      %v5224 = vsel %vm371, %v5220, %v5223
      %v5225 = vrot.slane %v5135, 7
      %v5226 = vsel %vm371, %v5221, %v5225
      %v5227 = vrot.slane %v5137, 7
      %v5228 = vsel %vm371, %v5223, %v5227
      %v5229 = vrot.slane %v5139, 7
      %v5230 = vsel %vm371, %v5225, %v5229
      %v5231 = vrot.slane %v5141, 7
      %v5232 = vsel %vm371, %v5227, %v5231
      %5243 = vst [vmem:[#allocation2] sm:$0xfe] %v5219
      %5244 = vst [vmem:[#allocation2 + $0x8] sm:$0xfe] %v5220
      %5245 = vst [vmem:[#allocation2 + $0x10] sm:$0xff] %v5222
      %5246 = vst [vmem:[#allocation2 + $0x18] sm:$0xff] %v5224
      %5247 = vst [vmem:[#allocation2 + $0x20] sm:$0xff] %v5226
      %5248 = vst [vmem:[#allocation2 + $0x28] sm:$0xff] %v5228
      %5249 = vst [vmem:[#allocation2 + $0x30] sm:$0xff] %v5230
      %5250 = vst [vmem:[#allocation2 + $0x38] sm:$0xff] %v5232
      %5251 = vst [vmem:[#allocation2 + $0x40] sm:$0x1] %v5229
      %5252 = vst [vmem:[#allocation2 + $0x48] sm:$0x1] %v5231
      %v5253 = vld [vmem:[#allocation2] sm:$0xff]
      %v5254 = vld [vmem:[#allocation2 + $0x8] sm:$0xff]
      %v5255 = vld [vmem:[#allocation2 + $0x10] sm:$0xff]
      %v5256 = vld [vmem:[#allocation2 + $0x18] sm:$0xff]
      %v5257 = vld [vmem:[#allocation2 + $0x20] sm:$0xff]
      %v5258 = vld [vmem:[#allocation2 + $0x28] sm:$0xff]
      %v5259 = vld [vmem:[#allocation2 + $0x30] sm:$0xff]
      %v5260 = vld [vmem:[#allocation2 + $0x38] sm:$0xff]
      %v5261 = vld [vmem:[#allocation2] sm:$0xfc]
      %v5262 = vld [vmem:[#allocation2 + $0x8] sm:$0xfc]
      %v5263 = vld [vmem:[#allocation2 + $0x40] sm:$0x3]
      %v5264 = vld [vmem:[#allocation2 + $0x48] sm:$0x3]
      %v5265 = vsel %vm3495, 0.0, %v5253
      %v5266 = vsel %vm3495, 0.0, %v5254
      %v5267 = vsel %vm3496, 0.0, %v5255
      %v5268 = vsel %vm3496, 0.0, %v5256
      %v5269 = vsel %vm3497, 0.0, %v5257
      %v5270 = vsel %vm3497, 0.0, %v5258
      %v5271 = vsel %vm3498, 0.0, %v5259
      %v5272 = vsel %vm3498, 0.0, %v5260
      %v5283 = vrot.slane %v5261, 2
      %v5284 = vrot.slane %v5255, 2
      %v5285 = vsel %vm553, %v5283, %v5284
      %v5286 = vrot.slane %v5262, 2
      %v5287 = vrot.slane %v5256, 2
      %v5288 = vsel %vm553, %v5286, %v5287
      %v5289 = vrot.slane %v5257, 2
      %v5290 = vsel %vm553, %v5284, %v5289
      %v5291 = vrot.slane %v5258, 2
      %v5292 = vsel %vm553, %v5287, %v5291
      %v5293 = vrot.slane %v5259, 2
      %v5294 = vsel %vm553, %v5289, %v5293
      %v5295 = vrot.slane %v5260, 2
      %v5296 = vsel %vm553, %v5291, %v5295
      %v5297 = vrot.slane %v5263, 2
      %v5298 = vsel %vm553, %v5293, %v5297
      %v5299 = vrot.slane %v5264, 2
      %v5300 = vsel %vm553, %v5295, %v5299
      %v5309 = vsel %vm3503, 0.0, %v5285
      %v5310 = vsel %vm3503, 0.0, %v5288
      %v5311 = vsel %vm3504, 0.0, %v5290
      %v5312 = vsel %vm3504, 0.0, %v5292
      %v5313 = vsel %vm3505, 0.0, %v5294
      %v5314 = vsel %vm3505, 0.0, %v5296
      %v5315 = vsel %vm3506, 0.0, %v5298
      %v5316 = vsel %vm3506, 0.0, %v5300
      %v5317 = vpack.c.bf16 %v5267, %v5265
      %v5318 = vpack.c.bf16 %v5268, %v5266
      %v5319 = vpack.c.bf16 %v5129, %v5125
      %v5320 = vpack.c.bf16 %v5131, %v5127
      %v5321 = vpack.c.bf16 %v5311, %v5309
      %v5322 = vpack.c.bf16 %v5312, %v5310
      %v5323 = vpack.c.bf16 %v5271, %v5269
      %v5324 = vpack.c.bf16 %v5272, %v5270
      %v5325 = vpack.c.bf16 %v5139, %v5135
      %v5326 = vpack.c.bf16 %v5141, %v5137
      %v5327 = vpack.c.bf16 %v5315, %v5313
      %v5328 = vpack.c.bf16 %v5316, %v5314
      %v5329 = vld [vmem:[%s1 + $0x4e0] sm:$0xf]
      %v5330 = vld [vmem:[%s1 + $0x4e4] sm:$0xf]
      %v5331 = vld [vmem:[%s1 + $0x4e8] sm:$0xf]
      %v5332 = vld [vmem:[%s1 + $0x4ec] sm:$0xf]
      %v5333 = vld [vmem:[%s1 + $0x4f0] sm:$0xf]
      %v5334 = vld [vmem:[%s1 + $0x4f4] sm:$0xf]
      %v5335 = vld [vmem:[%s1 + $0x4f8] sm:$0xf]
      %v5336 = vld [vmem:[%s1 + $0x4fc] sm:$0xf]
      %v5337 = vld [vmem:[%s1 + $0x500] sm:$0xf]
      %v5338 = vld [vmem:[%s1 + $0x504] sm:$0xf]
      %v5339 = vld [vmem:[%s1 + $0x508] sm:$0xf]
      %v5340 = vld [vmem:[%s1 + $0x50c] sm:$0xf]
      %v5341 = vld [vmem:[%s1 + $0x510] sm:$0xf]
      %v5342 = vld [vmem:[%s1 + $0x514] sm:$0xf]
      %v5343 = vld [vmem:[%s1 + $0x518] sm:$0xf]
      %v5344 = vld [vmem:[%s1 + $0x51c] sm:$0xf]
      %v5345 = vld [vmem:[%s1 + $0x520] sm:$0xf]
      %v5346 = vld [vmem:[%s1 + $0x524] sm:$0xf]
      %v5347 = vld [vmem:[%s1 + $0x528] sm:$0xf]
      %v5348 = vld [vmem:[%s1 + $0x52c] sm:$0xf]
      %v5349 = vld [vmem:[%s1 + $0x530] sm:$0xf]
      %v5350 = vld [vmem:[%s1 + $0x534] sm:$0xf]
      %v5351 = vld [vmem:[%s1 + $0x538] sm:$0xf]
      %v5352 = vld [vmem:[%s1 + $0x53c] sm:$0xf]
      %v5353 = vld [vmem:[%s1 + $0x540] sm:$0xf]
      %v5354 = vld [vmem:[%s1 + $0x544] sm:$0xf]
      %v5355 = vld [vmem:[%s1 + $0x548] sm:$0xf]
      %v5356 = vld [vmem:[%s1 + $0x54c] sm:$0xf]
      %v5357 = vld [vmem:[%s1 + $0x550] sm:$0xf]
      %v5358 = vld [vmem:[%s1 + $0x554] sm:$0xf]
      %v5359 = vld [vmem:[%s1 + $0x558] sm:$0xf]
      %v5360 = vld [vmem:[%s1 + $0x55c] sm:$0xf]
      %v5361 = vld [vmem:[%s1 + $0x560] sm:$0xf]
      %v5362 = vld [vmem:[%s1 + $0x564] sm:$0xf]
      %v5363 = vld [vmem:[%s1 + $0x568] sm:$0xf]
      %v5364 = vld [vmem:[%s1 + $0x56c] sm:$0xf]
      %v5365 = vld [vmem:[%s1 + $0x570] sm:$0xf]
      %v5366 = vld [vmem:[%s1 + $0x574] sm:$0xf]
      %v5367 = vld [vmem:[%s1 + $0x578] sm:$0xf]
      %v5368 = vld [vmem:[%s1 + $0x57c] sm:$0xf]
      %v5369 = vld [vmem:[%s1 + $0x580] sm:$0xf]
      %v5370 = vld [vmem:[%s1 + $0x584] sm:$0xf]
      %v5371 = vld [vmem:[%s1 + $0x588] sm:$0xf]
      %v5372 = vld [vmem:[%s1 + $0x58c] sm:$0xf]
      %v5373 = vld [vmem:[%s1 + $0x590] sm:$0xf]
      %v5374 = vld [vmem:[%s1 + $0x594] sm:$0xf]
      %v5375 = vld [vmem:[%s1 + $0x598] sm:$0xf]
      %v5376 = vld [vmem:[%s1 + $0x59c] sm:$0xf]
      %v5377 = vld [vmem:[%s1 + $0x5a0] sm:$0xf]
      %v5378 = vld [vmem:[%s1 + $0x5a4] sm:$0xf]
      %v5379 = vld [vmem:[%s1 + $0x5a8] sm:$0xf]
      %v5380 = vld [vmem:[%s1 + $0x5ac] sm:$0xf]
      %v5381 = vld [vmem:[%s1 + $0x5b0] sm:$0xf]
      %v5382 = vld [vmem:[%s1 + $0x5b4] sm:$0xf]
      %v5383 = vld [vmem:[%s1 + $0x5b8] sm:$0xf]
      %v5384 = vld [vmem:[%s1 + $0x5bc] sm:$0xf]
      %v5385 = vld [vmem:[%s1 + $0x5c0] sm:$0xf]
      %v5386 = vld [vmem:[%s1 + $0x5c4] sm:$0xf]
      %v5387 = vld [vmem:[%s1 + $0x5c8] sm:$0xf]
      %v5388 = vld [vmem:[%s1 + $0x5cc] sm:$0xf]
      %v5389 = vld [vmem:[%s1 + $0x5d0] sm:$0xf]
      %v5390 = vld [vmem:[%s1 + $0x5d4] sm:$0xf]
      %v5391 = vld [vmem:[%s1 + $0x5d8] sm:$0xf]
      %v5392 = vld [vmem:[%s1 + $0x5dc] sm:$0xf]
      %v5393 = vld [vmem:[%s1 + $0x5e0] sm:$0xf]
      %v5394 = vld [vmem:[%s1 + $0x5e4] sm:$0xf]
      %v5395 = vld [vmem:[%s1 + $0x5e8] sm:$0xf]
      %v5396 = vld [vmem:[%s1 + $0x5ec] sm:$0xf]
      %v5397 = vld [vmem:[%s1 + $0x5f0] sm:$0xf]
      %v5398 = vld [vmem:[%s1 + $0x5f4] sm:$0xf]
      %v5399 = vld [vmem:[%s1 + $0x5f8] sm:$0xf]
      %v5400 = vld [vmem:[%s1 + $0x5fc] sm:$0xf]
      %v5401 = vld [vmem:[%s1 + $0x600] sm:$0xf]
      %v5402 = vld [vmem:[%s1 + $0x604] sm:$0xf]
      %v5403 = vld [vmem:[%s1 + $0x608] sm:$0xf]
      %v5404 = vld [vmem:[%s1 + $0x60c] sm:$0xf]
      %v5405 = vld [vmem:[%s1 + $0x610] sm:$0xf]
      %v5406 = vld [vmem:[%s1 + $0x614] sm:$0xf]
      %v5407 = vld [vmem:[%s1 + $0x618] sm:$0xf]
      %v5408 = vld [vmem:[%s1 + $0x61c] sm:$0xf]
      %v5409 = vld [vmem:[%s1 + $0x620] sm:$0xf]
      %v5410 = vld [vmem:[%s1 + $0x624] sm:$0xf]
      %v5411 = vld [vmem:[%s1 + $0x628] sm:$0xf]
      %v5412 = vld [vmem:[%s1 + $0x62c] sm:$0xf]
      %v5413 = vld [vmem:[%s1 + $0x630] sm:$0xf]
      %v5414 = vld [vmem:[%s1 + $0x634] sm:$0xf]
      %v5415 = vld [vmem:[%s1 + $0x638] sm:$0xf]
      %v5416 = vld [vmem:[%s1 + $0x63c] sm:$0xf]
      %v5417 = vld [vmem:[%s1 + $0x640] sm:$0xf]
      %v5418 = vld [vmem:[%s1 + $0x644] sm:$0xf]
      %v5419 = vld [vmem:[%s1 + $0x648] sm:$0xf]
      %v5420 = vld [vmem:[%s1 + $0x64c] sm:$0xf]
      %v5421 = vld [vmem:[%s1 + $0x650] sm:$0xf]
      %v5422 = vld [vmem:[%s1 + $0x654] sm:$0xf]
      %v5423 = vld [vmem:[%s1 + $0x658] sm:$0xf]
      %v5424 = vld [vmem:[%s1 + $0x65c] sm:$0xf]
      %v5425 = vld [vmem:[%s1 + $0x660] sm:$0xf]
      %v5426 = vld [vmem:[%s1 + $0x664] sm:$0xf]
      %v5427 = vld [vmem:[%s1 + $0x668] sm:$0xf]
      %v5428 = vld [vmem:[%s1 + $0x66c] sm:$0xf]
      %v5429 = vld [vmem:[%s1 + $0x670] sm:$0xf]
      %v5430 = vld [vmem:[%s1 + $0x674] sm:$0xf]
      %v5431 = vld [vmem:[%s1 + $0x678] sm:$0xf]
      %v5432 = vld [vmem:[%s1 + $0x67c] sm:$0xf]
      %v5433 = vld [vmem:[%s1 + $0x680] sm:$0xf]
      %v5434 = vld [vmem:[%s1 + $0x684] sm:$0xf]
      %v5435 = vld [vmem:[%s1 + $0x688] sm:$0xf]
      %v5436 = vld [vmem:[%s1 + $0x68c] sm:$0xf]
      %v5437 = vld [vmem:[%s1 + $0x690] sm:$0xf]
      %v5438 = vld [vmem:[%s1 + $0x694] sm:$0xf]
      %v5439 = vld [vmem:[%s1 + $0x698] sm:$0xf]
      %v5440 = vld [vmem:[%s1 + $0x69c] sm:$0xf]
      %v5441 = vld [vmem:[%s1 + $0x6a0] sm:$0xf]
      %v5442 = vld [vmem:[%s1 + $0x6a4] sm:$0xf]
      %v5443 = vld [vmem:[%s1 + $0x6a8] sm:$0xf]
      %v5444 = vld [vmem:[%s1 + $0x6ac] sm:$0xf]
      %v5445 = vld [vmem:[%s1 + $0x6b0] sm:$0xf]
      %v5446 = vld [vmem:[%s1 + $0x6b4] sm:$0xf]
      %v5447 = vld [vmem:[%s1 + $0x6b8] sm:$0xf]
      %v5448 = vld [vmem:[%s1 + $0x6bc] sm:$0xf]
      %v5449 = vld [vmem:[%s1 + $0x6c0] sm:$0xf]
      %v5450 = vld [vmem:[%s1 + $0x6c4] sm:$0xf]
      %v5451 = vld [vmem:[%s1 + $0x6c8] sm:$0xf]
      %v5452 = vld [vmem:[%s1 + $0x6cc] sm:$0xf]
      %v5453 = vld [vmem:[%s1 + $0x6d0] sm:$0xf]
      %v5454 = vld [vmem:[%s1 + $0x6d4] sm:$0xf]
      %v5455 = vld [vmem:[%s1 + $0x6d8] sm:$0xf]
      %v5456 = vld [vmem:[%s1 + $0x6dc] sm:$0xf]
      %v5457 = vld [vmem:[%s1 + $0x6e0] sm:$0xf]
      %v5458 = vld [vmem:[%s1 + $0x6e4] sm:$0xf]
      %v5459 = vld [vmem:[%s1 + $0x6e8] sm:$0xf]
      %v5460 = vld [vmem:[%s1 + $0x6ec] sm:$0xf]
      %v5461 = vld [vmem:[%s1 + $0x6f0] sm:$0xf]
      %v5462 = vld [vmem:[%s1 + $0x6f4] sm:$0xf]
      %v5463 = vld [vmem:[%s1 + $0x6f8] sm:$0xf]
      %v5464 = vld [vmem:[%s1 + $0x6fc] sm:$0xf]
      %v5465 = vld [vmem:[%s1 + $0x700] sm:$0xf]
      %v5466 = vld [vmem:[%s1 + $0x704] sm:$0xf]
      %v5467 = vld [vmem:[%s1 + $0x708] sm:$0xf]
      %v5468 = vld [vmem:[%s1 + $0x70c] sm:$0xf]
      %v5469 = vld [vmem:[%s1 + $0x710] sm:$0xf]
      %v5470 = vld [vmem:[%s1 + $0x714] sm:$0xf]
      %v5471 = vld [vmem:[%s1 + $0x718] sm:$0xf]
      %v5472 = vld [vmem:[%s1 + $0x71c] sm:$0xf]
      %v5473 = vld [vmem:[%s2 + $0x8] sm:$0x1]
      %v5474 = vlaneseq
      %v5475 = vshrl.u32 %v5474, 7
      %v5476 = vsub.s32 0, %v5475
      %v5477 = vrot.slane %v5473, %v5476
      %v5622 = vunpack.c.l.b16 %v5329
      %v5623 = vunpack.c.l.b16 %v5330
      %v5624 = vunpack.c.l.b16 %v5331
      %v5625 = vunpack.c.l.b16 %v5332
      %v5626 = vunpack.c.l.b16 %v5333
      %v5627 = vunpack.c.l.b16 %v5334
      %v5628 = vunpack.c.l.b16 %v5335
      %v5629 = vunpack.c.l.b16 %v5336
      %v5630 = vunpack.c.l.b16 %v5337
      %v5631 = vunpack.c.l.b16 %v5338
      %v5632 = vunpack.c.l.b16 %v5339
      %v5633 = vunpack.c.l.b16 %v5340
      %v5634 = vunpack.c.l.b16 %v5341
      %v5635 = vunpack.c.l.b16 %v5342
      %v5636 = vunpack.c.l.b16 %v5343
      %v5637 = vunpack.c.l.b16 %v5344
      %v5638 = vunpack.c.l.b16 %v5345
      %v5639 = vunpack.c.l.b16 %v5346
      %v5640 = vunpack.c.l.b16 %v5347
      %v5641 = vunpack.c.l.b16 %v5348
      %v5642 = vunpack.c.l.b16 %v5349
      %v5643 = vunpack.c.l.b16 %v5350
      %v5644 = vunpack.c.l.b16 %v5351
      %v5645 = vunpack.c.l.b16 %v5352
      %v5646 = vunpack.c.l.b16 %v5353
      %v5647 = vunpack.c.l.b16 %v5354
      %v5648 = vunpack.c.l.b16 %v5355
      %v5649 = vunpack.c.l.b16 %v5356
      %v5650 = vunpack.c.l.b16 %v5357
      %v5651 = vunpack.c.l.b16 %v5358
      %v5652 = vunpack.c.l.b16 %v5359
      %v5653 = vunpack.c.l.b16 %v5360
      %v5654 = vunpack.c.l.b16 %v5361
      %v5655 = vunpack.c.l.b16 %v5362
      %v5656 = vunpack.c.l.b16 %v5363
      %v5657 = vunpack.c.l.b16 %v5364
      %v5658 = vunpack.c.l.b16 %v5365
      %v5659 = vunpack.c.l.b16 %v5366
      %v5660 = vunpack.c.l.b16 %v5367
      %v5661 = vunpack.c.l.b16 %v5368
      %v5662 = vunpack.c.l.b16 %v5369
      %v5663 = vunpack.c.l.b16 %v5370
      %v5664 = vunpack.c.l.b16 %v5371
      %v5665 = vunpack.c.l.b16 %v5372
      %v5666 = vunpack.c.l.b16 %v5373
      %v5667 = vunpack.c.l.b16 %v5374
      %v5668 = vunpack.c.l.b16 %v5375
      %v5669 = vunpack.c.l.b16 %v5376
      %v5670 = vunpack.c.l.b16 %v5377
      %v5671 = vunpack.c.l.b16 %v5378
      %v5672 = vunpack.c.l.b16 %v5379
      %v5673 = vunpack.c.l.b16 %v5380
      %v5674 = vunpack.c.l.b16 %v5381
      %v5675 = vunpack.c.l.b16 %v5382
      %v5676 = vunpack.c.l.b16 %v5383
      %v5677 = vunpack.c.l.b16 %v5384
      %v5678 = vunpack.c.l.b16 %v5385
      %v5679 = vunpack.c.l.b16 %v5386
      %v5680 = vunpack.c.l.b16 %v5387
      %v5681 = vunpack.c.l.b16 %v5388
      %v5682 = vunpack.c.l.b16 %v5389
      %v5683 = vunpack.c.l.b16 %v5390
      %v5684 = vunpack.c.l.b16 %v5391
      %v5685 = vunpack.c.l.b16 %v5392
      %v5686 = vunpack.c.l.b16 %v5393
      %v5687 = vunpack.c.l.b16 %v5394
      %v5688 = vunpack.c.l.b16 %v5395
      %v5689 = vunpack.c.l.b16 %v5396
      %v5690 = vunpack.c.l.b16 %v5397
      %v5691 = vunpack.c.l.b16 %v5398
      %v5692 = vunpack.c.l.b16 %v5399
      %v5693 = vunpack.c.l.b16 %v5400
      %v5694 = vunpack.c.l.b16 %v5401
      %v5695 = vunpack.c.l.b16 %v5402
      %v5696 = vunpack.c.l.b16 %v5403
      %v5697 = vunpack.c.l.b16 %v5404
      %v5698 = vunpack.c.l.b16 %v5405
      %v5699 = vunpack.c.l.b16 %v5406
      %v5700 = vunpack.c.l.b16 %v5407
      %v5701 = vunpack.c.l.b16 %v5408
      %v5702 = vunpack.c.l.b16 %v5409
      %v5703 = vunpack.c.l.b16 %v5410
      %v5704 = vunpack.c.l.b16 %v5411
      %v5705 = vunpack.c.l.b16 %v5412
      %v5706 = vunpack.c.l.b16 %v5413
      %v5707 = vunpack.c.l.b16 %v5414
      %v5708 = vunpack.c.l.b16 %v5415
      %v5709 = vunpack.c.l.b16 %v5416
      %v5710 = vunpack.c.l.b16 %v5417
      %v5711 = vunpack.c.l.b16 %v5418
      %v5712 = vunpack.c.l.b16 %v5419
      %v5713 = vunpack.c.l.b16 %v5420
      %v5714 = vunpack.c.l.b16 %v5421
      %v5715 = vunpack.c.l.b16 %v5422
      %v5716 = vunpack.c.l.b16 %v5423
      %v5717 = vunpack.c.l.b16 %v5424
      %v5718 = vunpack.c.l.b16 %v5425
      %v5719 = vunpack.c.l.b16 %v5426
      %v5720 = vunpack.c.l.b16 %v5427
      %v5721 = vunpack.c.l.b16 %v5428
      %v5722 = vunpack.c.l.b16 %v5429
      %v5723 = vunpack.c.l.b16 %v5430
      %v5724 = vunpack.c.l.b16 %v5431
      %v5725 = vunpack.c.l.b16 %v5432
      %v5726 = vunpack.c.l.b16 %v5433
      %v5727 = vunpack.c.l.b16 %v5434
      %v5728 = vunpack.c.l.b16 %v5435
      %v5729 = vunpack.c.l.b16 %v5436
      %v5730 = vunpack.c.l.b16 %v5437
      %v5731 = vunpack.c.l.b16 %v5438
      %v5732 = vunpack.c.l.b16 %v5439
      %v5733 = vunpack.c.l.b16 %v5440
      %v5734 = vunpack.c.l.b16 %v5441
      %v5735 = vunpack.c.l.b16 %v5442
      %v5736 = vunpack.c.l.b16 %v5443
      %v5737 = vunpack.c.l.b16 %v5444
      %v5738 = vunpack.c.l.b16 %v5445
      %v5739 = vunpack.c.l.b16 %v5446
      %v5740 = vunpack.c.l.b16 %v5447
      %v5741 = vunpack.c.l.b16 %v5448
      %v5742 = vunpack.c.l.b16 %v5449
      %v5743 = vunpack.c.l.b16 %v5450
      %v5744 = vunpack.c.l.b16 %v5451
      %v5745 = vunpack.c.l.b16 %v5452
      %v5746 = vunpack.c.l.b16 %v5453
      %v5747 = vunpack.c.l.b16 %v5454
      %v5748 = vunpack.c.l.b16 %v5455
      %v5749 = vunpack.c.l.b16 %v5456
      %v5750 = vunpack.c.l.b16 %v5457
      %v5751 = vunpack.c.l.b16 %v5458
      %v5752 = vunpack.c.l.b16 %v5459
      %v5753 = vunpack.c.l.b16 %v5460
      %v5754 = vunpack.c.l.b16 %v5461
      %v5755 = vunpack.c.l.b16 %v5462
      %v5756 = vunpack.c.l.b16 %v5463
      %v5757 = vunpack.c.l.b16 %v5464
      %v5758 = vunpack.c.l.b16 %v5465
      %v5759 = vunpack.c.l.b16 %v5466
      %v5760 = vunpack.c.l.b16 %v5467
      %v5761 = vunpack.c.l.b16 %v5468
      %v5762 = vunpack.c.l.b16 %v5469
      %v5763 = vunpack.c.l.b16 %v5470
      %v5764 = vunpack.c.l.b16 %v5471
      %v5765 = vunpack.c.l.b16 %v5472
      %v5766 = vpack.c.b16 %v5623, %v5622
      %v5767 = vpack.c.b16 %v5625, %v5624
      %v5768 = vpack.c.b16 %v5627, %v5626
      %v5769 = vpack.c.b16 %v5629, %v5628
      %v5770 = vpack.c.b16 %v5631, %v5630
      %v5771 = vpack.c.b16 %v5633, %v5632
      %v5772 = vpack.c.b16 %v5635, %v5634
      %v5773 = vpack.c.b16 %v5637, %v5636
      %v5774 = vpack.c.b16 %v5639, %v5638
      %v5775 = vpack.c.b16 %v5641, %v5640
      %v5776 = vpack.c.b16 %v5643, %v5642
      %v5777 = vpack.c.b16 %v5645, %v5644
      %v5778 = vpack.c.b16 %v5647, %v5646
      %v5779 = vpack.c.b16 %v5649, %v5648
      %v5780 = vpack.c.b16 %v5651, %v5650
      %v5781 = vpack.c.b16 %v5653, %v5652
      %v5782 = vpack.c.b16 %v5655, %v5654
      %v5783 = vpack.c.b16 %v5657, %v5656
      %v5784 = vpack.c.b16 %v5659, %v5658
      %v5785 = vpack.c.b16 %v5661, %v5660
      %v5786 = vpack.c.b16 %v5663, %v5662
      %v5787 = vpack.c.b16 %v5665, %v5664
      %v5788 = vpack.c.b16 %v5667, %v5666
      %v5789 = vpack.c.b16 %v5669, %v5668
      %v5790 = vpack.c.b16 %v5671, %v5670
      %v5791 = vpack.c.b16 %v5673, %v5672
      %v5792 = vpack.c.b16 %v5675, %v5674
      %v5793 = vpack.c.b16 %v5677, %v5676
      %v5794 = vpack.c.b16 %v5679, %v5678
      %v5795 = vpack.c.b16 %v5681, %v5680
      %v5796 = vpack.c.b16 %v5683, %v5682
      %v5797 = vpack.c.b16 %v5685, %v5684
      %v5798 = vpack.c.b16 %v5687, %v5686
      %v5799 = vpack.c.b16 %v5689, %v5688
      %v5800 = vpack.c.b16 %v5691, %v5690
      %v5801 = vpack.c.b16 %v5693, %v5692
      %v5802 = vpack.c.b16 %v5695, %v5694
      %v5803 = vpack.c.b16 %v5697, %v5696
      %v5804 = vpack.c.b16 %v5699, %v5698
      %v5805 = vpack.c.b16 %v5701, %v5700
      %v5806 = vpack.c.b16 %v5703, %v5702
      %v5807 = vpack.c.b16 %v5705, %v5704
      %v5808 = vpack.c.b16 %v5707, %v5706
      %v5809 = vpack.c.b16 %v5709, %v5708
      %v5810 = vpack.c.b16 %v5711, %v5710
      %v5811 = vpack.c.b16 %v5713, %v5712
      %v5812 = vpack.c.b16 %v5715, %v5714
      %v5813 = vpack.c.b16 %v5717, %v5716
      %v5814 = vpack.c.b16 %v5719, %v5718
      %v5815 = vpack.c.b16 %v5721, %v5720
      %v5816 = vpack.c.b16 %v5723, %v5722
      %v5817 = vpack.c.b16 %v5725, %v5724
      %v5818 = vpack.c.b16 %v5727, %v5726
      %v5819 = vpack.c.b16 %v5729, %v5728
      %v5820 = vpack.c.b16 %v5731, %v5730
      %v5821 = vpack.c.b16 %v5733, %v5732
      %v5822 = vpack.c.b16 %v5735, %v5734
      %v5823 = vpack.c.b16 %v5737, %v5736
      %v5824 = vpack.c.b16 %v5739, %v5738
      %v5825 = vpack.c.b16 %v5741, %v5740
      %v5826 = vpack.c.b16 %v5743, %v5742
      %v5827 = vpack.c.b16 %v5745, %v5744
      %v5828 = vpack.c.b16 %v5747, %v5746
      %v5829 = vpack.c.b16 %v5749, %v5748
      %v5830 = vpack.c.b16 %v5751, %v5750
      %v5831 = vpack.c.b16 %v5753, %v5752
      %v5832 = vpack.c.b16 %v5755, %v5754
      %v5833 = vpack.c.b16 %v5757, %v5756
      %v5834 = vpack.c.b16 %v5759, %v5758
      %v5835 = vpack.c.b16 %v5761, %v5760
      %v5836 = vpack.c.b16 %v5763, %v5762
      %v5837 = vpack.c.b16 %v5765, %v5764
      %5910 = vmatprep.subr.bf16.mxu0 0
      %5911 = vmatpush1.bf16.msra.mxu0 %v5766
      %5912 = vmatprep.subr.bf16.mxu0 0
      %5913 = vmatpush1.bf16.msra.mxu0 %v5767
      %5914 = vmatprep.subr.bf16.mxu0 0
      %5915 = vmatpush1.bf16.msra.mxu0 %v5768
      %5916 = vmatprep.subr.bf16.mxu0 0
      %5917 = vmatpush1.bf16.msra.mxu0 %v5769
      %5918 = vmatprep.subr.bf16.mxu0 0
      %5919 = vmatpush1.bf16.msra.mxu0 %v5770
      %5920 = vmatprep.subr.bf16.mxu0 0
      %5921 = vmatpush1.bf16.msra.mxu0 %v5771
      %5922 = vmatprep.subr.bf16.mxu0 0
      %5923 = vmatpush1.bf16.msra.mxu0 %v5772
      %5924 = vmatprep.subr.bf16.mxu0 0
      %5925 = vmatpush1.bf16.msra.mxu0 %v5773
      %5926 = vmatprep.subr.bf16.mxu0 0
      %5927 = vmatpush1.bf16.msra.mxu0 %v5774
      %5928 = vmatprep.subr.bf16.mxu0 0
      %5929 = vmatpush1.bf16.msra.mxu0 %v5775
      %5930 = vmatprep.subr.bf16.mxu0 0
      %5931 = vmatpush1.bf16.msra.mxu0 %v5776
      %5932 = vmatprep.subr.bf16.mxu0 0
      %5933 = vmatpush1.bf16.msra.mxu0 %v5777
      %5934 = vmatprep.subr.bf16.mxu0 0
      %5935 = vmatpush1.bf16.msra.mxu0 %v5778
      %5936 = vmatprep.subr.bf16.mxu0 0
      %5937 = vmatpush1.bf16.msra.mxu0 %v5779
      %5938 = vmatprep.subr.bf16.mxu0 0
      %5939 = vmatpush1.bf16.msra.mxu0 %v5780
      %5940 = vmatprep.subr.bf16.mxu0 0
      %5941 = vmatpush1.bf16.msra.mxu0 %v5781
      %5942 = vmatprep.mubr.bf16.mxu0 %v4069
      %5943 = vmatmul.mubr.bf16.gmra.mrb[0].mxu0 %v5198
      %v5944 = vpop.f32.mrb[0].mxu0
      %v5945 = vadd.f32 %v5477, %v5944
      %v5946 = vpop.f32.mrb[0].mxu0
      %v5947 = vpop.f32.mrb[0].mxu0
      %v5948 = vadd.f32 %v5477, %v5947
      %v5949 = vpop.f32.mrb[0].mxu0
      %5950 = vmatprep.mubr.bf16.mxu0 %v4070
      %5951 = vmatmul.mubr.bf16.gmra.mrb[0].mxu0 %v5200
      %v5952 = vpop.f32.mrb[0].mxu0
      %v5953 = vadd.f32 %v5477, %v5952
      %v5954 = vpop.f32.mrb[0].mxu0
      %v5955 = vpop.f32.mrb[0].mxu0
      %v5956 = vadd.f32 %v5477, %v5955
      %v5957 = vpop.f32.mrb[0].mxu0
      %5958 = vdwg.mxu0
      %5959 = vmatprep.subr.bf16.mxu0 0
      %5960 = vmatpush1.bf16.msra.mxu0 %v5782
      %5961 = vmatprep.subr.bf16.mxu0 0
      %5962 = vmatpush1.bf16.msra.mxu0 %v5783
      %5963 = vmatprep.subr.bf16.mxu0 0
      %5964 = vmatpush1.bf16.msra.mxu0 %v5784
      %5965 = vmatprep.subr.bf16.mxu0 0
      %5966 = vmatpush1.bf16.msra.mxu0 %v5785
      %5967 = vmatprep.subr.bf16.mxu0 0
      %5968 = vmatpush1.bf16.msra.mxu0 %v5786
      %5969 = vmatprep.subr.bf16.mxu0 0
      %5970 = vmatpush1.bf16.msra.mxu0 %v5787
      %5971 = vmatprep.subr.bf16.mxu0 0
      %5972 = vmatpush1.bf16.msra.mxu0 %v5788
      %5973 = vmatprep.subr.bf16.mxu0 0
      %5974 = vmatpush1.bf16.msra.mxu0 %v5789
      %5975 = vmatprep.subr.bf16.mxu0 0
      %5976 = vmatpush1.bf16.msra.mxu0 %v5790
      %5977 = vmatprep.subr.bf16.mxu0 0
      %5978 = vmatpush1.bf16.msra.mxu0 %v5791
      %5979 = vmatprep.subr.bf16.mxu0 0
      %5980 = vmatpush1.bf16.msra.mxu0 %v5792
      %5981 = vmatprep.subr.bf16.mxu0 0
      %5982 = vmatpush1.bf16.msra.mxu0 %v5793
      %5983 = vmatprep.subr.bf16.mxu0 0
      %5984 = vmatpush1.bf16.msra.mxu0 %v5794
      %5985 = vmatprep.subr.bf16.mxu0 0
      %5986 = vmatpush1.bf16.msra.mxu0 %v5795
      %5987 = vmatprep.subr.bf16.mxu0 0
      %5988 = vmatpush1.bf16.msra.mxu0 %v5796
      %5989 = vmatprep.subr.bf16.mxu0 0
      %5990 = vmatpush1.bf16.msra.mxu0 %v5797
      %5991 = vmatprep.mubr.bf16.mxu0 %v5317
      %5992 = vmatmul.mubr.bf16.gmra.mrb[0].mxu0 %v5199
      %v5993 = vpop.f32.mrb[0].mxu0
      %v5994 = vadd.f32 %v5945, %v5993
      %v5995 = vpop.f32.mrb[0].mxu0
      %v5996 = vpop.f32.mrb[0].mxu0
      %v5997 = vadd.f32 %v5948, %v5996
      %v5998 = vpop.f32.mrb[0].mxu0
      %5999 = vmatprep.mubr.bf16.mxu0 %v5323
      %6000 = vmatmul.mubr.bf16.gmra.mrb[0].mxu0 %v5201
      %v6001 = vpop.f32.mrb[0].mxu0
      %v6002 = vadd.f32 %v5953, %v6001
      %v6003 = vpop.f32.mrb[0].mxu0
      %v6004 = vpop.f32.mrb[0].mxu0
      %v6005 = vadd.f32 %v5956, %v6004
      %v6006 = vpop.f32.mrb[0].mxu0
      %6007 = vdwg.mxu0
      %6008 = vmatprep.subr.bf16.mxu0 0
      %6009 = vmatpush1.bf16.msra.mxu0 %v5798
      %6010 = vmatprep.subr.bf16.mxu0 0
      %6011 = vmatpush1.bf16.msra.mxu0 %v5799
      %6012 = vmatprep.subr.bf16.mxu0 0
      %6013 = vmatpush1.bf16.msra.mxu0 %v5800
      %6014 = vmatprep.subr.bf16.mxu0 0
      %6015 = vmatpush1.bf16.msra.mxu0 %v5801
      %6016 = vmatprep.subr.bf16.mxu0 0
      %6017 = vmatpush1.bf16.msra.mxu0 %v5802
      %6018 = vmatprep.subr.bf16.mxu0 0
      %6019 = vmatpush1.bf16.msra.mxu0 %v5803
      %6020 = vmatprep.subr.bf16.mxu0 0
      %6021 = vmatpush1.bf16.msra.mxu0 %v5804
      %6022 = vmatprep.subr.bf16.mxu0 0
      %6023 = vmatpush1.bf16.msra.mxu0 %v5805
      %6024 = vmatprep.subr.bf16.mxu0 0
      %6025 = vmatpush1.bf16.msra.mxu0 %v5806
      %6026 = vmatprep.subr.bf16.mxu0 0
      %6027 = vmatpush1.bf16.msra.mxu0 %v5807
      %6028 = vmatprep.subr.bf16.mxu0 0
      %6029 = vmatpush1.bf16.msra.mxu0 %v5808
      %6030 = vmatprep.subr.bf16.mxu0 0
      %6031 = vmatpush1.bf16.msra.mxu0 %v5809
      %6032 = vmatprep.subr.bf16.mxu0 0
      %6033 = vmatpush1.bf16.msra.mxu0 %v5810
      %6034 = vmatprep.subr.bf16.mxu0 0
      %6035 = vmatpush1.bf16.msra.mxu0 %v5811
      %6036 = vmatprep.subr.bf16.mxu0 0
      %6037 = vmatpush1.bf16.msra.mxu0 %v5812
      %6038 = vmatprep.subr.bf16.mxu0 0
      %6039 = vmatpush1.bf16.msra.mxu0 %v5813
      %6040 = vmatprep.mubr.bf16.mxu0 %v5319
      %6041 = vmatmul.mubr.bf16.gmra.mrb[0].mxu0 %v5318
      %v6042 = vpop.f32.mrb[0].mxu0
      %v6043 = vadd.f32 %v5994, %v6042
      %v6044 = vpop.f32.mrb[0].mxu0
      %v6045 = vpop.f32.mrb[0].mxu0
      %v6046 = vadd.f32 %v5997, %v6045
      %v6047 = vpop.f32.mrb[0].mxu0
      %6048 = vmatprep.mubr.bf16.mxu0 %v5325
      %6049 = vmatmul.mubr.bf16.gmra.mrb[0].mxu0 %v5324
      %v6050 = vpop.f32.mrb[0].mxu0
      %v6051 = vadd.f32 %v6002, %v6050
      %v6052 = vpop.f32.mrb[0].mxu0
      %v6053 = vpop.f32.mrb[0].mxu0
      %v6054 = vadd.f32 %v6005, %v6053
      %v6055 = vpop.f32.mrb[0].mxu0
      %6056 = vdwg.mxu0
      %6057 = vmatprep.subr.bf16.mxu0 0
      %6058 = vmatpush1.bf16.msra.mxu0 %v5814
      %6059 = vmatprep.subr.bf16.mxu0 0
      %6060 = vmatpush1.bf16.msra.mxu0 %v5815
      %6061 = vmatprep.subr.bf16.mxu0 0
      %6062 = vmatpush1.bf16.msra.mxu0 %v5816
      %6063 = vmatprep.subr.bf16.mxu0 0
      %6064 = vmatpush1.bf16.msra.mxu0 %v5817
      %6065 = vmatprep.subr.bf16.mxu0 0
      %6066 = vmatpush1.bf16.msra.mxu0 %v5818
      %6067 = vmatprep.subr.bf16.mxu0 0
      %6068 = vmatpush1.bf16.msra.mxu0 %v5819
      %6069 = vmatprep.subr.bf16.mxu0 0
      %6070 = vmatpush1.bf16.msra.mxu0 %v5820
      %6071 = vmatprep.subr.bf16.mxu0 0
      %6072 = vmatpush1.bf16.msra.mxu0 %v5821
      %6073 = vmatprep.subr.bf16.mxu0 0
      %6074 = vmatpush1.bf16.msra.mxu0 %v5822
      %6075 = vmatprep.subr.bf16.mxu0 0
      %6076 = vmatpush1.bf16.msra.mxu0 %v5823
      %6077 = vmatprep.subr.bf16.mxu0 0
      %6078 = vmatpush1.bf16.msra.mxu0 %v5824
      %6079 = vmatprep.subr.bf16.mxu0 0
      %6080 = vmatpush1.bf16.msra.mxu0 %v5825
      %6081 = vmatprep.subr.bf16.mxu0 0
      %6082 = vmatpush1.bf16.msra.mxu0 %v5826
      %6083 = vmatprep.subr.bf16.mxu0 0
      %6084 = vmatpush1.bf16.msra.mxu0 %v5827
      %6085 = vmatprep.subr.bf16.mxu0 0
      %6086 = vmatpush1.bf16.msra.mxu0 %v5828
      %6087 = vmatprep.subr.bf16.mxu0 0
      %6088 = vmatpush1.bf16.msra.mxu0 %v5829
      %6089 = vmatprep.mubr.bf16.mxu0 %v5321
      %6090 = vmatmul.mubr.bf16.gmra.mrb[0].mxu0 %v5320
      %v6091 = vpop.f32.mrb[0].mxu0
      %v6092 = vadd.f32 %v6043, %v6091
      %v6093 = vpop.f32.mrb[0].mxu0
      %v6094 = vpop.f32.mrb[0].mxu0
      %v6095 = vadd.f32 %v6046, %v6094
      %v6096 = vpop.f32.mrb[0].mxu0
      %6097 = vmatprep.mubr.bf16.mxu0 %v5327
      %6098 = vmatmul.mubr.bf16.gmra.mrb[0].mxu0 %v5326
      %v6099 = vpop.f32.mrb[0].mxu0
      %v6100 = vadd.f32 %v6051, %v6099
      %v6101 = vpop.f32.mrb[0].mxu0
      %v6102 = vpop.f32.mrb[0].mxu0
      %v6103 = vadd.f32 %v6054, %v6102
      %v6104 = vpop.f32.mrb[0].mxu0
      %6105 = vdwg.mxu0
      %6106 = vmatprep.subr.bf16.mxu0 0
      %6107 = vmatpush1.bf16.msra.mxu0 %v5830
      %6108 = vmatprep.subr.bf16.mxu0 0
      %6109 = vmatpush1.bf16.msra.mxu0 %v5831
      %6110 = vmatprep.subr.bf16.mxu0 0
      %6111 = vmatpush1.bf16.msra.mxu0 %v5832
      %6112 = vmatprep.subr.bf16.mxu0 0
      %6113 = vmatpush1.bf16.msra.mxu0 %v5833
      %6114 = vmatprep.subr.bf16.mxu0 0
      %6115 = vmatpush1.bf16.msra.mxu0 %v5834
      %6116 = vmatprep.subr.bf16.mxu0 0
      %6117 = vmatpush1.bf16.msra.mxu0 %v5835
      %6118 = vmatprep.subr.bf16.mxu0 0
      %6119 = vmatpush1.bf16.msra.mxu0 %v5836
      %6120 = vmatprep.subr.bf16.mxu0 0
      %6121 = vmatpush1.bf16.msra.mxu0 %v5837
      %6122 = vmatprep.subr.bf16.mxu0 0
      %6123 = vmatpush1.bf16.msra.mxu0 0
      %6124 = vmatprep.subr.bf16.mxu0 0
      %6125 = vmatpush1.bf16.msra.mxu0 0
      %6126 = vmatprep.subr.bf16.mxu0 0
      %6127 = vmatpush1.bf16.msra.mxu0 0
      %6128 = vmatprep.subr.bf16.mxu0 0
      %6129 = vmatpush1.bf16.msra.mxu0 0
      %6130 = vmatprep.subr.bf16.mxu0 0
      %6131 = vmatpush1.bf16.msra.mxu0 0
      %6132 = vmatprep.subr.bf16.mxu0 0
      %6133 = vmatpush1.bf16.msra.mxu0 0
      %6134 = vmatprep.subr.bf16.mxu0 0
      %6135 = vmatpush1.bf16.msra.mxu0 0
      %6136 = vmatprep.subr.bf16.mxu0 0
      %6137 = vmatpush1.bf16.msra.mxu0 0
      %6138 = vmatprep.mubr.bf16.mxu0 0
      %6139 = vmatmul.mubr.bf16.gmra.mrb[0].mxu0 %v5322
      %v6140 = vpop.f32.mrb[0].mxu0
      %v6141 = vadd.f32 %v6092, %v6140
      %v6142 = vpop.f32.mrb[0].mxu0
      %v6143 = vpop.f32.mrb[0].mxu0
      %v6144 = vadd.f32 %v6095, %v6143
      %v6145 = vpop.f32.mrb[0].mxu0
      %6146 = vmatprep.mubr.bf16.mxu0 0
      %6147 = vmatmul.mubr.bf16.gmra.mrb[0].mxu0 %v5328
      %v6148 = vpop.f32.mrb[0].mxu0
      %v6149 = vadd.f32 %v6100, %v6148
      %v6150 = vpop.f32.mrb[0].mxu0
      %v6151 = vpop.f32.mrb[0].mxu0
      %v6152 = vadd.f32 %v6103, %v6151
      %v6153 = vpop.f32.mrb[0].mxu0
      %6154 = vdwg.mxu0
      %v6155 = vmax.f32 %v6141, 0.0
      %v6156 = vmax.f32 %v6144, 0.0
      %v6157 = vmax.f32 %v6149, 0.0
      %v6158 = vmax.f32 %v6152, 0.0
      %6159 = vst [vmem:[#allocation2] sm:$0x1] 0.0
      %6160 = vst [vmem:[#allocation2 + $0x41] sm:$0x1] 0.0
      %v6165 = vrot.slane %v6155, 7
      %v6166 = vrot.slane %v6156, 7
      %v6167 = vsel %vm371, %v6165, %v6166
      %v6168 = vrot.slane %v6157, 7
      %v6169 = vsel %vm371, %v6166, %v6168
      %v6170 = vrot.slane %v6158, 7
      %v6171 = vsel %vm371, %v6168, %v6170
      %6177 = vst [vmem:[#allocation2] sm:$0xfe] %v6165
      %6178 = vst [vmem:[#allocation2 + $0x10] sm:$0xff] %v6167
      %6179 = vst [vmem:[#allocation2 + $0x20] sm:$0xff] %v6169
      %6180 = vst [vmem:[#allocation2 + $0x30] sm:$0xff] %v6171
      %6181 = vst [vmem:[#allocation2 + $0x40] sm:$0x1] %v6170
      %v6182 = vld [vmem:[#allocation2] sm:$0xff]
      %v6183 = vld [vmem:[#allocation2 + $0x10] sm:$0xff]
      %v6184 = vld [vmem:[#allocation2 + $0x20] sm:$0xff]
      %v6185 = vld [vmem:[#allocation2 + $0x30] sm:$0xff]
      %v6186 = vld [vmem:[#allocation2] sm:$0xfc]
      %v6187 = vld [vmem:[#allocation2 + $0x40] sm:$0x3]
      %v6188 = vsel %vm3495, 0.0, %v6182
      %v6189 = vsel %vm3496, 0.0, %v6183
      %v6190 = vsel %vm3497, 0.0, %v6184
      %v6191 = vsel %vm3498, 0.0, %v6185
      %v6197 = vrot.slane %v6186, 2
      %v6198 = vrot.slane %v6183, 2
      %v6199 = vsel %vm553, %v6197, %v6198
      %v6200 = vrot.slane %v6184, 2
      %v6201 = vsel %vm553, %v6198, %v6200
      %v6202 = vrot.slane %v6185, 2
      %v6203 = vsel %vm553, %v6200, %v6202
      %v6204 = vrot.slane %v6187, 2
      %v6205 = vsel %vm553, %v6202, %v6204
      %v6210 = vsel %vm3503, 0.0, %v6199
      %v6211 = vsel %vm3504, 0.0, %v6201
      %v6212 = vsel %vm3505, 0.0, %v6203
      %v6213 = vsel %vm3506, 0.0, %v6205
      %v6214 = vpack.c.bf16 %v6189, %v6188
      %v6215 = vpack.c.bf16 %v6156, %v6155
      %v6216 = vpack.c.bf16 %v6211, %v6210
      %v6217 = vpack.c.bf16 %v6191, %v6190
      %v6218 = vpack.c.bf16 %v6158, %v6157
      %v6219 = vpack.c.bf16 %v6213, %v6212
      %v6220 = vld [vmem:[%s1 + $0x720] sm:$0xf]
      %v6221 = vld [vmem:[%s1 + $0x724] sm:$0xf]
      %v6222 = vld [vmem:[%s1 + $0x728] sm:$0xf]
      %v6223 = vld [vmem:[%s1 + $0x72c] sm:$0xf]
      %v6224 = vld [vmem:[%s1 + $0x730] sm:$0xf]
      %v6225 = vld [vmem:[%s1 + $0x734] sm:$0xf]
      %v6226 = vld [vmem:[%s1 + $0x738] sm:$0xf]
      %v6227 = vld [vmem:[%s1 + $0x73c] sm:$0xf]
      %v6228 = vld [vmem:[%s1 + $0x740] sm:$0xf]
      %v6229 = vld [vmem:[%s1 + $0x744] sm:$0xf]
      %v6230 = vld [vmem:[%s1 + $0x748] sm:$0xf]
      %v6231 = vld [vmem:[%s1 + $0x74c] sm:$0xf]
      %v6232 = vld [vmem:[%s1 + $0x750] sm:$0xf]
      %v6233 = vld [vmem:[%s1 + $0x754] sm:$0xf]
      %v6234 = vld [vmem:[%s1 + $0x758] sm:$0xf]
      %v6235 = vld [vmem:[%s1 + $0x75c] sm:$0xf]
      %v6236 = vld [vmem:[%s1 + $0x760] sm:$0xf]
      %v6237 = vld [vmem:[%s1 + $0x764] sm:$0xf]
      %v6238 = vld [vmem:[%s1 + $0x768] sm:$0xf]
      %v6239 = vld [vmem:[%s1 + $0x76c] sm:$0xf]
      %v6240 = vld [vmem:[%s1 + $0x770] sm:$0xf]
      %v6241 = vld [vmem:[%s1 + $0x774] sm:$0xf]
      %v6242 = vld [vmem:[%s1 + $0x778] sm:$0xf]
      %v6243 = vld [vmem:[%s1 + $0x77c] sm:$0xf]
      %v6244 = vld [vmem:[%s1 + $0x780] sm:$0xf]
      %v6245 = vld [vmem:[%s1 + $0x784] sm:$0xf]
      %v6246 = vld [vmem:[%s1 + $0x788] sm:$0xf]
      %v6247 = vld [vmem:[%s1 + $0x78c] sm:$0xf]
      %v6248 = vld [vmem:[%s1 + $0x790] sm:$0xf]
      %v6249 = vld [vmem:[%s1 + $0x794] sm:$0xf]
      %v6250 = vld [vmem:[%s1 + $0x798] sm:$0xf]
      %v6251 = vld [vmem:[%s1 + $0x79c] sm:$0xf]
      %v6252 = vld [vmem:[%s1 + $0x7a0] sm:$0xf]
      %v6253 = vld [vmem:[%s1 + $0x7a4] sm:$0xf]
      %v6254 = vld [vmem:[%s1 + $0x7a8] sm:$0xf]
      %v6255 = vld [vmem:[%s1 + $0x7ac] sm:$0xf]
      %v6256 = vld [vmem:[%s1 + $0x7b0] sm:$0xf]
      %v6257 = vld [vmem:[%s1 + $0x7b4] sm:$0xf]
      %v6258 = vld [vmem:[%s1 + $0x7b8] sm:$0xf]
      %v6259 = vld [vmem:[%s1 + $0x7bc] sm:$0xf]
      %v6260 = vld [vmem:[%s1 + $0x7c0] sm:$0xf]
      %v6261 = vld [vmem:[%s1 + $0x7c4] sm:$0xf]
      %v6262 = vld [vmem:[%s1 + $0x7c8] sm:$0xf]
      %v6263 = vld [vmem:[%s1 + $0x7cc] sm:$0xf]
      %v6264 = vld [vmem:[%s1 + $0x7d0] sm:$0xf]
      %v6265 = vld [vmem:[%s1 + $0x7d4] sm:$0xf]
      %v6266 = vld [vmem:[%s1 + $0x7d8] sm:$0xf]
      %v6267 = vld [vmem:[%s1 + $0x7dc] sm:$0xf]
      %v6268 = vld [vmem:[%s2 + $0x9] sm:$0x1]
      %v6269 = vlaneseq
      %v6270 = vshrl.u32 %v6269, 7
      %v6271 = vsub.s32 0, %v6270
      %v6272 = vrot.slane %v6268, %v6271
      %v6321 = vunpack.c.l.b16 %v6220
      %v6322 = vunpack.c.l.b16 %v6221
      %v6323 = vunpack.c.l.b16 %v6222
      %v6324 = vunpack.c.l.b16 %v6223
      %v6325 = vunpack.c.l.b16 %v6224
      %v6326 = vunpack.c.l.b16 %v6225
      %v6327 = vunpack.c.l.b16 %v6226
      %v6328 = vunpack.c.l.b16 %v6227
      %v6329 = vunpack.c.l.b16 %v6228
      %v6330 = vunpack.c.l.b16 %v6229
      %v6331 = vunpack.c.l.b16 %v6230
      %v6332 = vunpack.c.l.b16 %v6231
      %v6333 = vunpack.c.l.b16 %v6232
      %v6334 = vunpack.c.l.b16 %v6233
      %v6335 = vunpack.c.l.b16 %v6234
      %v6336 = vunpack.c.l.b16 %v6235
      %v6337 = vunpack.c.l.b16 %v6236
      %v6338 = vunpack.c.l.b16 %v6237
      %v6339 = vunpack.c.l.b16 %v6238
      %v6340 = vunpack.c.l.b16 %v6239
      %v6341 = vunpack.c.l.b16 %v6240
      %v6342 = vunpack.c.l.b16 %v6241
      %v6343 = vunpack.c.l.b16 %v6242
      %v6344 = vunpack.c.l.b16 %v6243
      %v6345 = vunpack.c.l.b16 %v6244
      %v6346 = vunpack.c.l.b16 %v6245
      %v6347 = vunpack.c.l.b16 %v6246
      %v6348 = vunpack.c.l.b16 %v6247
      %v6349 = vunpack.c.l.b16 %v6248
      %v6350 = vunpack.c.l.b16 %v6249
      %v6351 = vunpack.c.l.b16 %v6250
      %v6352 = vunpack.c.l.b16 %v6251
      %v6353 = vunpack.c.l.b16 %v6252
      %v6354 = vunpack.c.l.b16 %v6253
      %v6355 = vunpack.c.l.b16 %v6254
      %v6356 = vunpack.c.l.b16 %v6255
      %v6357 = vunpack.c.l.b16 %v6256
      %v6358 = vunpack.c.l.b16 %v6257
      %v6359 = vunpack.c.l.b16 %v6258
      %v6360 = vunpack.c.l.b16 %v6259
      %v6361 = vunpack.c.l.b16 %v6260
      %v6362 = vunpack.c.l.b16 %v6261
      %v6363 = vunpack.c.l.b16 %v6262
      %v6364 = vunpack.c.l.b16 %v6263
      %v6365 = vunpack.c.l.b16 %v6264
      %v6366 = vunpack.c.l.b16 %v6265
      %v6367 = vunpack.c.l.b16 %v6266
      %v6368 = vunpack.c.l.b16 %v6267
      %v6369 = vpack.c.b16 %v6322, %v6321
      %v6370 = vpack.c.b16 %v6324, %v6323
      %v6371 = vpack.c.b16 %v6326, %v6325
      %v6372 = vpack.c.b16 %v6328, %v6327
      %v6373 = vpack.c.b16 %v6330, %v6329
      %v6374 = vpack.c.b16 %v6332, %v6331
      %v6375 = vpack.c.b16 %v6334, %v6333
      %v6376 = vpack.c.b16 %v6336, %v6335
      %v6377 = vpack.c.b16 %v6338, %v6337
      %v6378 = vpack.c.b16 %v6340, %v6339
      %v6379 = vpack.c.b16 %v6342, %v6341
      %v6380 = vpack.c.b16 %v6344, %v6343
      %v6381 = vpack.c.b16 %v6346, %v6345
      %v6382 = vpack.c.b16 %v6348, %v6347
      %v6383 = vpack.c.b16 %v6350, %v6349
      %v6384 = vpack.c.b16 %v6352, %v6351
      %v6385 = vpack.c.b16 %v6354, %v6353
      %v6386 = vpack.c.b16 %v6356, %v6355
      %v6387 = vpack.c.b16 %v6358, %v6357
      %v6388 = vpack.c.b16 %v6360, %v6359
      %v6389 = vpack.c.b16 %v6362, %v6361
      %v6390 = vpack.c.b16 %v6364, %v6363
      %v6391 = vpack.c.b16 %v6366, %v6365
      %v6392 = vpack.c.b16 %v6368, %v6367
      %6417 = vmatprep.subr.bf16.mxu0 0
      %6418 = vmatpush1.bf16.msra.mxu0 %v6369
      %6419 = vmatprep.subr.bf16.mxu0 0
      %6420 = vmatpush1.bf16.msra.mxu0 %v6370
      %6421 = vmatprep.subr.bf16.mxu0 0
      %6422 = vmatpush1.bf16.msra.mxu0 %v6371
      %6423 = vmatprep.subr.bf16.mxu0 0
      %6424 = vmatpush1.bf16.msra.mxu0 %v6372
      %6425 = vmatprep.subr.bf16.mxu0 0
      %6426 = vmatpush1.bf16.msra.mxu0 %v6373
      %6427 = vmatprep.subr.bf16.mxu0 0
      %6428 = vmatpush1.bf16.msra.mxu0 %v6374
      %6429 = vmatprep.subr.bf16.mxu0 0
      %6430 = vmatpush1.bf16.msra.mxu0 %v6375
      %6431 = vmatprep.subr.bf16.mxu0 0
      %6432 = vmatpush1.bf16.msra.mxu0 %v6376
      %6433 = vmatprep.subr.bf16.mxu0 0
      %6434 = vmatpush1.bf16.msra.mxu0 %v6377
      %6435 = vmatprep.subr.bf16.mxu0 0
      %6436 = vmatpush1.bf16.msra.mxu0 %v6378
      %6437 = vmatprep.subr.bf16.mxu0 0
      %6438 = vmatpush1.bf16.msra.mxu0 %v6379
      %6439 = vmatprep.subr.bf16.mxu0 0
      %6440 = vmatpush1.bf16.msra.mxu0 %v6380
      %6441 = vmatprep.subr.bf16.mxu0 0
      %6442 = vmatpush1.bf16.msra.mxu0 %v6381
      %6443 = vmatprep.subr.bf16.mxu0 0
      %6444 = vmatpush1.bf16.msra.mxu0 %v6382
      %6445 = vmatprep.subr.bf16.mxu0 0
      %6446 = vmatpush1.bf16.msra.mxu0 %v6383
      %6447 = vmatprep.subr.bf16.mxu0 0
      %6448 = vmatpush1.bf16.msra.mxu0 %v6384
      %6449 = vmatprep.mubr.bf16.mxu0 %v6215
      %6450 = vmatmul.mubr.bf16.gmra.mrb[0].mxu0 %v6214
      %v6451 = vpop.f32.mrb[0].mxu0
      %v6452 = vadd.f32 %v6272, %v6451
      %v6453 = vpop.f32.mrb[0].mxu0
      %v6454 = vpop.f32.mrb[0].mxu0
      %v6455 = vadd.f32 %v6272, %v6454
      %v6456 = vpop.f32.mrb[0].mxu0
      %6457 = vmatprep.mubr.bf16.mxu0 %v6218
      %6458 = vmatmul.mubr.bf16.gmra.mrb[0].mxu0 %v6217
      %v6459 = vpop.f32.mrb[0].mxu0
      %v6460 = vadd.f32 %v6272, %v6459
      %v6461 = vpop.f32.mrb[0].mxu0
      %v6462 = vpop.f32.mrb[0].mxu0
      %v6463 = vadd.f32 %v6272, %v6462
      %v6464 = vpop.f32.mrb[0].mxu0
      %6465 = vdwg.mxu0
      %6466 = vmatprep.subr.bf16.mxu0 0
      %6467 = vmatpush1.bf16.msra.mxu0 %v6385
      %6468 = vmatprep.subr.bf16.mxu0 0
      %6469 = vmatpush1.bf16.msra.mxu0 %v6386
      %6470 = vmatprep.subr.bf16.mxu0 0
      %6471 = vmatpush1.bf16.msra.mxu0 %v6387
      %6472 = vmatprep.subr.bf16.mxu0 0
      %6473 = vmatpush1.bf16.msra.mxu0 %v6388
      %6474 = vmatprep.subr.bf16.mxu0 0
      %6475 = vmatpush1.bf16.msra.mxu0 %v6389
      %6476 = vmatprep.subr.bf16.mxu0 0
      %6477 = vmatpush1.bf16.msra.mxu0 %v6390
      %6478 = vmatprep.subr.bf16.mxu0 0
      %6479 = vmatpush1.bf16.msra.mxu0 %v6391
      %6480 = vmatprep.subr.bf16.mxu0 0
      %6481 = vmatpush1.bf16.msra.mxu0 %v6392
      %6482 = vmatprep.subr.bf16.mxu0 0
      %6483 = vmatpush1.bf16.msra.mxu0 0
      %6484 = vmatprep.subr.bf16.mxu0 0
      %6485 = vmatpush1.bf16.msra.mxu0 0
      %6486 = vmatprep.subr.bf16.mxu0 0
      %6487 = vmatpush1.bf16.msra.mxu0 0
      %6488 = vmatprep.subr.bf16.mxu0 0
      %6489 = vmatpush1.bf16.msra.mxu0 0
      %6490 = vmatprep.subr.bf16.mxu0 0
      %6491 = vmatpush1.bf16.msra.mxu0 0
      %6492 = vmatprep.subr.bf16.mxu0 0
      %6493 = vmatpush1.bf16.msra.mxu0 0
      %6494 = vmatprep.subr.bf16.mxu0 0
      %6495 = vmatpush1.bf16.msra.mxu0 0
      %6496 = vmatprep.subr.bf16.mxu0 0
      %6497 = vmatpush1.bf16.msra.mxu0 0
      %6498 = vmatprep.mubr.bf16.mxu0 0
      %6499 = vmatmul.mubr.bf16.gmra.mrb[0].mxu0 %v6216
      %v6500 = vpop.f32.mrb[0].mxu0
      %v6501 = vadd.f32 %v6452, %v6500
      %v6502 = vpop.f32.mrb[0].mxu0
      %v6503 = vpop.f32.mrb[0].mxu0
      %v6504 = vadd.f32 %v6455, %v6503
      %v6505 = vpop.f32.mrb[0].mxu0
      %6506 = vmatprep.mubr.bf16.mxu0 0
      %6507 = vmatmul.mubr.bf16.gmra.mrb[0].mxu0 %v6219
      %v6508 = vpop.f32.mrb[0].mxu0
      %v6509 = vadd.f32 %v6460, %v6508
      %v6510 = vpop.f32.mrb[0].mxu0
      %v6511 = vpop.f32.mrb[0].mxu0
      %v6512 = vadd.f32 %v6463, %v6511
      %v6513 = vpop.f32.mrb[0].mxu0
      %6514 = vdwg.mxu0
      %v6515 = vmax.f32 %v6501, 0.0
      %v6516 = vmax.f32 %v6504, 0.0
      %v6517 = vmax.f32 %v6509, 0.0
      %v6518 = vmax.f32 %v6512, 0.0
      %s6519 = scalar_lea.vmem %s7, 64
      %v6520 = vld [vmem:[%s6519] sm:$0xf]
      %v6521 = vld [vmem:[%s6519 + $0x4] sm:$0xf]
      %v6522 = vld [vmem:[%s6519 + $0x8] sm:$0xf]
      %v6523 = vld [vmem:[%s6519 + $0xc] sm:$0xf]
      %v6524 = vld [vmem:[%s6519 + $0x10] sm:$0xf]
      %v6525 = vld [vmem:[%s6519 + $0x14] sm:$0xf]
      %v6526 = vld [vmem:[%s6519 + $0x18] sm:$0xf]
      %v6527 = vld [vmem:[%s6519 + $0x1c] sm:$0xf]
      %v6528 = vpack.c.bf16 %v6516, %v6515
      %v6529 = vpack.c.bf16 %v6518, %v6517
      %v6538 = vunpack.c.l.b16 %v6520
      %v6539 = vunpack.c.l.b16 %v6521
      %v6540 = vunpack.c.l.b16 %v6522
      %v6541 = vunpack.c.l.b16 %v6523
      %v6542 = vunpack.c.l.b16 %v6524
      %v6543 = vunpack.c.l.b16 %v6525
      %v6544 = vunpack.c.l.b16 %v6526
      %v6545 = vunpack.c.l.b16 %v6527
      %v6546 = vpack.c.b16 %v6539, %v6538
      %v6547 = vpack.c.b16 %v6541, %v6540
      %v6548 = vpack.c.b16 %v6543, %v6542
      %v6549 = vpack.c.b16 %v6545, %v6544
      %v6551 = vsel %vm4316, %v6546, 0
      %v6554 = vsel %vm4316, %v6547, 0
      %v6557 = vsel %vm4316, %v6548, 0
      %v6560 = vsel %vm4316, %v6549, 0
      %6562 = vmatprep.subr.bf16.mxu0 0
      %6563 = vmatpush1.bf16.msra.mxu0 %v6528
      %6564 = vmatprep.subr.bf16.mxu0 0
      %6565 = vmatpush1.bf16.msra.mxu0 %v6529
      %6566 = vmatprep.subr.bf16.mxu0 0
      %6567 = vmatpush1.bf16.msra.mxu0 0
      %6568 = vmatprep.subr.bf16.mxu0 0
      %6569 = vmatpush1.bf16.msra.mxu0 0
      %6570 = vmatprep.subr.bf16.mxu0 0
      %6571 = vmatpush1.bf16.msra.mxu0 0
      %6572 = vmatprep.subr.bf16.mxu0 0
      %6573 = vmatpush1.bf16.msra.mxu0 0
      %6574 = vmatprep.subr.bf16.mxu0 0
      %6575 = vmatpush1.bf16.msra.mxu0 0
      %6576 = vmatprep.subr.bf16.mxu0 0
      %6577 = vmatpush1.bf16.msra.mxu0 0
      %6578 = vmatprep.subr.bf16.mxu0 0
      %6579 = vmatpush1.bf16.msra.mxu0 0
      %6580 = vmatprep.subr.bf16.mxu0 0
      %6581 = vmatpush1.bf16.msra.mxu0 0
      %6582 = vmatprep.subr.bf16.mxu0 0
      %6583 = vmatpush1.bf16.msra.mxu0 0
      %6584 = vmatprep.subr.bf16.mxu0 0
      %6585 = vmatpush1.bf16.msra.mxu0 0
      %6586 = vmatprep.subr.bf16.mxu0 0
      %6587 = vmatpush1.bf16.msra.mxu0 0
      %6588 = vmatprep.subr.bf16.mxu0 0
      %6589 = vmatpush1.bf16.msra.mxu0 0
      %6590 = vmatprep.subr.bf16.mxu0 0
      %6591 = vmatpush1.bf16.msra.mxu0 0
      %6592 = vmatprep.subr.bf16.mxu0 0
      %6593 = vmatpush1.bf16.msra.mxu0 0
      %6594 = vmatprep.mubr.bf16.mxu0 0
      %6595 = vmatmul.mubr.bf16.gmra.mrb[0].mxu0 %v6551
      %v6596 = vpop.f32.mrb[0].mxu0
      %v6597 = vadd.f32 0.0, %v6596
      %v6598 = vpop.f32.mrb[0].mxu0
      %v6599 = vpop.f32.mrb[0].mxu0
      %v6600 = vadd.f32 0.0, %v6599
      %v6601 = vpop.f32.mrb[0].mxu0
      %6602 = vmatprep.mubr.bf16.mxu0 0
      %6603 = vmatmul.mubr.bf16.gmra.mrb[0].mxu0 %v6554
      %v6604 = vpop.f32.mrb[0].mxu0
      %v6605 = vadd.f32 0.0, %v6604
      %v6606 = vpop.f32.mrb[0].mxu0
      %v6607 = vpop.f32.mrb[0].mxu0
      %v6608 = vadd.f32 0.0, %v6607
      %v6609 = vpop.f32.mrb[0].mxu0
      %6610 = vmatprep.mubr.bf16.mxu0 0
      %6611 = vmatmul.mubr.bf16.gmra.mrb[0].mxu0 %v6557
      %v6612 = vpop.f32.mrb[0].mxu0
      %v6613 = vadd.f32 0.0, %v6612
      %v6614 = vpop.f32.mrb[0].mxu0
      %v6615 = vpop.f32.mrb[0].mxu0
      %v6616 = vadd.f32 0.0, %v6615
      %v6617 = vpop.f32.mrb[0].mxu0
      %6618 = vmatprep.mubr.bf16.mxu0 0
      %6619 = vmatmul.mubr.bf16.gmra.mrb[0].mxu0 %v6560
      %v6620 = vpop.f32.mrb[0].mxu0
      %v6621 = vadd.f32 0.0, %v6620
      %v6622 = vpop.f32.mrb[0].mxu0
      %v6623 = vpop.f32.mrb[0].mxu0
      %v6624 = vadd.f32 0.0, %v6623
      %v6625 = vpop.f32.mrb[0].mxu0
      %6626 = vdwg.mxu0
      %v6627 = vpack.c.bf16 %v6600, %v6597
      %v6628 = vpack.c.bf16 %v6608, %v6605
      %v6629 = vpack.c.bf16 %v6616, %v6613
      %v6630 = vpack.c.bf16 %v6624, %v6621
      %s6631 = scalar_lea.vmem %s8, 128
      %v6632 = vld [vmem:[%s6631] sm:$0xff]
      %v6633 = vld [vmem:[%s6631 + $0x8] sm:$0xff]
      %v6634 = vld [vmem:[%s6631 + $0x10] sm:$0xff]
      %v6635 = vld [vmem:[%s6631 + $0x18] sm:$0xff]
      %v6636 = vld [vmem:[%s6631 + $0x20] sm:$0xff]
      %v6637 = vld [vmem:[%s6631 + $0x28] sm:$0xff]
      %v6638 = vld [vmem:[%s6631 + $0x30] sm:$0xff]
      %v6639 = vld [vmem:[%s6631 + $0x38] sm:$0xff]
      %v6640 = vld [vmem:[%s6631 + $0x40] sm:$0xff]
      %v6641 = vld [vmem:[%s6631 + $0x48] sm:$0xff]
      %v6642 = vld [vmem:[%s6631 + $0x50] sm:$0xff]
      %v6643 = vld [vmem:[%s6631 + $0x58] sm:$0xff]
      %v6644 = vld [vmem:[%s6631 + $0x60] sm:$0xff]
      %v6645 = vld [vmem:[%s6631 + $0x68] sm:$0xff]
      %v6646 = vld [vmem:[%s6631 + $0x70] sm:$0xff]
      %v6647 = vld [vmem:[%s6631 + $0x78] sm:$0xff]
      %v6664 = vunpack.c.l.b16 %v6632
      %v6665 = vunpack.c.h.b16 %v6632
      %v6666 = vunpack.c.l.b16 %v6633
      %v6667 = vunpack.c.h.b16 %v6633
      %v6668 = vunpack.c.l.b16 %v6634
      %v6669 = vunpack.c.h.b16 %v6634
      %v6670 = vunpack.c.l.b16 %v6635
      %v6671 = vunpack.c.h.b16 %v6635
      %v6672 = vunpack.c.l.b16 %v6636
      %v6673 = vunpack.c.h.b16 %v6636
      %v6674 = vunpack.c.l.b16 %v6637
      %v6675 = vunpack.c.h.b16 %v6637
      %v6676 = vunpack.c.l.b16 %v6638
      %v6677 = vunpack.c.h.b16 %v6638
      %v6678 = vunpack.c.l.b16 %v6639
      %v6679 = vunpack.c.h.b16 %v6639
      %v6680 = vunpack.c.l.b16 %v6640
      %v6681 = vunpack.c.h.b16 %v6640
      %v6682 = vunpack.c.l.b16 %v6641
      %v6683 = vunpack.c.h.b16 %v6641
      %v6684 = vunpack.c.l.b16 %v6642
      %v6685 = vunpack.c.h.b16 %v6642
      %v6686 = vunpack.c.l.b16 %v6643
      %v6687 = vunpack.c.h.b16 %v6643
      %v6688 = vunpack.c.l.b16 %v6644
      %v6689 = vunpack.c.h.b16 %v6644
      %v6690 = vunpack.c.l.b16 %v6645
      %v6691 = vunpack.c.h.b16 %v6645
      %v6692 = vunpack.c.l.b16 %v6646
      %v6693 = vunpack.c.h.b16 %v6646
      %v6694 = vunpack.c.l.b16 %v6647
      %v6695 = vunpack.c.h.b16 %v6647
      %v6696 = vpack.c.b16 %v6666, %v6664
      %v6697 = vpack.c.b16 %v6667, %v6665
      %v6698 = vpack.c.b16 %v6670, %v6668
      %v6699 = vpack.c.b16 %v6671, %v6669
      %v6700 = vpack.c.b16 %v6674, %v6672
      %v6701 = vpack.c.b16 %v6675, %v6673
      %v6702 = vpack.c.b16 %v6678, %v6676
      %v6703 = vpack.c.b16 %v6679, %v6677
      %v6704 = vpack.c.b16 %v6682, %v6680
      %v6705 = vpack.c.b16 %v6683, %v6681
      %v6706 = vpack.c.b16 %v6686, %v6684
      %v6707 = vpack.c.b16 %v6687, %v6685
      %v6708 = vpack.c.b16 %v6690, %v6688
      %v6709 = vpack.c.b16 %v6691, %v6689
      %v6710 = vpack.c.b16 %v6694, %v6692
      %v6711 = vpack.c.b16 %v6695, %v6693
      %6728 = vmatprep.subr.bf16.mxu0 %v6697
      %6729 = vmatpush1.bf16.msra.mxu0 %v6696
      %6730 = vmatprep.subr.bf16.mxu0 %v6699
      %6731 = vmatpush1.bf16.msra.mxu0 %v6698
      %6732 = vmatprep.subr.bf16.mxu0 %v6701
      %6733 = vmatpush1.bf16.msra.mxu0 %v6700
      %6734 = vmatprep.subr.bf16.mxu0 %v6703
      %6735 = vmatpush1.bf16.msra.mxu0 %v6702
      %6736 = vmatprep.subr.bf16.mxu0 %v6705
      %6737 = vmatpush1.bf16.msra.mxu0 %v6704
      %6738 = vmatprep.subr.bf16.mxu0 %v6707
      %6739 = vmatpush1.bf16.msra.mxu0 %v6706
      %6740 = vmatprep.subr.bf16.mxu0 %v6709
      %6741 = vmatpush1.bf16.msra.mxu0 %v6708
      %6742 = vmatprep.subr.bf16.mxu0 %v6711
      %6743 = vmatpush1.bf16.msra.mxu0 %v6710
      %6744 = vmatprep.subr.bf16.mxu0 0
      %6745 = vmatpush1.bf16.msra.mxu0 0
      %6746 = vmatprep.subr.bf16.mxu0 0
      %6747 = vmatpush1.bf16.msra.mxu0 0
      %6748 = vmatprep.subr.bf16.mxu0 0
      %6749 = vmatpush1.bf16.msra.mxu0 0
      %6750 = vmatprep.subr.bf16.mxu0 0
      %6751 = vmatpush1.bf16.msra.mxu0 0
      %6752 = vmatprep.subr.bf16.mxu0 0
      %6753 = vmatpush1.bf16.msra.mxu0 0
      %6754 = vmatprep.subr.bf16.mxu0 0
      %6755 = vmatpush1.bf16.msra.mxu0 0
      %6756 = vmatprep.subr.bf16.mxu0 0
      %6757 = vmatpush1.bf16.msra.mxu0 0
      %6758 = vmatprep.subr.bf16.mxu0 0
      %6759 = vmatpush1.bf16.msra.mxu0 0
      %6760 = vmatprep.mubr.bf16.mxu0 0
      %6761 = vmatmul.mubr.bf16.gmra.mrb[0].mxu0 %v6627
      %v6762 = vpop.f32.mrb[0].mxu0
      %v6763 = vadd.f32 0.0, %v6762
      %v6764 = vpop.f32.mrb[0].mxu0
      %v6765 = vadd.f32 0.0, %v6764
      %v6766 = vpop.f32.mrb[0].mxu0
      %v6767 = vadd.f32 0.0, %v6766
      %v6768 = vpop.f32.mrb[0].mxu0
      %v6769 = vadd.f32 0.0, %v6768
      %6770 = vmatprep.mubr.bf16.mxu0 0
      %6771 = vmatmul.mubr.bf16.gmra.mrb[0].mxu0 %v6628
      %v6772 = vpop.f32.mrb[0].mxu0
      %v6773 = vadd.f32 0.0, %v6772
      %v6774 = vpop.f32.mrb[0].mxu0
      %v6775 = vadd.f32 0.0, %v6774
      %v6776 = vpop.f32.mrb[0].mxu0
      %v6777 = vadd.f32 0.0, %v6776
      %v6778 = vpop.f32.mrb[0].mxu0
      %v6779 = vadd.f32 0.0, %v6778
      %6780 = vmatprep.mubr.bf16.mxu0 0
      %6781 = vmatmul.mubr.bf16.gmra.mrb[0].mxu0 %v6629
      %v6782 = vpop.f32.mrb[0].mxu0
      %v6783 = vadd.f32 0.0, %v6782
      %v6784 = vpop.f32.mrb[0].mxu0
      %v6785 = vadd.f32 0.0, %v6784
      %v6786 = vpop.f32.mrb[0].mxu0
      %v6787 = vadd.f32 0.0, %v6786
      %v6788 = vpop.f32.mrb[0].mxu0
      %v6789 = vadd.f32 0.0, %v6788
      %6790 = vmatprep.mubr.bf16.mxu0 0
      %6791 = vmatmul.mubr.bf16.gmra.mrb[0].mxu0 %v6630
      %v6792 = vpop.f32.mrb[0].mxu0
      %v6793 = vadd.f32 0.0, %v6792
      %v6794 = vpop.f32.mrb[0].mxu0
      %v6795 = vadd.f32 0.0, %v6794
      %v6796 = vpop.f32.mrb[0].mxu0
      %v6797 = vadd.f32 0.0, %v6796
      %v6798 = vpop.f32.mrb[0].mxu0
      %v6799 = vadd.f32 0.0, %v6798
      %6800 = vdwg.mxu0
      %6801 = vst [vmem:[#allocation2] sm:$0x1] 0.0
      %6802 = vst [vmem:[#allocation2 + $0x81] sm:$0x1] 0.0
      %v6811 = vrot.slane %v3034, 7
      %v6812 = vrot.slane %v3035, 7
      %v6813 = vsel %vm371, %v6811, %v6812
      %v6814 = vrot.slane %v3036, 7
      %v6815 = vsel %vm371, %v6812, %v6814
      %v6816 = vrot.slane %v3037, 7
      %v6817 = vsel %vm371, %v6814, %v6816
      %v6818 = vrot.slane %v3038, 7
      %v6819 = vsel %vm371, %v6816, %v6818
      %v6820 = vrot.slane %v3039, 7
      %v6821 = vsel %vm371, %v6818, %v6820
      %v6822 = vrot.slane %v3040, 7
      %v6823 = vsel %vm371, %v6820, %v6822
      %v6824 = vrot.slane %v3041, 7
      %v6825 = vsel %vm371, %v6822, %v6824
      %6835 = vst [vmem:[#allocation2] sm:$0xfe] %v6811
      %6836 = vst [vmem:[#allocation2 + $0x10] sm:$0xff] %v6813
      %6837 = vst [vmem:[#allocation2 + $0x20] sm:$0xff] %v6815
      %6838 = vst [vmem:[#allocation2 + $0x30] sm:$0xff] %v6817
      %6839 = vst [vmem:[#allocation2 + $0x40] sm:$0xff] %v6819
      %6840 = vst [vmem:[#allocation2 + $0x50] sm:$0xff] %v6821
      %6841 = vst [vmem:[#allocation2 + $0x60] sm:$0xff] %v6823
      %6842 = vst [vmem:[#allocation2 + $0x70] sm:$0xff] %v6825
      %6843 = vst [vmem:[#allocation2 + $0x80] sm:$0x1] %v6824
      %v6844 = vld [vmem:[#allocation2] sm:$0xff]
      %v6845 = vld [vmem:[#allocation2 + $0x10] sm:$0xff]
      %v6846 = vld [vmem:[#allocation2 + $0x20] sm:$0xff]
      %v6847 = vld [vmem:[#allocation2 + $0x30] sm:$0xff]
      %v6848 = vld [vmem:[#allocation2 + $0x40] sm:$0xff]
      %v6849 = vld [vmem:[#allocation2 + $0x50] sm:$0xff]
      %v6850 = vld [vmem:[#allocation2 + $0x60] sm:$0xff]
      %v6851 = vld [vmem:[#allocation2 + $0x70] sm:$0xff]
      %v6852 = vld [vmem:[#allocation2] sm:$0xfc]
      %v6853 = vld [vmem:[#allocation2 + $0x80] sm:$0x3]
      %v6854 = vsel %vm2300, 0.0, %v6844
      %v6855 = vsel %vm2301, 0.0, %v6845
      %v6856 = vsel %vm2302, 0.0, %v6846
      %v6857 = vsel %vm2303, 0.0, %v6847
      %v6858 = vsel %vm2304, 0.0, %v6848
      %v6859 = vsel %vm2305, 0.0, %v6849
      %v6860 = vsel %vm2306, 0.0, %v6850
      %v6861 = vsel %vm2307, 0.0, %v6851
      %v6871 = vrot.slane %v6852, 2
      %v6872 = vrot.slane %v6845, 2
      %v6873 = vsel %vm553, %v6871, %v6872
      %v6874 = vrot.slane %v6846, 2
      %v6875 = vsel %vm553, %v6872, %v6874
      %v6876 = vrot.slane %v6847, 2
      %v6877 = vsel %vm553, %v6874, %v6876
      %v6878 = vrot.slane %v6848, 2
      %v6879 = vsel %vm553, %v6876, %v6878
      %v6880 = vrot.slane %v6849, 2
      %v6881 = vsel %vm553, %v6878, %v6880
      %v6882 = vrot.slane %v6850, 2
      %v6883 = vsel %vm553, %v6880, %v6882
      %v6884 = vrot.slane %v6851, 2
      %v6885 = vsel %vm553, %v6882, %v6884
      %v6886 = vrot.slane %v6853, 2
      %v6887 = vsel %vm553, %v6884, %v6886
      %v6896 = vsel %vm2316, 0.0, %v6873
      %v6897 = vsel %vm2317, 0.0, %v6875
      %v6898 = vsel %vm2318, 0.0, %v6877
      %v6899 = vsel %vm2319, 0.0, %v6879
      %v6900 = vsel %vm2320, 0.0, %v6881
      %v6901 = vsel %vm2321, 0.0, %v6883
      %v6902 = vsel %vm2322, 0.0, %v6885
      %v6903 = vsel %vm2323, 0.0, %v6887
      %v6904 = vpack.c.bf16 %v6855, %v6854
      %v6905 = vpack.c.bf16 %v6897, %v6896
      %v6906 = vpack.c.bf16 %v6857, %v6856
      %v6907 = vpack.c.bf16 %v6899, %v6898
      %v6908 = vpack.c.bf16 %v6859, %v6858
      %v6909 = vpack.c.bf16 %v6901, %v6900
      %v6910 = vpack.c.bf16 %v6861, %v6860
      %v6911 = vpack.c.bf16 %v6903, %v6902
      %6912 = vst.msk [vmem:[#allocation2] ss:$8 sm:$0x3] %vm5205, 0.0
      %6913 = vst.msk [vmem:[#allocation2] ss:$8 sm:$0x0] %vm5205, 0.0
      %s6914 = scalar_lea.vmem [#allocation2], 129
      %6915 = vst.msk [vmem:[%s6914] ss:$8 sm:$0x3] %vm5205, 0.0
      %6916 = vst.msk [vmem:[%s6914] ss:$8 sm:$0x0] %vm5205, 0.0
      %v6933 = vrot.slane %v6763, 7
      %v6934 = vrot.slane %v6765, 7
      %v6935 = vrot.slane %v6767, 7
      %v6936 = vsel %vm371, %v6933, %v6935
      %v6937 = vrot.slane %v6769, 7
      %v6938 = vsel %vm371, %v6934, %v6937
      %v6939 = vrot.slane %v6773, 7
      %v6940 = vsel %vm371, %v6935, %v6939
      %v6941 = vrot.slane %v6775, 7
      %v6942 = vsel %vm371, %v6937, %v6941
      %v6943 = vrot.slane %v6777, 7
      %v6944 = vsel %vm371, %v6939, %v6943
      %v6945 = vrot.slane %v6779, 7
      %v6946 = vsel %vm371, %v6941, %v6945
      %v6947 = vrot.slane %v6783, 7
      %v6948 = vsel %vm371, %v6943, %v6947
      %v6949 = vrot.slane %v6785, 7
      %v6950 = vsel %vm371, %v6945, %v6949
      %v6951 = vrot.slane %v6787, 7
      %v6952 = vsel %vm371, %v6947, %v6951
      %v6953 = vrot.slane %v6789, 7
      %v6954 = vsel %vm371, %v6949, %v6953
      %v6955 = vrot.slane %v6793, 7
      %v6956 = vsel %vm371, %v6951, %v6955
      %v6957 = vrot.slane %v6795, 7
      %v6958 = vsel %vm371, %v6953, %v6957
      %v6959 = vrot.slane %v6797, 7
      %v6960 = vsel %vm371, %v6955, %v6959
      %v6961 = vrot.slane %v6799, 7
      %v6962 = vsel %vm371, %v6957, %v6961
      %6981 = vst [vmem:[#allocation2] sm:$0xfe] %v6933
      %6982 = vst [vmem:[#allocation2 + $0x8] sm:$0xfe] %v6934
      %6983 = vst [vmem:[#allocation2 + $0x10] sm:$0xff] %v6936
      %6984 = vst [vmem:[#allocation2 + $0x18] sm:$0xff] %v6938
      %6985 = vst [vmem:[#allocation2 + $0x20] sm:$0xff] %v6940
      %6986 = vst [vmem:[#allocation2 + $0x28] sm:$0xff] %v6942
      %6987 = vst [vmem:[#allocation2 + $0x30] sm:$0xff] %v6944
      %6988 = vst [vmem:[#allocation2 + $0x38] sm:$0xff] %v6946
      %6989 = vst [vmem:[#allocation2 + $0x40] sm:$0xff] %v6948
      %6990 = vst [vmem:[#allocation2 + $0x48] sm:$0xff] %v6950
      %6991 = vst [vmem:[#allocation2 + $0x50] sm:$0xff] %v6952
      %6992 = vst [vmem:[#allocation2 + $0x58] sm:$0xff] %v6954
      %6993 = vst [vmem:[#allocation2 + $0x60] sm:$0xff] %v6956
      %6994 = vst [vmem:[#allocation2 + $0x68] sm:$0xff] %v6958
      %6995 = vst [vmem:[#allocation2 + $0x70] sm:$0xff] %v6960
      %6996 = vst [vmem:[#allocation2 + $0x78] sm:$0xff] %v6962
      %6997 = vst [vmem:[#allocation2 + $0x80] sm:$0x1] %v6959
      %6998 = vst [vmem:[#allocation2 + $0x88] sm:$0x1] %v6961
      %v6999 = vld [vmem:[#allocation2] sm:$0xff]
      %v7000 = vld [vmem:[#allocation2 + $0x8] sm:$0xff]
      %v7001 = vld [vmem:[#allocation2 + $0x10] sm:$0xff]
      %v7002 = vld [vmem:[#allocation2 + $0x18] sm:$0xff]
      %v7003 = vld [vmem:[#allocation2 + $0x20] sm:$0xff]
      %v7004 = vld [vmem:[#allocation2 + $0x28] sm:$0xff]
      %v7005 = vld [vmem:[#allocation2 + $0x30] sm:$0xff]
      %v7006 = vld [vmem:[#allocation2 + $0x38] sm:$0xff]
      %v7007 = vld [vmem:[#allocation2 + $0x40] sm:$0xff]
      %v7008 = vld [vmem:[#allocation2 + $0x48] sm:$0xff]
      %v7009 = vld [vmem:[#allocation2 + $0x50] sm:$0xff]
      %v7010 = vld [vmem:[#allocation2 + $0x58] sm:$0xff]
      %v7011 = vld [vmem:[#allocation2 + $0x60] sm:$0xff]
      %v7012 = vld [vmem:[#allocation2 + $0x68] sm:$0xff]
      %v7013 = vld [vmem:[#allocation2 + $0x70] sm:$0xff]
      %v7014 = vld [vmem:[#allocation2 + $0x78] sm:$0xff]
      %v7015 = vld [vmem:[#allocation2] sm:$0xfc]
      %v7016 = vld [vmem:[#allocation2 + $0x8] sm:$0xfc]
      %v7017 = vld [vmem:[#allocation2 + $0x80] sm:$0x3]
      %v7018 = vld [vmem:[#allocation2 + $0x88] sm:$0x3]
      %v7019 = vsel %vm2300, 0.0, %v6999
      %v7020 = vsel %vm2300, 0.0, %v7000
      %v7021 = vsel %vm2301, 0.0, %v7001
      %v7022 = vsel %vm2301, 0.0, %v7002
      %v7023 = vsel %vm2302, 0.0, %v7003
      %v7024 = vsel %vm2302, 0.0, %v7004
      %v7025 = vsel %vm2303, 0.0, %v7005
      %v7026 = vsel %vm2303, 0.0, %v7006
      %v7027 = vsel %vm2304, 0.0, %v7007
      %v7028 = vsel %vm2304, 0.0, %v7008
      %v7029 = vsel %vm2305, 0.0, %v7009
      %v7030 = vsel %vm2305, 0.0, %v7010
      %v7031 = vsel %vm2306, 0.0, %v7011
      %v7032 = vsel %vm2306, 0.0, %v7012
      %v7033 = vsel %vm2307, 0.0, %v7013
      %v7034 = vsel %vm2307, 0.0, %v7014
      %v7053 = vrot.slane %v7015, 2
      %v7054 = vrot.slane %v7001, 2
      %v7055 = vsel %vm553, %v7053, %v7054
      %v7056 = vrot.slane %v7016, 2
      %v7057 = vrot.slane %v7002, 2
      %v7058 = vsel %vm553, %v7056, %v7057
      %v7059 = vrot.slane %v7003, 2
      %v7060 = vsel %vm553, %v7054, %v7059
      %v7061 = vrot.slane %v7004, 2
      %v7062 = vsel %vm553, %v7057, %v7061
      %v7063 = vrot.slane %v7005, 2
      %v7064 = vsel %vm553, %v7059, %v7063
      %v7065 = vrot.slane %v7006, 2
      %v7066 = vsel %vm553, %v7061, %v7065
      %v7067 = vrot.slane %v7007, 2
      %v7068 = vsel %vm553, %v7063, %v7067
      %v7069 = vrot.slane %v7008, 2
      %v7070 = vsel %vm553, %v7065, %v7069
      %v7071 = vrot.slane %v7009, 2
      %v7072 = vsel %vm553, %v7067, %v7071
      %v7073 = vrot.slane %v7010, 2
      %v7074 = vsel %vm553, %v7069, %v7073
      %v7075 = vrot.slane %v7011, 2
      %v7076 = vsel %vm553, %v7071, %v7075
      %v7077 = vrot.slane %v7012, 2
      %v7078 = vsel %vm553, %v7073, %v7077
      %v7079 = vrot.slane %v7013, 2
      %v7080 = vsel %vm553, %v7075, %v7079
      %v7081 = vrot.slane %v7014, 2
      %v7082 = vsel %vm553, %v7077, %v7081
      %v7083 = vrot.slane %v7017, 2
      %v7084 = vsel %vm553, %v7079, %v7083
      %v7085 = vrot.slane %v7018, 2
      %v7086 = vsel %vm553, %v7081, %v7085
      %v7103 = vsel %vm2316, 0.0, %v7055
      %v7104 = vsel %vm2316, 0.0, %v7058
      %v7105 = vsel %vm2317, 0.0, %v7060
      %v7106 = vsel %vm2317, 0.0, %v7062
      %v7107 = vsel %vm2318, 0.0, %v7064
      %v7108 = vsel %vm2318, 0.0, %v7066
      %v7109 = vsel %vm2319, 0.0, %v7068
      %v7110 = vsel %vm2319, 0.0, %v7070
      %v7111 = vsel %vm2320, 0.0, %v7072
      %v7112 = vsel %vm2320, 0.0, %v7074
      %v7113 = vsel %vm2321, 0.0, %v7076
      %v7114 = vsel %vm2321, 0.0, %v7078
      %v7115 = vsel %vm2322, 0.0, %v7080
      %v7116 = vsel %vm2322, 0.0, %v7082
      %v7117 = vsel %vm2323, 0.0, %v7084
      %v7118 = vsel %vm2323, 0.0, %v7086
      %v7119 = vpack.c.bf16 %v7021, %v7019
      %v7120 = vpack.c.bf16 %v7022, %v7020
      %v7121 = vpack.c.bf16 %v6767, %v6763
      %v7122 = vpack.c.bf16 %v6769, %v6765
      %v7123 = vpack.c.bf16 %v7105, %v7103
      %v7124 = vpack.c.bf16 %v7106, %v7104
      %v7125 = vpack.c.bf16 %v7025, %v7023
      %v7126 = vpack.c.bf16 %v7026, %v7024
      %v7127 = vpack.c.bf16 %v6777, %v6773
      %v7128 = vpack.c.bf16 %v6779, %v6775
      %v7129 = vpack.c.bf16 %v7109, %v7107
      %v7130 = vpack.c.bf16 %v7110, %v7108
      %v7131 = vpack.c.bf16 %v7029, %v7027
      %v7132 = vpack.c.bf16 %v7030, %v7028
      %v7133 = vpack.c.bf16 %v6787, %v6783
      %v7134 = vpack.c.bf16 %v6789, %v6785
      %v7135 = vpack.c.bf16 %v7113, %v7111
      %v7136 = vpack.c.bf16 %v7114, %v7112
      %v7137 = vpack.c.bf16 %v7033, %v7031
      %v7138 = vpack.c.bf16 %v7034, %v7032
      %v7139 = vpack.c.bf16 %v6797, %v6793
      %v7140 = vpack.c.bf16 %v6799, %v6795
      %v7141 = vpack.c.bf16 %v7117, %v7115
      %v7142 = vpack.c.bf16 %v7118, %v7116
      %v7143 = vld [vmem:[%s1 + $0x7e0] sm:$0xf]
      %v7144 = vld [vmem:[%s1 + $0x7e4] sm:$0xf]
      %v7145 = vld [vmem:[%s1 + $0x7e8] sm:$0xf]
      %v7146 = vld [vmem:[%s1 + $0x7ec] sm:$0xf]
      %v7147 = vld [vmem:[%s1 + $0x7f0] sm:$0xf]
      %v7148 = vld [vmem:[%s1 + $0x7f4] sm:$0xf]
      %v7149 = vld [vmem:[%s1 + $0x7f8] sm:$0xf]
      %v7150 = vld [vmem:[%s1 + $0x7fc] sm:$0xf]
      %v7151 = vld [vmem:[%s1 + $0x800] sm:$0xf]
      %v7152 = vld [vmem:[%s1 + $0x804] sm:$0xf]
      %v7153 = vld [vmem:[%s1 + $0x808] sm:$0xf]
      %v7154 = vld [vmem:[%s1 + $0x80c] sm:$0xf]
      %v7155 = vld [vmem:[%s1 + $0x810] sm:$0xf]
      %v7156 = vld [vmem:[%s1 + $0x814] sm:$0xf]
      %v7157 = vld [vmem:[%s1 + $0x818] sm:$0xf]
      %v7158 = vld [vmem:[%s1 + $0x81c] sm:$0xf]
      %v7159 = vld [vmem:[%s1 + $0x820] sm:$0xf]
      %v7160 = vld [vmem:[%s1 + $0x824] sm:$0xf]
      %v7161 = vld [vmem:[%s1 + $0x828] sm:$0xf]
      %v7162 = vld [vmem:[%s1 + $0x82c] sm:$0xf]
      %v7163 = vld [vmem:[%s1 + $0x830] sm:$0xf]
      %v7164 = vld [vmem:[%s1 + $0x834] sm:$0xf]
      %v7165 = vld [vmem:[%s1 + $0x838] sm:$0xf]
      %v7166 = vld [vmem:[%s1 + $0x83c] sm:$0xf]
      %v7167 = vld [vmem:[%s1 + $0x840] sm:$0xf]
      %v7168 = vld [vmem:[%s1 + $0x844] sm:$0xf]
      %v7169 = vld [vmem:[%s1 + $0x848] sm:$0xf]
      %v7170 = vld [vmem:[%s1 + $0x84c] sm:$0xf]
      %v7171 = vld [vmem:[%s1 + $0x850] sm:$0xf]
      %v7172 = vld [vmem:[%s1 + $0x854] sm:$0xf]
      %v7173 = vld [vmem:[%s1 + $0x858] sm:$0xf]
      %v7174 = vld [vmem:[%s1 + $0x85c] sm:$0xf]
      %v7175 = vld [vmem:[%s1 + $0x860] sm:$0xf]
      %v7176 = vld [vmem:[%s1 + $0x864] sm:$0xf]
      %v7177 = vld [vmem:[%s1 + $0x868] sm:$0xf]
      %v7178 = vld [vmem:[%s1 + $0x86c] sm:$0xf]
      %v7179 = vld [vmem:[%s1 + $0x870] sm:$0xf]
      %v7180 = vld [vmem:[%s1 + $0x874] sm:$0xf]
      %v7181 = vld [vmem:[%s1 + $0x878] sm:$0xf]
      %v7182 = vld [vmem:[%s1 + $0x87c] sm:$0xf]
      %v7183 = vld [vmem:[%s1 + $0x880] sm:$0xf]
      %v7184 = vld [vmem:[%s1 + $0x884] sm:$0xf]
      %v7185 = vld [vmem:[%s1 + $0x888] sm:$0xf]
      %v7186 = vld [vmem:[%s1 + $0x88c] sm:$0xf]
      %v7187 = vld [vmem:[%s1 + $0x890] sm:$0xf]
      %v7188 = vld [vmem:[%s1 + $0x894] sm:$0xf]
      %v7189 = vld [vmem:[%s1 + $0x898] sm:$0xf]
      %v7190 = vld [vmem:[%s1 + $0x89c] sm:$0xf]
      %v7191 = vld [vmem:[%s1 + $0x8a0] sm:$0xf]
      %v7192 = vld [vmem:[%s1 + $0x8a4] sm:$0xf]
      %v7193 = vld [vmem:[%s1 + $0x8a8] sm:$0xf]
      %v7194 = vld [vmem:[%s1 + $0x8ac] sm:$0xf]
      %v7195 = vld [vmem:[%s1 + $0x8b0] sm:$0xf]
      %v7196 = vld [vmem:[%s1 + $0x8b4] sm:$0xf]
      %v7197 = vld [vmem:[%s1 + $0x8b8] sm:$0xf]
      %v7198 = vld [vmem:[%s1 + $0x8bc] sm:$0xf]
      %v7199 = vld [vmem:[%s1 + $0x8c0] sm:$0xf]
      %v7200 = vld [vmem:[%s1 + $0x8c4] sm:$0xf]
      %v7201 = vld [vmem:[%s1 + $0x8c8] sm:$0xf]
      %v7202 = vld [vmem:[%s1 + $0x8cc] sm:$0xf]
      %v7203 = vld [vmem:[%s1 + $0x8d0] sm:$0xf]
      %v7204 = vld [vmem:[%s1 + $0x8d4] sm:$0xf]
      %v7205 = vld [vmem:[%s1 + $0x8d8] sm:$0xf]
      %v7206 = vld [vmem:[%s1 + $0x8dc] sm:$0xf]
      %v7207 = vld [vmem:[%s1 + $0x8e0] sm:$0xf]
      %v7208 = vld [vmem:[%s1 + $0x8e4] sm:$0xf]
      %v7209 = vld [vmem:[%s1 + $0x8e8] sm:$0xf]
      %v7210 = vld [vmem:[%s1 + $0x8ec] sm:$0xf]
      %v7211 = vld [vmem:[%s1 + $0x8f0] sm:$0xf]
      %v7212 = vld [vmem:[%s1 + $0x8f4] sm:$0xf]
      %v7213 = vld [vmem:[%s1 + $0x8f8] sm:$0xf]
      %v7214 = vld [vmem:[%s1 + $0x8fc] sm:$0xf]
      %v7215 = vld [vmem:[%s1 + $0x900] sm:$0xf]
      %v7216 = vld [vmem:[%s1 + $0x904] sm:$0xf]
      %v7217 = vld [vmem:[%s1 + $0x908] sm:$0xf]
      %v7218 = vld [vmem:[%s1 + $0x90c] sm:$0xf]
      %v7219 = vld [vmem:[%s1 + $0x910] sm:$0xf]
      %v7220 = vld [vmem:[%s1 + $0x914] sm:$0xf]
      %v7221 = vld [vmem:[%s1 + $0x918] sm:$0xf]
      %v7222 = vld [vmem:[%s1 + $0x91c] sm:$0xf]
      %v7223 = vld [vmem:[%s1 + $0x920] sm:$0xf]
      %v7224 = vld [vmem:[%s1 + $0x924] sm:$0xf]
      %v7225 = vld [vmem:[%s1 + $0x928] sm:$0xf]
      %v7226 = vld [vmem:[%s1 + $0x92c] sm:$0xf]
      %v7227 = vld [vmem:[%s1 + $0x930] sm:$0xf]
      %v7228 = vld [vmem:[%s1 + $0x934] sm:$0xf]
      %v7229 = vld [vmem:[%s1 + $0x938] sm:$0xf]
      %v7230 = vld [vmem:[%s1 + $0x93c] sm:$0xf]
      %v7231 = vld [vmem:[%s1 + $0x940] sm:$0xf]
      %v7232 = vld [vmem:[%s1 + $0x944] sm:$0xf]
      %v7233 = vld [vmem:[%s1 + $0x948] sm:$0xf]
      %v7234 = vld [vmem:[%s1 + $0x94c] sm:$0xf]
      %v7235 = vld [vmem:[%s1 + $0x950] sm:$0xf]
      %v7236 = vld [vmem:[%s1 + $0x954] sm:$0xf]
      %v7237 = vld [vmem:[%s1 + $0x958] sm:$0xf]
      %v7238 = vld [vmem:[%s1 + $0x95c] sm:$0xf]
      %v7239 = vld [vmem:[%s1 + $0x960] sm:$0xf]
      %v7240 = vld [vmem:[%s1 + $0x964] sm:$0xf]
      %v7241 = vld [vmem:[%s1 + $0x968] sm:$0xf]
      %v7242 = vld [vmem:[%s1 + $0x96c] sm:$0xf]
      %v7243 = vld [vmem:[%s1 + $0x970] sm:$0xf]
      %v7244 = vld [vmem:[%s1 + $0x974] sm:$0xf]
      %v7245 = vld [vmem:[%s1 + $0x978] sm:$0xf]
      %v7246 = vld [vmem:[%s1 + $0x97c] sm:$0xf]
      %v7247 = vld [vmem:[%s1 + $0x980] sm:$0xf]
      %v7248 = vld [vmem:[%s1 + $0x984] sm:$0xf]
      %v7249 = vld [vmem:[%s1 + $0x988] sm:$0xf]
      %v7250 = vld [vmem:[%s1 + $0x98c] sm:$0xf]
      %v7251 = vld [vmem:[%s1 + $0x990] sm:$0xf]
      %v7252 = vld [vmem:[%s1 + $0x994] sm:$0xf]
      %v7253 = vld [vmem:[%s1 + $0x998] sm:$0xf]
      %v7254 = vld [vmem:[%s1 + $0x99c] sm:$0xf]
      %v7255 = vld [vmem:[%s1 + $0x9a0] sm:$0xf]
      %v7256 = vld [vmem:[%s1 + $0x9a4] sm:$0xf]
      %v7257 = vld [vmem:[%s1 + $0x9a8] sm:$0xf]
      %v7258 = vld [vmem:[%s1 + $0x9ac] sm:$0xf]
      %v7259 = vld [vmem:[%s1 + $0x9b0] sm:$0xf]
      %v7260 = vld [vmem:[%s1 + $0x9b4] sm:$0xf]
      %v7261 = vld [vmem:[%s1 + $0x9b8] sm:$0xf]
      %v7262 = vld [vmem:[%s1 + $0x9bc] sm:$0xf]
      %v7263 = vld [vmem:[%s1 + $0x9c0] sm:$0xf]
      %v7264 = vld [vmem:[%s1 + $0x9c4] sm:$0xf]
      %v7265 = vld [vmem:[%s1 + $0x9c8] sm:$0xf]
      %v7266 = vld [vmem:[%s1 + $0x9cc] sm:$0xf]
      %v7267 = vld [vmem:[%s1 + $0x9d0] sm:$0xf]
      %v7268 = vld [vmem:[%s1 + $0x9d4] sm:$0xf]
      %v7269 = vld [vmem:[%s1 + $0x9d8] sm:$0xf]
      %v7270 = vld [vmem:[%s1 + $0x9dc] sm:$0xf]
      %v7271 = vld [vmem:[%s1 + $0x9e0] sm:$0xf]
      %v7272 = vld [vmem:[%s1 + $0x9e4] sm:$0xf]
      %v7273 = vld [vmem:[%s1 + $0x9e8] sm:$0xf]
      %v7274 = vld [vmem:[%s1 + $0x9ec] sm:$0xf]
      %v7275 = vld [vmem:[%s1 + $0x9f0] sm:$0xf]
      %v7276 = vld [vmem:[%s1 + $0x9f4] sm:$0xf]
      %v7277 = vld [vmem:[%s1 + $0x9f8] sm:$0xf]
      %v7278 = vld [vmem:[%s1 + $0x9fc] sm:$0xf]
      %v7279 = vld [vmem:[%s1 + $0xa00] sm:$0xf]
      %v7280 = vld [vmem:[%s1 + $0xa04] sm:$0xf]
      %v7281 = vld [vmem:[%s1 + $0xa08] sm:$0xf]
      %v7282 = vld [vmem:[%s1 + $0xa0c] sm:$0xf]
      %v7283 = vld [vmem:[%s1 + $0xa10] sm:$0xf]
      %v7284 = vld [vmem:[%s1 + $0xa14] sm:$0xf]
      %v7285 = vld [vmem:[%s1 + $0xa18] sm:$0xf]
      %v7286 = vld [vmem:[%s1 + $0xa1c] sm:$0xf]
      %v7287 = vld [vmem:[%s2 + $0xa] sm:$0x1]
      %v7288 = vlaneseq
      %v7289 = vshrl.u32 %v7288, 7
      %v7290 = vsub.s32 0, %v7289
      %v7291 = vrot.slane %v7287, %v7290
      %v7436 = vunpack.c.l.b16 %v7143
      %v7437 = vunpack.c.l.b16 %v7144
      %v7438 = vunpack.c.l.b16 %v7145
      %v7439 = vunpack.c.l.b16 %v7146
      %v7440 = vunpack.c.l.b16 %v7147
      %v7441 = vunpack.c.l.b16 %v7148
      %v7442 = vunpack.c.l.b16 %v7149
      %v7443 = vunpack.c.l.b16 %v7150
      %v7444 = vunpack.c.l.b16 %v7151
      %v7445 = vunpack.c.l.b16 %v7152
      %v7446 = vunpack.c.l.b16 %v7153
      %v7447 = vunpack.c.l.b16 %v7154
      %v7448 = vunpack.c.l.b16 %v7155
      %v7449 = vunpack.c.l.b16 %v7156
      %v7450 = vunpack.c.l.b16 %v7157
      %v7451 = vunpack.c.l.b16 %v7158
      %v7452 = vunpack.c.l.b16 %v7159
      %v7453 = vunpack.c.l.b16 %v7160
      %v7454 = vunpack.c.l.b16 %v7161
      %v7455 = vunpack.c.l.b16 %v7162
      %v7456 = vunpack.c.l.b16 %v7163
      %v7457 = vunpack.c.l.b16 %v7164
      %v7458 = vunpack.c.l.b16 %v7165
      %v7459 = vunpack.c.l.b16 %v7166
      %v7460 = vunpack.c.l.b16 %v7167
      %v7461 = vunpack.c.l.b16 %v7168
      %v7462 = vunpack.c.l.b16 %v7169
      %v7463 = vunpack.c.l.b16 %v7170
      %v7464 = vunpack.c.l.b16 %v7171
      %v7465 = vunpack.c.l.b16 %v7172
      %v7466 = vunpack.c.l.b16 %v7173
      %v7467 = vunpack.c.l.b16 %v7174
      %v7468 = vunpack.c.l.b16 %v7175
      %v7469 = vunpack.c.l.b16 %v7176
      %v7470 = vunpack.c.l.b16 %v7177
      %v7471 = vunpack.c.l.b16 %v7178
      %v7472 = vunpack.c.l.b16 %v7179
      %v7473 = vunpack.c.l.b16 %v7180
      %v7474 = vunpack.c.l.b16 %v7181
      %v7475 = vunpack.c.l.b16 %v7182
      %v7476 = vunpack.c.l.b16 %v7183
      %v7477 = vunpack.c.l.b16 %v7184
      %v7478 = vunpack.c.l.b16 %v7185
      %v7479 = vunpack.c.l.b16 %v7186
      %v7480 = vunpack.c.l.b16 %v7187
      %v7481 = vunpack.c.l.b16 %v7188
      %v7482 = vunpack.c.l.b16 %v7189
      %v7483 = vunpack.c.l.b16 %v7190
      %v7484 = vunpack.c.l.b16 %v7191
      %v7485 = vunpack.c.l.b16 %v7192
      %v7486 = vunpack.c.l.b16 %v7193
      %v7487 = vunpack.c.l.b16 %v7194
      %v7488 = vunpack.c.l.b16 %v7195
      %v7489 = vunpack.c.l.b16 %v7196
      %v7490 = vunpack.c.l.b16 %v7197
      %v7491 = vunpack.c.l.b16 %v7198
      %v7492 = vunpack.c.l.b16 %v7199
      %v7493 = vunpack.c.l.b16 %v7200
      %v7494 = vunpack.c.l.b16 %v7201
      %v7495 = vunpack.c.l.b16 %v7202
      %v7496 = vunpack.c.l.b16 %v7203
      %v7497 = vunpack.c.l.b16 %v7204
      %v7498 = vunpack.c.l.b16 %v7205
      %v7499 = vunpack.c.l.b16 %v7206
      %v7500 = vunpack.c.l.b16 %v7207
      %v7501 = vunpack.c.l.b16 %v7208
      %v7502 = vunpack.c.l.b16 %v7209
      %v7503 = vunpack.c.l.b16 %v7210
      %v7504 = vunpack.c.l.b16 %v7211
      %v7505 = vunpack.c.l.b16 %v7212
      %v7506 = vunpack.c.l.b16 %v7213
      %v7507 = vunpack.c.l.b16 %v7214
      %v7508 = vunpack.c.l.b16 %v7215
      %v7509 = vunpack.c.l.b16 %v7216
      %v7510 = vunpack.c.l.b16 %v7217
      %v7511 = vunpack.c.l.b16 %v7218
      %v7512 = vunpack.c.l.b16 %v7219
      %v7513 = vunpack.c.l.b16 %v7220
      %v7514 = vunpack.c.l.b16 %v7221
      %v7515 = vunpack.c.l.b16 %v7222
      %v7516 = vunpack.c.l.b16 %v7223
      %v7517 = vunpack.c.l.b16 %v7224
      %v7518 = vunpack.c.l.b16 %v7225
      %v7519 = vunpack.c.l.b16 %v7226
      %v7520 = vunpack.c.l.b16 %v7227
      %v7521 = vunpack.c.l.b16 %v7228
      %v7522 = vunpack.c.l.b16 %v7229
      %v7523 = vunpack.c.l.b16 %v7230
      %v7524 = vunpack.c.l.b16 %v7231
      %v7525 = vunpack.c.l.b16 %v7232
      %v7526 = vunpack.c.l.b16 %v7233
      %v7527 = vunpack.c.l.b16 %v7234
      %v7528 = vunpack.c.l.b16 %v7235
      %v7529 = vunpack.c.l.b16 %v7236
      %v7530 = vunpack.c.l.b16 %v7237
      %v7531 = vunpack.c.l.b16 %v7238
      %v7532 = vunpack.c.l.b16 %v7239
      %v7533 = vunpack.c.l.b16 %v7240
      %v7534 = vunpack.c.l.b16 %v7241
      %v7535 = vunpack.c.l.b16 %v7242
      %v7536 = vunpack.c.l.b16 %v7243
      %v7537 = vunpack.c.l.b16 %v7244
      %v7538 = vunpack.c.l.b16 %v7245
      %v7539 = vunpack.c.l.b16 %v7246
      %v7540 = vunpack.c.l.b16 %v7247
      %v7541 = vunpack.c.l.b16 %v7248
      %v7542 = vunpack.c.l.b16 %v7249
      %v7543 = vunpack.c.l.b16 %v7250
      %v7544 = vunpack.c.l.b16 %v7251
      %v7545 = vunpack.c.l.b16 %v7252
      %v7546 = vunpack.c.l.b16 %v7253
      %v7547 = vunpack.c.l.b16 %v7254
      %v7548 = vunpack.c.l.b16 %v7255
      %v7549 = vunpack.c.l.b16 %v7256
      %v7550 = vunpack.c.l.b16 %v7257
      %v7551 = vunpack.c.l.b16 %v7258
      %v7552 = vunpack.c.l.b16 %v7259
      %v7553 = vunpack.c.l.b16 %v7260
      %v7554 = vunpack.c.l.b16 %v7261
      %v7555 = vunpack.c.l.b16 %v7262
      %v7556 = vunpack.c.l.b16 %v7263
      %v7557 = vunpack.c.l.b16 %v7264
      %v7558 = vunpack.c.l.b16 %v7265
      %v7559 = vunpack.c.l.b16 %v7266
      %v7560 = vunpack.c.l.b16 %v7267
      %v7561 = vunpack.c.l.b16 %v7268
      %v7562 = vunpack.c.l.b16 %v7269
      %v7563 = vunpack.c.l.b16 %v7270
      %v7564 = vunpack.c.l.b16 %v7271
      %v7565 = vunpack.c.l.b16 %v7272
      %v7566 = vunpack.c.l.b16 %v7273
      %v7567 = vunpack.c.l.b16 %v7274
      %v7568 = vunpack.c.l.b16 %v7275
      %v7569 = vunpack.c.l.b16 %v7276
      %v7570 = vunpack.c.l.b16 %v7277
      %v7571 = vunpack.c.l.b16 %v7278
      %v7572 = vunpack.c.l.b16 %v7279
      %v7573 = vunpack.c.l.b16 %v7280
      %v7574 = vunpack.c.l.b16 %v7281
      %v7575 = vunpack.c.l.b16 %v7282
      %v7576 = vunpack.c.l.b16 %v7283
      %v7577 = vunpack.c.l.b16 %v7284
      %v7578 = vunpack.c.l.b16 %v7285
      %v7579 = vunpack.c.l.b16 %v7286
      %v7580 = vpack.c.b16 %v7437, %v7436
      %v7581 = vpack.c.b16 %v7439, %v7438
      %v7582 = vpack.c.b16 %v7441, %v7440
      %v7583 = vpack.c.b16 %v7443, %v7442
      %v7584 = vpack.c.b16 %v7445, %v7444
      %v7585 = vpack.c.b16 %v7447, %v7446
      %v7586 = vpack.c.b16 %v7449, %v7448
      %v7587 = vpack.c.b16 %v7451, %v7450
      %v7588 = vpack.c.b16 %v7453, %v7452
      %v7589 = vpack.c.b16 %v7455, %v7454
      %v7590 = vpack.c.b16 %v7457, %v7456
      %v7591 = vpack.c.b16 %v7459, %v7458
      %v7592 = vpack.c.b16 %v7461, %v7460
      %v7593 = vpack.c.b16 %v7463, %v7462
      %v7594 = vpack.c.b16 %v7465, %v7464
      %v7595 = vpack.c.b16 %v7467, %v7466
      %v7596 = vpack.c.b16 %v7469, %v7468
      %v7597 = vpack.c.b16 %v7471, %v7470
      %v7598 = vpack.c.b16 %v7473, %v7472
      %v7599 = vpack.c.b16 %v7475, %v7474
      %v7600 = vpack.c.b16 %v7477, %v7476
      %v7601 = vpack.c.b16 %v7479, %v7478
      %v7602 = vpack.c.b16 %v7481, %v7480
      %v7603 = vpack.c.b16 %v7483, %v7482
      %v7604 = vpack.c.b16 %v7485, %v7484
      %v7605 = vpack.c.b16 %v7487, %v7486
      %v7606 = vpack.c.b16 %v7489, %v7488
      %v7607 = vpack.c.b16 %v7491, %v7490
      %v7608 = vpack.c.b16 %v7493, %v7492
      %v7609 = vpack.c.b16 %v7495, %v7494
      %v7610 = vpack.c.b16 %v7497, %v7496
      %v7611 = vpack.c.b16 %v7499, %v7498
      %v7612 = vpack.c.b16 %v7501, %v7500
      %v7613 = vpack.c.b16 %v7503, %v7502
      %v7614 = vpack.c.b16 %v7505, %v7504
      %v7615 = vpack.c.b16 %v7507, %v7506
      %v7616 = vpack.c.b16 %v7509, %v7508
      %v7617 = vpack.c.b16 %v7511, %v7510
      %v7618 = vpack.c.b16 %v7513, %v7512
      %v7619 = vpack.c.b16 %v7515, %v7514
      %v7620 = vpack.c.b16 %v7517, %v7516
      %v7621 = vpack.c.b16 %v7519, %v7518
      %v7622 = vpack.c.b16 %v7521, %v7520
      %v7623 = vpack.c.b16 %v7523, %v7522
      %v7624 = vpack.c.b16 %v7525, %v7524
      %v7625 = vpack.c.b16 %v7527, %v7526
      %v7626 = vpack.c.b16 %v7529, %v7528
      %v7627 = vpack.c.b16 %v7531, %v7530
      %v7628 = vpack.c.b16 %v7533, %v7532
      %v7629 = vpack.c.b16 %v7535, %v7534
      %v7630 = vpack.c.b16 %v7537, %v7536
      %v7631 = vpack.c.b16 %v7539, %v7538
      %v7632 = vpack.c.b16 %v7541, %v7540
      %v7633 = vpack.c.b16 %v7543, %v7542
      %v7634 = vpack.c.b16 %v7545, %v7544
      %v7635 = vpack.c.b16 %v7547, %v7546
      %v7636 = vpack.c.b16 %v7549, %v7548
      %v7637 = vpack.c.b16 %v7551, %v7550
      %v7638 = vpack.c.b16 %v7553, %v7552
      %v7639 = vpack.c.b16 %v7555, %v7554
      %v7640 = vpack.c.b16 %v7557, %v7556
      %v7641 = vpack.c.b16 %v7559, %v7558
      %v7642 = vpack.c.b16 %v7561, %v7560
      %v7643 = vpack.c.b16 %v7563, %v7562
      %v7644 = vpack.c.b16 %v7565, %v7564
      %v7645 = vpack.c.b16 %v7567, %v7566
      %v7646 = vpack.c.b16 %v7569, %v7568
      %v7647 = vpack.c.b16 %v7571, %v7570
      %v7648 = vpack.c.b16 %v7573, %v7572
      %v7649 = vpack.c.b16 %v7575, %v7574
      %v7650 = vpack.c.b16 %v7577, %v7576
      %v7651 = vpack.c.b16 %v7579, %v7578
      %7724 = vmatprep.subr.bf16.mxu0 0
      %7725 = vmatpush1.bf16.msra.mxu0 %v7580
      %7726 = vmatprep.subr.bf16.mxu0 0
      %7727 = vmatpush1.bf16.msra.mxu0 %v7581
      %7728 = vmatprep.subr.bf16.mxu0 0
      %7729 = vmatpush1.bf16.msra.mxu0 %v7582
      %7730 = vmatprep.subr.bf16.mxu0 0
      %7731 = vmatpush1.bf16.msra.mxu0 %v7583
      %7732 = vmatprep.subr.bf16.mxu0 0
      %7733 = vmatpush1.bf16.msra.mxu0 %v7584
      %7734 = vmatprep.subr.bf16.mxu0 0
      %7735 = vmatpush1.bf16.msra.mxu0 %v7585
      %7736 = vmatprep.subr.bf16.mxu0 0
      %7737 = vmatpush1.bf16.msra.mxu0 %v7586
      %7738 = vmatprep.subr.bf16.mxu0 0
      %7739 = vmatpush1.bf16.msra.mxu0 %v7587
      %7740 = vmatprep.subr.bf16.mxu0 0
      %7741 = vmatpush1.bf16.msra.mxu0 %v7588
      %7742 = vmatprep.subr.bf16.mxu0 0
      %7743 = vmatpush1.bf16.msra.mxu0 %v7589
      %7744 = vmatprep.subr.bf16.mxu0 0
      %7745 = vmatpush1.bf16.msra.mxu0 %v7590
      %7746 = vmatprep.subr.bf16.mxu0 0
      %7747 = vmatpush1.bf16.msra.mxu0 %v7591
      %7748 = vmatprep.subr.bf16.mxu0 0
      %7749 = vmatpush1.bf16.msra.mxu0 %v7592
      %7750 = vmatprep.subr.bf16.mxu0 0
      %7751 = vmatpush1.bf16.msra.mxu0 %v7593
      %7752 = vmatprep.subr.bf16.mxu0 0
      %7753 = vmatpush1.bf16.msra.mxu0 %v7594
      %7754 = vmatprep.subr.bf16.mxu0 0
      %7755 = vmatpush1.bf16.msra.mxu0 %v7595
      %7756 = vmatprep.mubr.bf16.mxu0 %v3042
      %7757 = vmatmul.mubr.bf16.gmra.mrb[0].mxu0 %v6904
      %v7758 = vpop.f32.mrb[0].mxu0
      %v7759 = vadd.f32 %v7291, %v7758
      %v7760 = vpop.f32.mrb[0].mxu0
      %v7761 = vpop.f32.mrb[0].mxu0
      %v7762 = vadd.f32 %v7291, %v7761
      %v7763 = vpop.f32.mrb[0].mxu0
      %7764 = vmatprep.mubr.bf16.mxu0 %v3043
      %7765 = vmatmul.mubr.bf16.gmra.mrb[0].mxu0 %v6906
      %v7766 = vpop.f32.mrb[0].mxu0
      %v7767 = vadd.f32 %v7291, %v7766
      %v7768 = vpop.f32.mrb[0].mxu0
      %v7769 = vpop.f32.mrb[0].mxu0
      %v7770 = vadd.f32 %v7291, %v7769
      %v7771 = vpop.f32.mrb[0].mxu0
      %7772 = vmatprep.mubr.bf16.mxu0 %v3044
      %7773 = vmatmul.mubr.bf16.gmra.mrb[0].mxu0 %v6908
      %v7774 = vpop.f32.mrb[0].mxu0
      %v7775 = vadd.f32 %v7291, %v7774
      %v7776 = vpop.f32.mrb[0].mxu0
      %v7777 = vpop.f32.mrb[0].mxu0
      %v7778 = vadd.f32 %v7291, %v7777
      %v7779 = vpop.f32.mrb[0].mxu0
      %7780 = vmatprep.mubr.bf16.mxu0 %v3045
      %7781 = vmatmul.mubr.bf16.gmra.mrb[0].mxu0 %v6910
      %v7782 = vpop.f32.mrb[0].mxu0
      %v7783 = vadd.f32 %v7291, %v7782
      %v7784 = vpop.f32.mrb[0].mxu0
      %v7785 = vpop.f32.mrb[0].mxu0
      %v7786 = vadd.f32 %v7291, %v7785
      %v7787 = vpop.f32.mrb[0].mxu0
      %7788 = vdwg.mxu0
      %7789 = vmatprep.subr.bf16.mxu0 0
      %7790 = vmatpush1.bf16.msra.mxu0 %v7596
      %7791 = vmatprep.subr.bf16.mxu0 0
      %7792 = vmatpush1.bf16.msra.mxu0 %v7597
      %7793 = vmatprep.subr.bf16.mxu0 0
      %7794 = vmatpush1.bf16.msra.mxu0 %v7598
      %7795 = vmatprep.subr.bf16.mxu0 0
      %7796 = vmatpush1.bf16.msra.mxu0 %v7599
      %7797 = vmatprep.subr.bf16.mxu0 0
      %7798 = vmatpush1.bf16.msra.mxu0 %v7600
      %7799 = vmatprep.subr.bf16.mxu0 0
      %7800 = vmatpush1.bf16.msra.mxu0 %v7601
      %7801 = vmatprep.subr.bf16.mxu0 0
      %7802 = vmatpush1.bf16.msra.mxu0 %v7602
      %7803 = vmatprep.subr.bf16.mxu0 0
      %7804 = vmatpush1.bf16.msra.mxu0 %v7603
      %7805 = vmatprep.subr.bf16.mxu0 0
      %7806 = vmatpush1.bf16.msra.mxu0 %v7604
      %7807 = vmatprep.subr.bf16.mxu0 0
      %7808 = vmatpush1.bf16.msra.mxu0 %v7605
      %7809 = vmatprep.subr.bf16.mxu0 0
      %7810 = vmatpush1.bf16.msra.mxu0 %v7606
      %7811 = vmatprep.subr.bf16.mxu0 0
      %7812 = vmatpush1.bf16.msra.mxu0 %v7607
      %7813 = vmatprep.subr.bf16.mxu0 0
      %7814 = vmatpush1.bf16.msra.mxu0 %v7608
      %7815 = vmatprep.subr.bf16.mxu0 0
      %7816 = vmatpush1.bf16.msra.mxu0 %v7609
      %7817 = vmatprep.subr.bf16.mxu0 0
      %7818 = vmatpush1.bf16.msra.mxu0 %v7610
      %7819 = vmatprep.subr.bf16.mxu0 0
      %7820 = vmatpush1.bf16.msra.mxu0 %v7611
      %7821 = vmatprep.mubr.bf16.mxu0 %v7119
      %7822 = vmatmul.mubr.bf16.gmra.mrb[0].mxu0 %v6905
      %v7823 = vpop.f32.mrb[0].mxu0
      %v7824 = vadd.f32 %v7759, %v7823
      %v7825 = vpop.f32.mrb[0].mxu0
      %v7826 = vpop.f32.mrb[0].mxu0
      %v7827 = vadd.f32 %v7762, %v7826
      %v7828 = vpop.f32.mrb[0].mxu0
      %7829 = vmatprep.mubr.bf16.mxu0 %v7125
      %7830 = vmatmul.mubr.bf16.gmra.mrb[0].mxu0 %v6907
      %v7831 = vpop.f32.mrb[0].mxu0
      %v7832 = vadd.f32 %v7767, %v7831
      %v7833 = vpop.f32.mrb[0].mxu0
      %v7834 = vpop.f32.mrb[0].mxu0
      %v7835 = vadd.f32 %v7770, %v7834
      %v7836 = vpop.f32.mrb[0].mxu0
      %7837 = vmatprep.mubr.bf16.mxu0 %v7131
      %7838 = vmatmul.mubr.bf16.gmra.mrb[0].mxu0 %v6909
      %v7839 = vpop.f32.mrb[0].mxu0
      %v7840 = vadd.f32 %v7775, %v7839
      %v7841 = vpop.f32.mrb[0].mxu0
      %v7842 = vpop.f32.mrb[0].mxu0
      %v7843 = vadd.f32 %v7778, %v7842
      %v7844 = vpop.f32.mrb[0].mxu0
      %7845 = vmatprep.mubr.bf16.mxu0 %v7137
      %7846 = vmatmul.mubr.bf16.gmra.mrb[0].mxu0 %v6911
      %v7847 = vpop.f32.mrb[0].mxu0
      %v7848 = vadd.f32 %v7783, %v7847
      %v7849 = vpop.f32.mrb[0].mxu0
      %v7850 = vpop.f32.mrb[0].mxu0
      %v7851 = vadd.f32 %v7786, %v7850
      %v7852 = vpop.f32.mrb[0].mxu0
      %7853 = vdwg.mxu0
      %7854 = vmatprep.subr.bf16.mxu0 0
      %7855 = vmatpush1.bf16.msra.mxu0 %v7612
      %7856 = vmatprep.subr.bf16.mxu0 0
      %7857 = vmatpush1.bf16.msra.mxu0 %v7613
      %7858 = vmatprep.subr.bf16.mxu0 0
      %7859 = vmatpush1.bf16.msra.mxu0 %v7614
      %7860 = vmatprep.subr.bf16.mxu0 0
      %7861 = vmatpush1.bf16.msra.mxu0 %v7615
      %7862 = vmatprep.subr.bf16.mxu0 0
      %7863 = vmatpush1.bf16.msra.mxu0 %v7616
      %7864 = vmatprep.subr.bf16.mxu0 0
      %7865 = vmatpush1.bf16.msra.mxu0 %v7617
      %7866 = vmatprep.subr.bf16.mxu0 0
      %7867 = vmatpush1.bf16.msra.mxu0 %v7618
      %7868 = vmatprep.subr.bf16.mxu0 0
      %7869 = vmatpush1.bf16.msra.mxu0 %v7619
      %7870 = vmatprep.subr.bf16.mxu0 0
      %7871 = vmatpush1.bf16.msra.mxu0 %v7620
      %7872 = vmatprep.subr.bf16.mxu0 0
      %7873 = vmatpush1.bf16.msra.mxu0 %v7621
      %7874 = vmatprep.subr.bf16.mxu0 0
      %7875 = vmatpush1.bf16.msra.mxu0 %v7622
      %7876 = vmatprep.subr.bf16.mxu0 0
      %7877 = vmatpush1.bf16.msra.mxu0 %v7623
      %7878 = vmatprep.subr.bf16.mxu0 0
      %7879 = vmatpush1.bf16.msra.mxu0 %v7624
      %7880 = vmatprep.subr.bf16.mxu0 0
      %7881 = vmatpush1.bf16.msra.mxu0 %v7625
      %7882 = vmatprep.subr.bf16.mxu0 0
      %7883 = vmatpush1.bf16.msra.mxu0 %v7626
      %7884 = vmatprep.subr.bf16.mxu0 0
      %7885 = vmatpush1.bf16.msra.mxu0 %v7627
      %7886 = vmatprep.mubr.bf16.mxu0 %v7121
      %7887 = vmatmul.mubr.bf16.gmra.mrb[0].mxu0 %v7120
      %v7888 = vpop.f32.mrb[0].mxu0
      %v7889 = vadd.f32 %v7824, %v7888
      %v7890 = vpop.f32.mrb[0].mxu0
      %v7891 = vpop.f32.mrb[0].mxu0
      %v7892 = vadd.f32 %v7827, %v7891
      %v7893 = vpop.f32.mrb[0].mxu0
      %7894 = vmatprep.mubr.bf16.mxu0 %v7127
      %7895 = vmatmul.mubr.bf16.gmra.mrb[0].mxu0 %v7126
      %v7896 = vpop.f32.mrb[0].mxu0
      %v7897 = vadd.f32 %v7832, %v7896
      %v7898 = vpop.f32.mrb[0].mxu0
      %v7899 = vpop.f32.mrb[0].mxu0
      %v7900 = vadd.f32 %v7835, %v7899
      %v7901 = vpop.f32.mrb[0].mxu0
      %7902 = vmatprep.mubr.bf16.mxu0 %v7133
      %7903 = vmatmul.mubr.bf16.gmra.mrb[0].mxu0 %v7132
      %v7904 = vpop.f32.mrb[0].mxu0
      %v7905 = vadd.f32 %v7840, %v7904
      %v7906 = vpop.f32.mrb[0].mxu0
      %v7907 = vpop.f32.mrb[0].mxu0
      %v7908 = vadd.f32 %v7843, %v7907
      %v7909 = vpop.f32.mrb[0].mxu0
      %7910 = vmatprep.mubr.bf16.mxu0 %v7139
      %7911 = vmatmul.mubr.bf16.gmra.mrb[0].mxu0 %v7138
      %v7912 = vpop.f32.mrb[0].mxu0
      %v7913 = vadd.f32 %v7848, %v7912
      %v7914 = vpop.f32.mrb[0].mxu0
      %v7915 = vpop.f32.mrb[0].mxu0
      %v7916 = vadd.f32 %v7851, %v7915
      %v7917 = vpop.f32.mrb[0].mxu0
      %7918 = vdwg.mxu0
      %7919 = vmatprep.subr.bf16.mxu0 0
      %7920 = vmatpush1.bf16.msra.mxu0 %v7628
      %7921 = vmatprep.subr.bf16.mxu0 0
      %7922 = vmatpush1.bf16.msra.mxu0 %v7629
      %7923 = vmatprep.subr.bf16.mxu0 0
      %7924 = vmatpush1.bf16.msra.mxu0 %v7630
      %7925 = vmatprep.subr.bf16.mxu0 0
      %7926 = vmatpush1.bf16.msra.mxu0 %v7631
      %7927 = vmatprep.subr.bf16.mxu0 0
      %7928 = vmatpush1.bf16.msra.mxu0 %v7632
      %7929 = vmatprep.subr.bf16.mxu0 0
      %7930 = vmatpush1.bf16.msra.mxu0 %v7633
      %7931 = vmatprep.subr.bf16.mxu0 0
      %7932 = vmatpush1.bf16.msra.mxu0 %v7634
      %7933 = vmatprep.subr.bf16.mxu0 0
      %7934 = vmatpush1.bf16.msra.mxu0 %v7635
      %7935 = vmatprep.subr.bf16.mxu0 0
      %7936 = vmatpush1.bf16.msra.mxu0 %v7636
      %7937 = vmatprep.subr.bf16.mxu0 0
      %7938 = vmatpush1.bf16.msra.mxu0 %v7637
      %7939 = vmatprep.subr.bf16.mxu0 0
      %7940 = vmatpush1.bf16.msra.mxu0 %v7638
      %7941 = vmatprep.subr.bf16.mxu0 0
      %7942 = vmatpush1.bf16.msra.mxu0 %v7639
      %7943 = vmatprep.subr.bf16.mxu0 0
      %7944 = vmatpush1.bf16.msra.mxu0 %v7640
      %7945 = vmatprep.subr.bf16.mxu0 0
      %7946 = vmatpush1.bf16.msra.mxu0 %v7641
      %7947 = vmatprep.subr.bf16.mxu0 0
      %7948 = vmatpush1.bf16.msra.mxu0 %v7642
      %7949 = vmatprep.subr.bf16.mxu0 0
      %7950 = vmatpush1.bf16.msra.mxu0 %v7643
      %7951 = vmatprep.mubr.bf16.mxu0 %v7123
      %7952 = vmatmul.mubr.bf16.gmra.mrb[0].mxu0 %v7122
      %v7953 = vpop.f32.mrb[0].mxu0
      %v7954 = vadd.f32 %v7889, %v7953
      %v7955 = vpop.f32.mrb[0].mxu0
      %v7956 = vpop.f32.mrb[0].mxu0
      %v7957 = vadd.f32 %v7892, %v7956
      %v7958 = vpop.f32.mrb[0].mxu0
      %7959 = vmatprep.mubr.bf16.mxu0 %v7129
      %7960 = vmatmul.mubr.bf16.gmra.mrb[0].mxu0 %v7128
      %v7961 = vpop.f32.mrb[0].mxu0
      %v7962 = vadd.f32 %v7897, %v7961
      %v7963 = vpop.f32.mrb[0].mxu0
      %v7964 = vpop.f32.mrb[0].mxu0
      %v7965 = vadd.f32 %v7900, %v7964
      %v7966 = vpop.f32.mrb[0].mxu0
      %7967 = vmatprep.mubr.bf16.mxu0 %v7135
      %7968 = vmatmul.mubr.bf16.gmra.mrb[0].mxu0 %v7134
      %v7969 = vpop.f32.mrb[0].mxu0
      %v7970 = vadd.f32 %v7905, %v7969
      %v7971 = vpop.f32.mrb[0].mxu0
      %v7972 = vpop.f32.mrb[0].mxu0
      %v7973 = vadd.f32 %v7908, %v7972
      %v7974 = vpop.f32.mrb[0].mxu0
      %7975 = vmatprep.mubr.bf16.mxu0 %v7141
      %7976 = vmatmul.mubr.bf16.gmra.mrb[0].mxu0 %v7140
      %v7977 = vpop.f32.mrb[0].mxu0
      %v7978 = vadd.f32 %v7913, %v7977
      %v7979 = vpop.f32.mrb[0].mxu0
      %v7980 = vpop.f32.mrb[0].mxu0
      %v7981 = vadd.f32 %v7916, %v7980
      %v7982 = vpop.f32.mrb[0].mxu0
      %7983 = vdwg.mxu0
      %7984 = vmatprep.subr.bf16.mxu0 0
      %7985 = vmatpush1.bf16.msra.mxu0 %v7644
      %7986 = vmatprep.subr.bf16.mxu0 0
      %7987 = vmatpush1.bf16.msra.mxu0 %v7645
      %7988 = vmatprep.subr.bf16.mxu0 0
      %7989 = vmatpush1.bf16.msra.mxu0 %v7646
      %7990 = vmatprep.subr.bf16.mxu0 0
      %7991 = vmatpush1.bf16.msra.mxu0 %v7647
      %7992 = vmatprep.subr.bf16.mxu0 0
      %7993 = vmatpush1.bf16.msra.mxu0 %v7648
      %7994 = vmatprep.subr.bf16.mxu0 0
      %7995 = vmatpush1.bf16.msra.mxu0 %v7649
      %7996 = vmatprep.subr.bf16.mxu0 0
      %7997 = vmatpush1.bf16.msra.mxu0 %v7650
      %7998 = vmatprep.subr.bf16.mxu0 0
      %7999 = vmatpush1.bf16.msra.mxu0 %v7651
      %8000 = vmatprep.subr.bf16.mxu0 0
      %8001 = vmatpush1.bf16.msra.mxu0 0
      %8002 = vmatprep.subr.bf16.mxu0 0
      %8003 = vmatpush1.bf16.msra.mxu0 0
      %8004 = vmatprep.subr.bf16.mxu0 0
      %8005 = vmatpush1.bf16.msra.mxu0 0
      %8006 = vmatprep.subr.bf16.mxu0 0
      %8007 = vmatpush1.bf16.msra.mxu0 0
      %8008 = vmatprep.subr.bf16.mxu0 0
      %8009 = vmatpush1.bf16.msra.mxu0 0
      %8010 = vmatprep.subr.bf16.mxu0 0
      %8011 = vmatpush1.bf16.msra.mxu0 0
      %8012 = vmatprep.subr.bf16.mxu0 0
      %8013 = vmatpush1.bf16.msra.mxu0 0
      %8014 = vmatprep.subr.bf16.mxu0 0
      %8015 = vmatpush1.bf16.msra.mxu0 0
      %8016 = vmatprep.mubr.bf16.mxu0 0
      %8017 = vmatmul.mubr.bf16.gmra.mrb[0].mxu0 %v7124
      %v8018 = vpop.f32.mrb[0].mxu0
      %v8019 = vadd.f32 %v7954, %v8018
      %v8020 = vpop.f32.mrb[0].mxu0
      %v8021 = vpop.f32.mrb[0].mxu0
      %v8022 = vadd.f32 %v7957, %v8021
      %v8023 = vpop.f32.mrb[0].mxu0
      %8024 = vmatprep.mubr.bf16.mxu0 0
      %8025 = vmatmul.mubr.bf16.gmra.mrb[0].mxu0 %v7130
      %v8026 = vpop.f32.mrb[0].mxu0
      %v8027 = vadd.f32 %v7962, %v8026
      %v8028 = vpop.f32.mrb[0].mxu0
      %v8029 = vpop.f32.mrb[0].mxu0
      %v8030 = vadd.f32 %v7965, %v8029
      %v8031 = vpop.f32.mrb[0].mxu0
      %8032 = vmatprep.mubr.bf16.mxu0 0
      %8033 = vmatmul.mubr.bf16.gmra.mrb[0].mxu0 %v7136
      %v8034 = vpop.f32.mrb[0].mxu0
      %v8035 = vadd.f32 %v7970, %v8034
      %v8036 = vpop.f32.mrb[0].mxu0
      %v8037 = vpop.f32.mrb[0].mxu0
      %v8038 = vadd.f32 %v7973, %v8037
      %v8039 = vpop.f32.mrb[0].mxu0
      %8040 = vmatprep.mubr.bf16.mxu0 0
      %8041 = vmatmul.mubr.bf16.gmra.mrb[0].mxu0 %v7142
      %v8042 = vpop.f32.mrb[0].mxu0
      %v8043 = vadd.f32 %v7978, %v8042
      %v8044 = vpop.f32.mrb[0].mxu0
      %v8045 = vpop.f32.mrb[0].mxu0
      %v8046 = vadd.f32 %v7981, %v8045
      %v8047 = vpop.f32.mrb[0].mxu0
      %8048 = vdwg.mxu0
      %v8049 = vmax.f32 %v8019, 0.0
      %v8050 = vmax.f32 %v8022, 0.0
      %v8051 = vmax.f32 %v8027, 0.0
      %v8052 = vmax.f32 %v8030, 0.0
      %v8053 = vmax.f32 %v8035, 0.0
      %v8054 = vmax.f32 %v8038, 0.0
      %v8055 = vmax.f32 %v8043, 0.0
      %v8056 = vmax.f32 %v8046, 0.0
      %8057 = vst [vmem:[#allocation2] sm:$0x1] 0.0
      %8058 = vst [vmem:[#allocation2 + $0x81] sm:$0x1] 0.0
      %v8067 = vrot.slane %v8049, 7
      %v8068 = vrot.slane %v8050, 7
      %v8069 = vsel %vm371, %v8067, %v8068
      %v8070 = vrot.slane %v8051, 7
      %v8071 = vsel %vm371, %v8068, %v8070
      %v8072 = vrot.slane %v8052, 7
      %v8073 = vsel %vm371, %v8070, %v8072
      %v8074 = vrot.slane %v8053, 7
      %v8075 = vsel %vm371, %v8072, %v8074
      %v8076 = vrot.slane %v8054, 7
      %v8077 = vsel %vm371, %v8074, %v8076
      %v8078 = vrot.slane %v8055, 7
      %v8079 = vsel %vm371, %v8076, %v8078
      %v8080 = vrot.slane %v8056, 7
      %v8081 = vsel %vm371, %v8078, %v8080
      %8091 = vst [vmem:[#allocation2] sm:$0xfe] %v8067
      %8092 = vst [vmem:[#allocation2 + $0x10] sm:$0xff] %v8069
      %8093 = vst [vmem:[#allocation2 + $0x20] sm:$0xff] %v8071
      %8094 = vst [vmem:[#allocation2 + $0x30] sm:$0xff] %v8073
      %8095 = vst [vmem:[#allocation2 + $0x40] sm:$0xff] %v8075
      %8096 = vst [vmem:[#allocation2 + $0x50] sm:$0xff] %v8077
      %8097 = vst [vmem:[#allocation2 + $0x60] sm:$0xff] %v8079
      %8098 = vst [vmem:[#allocation2 + $0x70] sm:$0xff] %v8081
      %8099 = vst [vmem:[#allocation2 + $0x80] sm:$0x1] %v8080
      %v8100 = vld [vmem:[#allocation2] sm:$0xff]
      %v8101 = vld [vmem:[#allocation2 + $0x10] sm:$0xff]
      %v8102 = vld [vmem:[#allocation2 + $0x20] sm:$0xff]
      %v8103 = vld [vmem:[#allocation2 + $0x30] sm:$0xff]
      %v8104 = vld [vmem:[#allocation2 + $0x40] sm:$0xff]
      %v8105 = vld [vmem:[#allocation2 + $0x50] sm:$0xff]
      %v8106 = vld [vmem:[#allocation2 + $0x60] sm:$0xff]
      %v8107 = vld [vmem:[#allocation2 + $0x70] sm:$0xff]
      %v8108 = vld [vmem:[#allocation2] sm:$0xfc]
      %v8109 = vld [vmem:[#allocation2 + $0x80] sm:$0x3]
      %v8110 = vsel %vm2300, 0.0, %v8100
      %v8111 = vsel %vm2301, 0.0, %v8101
      %v8112 = vsel %vm2302, 0.0, %v8102
      %v8113 = vsel %vm2303, 0.0, %v8103
      %v8114 = vsel %vm2304, 0.0, %v8104
      %v8115 = vsel %vm2305, 0.0, %v8105
      %v8116 = vsel %vm2306, 0.0, %v8106
      %v8117 = vsel %vm2307, 0.0, %v8107
      %v8127 = vrot.slane %v8108, 2
      %v8128 = vrot.slane %v8101, 2
      %v8129 = vsel %vm553, %v8127, %v8128
      %v8130 = vrot.slane %v8102, 2
      %v8131 = vsel %vm553, %v8128, %v8130
      %v8132 = vrot.slane %v8103, 2
      %v8133 = vsel %vm553, %v8130, %v8132
      %v8134 = vrot.slane %v8104, 2
      %v8135 = vsel %vm553, %v8132, %v8134
      %v8136 = vrot.slane %v8105, 2
      %v8137 = vsel %vm553, %v8134, %v8136
      %v8138 = vrot.slane %v8106, 2
      %v8139 = vsel %vm553, %v8136, %v8138
      %v8140 = vrot.slane %v8107, 2
      %v8141 = vsel %vm553, %v8138, %v8140
      %v8142 = vrot.slane %v8109, 2
      %v8143 = vsel %vm553, %v8140, %v8142
      %v8152 = vsel %vm2316, 0.0, %v8129
      %v8153 = vsel %vm2317, 0.0, %v8131
      %v8154 = vsel %vm2318, 0.0, %v8133
      %v8155 = vsel %vm2319, 0.0, %v8135
      %v8156 = vsel %vm2320, 0.0, %v8137
      %v8157 = vsel %vm2321, 0.0, %v8139
      %v8158 = vsel %vm2322, 0.0, %v8141
      %v8159 = vsel %vm2323, 0.0, %v8143
      %v8160 = vpack.c.bf16 %v8111, %v8110
      %v8161 = vpack.c.bf16 %v8050, %v8049
      %v8162 = vpack.c.bf16 %v8153, %v8152
      %v8163 = vpack.c.bf16 %v8113, %v8112
      %v8164 = vpack.c.bf16 %v8052, %v8051
      %v8165 = vpack.c.bf16 %v8155, %v8154
      %v8166 = vpack.c.bf16 %v8115, %v8114
      %v8167 = vpack.c.bf16 %v8054, %v8053
      %v8168 = vpack.c.bf16 %v8157, %v8156
      %v8169 = vpack.c.bf16 %v8117, %v8116
      %v8170 = vpack.c.bf16 %v8056, %v8055
      %v8171 = vpack.c.bf16 %v8159, %v8158
      %v8172 = vld [vmem:[%s1 + $0xa20] sm:$0xf]
      %v8173 = vld [vmem:[%s1 + $0xa24] sm:$0xf]
      %v8174 = vld [vmem:[%s1 + $0xa28] sm:$0xf]
      %v8175 = vld [vmem:[%s1 + $0xa2c] sm:$0xf]
      %v8176 = vld [vmem:[%s1 + $0xa30] sm:$0xf]
      %v8177 = vld [vmem:[%s1 + $0xa34] sm:$0xf]
      %v8178 = vld [vmem:[%s1 + $0xa38] sm:$0xf]
      %v8179 = vld [vmem:[%s1 + $0xa3c] sm:$0xf]
      %v8180 = vld [vmem:[%s1 + $0xa40] sm:$0xf]
      %v8181 = vld [vmem:[%s1 + $0xa44] sm:$0xf]
      %v8182 = vld [vmem:[%s1 + $0xa48] sm:$0xf]
      %v8183 = vld [vmem:[%s1 + $0xa4c] sm:$0xf]
      %v8184 = vld [vmem:[%s1 + $0xa50] sm:$0xf]
      %v8185 = vld [vmem:[%s1 + $0xa54] sm:$0xf]
      %v8186 = vld [vmem:[%s1 + $0xa58] sm:$0xf]
      %v8187 = vld [vmem:[%s1 + $0xa5c] sm:$0xf]
      %v8188 = vld [vmem:[%s1 + $0xa60] sm:$0xf]
      %v8189 = vld [vmem:[%s1 + $0xa64] sm:$0xf]
      %v8190 = vld [vmem:[%s1 + $0xa68] sm:$0xf]
      %v8191 = vld [vmem:[%s1 + $0xa6c] sm:$0xf]
      %v8192 = vld [vmem:[%s1 + $0xa70] sm:$0xf]
      %v8193 = vld [vmem:[%s1 + $0xa74] sm:$0xf]
      %v8194 = vld [vmem:[%s1 + $0xa78] sm:$0xf]
      %v8195 = vld [vmem:[%s1 + $0xa7c] sm:$0xf]
      %v8196 = vld [vmem:[%s1 + $0xa80] sm:$0xf]
      %v8197 = vld [vmem:[%s1 + $0xa84] sm:$0xf]
      %v8198 = vld [vmem:[%s1 + $0xa88] sm:$0xf]
      %v8199 = vld [vmem:[%s1 + $0xa8c] sm:$0xf]
      %v8200 = vld [vmem:[%s1 + $0xa90] sm:$0xf]
      %v8201 = vld [vmem:[%s1 + $0xa94] sm:$0xf]
      %v8202 = vld [vmem:[%s1 + $0xa98] sm:$0xf]
      %v8203 = vld [vmem:[%s1 + $0xa9c] sm:$0xf]
      %v8204 = vld [vmem:[%s1 + $0xaa0] sm:$0xf]
      %v8205 = vld [vmem:[%s1 + $0xaa4] sm:$0xf]
      %v8206 = vld [vmem:[%s1 + $0xaa8] sm:$0xf]
      %v8207 = vld [vmem:[%s1 + $0xaac] sm:$0xf]
      %v8208 = vld [vmem:[%s1 + $0xab0] sm:$0xf]
      %v8209 = vld [vmem:[%s1 + $0xab4] sm:$0xf]
      %v8210 = vld [vmem:[%s1 + $0xab8] sm:$0xf]
      %v8211 = vld [vmem:[%s1 + $0xabc] sm:$0xf]
      %v8212 = vld [vmem:[%s1 + $0xac0] sm:$0xf]
      %v8213 = vld [vmem:[%s1 + $0xac4] sm:$0xf]
      %v8214 = vld [vmem:[%s1 + $0xac8] sm:$0xf]
      %v8215 = vld [vmem:[%s1 + $0xacc] sm:$0xf]
      %v8216 = vld [vmem:[%s1 + $0xad0] sm:$0xf]
      %v8217 = vld [vmem:[%s1 + $0xad4] sm:$0xf]
      %v8218 = vld [vmem:[%s1 + $0xad8] sm:$0xf]
      %v8219 = vld [vmem:[%s1 + $0xadc] sm:$0xf]
      %v8220 = vld [vmem:[%s2 + $0xb] sm:$0x1]
      %v8221 = vlaneseq
      %v8222 = vshrl.u32 %v8221, 7
      %v8223 = vsub.s32 0, %v8222
      %v8224 = vrot.slane %v8220, %v8223
      %v8273 = vunpack.c.l.b16 %v8172
      %v8274 = vunpack.c.l.b16 %v8173
      %v8275 = vunpack.c.l.b16 %v8174
      %v8276 = vunpack.c.l.b16 %v8175
      %v8277 = vunpack.c.l.b16 %v8176
      %v8278 = vunpack.c.l.b16 %v8177
      %v8279 = vunpack.c.l.b16 %v8178
      %v8280 = vunpack.c.l.b16 %v8179
      %v8281 = vunpack.c.l.b16 %v8180
      %v8282 = vunpack.c.l.b16 %v8181
      %v8283 = vunpack.c.l.b16 %v8182
      %v8284 = vunpack.c.l.b16 %v8183
      %v8285 = vunpack.c.l.b16 %v8184
      %v8286 = vunpack.c.l.b16 %v8185
      %v8287 = vunpack.c.l.b16 %v8186
      %v8288 = vunpack.c.l.b16 %v8187
      %v8289 = vunpack.c.l.b16 %v8188
      %v8290 = vunpack.c.l.b16 %v8189
      %v8291 = vunpack.c.l.b16 %v8190
      %v8292 = vunpack.c.l.b16 %v8191
      %v8293 = vunpack.c.l.b16 %v8192
      %v8294 = vunpack.c.l.b16 %v8193
      %v8295 = vunpack.c.l.b16 %v8194
      %v8296 = vunpack.c.l.b16 %v8195
      %v8297 = vunpack.c.l.b16 %v8196
      %v8298 = vunpack.c.l.b16 %v8197
      %v8299 = vunpack.c.l.b16 %v8198
      %v8300 = vunpack.c.l.b16 %v8199
      %v8301 = vunpack.c.l.b16 %v8200
      %v8302 = vunpack.c.l.b16 %v8201
      %v8303 = vunpack.c.l.b16 %v8202
      %v8304 = vunpack.c.l.b16 %v8203
      %v8305 = vunpack.c.l.b16 %v8204
      %v8306 = vunpack.c.l.b16 %v8205
      %v8307 = vunpack.c.l.b16 %v8206
      %v8308 = vunpack.c.l.b16 %v8207
      %v8309 = vunpack.c.l.b16 %v8208
      %v8310 = vunpack.c.l.b16 %v8209
      %v8311 = vunpack.c.l.b16 %v8210
      %v8312 = vunpack.c.l.b16 %v8211
      %v8313 = vunpack.c.l.b16 %v8212
      %v8314 = vunpack.c.l.b16 %v8213
      %v8315 = vunpack.c.l.b16 %v8214
      %v8316 = vunpack.c.l.b16 %v8215
      %v8317 = vunpack.c.l.b16 %v8216
      %v8318 = vunpack.c.l.b16 %v8217
      %v8319 = vunpack.c.l.b16 %v8218
      %v8320 = vunpack.c.l.b16 %v8219
      %v8321 = vpack.c.b16 %v8274, %v8273
      %v8322 = vpack.c.b16 %v8276, %v8275
      %v8323 = vpack.c.b16 %v8278, %v8277
      %v8324 = vpack.c.b16 %v8280, %v8279
      %v8325 = vpack.c.b16 %v8282, %v8281
      %v8326 = vpack.c.b16 %v8284, %v8283
      %v8327 = vpack.c.b16 %v8286, %v8285
      %v8328 = vpack.c.b16 %v8288, %v8287
      %v8329 = vpack.c.b16 %v8290, %v8289
      %v8330 = vpack.c.b16 %v8292, %v8291
      %v8331 = vpack.c.b16 %v8294, %v8293
      %v8332 = vpack.c.b16 %v8296, %v8295
      %v8333 = vpack.c.b16 %v8298, %v8297
      %v8334 = vpack.c.b16 %v8300, %v8299
      %v8335 = vpack.c.b16 %v8302, %v8301
      %v8336 = vpack.c.b16 %v8304, %v8303
      %v8337 = vpack.c.b16 %v8306, %v8305
      %v8338 = vpack.c.b16 %v8308, %v8307
      %v8339 = vpack.c.b16 %v8310, %v8309
      %v8340 = vpack.c.b16 %v8312, %v8311
      %v8341 = vpack.c.b16 %v8314, %v8313
      %v8342 = vpack.c.b16 %v8316, %v8315
      %v8343 = vpack.c.b16 %v8318, %v8317
      %v8344 = vpack.c.b16 %v8320, %v8319
      %8369 = vmatprep.subr.bf16.mxu0 0
      %8370 = vmatpush1.bf16.msra.mxu0 %v8321
      %8371 = vmatprep.subr.bf16.mxu0 0
      %8372 = vmatpush1.bf16.msra.mxu0 %v8322
      %8373 = vmatprep.subr.bf16.mxu0 0
      %8374 = vmatpush1.bf16.msra.mxu0 %v8323
      %8375 = vmatprep.subr.bf16.mxu0 0
      %8376 = vmatpush1.bf16.msra.mxu0 %v8324
      %8377 = vmatprep.subr.bf16.mxu0 0
      %8378 = vmatpush1.bf16.msra.mxu0 %v8325
      %8379 = vmatprep.subr.bf16.mxu0 0
      %8380 = vmatpush1.bf16.msra.mxu0 %v8326
      %8381 = vmatprep.subr.bf16.mxu0 0
      %8382 = vmatpush1.bf16.msra.mxu0 %v8327
      %8383 = vmatprep.subr.bf16.mxu0 0
      %8384 = vmatpush1.bf16.msra.mxu0 %v8328
      %8385 = vmatprep.subr.bf16.mxu0 0
      %8386 = vmatpush1.bf16.msra.mxu0 %v8329
      %8387 = vmatprep.subr.bf16.mxu0 0
      %8388 = vmatpush1.bf16.msra.mxu0 %v8330
      %8389 = vmatprep.subr.bf16.mxu0 0
      %8390 = vmatpush1.bf16.msra.mxu0 %v8331
      %8391 = vmatprep.subr.bf16.mxu0 0
      %8392 = vmatpush1.bf16.msra.mxu0 %v8332
      %8393 = vmatprep.subr.bf16.mxu0 0
      %8394 = vmatpush1.bf16.msra.mxu0 %v8333
      %8395 = vmatprep.subr.bf16.mxu0 0
      %8396 = vmatpush1.bf16.msra.mxu0 %v8334
      %8397 = vmatprep.subr.bf16.mxu0 0
      %8398 = vmatpush1.bf16.msra.mxu0 %v8335
      %8399 = vmatprep.subr.bf16.mxu0 0
      %8400 = vmatpush1.bf16.msra.mxu0 %v8336
      %8401 = vmatprep.mubr.bf16.mxu0 %v8161
      %8402 = vmatmul.mubr.bf16.gmra.mrb[0].mxu0 %v8160
      %v8403 = vpop.f32.mrb[0].mxu0
      %v8404 = vadd.f32 %v8224, %v8403
      %v8405 = vpop.f32.mrb[0].mxu0
      %v8406 = vpop.f32.mrb[0].mxu0
      %v8407 = vadd.f32 %v8224, %v8406
      %v8408 = vpop.f32.mrb[0].mxu0
      %8409 = vmatprep.mubr.bf16.mxu0 %v8164
      %8410 = vmatmul.mubr.bf16.gmra.mrb[0].mxu0 %v8163
      %v8411 = vpop.f32.mrb[0].mxu0
      %v8412 = vadd.f32 %v8224, %v8411
      %v8413 = vpop.f32.mrb[0].mxu0
      %v8414 = vpop.f32.mrb[0].mxu0
      %v8415 = vadd.f32 %v8224, %v8414
      %v8416 = vpop.f32.mrb[0].mxu0
      %8417 = vmatprep.mubr.bf16.mxu0 %v8167
      %8418 = vmatmul.mubr.bf16.gmra.mrb[0].mxu0 %v8166
      %v8419 = vpop.f32.mrb[0].mxu0
      %v8420 = vadd.f32 %v8224, %v8419
      %v8421 = vpop.f32.mrb[0].mxu0
      %v8422 = vpop.f32.mrb[0].mxu0
      %v8423 = vadd.f32 %v8224, %v8422
      %v8424 = vpop.f32.mrb[0].mxu0
      %8425 = vmatprep.mubr.bf16.mxu0 %v8170
      %8426 = vmatmul.mubr.bf16.gmra.mrb[0].mxu0 %v8169
      %v8427 = vpop.f32.mrb[0].mxu0
      %v8428 = vadd.f32 %v8224, %v8427
      %v8429 = vpop.f32.mrb[0].mxu0
      %v8430 = vpop.f32.mrb[0].mxu0
      %v8431 = vadd.f32 %v8224, %v8430
      %v8432 = vpop.f32.mrb[0].mxu0
      %8433 = vdwg.mxu0
      %8434 = vmatprep.subr.bf16.mxu0 0
      %8435 = vmatpush1.bf16.msra.mxu0 %v8337
      %8436 = vmatprep.subr.bf16.mxu0 0
      %8437 = vmatpush1.bf16.msra.mxu0 %v8338
      %8438 = vmatprep.subr.bf16.mxu0 0
      %8439 = vmatpush1.bf16.msra.mxu0 %v8339
      %8440 = vmatprep.subr.bf16.mxu0 0
      %8441 = vmatpush1.bf16.msra.mxu0 %v8340
      %8442 = vmatprep.subr.bf16.mxu0 0
      %8443 = vmatpush1.bf16.msra.mxu0 %v8341
      %8444 = vmatprep.subr.bf16.mxu0 0
      %8445 = vmatpush1.bf16.msra.mxu0 %v8342
      %8446 = vmatprep.subr.bf16.mxu0 0
      %8447 = vmatpush1.bf16.msra.mxu0 %v8343
      %8448 = vmatprep.subr.bf16.mxu0 0
      %8449 = vmatpush1.bf16.msra.mxu0 %v8344
      %8450 = vmatprep.subr.bf16.mxu0 0
      %8451 = vmatpush1.bf16.msra.mxu0 0
      %8452 = vmatprep.subr.bf16.mxu0 0
      %8453 = vmatpush1.bf16.msra.mxu0 0
      %8454 = vmatprep.subr.bf16.mxu0 0
      %8455 = vmatpush1.bf16.msra.mxu0 0
      %8456 = vmatprep.subr.bf16.mxu0 0
      %8457 = vmatpush1.bf16.msra.mxu0 0
      %8458 = vmatprep.subr.bf16.mxu0 0
      %8459 = vmatpush1.bf16.msra.mxu0 0
      %8460 = vmatprep.subr.bf16.mxu0 0
      %8461 = vmatpush1.bf16.msra.mxu0 0
      %8462 = vmatprep.subr.bf16.mxu0 0
      %8463 = vmatpush1.bf16.msra.mxu0 0
      %8464 = vmatprep.subr.bf16.mxu0 0
      %8465 = vmatpush1.bf16.msra.mxu0 0
      %8466 = vmatprep.mubr.bf16.mxu0 0
      %8467 = vmatmul.mubr.bf16.gmra.mrb[0].mxu0 %v8162
      %v8468 = vpop.f32.mrb[0].mxu0
      %v8469 = vadd.f32 %v8404, %v8468
      %v8470 = vpop.f32.mrb[0].mxu0
      %v8471 = vpop.f32.mrb[0].mxu0
      %v8472 = vadd.f32 %v8407, %v8471
      %v8473 = vpop.f32.mrb[0].mxu0
      %8474 = vmatprep.mubr.bf16.mxu0 0
      %8475 = vmatmul.mubr.bf16.gmra.mrb[0].mxu0 %v8165
      %v8476 = vpop.f32.mrb[0].mxu0
      %v8477 = vadd.f32 %v8412, %v8476
      %v8478 = vpop.f32.mrb[0].mxu0
      %v8479 = vpop.f32.mrb[0].mxu0
      %v8480 = vadd.f32 %v8415, %v8479
      %v8481 = vpop.f32.mrb[0].mxu0
      %8482 = vmatprep.mubr.bf16.mxu0 0
      %8483 = vmatmul.mubr.bf16.gmra.mrb[0].mxu0 %v8168
      %v8484 = vpop.f32.mrb[0].mxu0
      %v8485 = vadd.f32 %v8420, %v8484
      %v8486 = vpop.f32.mrb[0].mxu0
      %v8487 = vpop.f32.mrb[0].mxu0
      %v8488 = vadd.f32 %v8423, %v8487
      %v8489 = vpop.f32.mrb[0].mxu0
      %8490 = vmatprep.mubr.bf16.mxu0 0
      %8491 = vmatmul.mubr.bf16.gmra.mrb[0].mxu0 %v8171
      %v8492 = vpop.f32.mrb[0].mxu0
      %v8493 = vadd.f32 %v8428, %v8492
      %v8494 = vpop.f32.mrb[0].mxu0
      %v8495 = vpop.f32.mrb[0].mxu0
      %v8496 = vadd.f32 %v8431, %v8495
      %v8497 = vpop.f32.mrb[0].mxu0
      %8498 = vdwg.mxu0
      %v8499 = vmax.f32 %v8469, 0.0
      %v8500 = vmax.f32 %v8472, 0.0
      %v8501 = vmax.f32 %v8477, 0.0
      %v8502 = vmax.f32 %v8480, 0.0
      %v8503 = vmax.f32 %v8485, 0.0
      %v8504 = vmax.f32 %v8488, 0.0
      %v8505 = vmax.f32 %v8493, 0.0
      %v8506 = vmax.f32 %v8496, 0.0
      %s8507 = scalar_lea.vmem %s7, 128
      %v8508 = vld [vmem:[%s8507] sm:$0xf]
      %v8509 = vld [vmem:[%s8507 + $0x4] sm:$0xf]
      %v8510 = vld [vmem:[%s8507 + $0x8] sm:$0xf]
      %v8511 = vld [vmem:[%s8507 + $0xc] sm:$0xf]
      %v8512 = vld [vmem:[%s8507 + $0x10] sm:$0xf]
      %v8513 = vld [vmem:[%s8507 + $0x14] sm:$0xf]
      %v8514 = vld [vmem:[%s8507 + $0x18] sm:$0xf]
      %v8515 = vld [vmem:[%s8507 + $0x1c] sm:$0xf]
      %v8516 = vld [vmem:[%s8507 + $0x20] sm:$0xf]
      %v8517 = vld [vmem:[%s8507 + $0x24] sm:$0xf]
      %v8518 = vld [vmem:[%s8507 + $0x28] sm:$0xf]
      %v8519 = vld [vmem:[%s8507 + $0x2c] sm:$0xf]
      %v8520 = vld [vmem:[%s8507 + $0x30] sm:$0xf]
      %v8521 = vld [vmem:[%s8507 + $0x34] sm:$0xf]
      %v8522 = vld [vmem:[%s8507 + $0x38] sm:$0xf]
      %v8523 = vld [vmem:[%s8507 + $0x3c] sm:$0xf]
      %v8524 = vpack.c.bf16 %v8500, %v8499
      %v8525 = vpack.c.bf16 %v8502, %v8501
      %v8526 = vpack.c.bf16 %v8504, %v8503
      %v8527 = vpack.c.bf16 %v8506, %v8505
      %v8544 = vunpack.c.l.b16 %v8508
      %v8545 = vunpack.c.l.b16 %v8509
      %v8546 = vunpack.c.l.b16 %v8510
      %v8547 = vunpack.c.l.b16 %v8511
      %v8548 = vunpack.c.l.b16 %v8512
      %v8549 = vunpack.c.l.b16 %v8513
      %v8550 = vunpack.c.l.b16 %v8514
      %v8551 = vunpack.c.l.b16 %v8515
      %v8552 = vunpack.c.l.b16 %v8516
      %v8553 = vunpack.c.l.b16 %v8517
      %v8554 = vunpack.c.l.b16 %v8518
      %v8555 = vunpack.c.l.b16 %v8519
      %v8556 = vunpack.c.l.b16 %v8520
      %v8557 = vunpack.c.l.b16 %v8521
      %v8558 = vunpack.c.l.b16 %v8522
      %v8559 = vunpack.c.l.b16 %v8523
      %v8560 = vpack.c.b16 %v8545, %v8544
      %v8561 = vpack.c.b16 %v8547, %v8546
      %v8562 = vpack.c.b16 %v8549, %v8548
      %v8563 = vpack.c.b16 %v8551, %v8550
      %v8564 = vpack.c.b16 %v8553, %v8552
      %v8565 = vpack.c.b16 %v8555, %v8554
      %v8566 = vpack.c.b16 %v8557, %v8556
      %v8567 = vpack.c.b16 %v8559, %v8558
      %v8569 = vsel %vm2273, %v8560, 0
      %v8572 = vsel %vm2273, %v8561, 0
      %v8575 = vsel %vm2273, %v8562, 0
      %v8578 = vsel %vm2273, %v8563, 0
      %v8581 = vsel %vm2273, %v8564, 0
      %v8584 = vsel %vm2273, %v8565, 0
      %v8587 = vsel %vm2273, %v8566, 0
      %v8590 = vsel %vm2273, %v8567, 0
      %8592 = vmatprep.subr.bf16.mxu0 0
      %8593 = vmatpush1.bf16.msra.mxu0 %v8524
      %8594 = vmatprep.subr.bf16.mxu0 0
      %8595 = vmatpush1.bf16.msra.mxu0 %v8525
      %8596 = vmatprep.subr.bf16.mxu0 0
      %8597 = vmatpush1.bf16.msra.mxu0 %v8526
      %8598 = vmatprep.subr.bf16.mxu0 0
      %8599 = vmatpush1.bf16.msra.mxu0 %v8527
      %8600 = vmatprep.subr.bf16.mxu0 0
      %8601 = vmatpush1.bf16.msra.mxu0 0
      %8602 = vmatprep.subr.bf16.mxu0 0
      %8603 = vmatpush1.bf16.msra.mxu0 0
      %8604 = vmatprep.subr.bf16.mxu0 0
      %8605 = vmatpush1.bf16.msra.mxu0 0
      %8606 = vmatprep.subr.bf16.mxu0 0
      %8607 = vmatpush1.bf16.msra.mxu0 0
      %8608 = vmatprep.subr.bf16.mxu0 0
      %8609 = vmatpush1.bf16.msra.mxu0 0
      %8610 = vmatprep.subr.bf16.mxu0 0
      %8611 = vmatpush1.bf16.msra.mxu0 0
      %8612 = vmatprep.subr.bf16.mxu0 0
      %8613 = vmatpush1.bf16.msra.mxu0 0
      %8614 = vmatprep.subr.bf16.mxu0 0
      %8615 = vmatpush1.bf16.msra.mxu0 0
      %8616 = vmatprep.subr.bf16.mxu0 0
      %8617 = vmatpush1.bf16.msra.mxu0 0
      %8618 = vmatprep.subr.bf16.mxu0 0
      %8619 = vmatpush1.bf16.msra.mxu0 0
      %8620 = vmatprep.subr.bf16.mxu0 0
      %8621 = vmatpush1.bf16.msra.mxu0 0
      %8622 = vmatprep.subr.bf16.mxu0 0
      %8623 = vmatpush1.bf16.msra.mxu0 0
      %8624 = vmatprep.mubr.bf16.mxu0 0
      %8625 = vmatmul.mubr.bf16.gmra.mrb[0].mxu0 %v8569
      %v8626 = vpop.f32.mrb[0].mxu0
      %v8627 = vadd.f32 0.0, %v8626
      %v8628 = vpop.f32.mrb[0].mxu0
      %v8629 = vpop.f32.mrb[0].mxu0
      %v8630 = vadd.f32 0.0, %v8629
      %v8631 = vpop.f32.mrb[0].mxu0
      %8632 = vmatprep.mubr.bf16.mxu0 0
      %8633 = vmatmul.mubr.bf16.gmra.mrb[0].mxu0 %v8572
      %v8634 = vpop.f32.mrb[0].mxu0
      %v8635 = vadd.f32 0.0, %v8634
      %v8636 = vpop.f32.mrb[0].mxu0
      %v8637 = vpop.f32.mrb[0].mxu0
      %v8638 = vadd.f32 0.0, %v8637
      %v8639 = vpop.f32.mrb[0].mxu0
      %8640 = vmatprep.mubr.bf16.mxu0 0
      %8641 = vmatmul.mubr.bf16.gmra.mrb[0].mxu0 %v8575
      %v8642 = vpop.f32.mrb[0].mxu0
      %v8643 = vadd.f32 0.0, %v8642
      %v8644 = vpop.f32.mrb[0].mxu0
      %v8645 = vpop.f32.mrb[0].mxu0
      %v8646 = vadd.f32 0.0, %v8645
      %v8647 = vpop.f32.mrb[0].mxu0
      %8648 = vmatprep.mubr.bf16.mxu0 0
      %8649 = vmatmul.mubr.bf16.gmra.mrb[0].mxu0 %v8578
      %v8650 = vpop.f32.mrb[0].mxu0
      %v8651 = vadd.f32 0.0, %v8650
      %v8652 = vpop.f32.mrb[0].mxu0
      %v8653 = vpop.f32.mrb[0].mxu0
      %v8654 = vadd.f32 0.0, %v8653
      %v8655 = vpop.f32.mrb[0].mxu0
      %8656 = vmatprep.mubr.bf16.mxu0 0
      %8657 = vmatmul.mubr.bf16.gmra.mrb[0].mxu0 %v8581
      %v8658 = vpop.f32.mrb[0].mxu0
      %v8659 = vadd.f32 0.0, %v8658
      %v8660 = vpop.f32.mrb[0].mxu0
      %v8661 = vpop.f32.mrb[0].mxu0
      %v8662 = vadd.f32 0.0, %v8661
      %v8663 = vpop.f32.mrb[0].mxu0
      %8664 = vmatprep.mubr.bf16.mxu0 0
      %8665 = vmatmul.mubr.bf16.gmra.mrb[0].mxu0 %v8584
      %v8666 = vpop.f32.mrb[0].mxu0
      %v8667 = vadd.f32 0.0, %v8666
      %v8668 = vpop.f32.mrb[0].mxu0
      %v8669 = vpop.f32.mrb[0].mxu0
      %v8670 = vadd.f32 0.0, %v8669
      %v8671 = vpop.f32.mrb[0].mxu0
      %8672 = vmatprep.mubr.bf16.mxu0 0
      %8673 = vmatmul.mubr.bf16.gmra.mrb[0].mxu0 %v8587
      %v8674 = vpop.f32.mrb[0].mxu0
      %v8675 = vadd.f32 0.0, %v8674
      %v8676 = vpop.f32.mrb[0].mxu0
      %v8677 = vpop.f32.mrb[0].mxu0
      %v8678 = vadd.f32 0.0, %v8677
      %v8679 = vpop.f32.mrb[0].mxu0
      %8680 = vmatprep.mubr.bf16.mxu0 0
      %8681 = vmatmul.mubr.bf16.gmra.mrb[0].mxu0 %v8590
      %v8682 = vpop.f32.mrb[0].mxu0
      %v8683 = vadd.f32 0.0, %v8682
      %v8684 = vpop.f32.mrb[0].mxu0
      %v8685 = vpop.f32.mrb[0].mxu0
      %v8686 = vadd.f32 0.0, %v8685
      %v8687 = vpop.f32.mrb[0].mxu0
      %8688 = vdwg.mxu0
      %v8689 = vpack.c.bf16 %v8630, %v8627
      %v8690 = vpack.c.bf16 %v8638, %v8635
      %v8691 = vpack.c.bf16 %v8646, %v8643
      %v8692 = vpack.c.bf16 %v8654, %v8651
      %v8693 = vpack.c.bf16 %v8662, %v8659
      %v8694 = vpack.c.bf16 %v8670, %v8667
      %v8695 = vpack.c.bf16 %v8678, %v8675
      %v8696 = vpack.c.bf16 %v8686, %v8683
      %s8697 = scalar_lea.vmem %s8, 256
      %v8698 = vld [vmem:[%s8697] sm:$0xff]
      %v8699 = vld [vmem:[%s8697 + $0x8] sm:$0xff]
      %v8700 = vld [vmem:[%s8697 + $0x10] sm:$0xff]
      %v8701 = vld [vmem:[%s8697 + $0x18] sm:$0xff]
      %v8702 = vld [vmem:[%s8697 + $0x20] sm:$0xff]
      %v8703 = vld [vmem:[%s8697 + $0x28] sm:$0xff]
      %v8704 = vld [vmem:[%s8697 + $0x30] sm:$0xff]
      %v8705 = vld [vmem:[%s8697 + $0x38] sm:$0xff]
      %v8706 = vld [vmem:[%s8697 + $0x40] sm:$0xff]
      %v8707 = vld [vmem:[%s8697 + $0x48] sm:$0xff]
      %v8708 = vld [vmem:[%s8697 + $0x50] sm:$0xff]
      %v8709 = vld [vmem:[%s8697 + $0x58] sm:$0xff]
      %v8710 = vld [vmem:[%s8697 + $0x60] sm:$0xff]
      %v8711 = vld [vmem:[%s8697 + $0x68] sm:$0xff]
      %v8712 = vld [vmem:[%s8697 + $0x70] sm:$0xff]
      %v8713 = vld [vmem:[%s8697 + $0x78] sm:$0xff]
      %v8730 = vunpack.c.l.b16 %v8698
      %v8731 = vunpack.c.h.b16 %v8698
      %v8732 = vunpack.c.l.b16 %v8699
      %v8733 = vunpack.c.h.b16 %v8699
      %v8734 = vunpack.c.l.b16 %v8700
      %v8735 = vunpack.c.h.b16 %v8700
      %v8736 = vunpack.c.l.b16 %v8701
      %v8737 = vunpack.c.h.b16 %v8701
      %v8738 = vunpack.c.l.b16 %v8702
      %v8739 = vunpack.c.h.b16 %v8702
      %v8740 = vunpack.c.l.b16 %v8703
      %v8741 = vunpack.c.h.b16 %v8703
      %v8742 = vunpack.c.l.b16 %v8704
      %v8743 = vunpack.c.h.b16 %v8704
      %v8744 = vunpack.c.l.b16 %v8705
      %v8745 = vunpack.c.h.b16 %v8705
      %v8746 = vunpack.c.l.b16 %v8706
      %v8747 = vunpack.c.h.b16 %v8706
      %v8748 = vunpack.c.l.b16 %v8707
      %v8749 = vunpack.c.h.b16 %v8707
      %v8750 = vunpack.c.l.b16 %v8708
      %v8751 = vunpack.c.h.b16 %v8708
      %v8752 = vunpack.c.l.b16 %v8709
      %v8753 = vunpack.c.h.b16 %v8709
      %v8754 = vunpack.c.l.b16 %v8710
      %v8755 = vunpack.c.h.b16 %v8710
      %v8756 = vunpack.c.l.b16 %v8711
      %v8757 = vunpack.c.h.b16 %v8711
      %v8758 = vunpack.c.l.b16 %v8712
      %v8759 = vunpack.c.h.b16 %v8712
      %v8760 = vunpack.c.l.b16 %v8713
      %v8761 = vunpack.c.h.b16 %v8713
      %v8762 = vpack.c.b16 %v8732, %v8730
      %v8763 = vpack.c.b16 %v8733, %v8731
      %v8764 = vpack.c.b16 %v8736, %v8734
      %v8765 = vpack.c.b16 %v8737, %v8735
      %v8766 = vpack.c.b16 %v8740, %v8738
      %v8767 = vpack.c.b16 %v8741, %v8739
      %v8768 = vpack.c.b16 %v8744, %v8742
      %v8769 = vpack.c.b16 %v8745, %v8743
      %v8770 = vpack.c.b16 %v8748, %v8746
      %v8771 = vpack.c.b16 %v8749, %v8747
      %v8772 = vpack.c.b16 %v8752, %v8750
      %v8773 = vpack.c.b16 %v8753, %v8751
      %v8774 = vpack.c.b16 %v8756, %v8754
      %v8775 = vpack.c.b16 %v8757, %v8755
      %v8776 = vpack.c.b16 %v8760, %v8758
      %v8777 = vpack.c.b16 %v8761, %v8759
      %8794 = vmatprep.subr.bf16.mxu0 %v8763
      %8795 = vmatpush1.bf16.msra.mxu0 %v8762
      %8796 = vmatprep.subr.bf16.mxu0 %v8765
      %8797 = vmatpush1.bf16.msra.mxu0 %v8764
      %8798 = vmatprep.subr.bf16.mxu0 %v8767
      %8799 = vmatpush1.bf16.msra.mxu0 %v8766
      %8800 = vmatprep.subr.bf16.mxu0 %v8769
      %8801 = vmatpush1.bf16.msra.mxu0 %v8768
      %8802 = vmatprep.subr.bf16.mxu0 %v8771
      %8803 = vmatpush1.bf16.msra.mxu0 %v8770
      %8804 = vmatprep.subr.bf16.mxu0 %v8773
      %8805 = vmatpush1.bf16.msra.mxu0 %v8772
      %8806 = vmatprep.subr.bf16.mxu0 %v8775
      %8807 = vmatpush1.bf16.msra.mxu0 %v8774
      %8808 = vmatprep.subr.bf16.mxu0 %v8777
      %8809 = vmatpush1.bf16.msra.mxu0 %v8776
      %8810 = vmatprep.subr.bf16.mxu0 0
      %8811 = vmatpush1.bf16.msra.mxu0 0
      %8812 = vmatprep.subr.bf16.mxu0 0
      %8813 = vmatpush1.bf16.msra.mxu0 0
      %8814 = vmatprep.subr.bf16.mxu0 0
      %8815 = vmatpush1.bf16.msra.mxu0 0
      %8816 = vmatprep.subr.bf16.mxu0 0
      %8817 = vmatpush1.bf16.msra.mxu0 0
      %8818 = vmatprep.subr.bf16.mxu0 0
      %8819 = vmatpush1.bf16.msra.mxu0 0
      %8820 = vmatprep.subr.bf16.mxu0 0
      %8821 = vmatpush1.bf16.msra.mxu0 0
      %8822 = vmatprep.subr.bf16.mxu0 0
      %8823 = vmatpush1.bf16.msra.mxu0 0
      %8824 = vmatprep.subr.bf16.mxu0 0
      %8825 = vmatpush1.bf16.msra.mxu0 0
      %8826 = vmatprep.mubr.bf16.mxu0 0
      %8827 = vmatmul.mubr.bf16.gmra.mrb[0].mxu0 %v8689
      %v8828 = vpop.f32.mrb[0].mxu0
      %v8829 = vadd.f32 0.0, %v8828
      %v8830 = vpop.f32.mrb[0].mxu0
      %v8831 = vadd.f32 0.0, %v8830
      %v8832 = vpop.f32.mrb[0].mxu0
      %v8833 = vadd.f32 0.0, %v8832
      %v8834 = vpop.f32.mrb[0].mxu0
      %v8835 = vadd.f32 0.0, %v8834
      %8836 = vmatprep.mubr.bf16.mxu0 0
      %8837 = vmatmul.mubr.bf16.gmra.mrb[0].mxu0 %v8690
      %v8838 = vpop.f32.mrb[0].mxu0
      %v8839 = vadd.f32 0.0, %v8838
      %v8840 = vpop.f32.mrb[0].mxu0
      %v8841 = vadd.f32 0.0, %v8840
      %v8842 = vpop.f32.mrb[0].mxu0
      %v8843 = vadd.f32 0.0, %v8842
      %v8844 = vpop.f32.mrb[0].mxu0
      %v8845 = vadd.f32 0.0, %v8844
      %8846 = vmatprep.mubr.bf16.mxu0 0
      %8847 = vmatmul.mubr.bf16.gmra.mrb[0].mxu0 %v8691
      %v8848 = vpop.f32.mrb[0].mxu0
      %v8849 = vadd.f32 0.0, %v8848
      %v8850 = vpop.f32.mrb[0].mxu0
      %v8851 = vadd.f32 0.0, %v8850
      %v8852 = vpop.f32.mrb[0].mxu0
      %v8853 = vadd.f32 0.0, %v8852
      %v8854 = vpop.f32.mrb[0].mxu0
      %v8855 = vadd.f32 0.0, %v8854
      %8856 = vmatprep.mubr.bf16.mxu0 0
      %8857 = vmatmul.mubr.bf16.gmra.mrb[0].mxu0 %v8692
      %v8858 = vpop.f32.mrb[0].mxu0
      %v8859 = vadd.f32 0.0, %v8858
      %v8860 = vpop.f32.mrb[0].mxu0
      %v8861 = vadd.f32 0.0, %v8860
      %v8862 = vpop.f32.mrb[0].mxu0
      %v8863 = vadd.f32 0.0, %v8862
      %v8864 = vpop.f32.mrb[0].mxu0
      %v8865 = vadd.f32 0.0, %v8864
      %8866 = vmatprep.mubr.bf16.mxu0 0
      %8867 = vmatmul.mubr.bf16.gmra.mrb[0].mxu0 %v8693
      %v8868 = vpop.f32.mrb[0].mxu0
      %v8869 = vadd.f32 0.0, %v8868
      %v8870 = vpop.f32.mrb[0].mxu0
      %v8871 = vadd.f32 0.0, %v8870
      %v8872 = vpop.f32.mrb[0].mxu0
      %v8873 = vadd.f32 0.0, %v8872
      %v8874 = vpop.f32.mrb[0].mxu0
      %v8875 = vadd.f32 0.0, %v8874
      %8876 = vmatprep.mubr.bf16.mxu0 0
      %8877 = vmatmul.mubr.bf16.gmra.mrb[0].mxu0 %v8694
      %v8878 = vpop.f32.mrb[0].mxu0
      %v8879 = vadd.f32 0.0, %v8878
      %v8880 = vpop.f32.mrb[0].mxu0
      %v8881 = vadd.f32 0.0, %v8880
      %v8882 = vpop.f32.mrb[0].mxu0
      %v8883 = vadd.f32 0.0, %v8882
      %v8884 = vpop.f32.mrb[0].mxu0
      %v8885 = vadd.f32 0.0, %v8884
      %8886 = vmatprep.mubr.bf16.mxu0 0
      %8887 = vmatmul.mubr.bf16.gmra.mrb[0].mxu0 %v8695
      %v8888 = vpop.f32.mrb[0].mxu0
      %v8889 = vadd.f32 0.0, %v8888
      %v8890 = vpop.f32.mrb[0].mxu0
      %v8891 = vadd.f32 0.0, %v8890
      %v8892 = vpop.f32.mrb[0].mxu0
      %v8893 = vadd.f32 0.0, %v8892
      %v8894 = vpop.f32.mrb[0].mxu0
      %v8895 = vadd.f32 0.0, %v8894
      %8896 = vmatprep.mubr.bf16.mxu0 0
      %8897 = vmatmul.mubr.bf16.gmra.mrb[0].mxu0 %v8696
      %v8898 = vpop.f32.mrb[0].mxu0
      %v8899 = vadd.f32 0.0, %v8898
      %v8900 = vpop.f32.mrb[0].mxu0
      %v8901 = vadd.f32 0.0, %v8900
      %v8902 = vpop.f32.mrb[0].mxu0
      %v8903 = vadd.f32 0.0, %v8902
      %v8904 = vpop.f32.mrb[0].mxu0
      %v8905 = vadd.f32 0.0, %v8904
      %8906 = vdwg.mxu0
      %8907 = vst [vmem:[#allocation2] sm:$0x1] 0.0
      %8908 = vst [vmem:[#allocation2 + $0x101] sm:$0x1] 0.0
      %v8925 = vrot.slane %v1664, 7
      %v8926 = vrot.slane %v1665, 7
      %v8927 = vsel %vm371, %v8925, %v8926
      %v8928 = vrot.slane %v1666, 7
      %v8929 = vsel %vm371, %v8926, %v8928
      %v8930 = vrot.slane %v1667, 7
      %v8931 = vsel %vm371, %v8928, %v8930
      %v8932 = vrot.slane %v1668, 7
      %v8933 = vsel %vm371, %v8930, %v8932
      %v8934 = vrot.slane %v1669, 7
      %v8935 = vsel %vm371, %v8932, %v8934
      %v8936 = vrot.slane %v1670, 7
      %v8937 = vsel %vm371, %v8934, %v8936
      %v8938 = vrot.slane %v1671, 7
      %v8939 = vsel %vm371, %v8936, %v8938
      %v8940 = vrot.slane %v1672, 7
      %v8941 = vsel %vm371, %v8938, %v8940
      %v8942 = vrot.slane %v1673, 7
      %v8943 = vsel %vm371, %v8940, %v8942
      %v8944 = vrot.slane %v1674, 7
      %v8945 = vsel %vm371, %v8942, %v8944
      %v8946 = vrot.slane %v1675, 7
      %v8947 = vsel %vm371, %v8944, %v8946
      %v8948 = vrot.slane %v1676, 7
      %v8949 = vsel %vm371, %v8946, %v8948
      %v8950 = vrot.slane %v1677, 7
      %v8951 = vsel %vm371, %v8948, %v8950
      %v8952 = vrot.slane %v1678, 7
      %v8953 = vsel %vm371, %v8950, %v8952
      %v8954 = vrot.slane %v1679, 7
      %v8955 = vsel %vm371, %v8952, %v8954
      %8973 = vst [vmem:[#allocation2] sm:$0xfe] %v8925
      %8974 = vst [vmem:[#allocation2 + $0x10] sm:$0xff] %v8927
      %8975 = vst [vmem:[#allocation2 + $0x20] sm:$0xff] %v8929
      %8976 = vst [vmem:[#allocation2 + $0x30] sm:$0xff] %v8931
      %8977 = vst [vmem:[#allocation2 + $0x40] sm:$0xff] %v8933
      %8978 = vst [vmem:[#allocation2 + $0x50] sm:$0xff] %v8935
      %8979 = vst [vmem:[#allocation2 + $0x60] sm:$0xff] %v8937
      %8980 = vst [vmem:[#allocation2 + $0x70] sm:$0xff] %v8939
      %8981 = vst [vmem:[#allocation2 + $0x80] sm:$0xff] %v8941
      %8982 = vst [vmem:[#allocation2 + $0x90] sm:$0xff] %v8943
      %8983 = vst [vmem:[#allocation2 + $0xa0] sm:$0xff] %v8945
      %8984 = vst [vmem:[#allocation2 + $0xb0] sm:$0xff] %v8947
      %8985 = vst [vmem:[#allocation2 + $0xc0] sm:$0xff] %v8949
      %8986 = vst [vmem:[#allocation2 + $0xd0] sm:$0xff] %v8951
      %8987 = vst [vmem:[#allocation2 + $0xe0] sm:$0xff] %v8953
      %8988 = vst [vmem:[#allocation2 + $0xf0] sm:$0xff] %v8955
      %8989 = vst [vmem:[#allocation2 + $0x100] sm:$0x1] %v8954
      %v8990 = vld [vmem:[#allocation2] sm:$0xff]
      %v8991 = vld [vmem:[#allocation2 + $0x10] sm:$0xff]
      %v8992 = vld [vmem:[#allocation2 + $0x20] sm:$0xff]
      %v8993 = vld [vmem:[#allocation2 + $0x30] sm:$0xff]
      %v8994 = vld [vmem:[#allocation2 + $0x40] sm:$0xff]
      %v8995 = vld [vmem:[#allocation2 + $0x50] sm:$0xff]
      %v8996 = vld [vmem:[#allocation2 + $0x60] sm:$0xff]
      %v8997 = vld [vmem:[#allocation2 + $0x70] sm:$0xff]
      %v8998 = vld [vmem:[#allocation2 + $0x80] sm:$0xff]
      %v8999 = vld [vmem:[#allocation2 + $0x90] sm:$0xff]
      %v9000 = vld [vmem:[#allocation2 + $0xa0] sm:$0xff]
      %v9001 = vld [vmem:[#allocation2 + $0xb0] sm:$0xff]
      %v9002 = vld [vmem:[#allocation2 + $0xc0] sm:$0xff]
      %v9003 = vld [vmem:[#allocation2 + $0xd0] sm:$0xff]
      %v9004 = vld [vmem:[#allocation2 + $0xe0] sm:$0xff]
      %v9005 = vld [vmem:[#allocation2 + $0xf0] sm:$0xff]
      %v9006 = vld [vmem:[#allocation2] sm:$0xfc]
      %v9007 = vld [vmem:[#allocation2 + $0x100] sm:$0x3]
      %v9008 = vsel %vm488, 0.0, %v8990
      %v9009 = vsel %vm489, 0.0, %v8991
      %v9010 = vsel %vm490, 0.0, %v8992
      %v9011 = vsel %vm491, 0.0, %v8993
      %v9012 = vsel %vm492, 0.0, %v8994
      %v9013 = vsel %vm493, 0.0, %v8995
      %v9014 = vsel %vm494, 0.0, %v8996
      %v9015 = vsel %vm495, 0.0, %v8997
      %v9016 = vsel %vm496, 0.0, %v8998
      %v9017 = vsel %vm497, 0.0, %v8999
      %v9018 = vsel %vm498, 0.0, %v9000
      %v9019 = vsel %vm499, 0.0, %v9001
      %v9020 = vsel %vm500, 0.0, %v9002
      %v9021 = vsel %vm501, 0.0, %v9003
      %v9022 = vsel %vm502, 0.0, %v9004
      %v9023 = vsel %vm503, 0.0, %v9005
      %v9041 = vrot.slane %v9006, 2
      %v9042 = vrot.slane %v8991, 2
      %v9043 = vsel %vm553, %v9041, %v9042
      %v9044 = vrot.slane %v8992, 2
      %v9045 = vsel %vm553, %v9042, %v9044
      %v9046 = vrot.slane %v8993, 2
      %v9047 = vsel %vm553, %v9044, %v9046
      %v9048 = vrot.slane %v8994, 2
      %v9049 = vsel %vm553, %v9046, %v9048
      %v9050 = vrot.slane %v8995, 2
      %v9051 = vsel %vm553, %v9048, %v9050
      %v9052 = vrot.slane %v8996, 2
      %v9053 = vsel %vm553, %v9050, %v9052
      %v9054 = vrot.slane %v8997, 2
      %v9055 = vsel %vm553, %v9052, %v9054
      %v9056 = vrot.slane %v8998, 2
      %v9057 = vsel %vm553, %v9054, %v9056
      %v9058 = vrot.slane %v8999, 2
      %v9059 = vsel %vm553, %v9056, %v9058
      %v9060 = vrot.slane %v9000, 2
      %v9061 = vsel %vm553, %v9058, %v9060
      %v9062 = vrot.slane %v9001, 2
      %v9063 = vsel %vm553, %v9060, %v9062
      %v9064 = vrot.slane %v9002, 2
      %v9065 = vsel %vm553, %v9062, %v9064
      %v9066 = vrot.slane %v9003, 2
      %v9067 = vsel %vm553, %v9064, %v9066
      %v9068 = vrot.slane %v9004, 2
      %v9069 = vsel %vm553, %v9066, %v9068
      %v9070 = vrot.slane %v9005, 2
      %v9071 = vsel %vm553, %v9068, %v9070
      %v9072 = vrot.slane %v9007, 2
      %v9073 = vsel %vm553, %v9070, %v9072
      %v9090 = vsel %vm520, 0.0, %v9043
      %v9091 = vsel %vm521, 0.0, %v9045
      %v9092 = vsel %vm522, 0.0, %v9047
      %v9093 = vsel %vm523, 0.0, %v9049
      %v9094 = vsel %vm524, 0.0, %v9051
      %v9095 = vsel %vm525, 0.0, %v9053
      %v9096 = vsel %vm526, 0.0, %v9055
      %v9097 = vsel %vm527, 0.0, %v9057
      %v9098 = vsel %vm528, 0.0, %v9059
      %v9099 = vsel %vm529, 0.0, %v9061
      %v9100 = vsel %vm530, 0.0, %v9063
      %v9101 = vsel %vm531, 0.0, %v9065
      %v9102 = vsel %vm532, 0.0, %v9067
      %v9103 = vsel %vm533, 0.0, %v9069
      %v9104 = vsel %vm534, 0.0, %v9071
      %v9105 = vsel %vm535, 0.0, %v9073
      %v9106 = vpack.c.bf16 %v9009, %v9008
      %v9107 = vpack.c.bf16 %v9091, %v9090
      %v9108 = vpack.c.bf16 %v9011, %v9010
      %v9109 = vpack.c.bf16 %v9093, %v9092
      %v9110 = vpack.c.bf16 %v9013, %v9012
      %v9111 = vpack.c.bf16 %v9095, %v9094
      %v9112 = vpack.c.bf16 %v9015, %v9014
      %v9113 = vpack.c.bf16 %v9097, %v9096
      %v9114 = vpack.c.bf16 %v9017, %v9016
      %v9115 = vpack.c.bf16 %v9099, %v9098
      %v9116 = vpack.c.bf16 %v9019, %v9018
      %v9117 = vpack.c.bf16 %v9101, %v9100
      %v9118 = vpack.c.bf16 %v9021, %v9020
      %v9119 = vpack.c.bf16 %v9103, %v9102
      %v9120 = vpack.c.bf16 %v9023, %v9022
      %v9121 = vpack.c.bf16 %v9105, %v9104
      %9122 = vst.msk [vmem:[#allocation2] ss:$8 sm:$0x3] %vm5205, 0.0
      %9123 = vst.msk [vmem:[#allocation2] ss:$8 sm:$0x0] %vm5205, 0.0
      %s9124 = scalar_lea.vmem [#allocation2], 257
      %9125 = vst.msk [vmem:[%s9124] ss:$8 sm:$0x3] %vm5205, 0.0
      %9126 = vst.msk [vmem:[%s9124] ss:$8 sm:$0x0] %vm5205, 0.0
      %v9159 = vrot.slane %v8829, 7
      %v9160 = vrot.slane %v8831, 7
      %v9161 = vrot.slane %v8833, 7
      %v9162 = vsel %vm371, %v9159, %v9161
      %v9163 = vrot.slane %v8835, 7
      %v9164 = vsel %vm371, %v9160, %v9163
      %v9165 = vrot.slane %v8839, 7
      %v9166 = vsel %vm371, %v9161, %v9165
      %v9167 = vrot.slane %v8841, 7
      %v9168 = vsel %vm371, %v9163, %v9167
      %v9169 = vrot.slane %v8843, 7
      %v9170 = vsel %vm371, %v9165, %v9169
      %v9171 = vrot.slane %v8845, 7
      %v9172 = vsel %vm371, %v9167, %v9171
      %v9173 = vrot.slane %v8849, 7
      %v9174 = vsel %vm371, %v9169, %v9173
      %v9175 = vrot.slane %v8851, 7
      %v9176 = vsel %vm371, %v9171, %v9175
      %v9177 = vrot.slane %v8853, 7
      %v9178 = vsel %vm371, %v9173, %v9177
      %v9179 = vrot.slane %v8855, 7
      %v9180 = vsel %vm371, %v9175, %v9179
      %v9181 = vrot.slane %v8859, 7
      %v9182 = vsel %vm371, %v9177, %v9181
      %v9183 = vrot.slane %v8861, 7
      %v9184 = vsel %vm371, %v9179, %v9183
      %v9185 = vrot.slane %v8863, 7
      %v9186 = vsel %vm371, %v9181, %v9185
      %v9187 = vrot.slane %v8865, 7
      %v9188 = vsel %vm371, %v9183, %v9187
      %v9189 = vrot.slane %v8869, 7
      %v9190 = vsel %vm371, %v9185, %v9189
      %v9191 = vrot.slane %v8871, 7
      %v9192 = vsel %vm371, %v9187, %v9191
      %v9193 = vrot.slane %v8873, 7
      %v9194 = vsel %vm371, %v9189, %v9193
      %v9195 = vrot.slane %v8875, 7
      %v9196 = vsel %vm371, %v9191, %v9195
      %v9197 = vrot.slane %v8879, 7
      %v9198 = vsel %vm371, %v9193, %v9197
      %v9199 = vrot.slane %v8881, 7
      %v9200 = vsel %vm371, %v9195, %v9199
      %v9201 = vrot.slane %v8883, 7
      %v9202 = vsel %vm371, %v9197, %v9201
      %v9203 = vrot.slane %v8885, 7
      %v9204 = vsel %vm371, %v9199, %v9203
      %v9205 = vrot.slane %v8889, 7
      %v9206 = vsel %vm371, %v9201, %v9205
      %v9207 = vrot.slane %v8891, 7
      %v9208 = vsel %vm371, %v9203, %v9207
      %v9209 = vrot.slane %v8893, 7
      %v9210 = vsel %vm371, %v9205, %v9209
      %v9211 = vrot.slane %v8895, 7
      %v9212 = vsel %vm371, %v9207, %v9211
      %v9213 = vrot.slane %v8899, 7
      %v9214 = vsel %vm371, %v9209, %v9213
      %v9215 = vrot.slane %v8901, 7
      %v9216 = vsel %vm371, %v9211, %v9215
      %v9217 = vrot.slane %v8903, 7
      %v9218 = vsel %vm371, %v9213, %v9217
      %v9219 = vrot.slane %v8905, 7
      %v9220 = vsel %vm371, %v9215, %v9219
      %9255 = vst [vmem:[#allocation2] sm:$0xfe] %v9159
      %9256 = vst [vmem:[#allocation2 + $0x8] sm:$0xfe] %v9160
      %9257 = vst [vmem:[#allocation2 + $0x10] sm:$0xff] %v9162
      %9258 = vst [vmem:[#allocation2 + $0x18] sm:$0xff] %v9164
      %9259 = vst [vmem:[#allocation2 + $0x20] sm:$0xff] %v9166
      %9260 = vst [vmem:[#allocation2 + $0x28] sm:$0xff] %v9168
      %9261 = vst [vmem:[#allocation2 + $0x30] sm:$0xff] %v9170
      %9262 = vst [vmem:[#allocation2 + $0x38] sm:$0xff] %v9172
      %9263 = vst [vmem:[#allocation2 + $0x40] sm:$0xff] %v9174
      %9264 = vst [vmem:[#allocation2 + $0x48] sm:$0xff] %v9176
      %9265 = vst [vmem:[#allocation2 + $0x50] sm:$0xff] %v9178
      %9266 = vst [vmem:[#allocation2 + $0x58] sm:$0xff] %v9180
      %9267 = vst [vmem:[#allocation2 + $0x60] sm:$0xff] %v9182
      %9268 = vst [vmem:[#allocation2 + $0x68] sm:$0xff] %v9184
      %9269 = vst [vmem:[#allocation2 + $0x70] sm:$0xff] %v9186
      %9270 = vst [vmem:[#allocation2 + $0x78] sm:$0xff] %v9188
      %9271 = vst [vmem:[#allocation2 + $0x80] sm:$0xff] %v9190
      %9272 = vst [vmem:[#allocation2 + $0x88] sm:$0xff] %v9192
      %9273 = vst [vmem:[#allocation2 + $0x90] sm:$0xff] %v9194
      %9274 = vst [vmem:[#allocation2 + $0x98] sm:$0xff] %v9196
      %9275 = vst [vmem:[#allocation2 + $0xa0] sm:$0xff] %v9198
      %9276 = vst [vmem:[#allocation2 + $0xa8] sm:$0xff] %v9200
      %9277 = vst [vmem:[#allocation2 + $0xb0] sm:$0xff] %v9202
      %9278 = vst [vmem:[#allocation2 + $0xb8] sm:$0xff] %v9204
      %9279 = vst [vmem:[#allocation2 + $0xc0] sm:$0xff] %v9206
      %9280 = vst [vmem:[#allocation2 + $0xc8] sm:$0xff] %v9208
      %9281 = vst [vmem:[#allocation2 + $0xd0] sm:$0xff] %v9210
      %9282 = vst [vmem:[#allocation2 + $0xd8] sm:$0xff] %v9212
      %9283 = vst [vmem:[#allocation2 + $0xe0] sm:$0xff] %v9214
      %9284 = vst [vmem:[#allocation2 + $0xe8] sm:$0xff] %v9216
      %9285 = vst [vmem:[#allocation2 + $0xf0] sm:$0xff] %v9218
      %9286 = vst [vmem:[#allocation2 + $0xf8] sm:$0xff] %v9220
      %9287 = vst [vmem:[#allocation2 + $0x100] sm:$0x1] %v9217
      %9288 = vst [vmem:[#allocation2 + $0x108] sm:$0x1] %v9219
      %v9289 = vld [vmem:[#allocation2] sm:$0xff]
      %v9290 = vld [vmem:[#allocation2 + $0x8] sm:$0xff]
      %v9291 = vld [vmem:[#allocation2 + $0x10] sm:$0xff]
      %v9292 = vld [vmem:[#allocation2 + $0x18] sm:$0xff]
      %v9293 = vld [vmem:[#allocation2 + $0x20] sm:$0xff]
      %v9294 = vld [vmem:[#allocation2 + $0x28] sm:$0xff]
      %v9295 = vld [vmem:[#allocation2 + $0x30] sm:$0xff]
      %v9296 = vld [vmem:[#allocation2 + $0x38] sm:$0xff]
      %v9297 = vld [vmem:[#allocation2 + $0x40] sm:$0xff]
      %v9298 = vld [vmem:[#allocation2 + $0x48] sm:$0xff]
      %v9299 = vld [vmem:[#allocation2 + $0x50] sm:$0xff]
      %v9300 = vld [vmem:[#allocation2 + $0x58] sm:$0xff]
      %v9301 = vld [vmem:[#allocation2 + $0x60] sm:$0xff]
      %v9302 = vld [vmem:[#allocation2 + $0x68] sm:$0xff]
      %v9303 = vld [vmem:[#allocation2 + $0x70] sm:$0xff]
      %v9304 = vld [vmem:[#allocation2 + $0x78] sm:$0xff]
      %v9305 = vld [vmem:[#allocation2 + $0x80] sm:$0xff]
      %v9306 = vld [vmem:[#allocation2 + $0x88] sm:$0xff]
      %v9307 = vld [vmem:[#allocation2 + $0x90] sm:$0xff]
      %v9308 = vld [vmem:[#allocation2 + $0x98] sm:$0xff]
      %v9309 = vld [vmem:[#allocation2 + $0xa0] sm:$0xff]
      %v9310 = vld [vmem:[#allocation2 + $0xa8] sm:$0xff]
      %v9311 = vld [vmem:[#allocation2 + $0xb0] sm:$0xff]
      %v9312 = vld [vmem:[#allocation2 + $0xb8] sm:$0xff]
      %v9313 = vld [vmem:[#allocation2 + $0xc0] sm:$0xff]
      %v9314 = vld [vmem:[#allocation2 + $0xc8] sm:$0xff]
      %v9315 = vld [vmem:[#allocation2 + $0xd0] sm:$0xff]
      %v9316 = vld [vmem:[#allocation2 + $0xd8] sm:$0xff]
      %v9317 = vld [vmem:[#allocation2 + $0xe0] sm:$0xff]
      %v9318 = vld [vmem:[#allocation2 + $0xe8] sm:$0xff]
      %v9319 = vld [vmem:[#allocation2 + $0xf0] sm:$0xff]
      %v9320 = vld [vmem:[#allocation2 + $0xf8] sm:$0xff]
      %v9321 = vld [vmem:[#allocation2] sm:$0xfc]
      %v9322 = vld [vmem:[#allocation2 + $0x8] sm:$0xfc]
      %v9323 = vld [vmem:[#allocation2 + $0x10] sm:$0xff]
      %v9324 = vld [vmem:[#allocation2 + $0x18] sm:$0xff]
      %v9325 = vld [vmem:[#allocation2 + $0x20] sm:$0xff]
      %v9326 = vld [vmem:[#allocation2 + $0x28] sm:$0xff]
      %v9327 = vld [vmem:[#allocation2 + $0x30] sm:$0xff]
      %v9328 = vld [vmem:[#allocation2 + $0x38] sm:$0xff]
      %v9329 = vld [vmem:[#allocation2 + $0x40] sm:$0xff]
      %v9330 = vld [vmem:[#allocation2 + $0x48] sm:$0xff]
      %v9331 = vld [vmem:[#allocation2 + $0x50] sm:$0xff]
      %v9332 = vld [vmem:[#allocation2 + $0x58] sm:$0xff]
      %v9333 = vld [vmem:[#allocation2 + $0x60] sm:$0xff]
      %v9334 = vld [vmem:[#allocation2 + $0x68] sm:$0xff]
      %v9335 = vld [vmem:[#allocation2 + $0x70] sm:$0xff]
      %v9336 = vld [vmem:[#allocation2 + $0x78] sm:$0xff]
      %v9337 = vld [vmem:[#allocation2 + $0x80] sm:$0xff]
      %v9338 = vld [vmem:[#allocation2 + $0x88] sm:$0xff]
      %v9339 = vld [vmem:[#allocation2 + $0x90] sm:$0xff]
      %v9340 = vld [vmem:[#allocation2 + $0x98] sm:$0xff]
      %v9341 = vld [vmem:[#allocation2 + $0xa0] sm:$0xff]
      %v9342 = vld [vmem:[#allocation2 + $0xa8] sm:$0xff]
      %v9343 = vld [vmem:[#allocation2 + $0xb0] sm:$0xff]
      %v9344 = vld [vmem:[#allocation2 + $0xb8] sm:$0xff]
      %v9345 = vld [vmem:[#allocation2 + $0xc0] sm:$0xff]
      %v9346 = vld [vmem:[#allocation2 + $0xc8] sm:$0xff]
      %v9347 = vld [vmem:[#allocation2 + $0xd0] sm:$0xff]
      %v9348 = vld [vmem:[#allocation2 + $0xd8] sm:$0xff]
      %v9349 = vld [vmem:[#allocation2 + $0xe0] sm:$0xff]
      %v9350 = vld [vmem:[#allocation2 + $0xe8] sm:$0xff]
      %v9351 = vld [vmem:[#allocation2 + $0xf0] sm:$0xff]
      %v9352 = vld [vmem:[#allocation2 + $0xf8] sm:$0xff]
      %v9353 = vld [vmem:[#allocation2 + $0x100] sm:$0x3]
      %v9354 = vld [vmem:[#allocation2 + $0x108] sm:$0x3]
      %v9355 = vsel %vm488, 0.0, %v9289
      %v9356 = vsel %vm488, 0.0, %v9290
      %v9357 = vsel %vm489, 0.0, %v9291
      %v9358 = vsel %vm489, 0.0, %v9292
      %v9359 = vsel %vm490, 0.0, %v9293
      %v9360 = vsel %vm490, 0.0, %v9294
      %v9361 = vsel %vm491, 0.0, %v9295
      %v9362 = vsel %vm491, 0.0, %v9296
      %v9363 = vsel %vm492, 0.0, %v9297
      %v9364 = vsel %vm492, 0.0, %v9298
      %v9365 = vsel %vm493, 0.0, %v9299
      %v9366 = vsel %vm493, 0.0, %v9300
      %v9367 = vsel %vm494, 0.0, %v9301
      %v9368 = vsel %vm494, 0.0, %v9302
      %v9369 = vsel %vm495, 0.0, %v9303
      %v9370 = vsel %vm495, 0.0, %v9304
      %v9371 = vsel %vm496, 0.0, %v9305
      %v9372 = vsel %vm496, 0.0, %v9306
      %v9373 = vsel %vm497, 0.0, %v9307
      %v9374 = vsel %vm497, 0.0, %v9308
      %v9375 = vsel %vm498, 0.0, %v9309
      %v9376 = vsel %vm498, 0.0, %v9310
      %v9377 = vsel %vm499, 0.0, %v9311
      %v9378 = vsel %vm499, 0.0, %v9312
      %v9379 = vsel %vm500, 0.0, %v9313
      %v9380 = vsel %vm500, 0.0, %v9314
      %v9381 = vsel %vm501, 0.0, %v9315
      %v9382 = vsel %vm501, 0.0, %v9316
      %v9383 = vsel %vm502, 0.0, %v9317
      %v9384 = vsel %vm502, 0.0, %v9318
      %v9385 = vsel %vm503, 0.0, %v9319
      %v9386 = vsel %vm503, 0.0, %v9320
      %v9421 = vrot.slane %v9321, 2
      %v9422 = vrot.slane %v9323, 2
      %v9423 = vsel %vm553, %v9421, %v9422
      %v9424 = vrot.slane %v9322, 2
      %v9425 = vrot.slane %v9324, 2
      %v9426 = vsel %vm553, %v9424, %v9425
      %v9427 = vrot.slane %v9325, 2
      %v9428 = vsel %vm553, %v9422, %v9427
      %v9429 = vrot.slane %v9326, 2
      %v9430 = vsel %vm553, %v9425, %v9429
      %v9431 = vrot.slane %v9327, 2
      %v9432 = vsel %vm553, %v9427, %v9431
      %v9433 = vrot.slane %v9328, 2
      %v9434 = vsel %vm553, %v9429, %v9433
      %v9435 = vrot.slane %v9329, 2
      %v9436 = vsel %vm553, %v9431, %v9435
      %v9437 = vrot.slane %v9330, 2
      %v9438 = vsel %vm553, %v9433, %v9437
      %v9439 = vrot.slane %v9331, 2
      %v9440 = vsel %vm553, %v9435, %v9439
      %v9441 = vrot.slane %v9332, 2
      %v9442 = vsel %vm553, %v9437, %v9441
      %v9443 = vrot.slane %v9333, 2
      %v9444 = vsel %vm553, %v9439, %v9443
      %v9445 = vrot.slane %v9334, 2
      %v9446 = vsel %vm553, %v9441, %v9445
      %v9447 = vrot.slane %v9335, 2
      %v9448 = vsel %vm553, %v9443, %v9447
      %v9449 = vrot.slane %v9336, 2
      %v9450 = vsel %vm553, %v9445, %v9449
      %v9451 = vrot.slane %v9337, 2
      %v9452 = vsel %vm553, %v9447, %v9451
      %v9453 = vrot.slane %v9338, 2
      %v9454 = vsel %vm553, %v9449, %v9453
      %v9455 = vrot.slane %v9339, 2
      %v9456 = vsel %vm553, %v9451, %v9455
      %v9457 = vrot.slane %v9340, 2
      %v9458 = vsel %vm553, %v9453, %v9457
      %v9459 = vrot.slane %v9341, 2
      %v9460 = vsel %vm553, %v9455, %v9459
      %v9461 = vrot.slane %v9342, 2
      %v9462 = vsel %vm553, %v9457, %v9461
      %v9463 = vrot.slane %v9343, 2
      %v9464 = vsel %vm553, %v9459, %v9463
      %v9465 = vrot.slane %v9344, 2
      %v9466 = vsel %vm553, %v9461, %v9465
      %v9467 = vrot.slane %v9345, 2
      %v9468 = vsel %vm553, %v9463, %v9467
      %v9469 = vrot.slane %v9346, 2
      %v9470 = vsel %vm553, %v9465, %v9469
      %v9471 = vrot.slane %v9347, 2
      %v9472 = vsel %vm553, %v9467, %v9471
      %v9473 = vrot.slane %v9348, 2
      %v9474 = vsel %vm553, %v9469, %v9473
      %v9475 = vrot.slane %v9349, 2
      %v9476 = vsel %vm553, %v9471, %v9475
      %v9477 = vrot.slane %v9350, 2
      %v9478 = vsel %vm553, %v9473, %v9477
      %v9479 = vrot.slane %v9351, 2
      %v9480 = vsel %vm553, %v9475, %v9479
      %v9481 = vrot.slane %v9352, 2
      %v9482 = vsel %vm553, %v9477, %v9481
      %v9483 = vrot.slane %v9353, 2
      %v9484 = vsel %vm553, %v9479, %v9483
      %v9485 = vrot.slane %v9354, 2
      %v9486 = vsel %vm553, %v9481, %v9485
      %v9519 = vsel %vm520, 0.0, %v9423
      %v9520 = vsel %vm520, 0.0, %v9426
      %v9521 = vsel %vm521, 0.0, %v9428
      %v9522 = vsel %vm521, 0.0, %v9430
      %v9523 = vsel %vm522, 0.0, %v9432
      %v9524 = vsel %vm522, 0.0, %v9434
      %v9525 = vsel %vm523, 0.0, %v9436
      %v9526 = vsel %vm523, 0.0, %v9438
      %v9527 = vsel %vm524, 0.0, %v9440
      %v9528 = vsel %vm524, 0.0, %v9442
      %v9529 = vsel %vm525, 0.0, %v9444
      %v9530 = vsel %vm525, 0.0, %v9446
      %v9531 = vsel %vm526, 0.0, %v9448
      %v9532 = vsel %vm526, 0.0, %v9450
      %v9533 = vsel %vm527, 0.0, %v9452
      %v9534 = vsel %vm527, 0.0, %v9454
      %v9535 = vsel %vm528, 0.0, %v9456
      %v9536 = vsel %vm528, 0.0, %v9458
      %v9537 = vsel %vm529, 0.0, %v9460
      %v9538 = vsel %vm529, 0.0, %v9462
      %v9539 = vsel %vm530, 0.0, %v9464
      %v9540 = vsel %vm530, 0.0, %v9466
      %v9541 = vsel %vm531, 0.0, %v9468
      %v9542 = vsel %vm531, 0.0, %v9470
      %v9543 = vsel %vm532, 0.0, %v9472
      %v9544 = vsel %vm532, 0.0, %v9474
      %v9545 = vsel %vm533, 0.0, %v9476
      %v9546 = vsel %vm533, 0.0, %v9478
      %v9547 = vsel %vm534, 0.0, %v9480
      %v9548 = vsel %vm534, 0.0, %v9482
      %v9549 = vsel %vm535, 0.0, %v9484
      %v9550 = vsel %vm535, 0.0, %v9486
      %v9551 = vpack.c.bf16 %v9357, %v9355
      %v9552 = vpack.c.bf16 %v9358, %v9356
      %v9553 = vpack.c.bf16 %v8833, %v8829
      %v9554 = vpack.c.bf16 %v8835, %v8831
      %v9555 = vpack.c.bf16 %v9521, %v9519
      %v9556 = vpack.c.bf16 %v9522, %v9520
      %v9557 = vpack.c.bf16 %v9361, %v9359
      %v9558 = vpack.c.bf16 %v9362, %v9360
      %v9559 = vpack.c.bf16 %v8843, %v8839
      %v9560 = vpack.c.bf16 %v8845, %v8841
      %v9561 = vpack.c.bf16 %v9525, %v9523
      %v9562 = vpack.c.bf16 %v9526, %v9524
      %v9563 = vpack.c.bf16 %v9365, %v9363
      %v9564 = vpack.c.bf16 %v9366, %v9364
      %v9565 = vpack.c.bf16 %v8853, %v8849
      %v9566 = vpack.c.bf16 %v8855, %v8851
      %v9567 = vpack.c.bf16 %v9529, %v9527
      %v9568 = vpack.c.bf16 %v9530, %v9528
      %v9569 = vpack.c.bf16 %v9369, %v9367
      %v9570 = vpack.c.bf16 %v9370, %v9368
      %v9571 = vpack.c.bf16 %v8863, %v8859
      %v9572 = vpack.c.bf16 %v8865, %v8861
      %v9573 = vpack.c.bf16 %v9533, %v9531
      %v9574 = vpack.c.bf16 %v9534, %v9532
      %v9575 = vpack.c.bf16 %v9373, %v9371
      %v9576 = vpack.c.bf16 %v9374, %v9372
      %v9577 = vpack.c.bf16 %v8873, %v8869
      %v9578 = vpack.c.bf16 %v8875, %v8871
      %v9579 = vpack.c.bf16 %v9537, %v9535
      %v9580 = vpack.c.bf16 %v9538, %v9536
      %v9581 = vpack.c.bf16 %v9377, %v9375
      %v9582 = vpack.c.bf16 %v9378, %v9376
      %v9583 = vpack.c.bf16 %v8883, %v8879
      %v9584 = vpack.c.bf16 %v8885, %v8881
      %v9585 = vpack.c.bf16 %v9541, %v9539
      %v9586 = vpack.c.bf16 %v9542, %v9540
      %v9587 = vpack.c.bf16 %v9381, %v9379
      %v9588 = vpack.c.bf16 %v9382, %v9380
      %v9589 = vpack.c.bf16 %v8893, %v8889
      %v9590 = vpack.c.bf16 %v8895, %v8891
      %v9591 = vpack.c.bf16 %v9545, %v9543
      %v9592 = vpack.c.bf16 %v9546, %v9544
      %v9593 = vpack.c.bf16 %v9385, %v9383
      %v9594 = vpack.c.bf16 %v9386, %v9384
      %v9595 = vpack.c.bf16 %v8903, %v8899
      %v9596 = vpack.c.bf16 %v8905, %v8901
      %v9597 = vpack.c.bf16 %v9549, %v9547
      %v9598 = vpack.c.bf16 %v9550, %v9548
      %v9599 = vld [vmem:[%s1 + $0xae0] sm:$0xf]
      %v9600 = vld [vmem:[%s1 + $0xae4] sm:$0xf]
      %v9601 = vld [vmem:[%s1 + $0xae8] sm:$0xf]
      %v9602 = vld [vmem:[%s1 + $0xaec] sm:$0xf]
      %v9603 = vld [vmem:[%s1 + $0xaf0] sm:$0xf]
      %v9604 = vld [vmem:[%s1 + $0xaf4] sm:$0xf]
      %v9605 = vld [vmem:[%s1 + $0xaf8] sm:$0xf]
      %v9606 = vld [vmem:[%s1 + $0xafc] sm:$0xf]
      %v9607 = vld [vmem:[%s1 + $0xb00] sm:$0xf]
      %v9608 = vld [vmem:[%s1 + $0xb04] sm:$0xf]
      %v9609 = vld [vmem:[%s1 + $0xb08] sm:$0xf]
      %v9610 = vld [vmem:[%s1 + $0xb0c] sm:$0xf]
      %v9611 = vld [vmem:[%s1 + $0xb10] sm:$0xf]
      %v9612 = vld [vmem:[%s1 + $0xb14] sm:$0xf]
      %v9613 = vld [vmem:[%s1 + $0xb18] sm:$0xf]
      %v9614 = vld [vmem:[%s1 + $0xb1c] sm:$0xf]
      %v9615 = vld [vmem:[%s1 + $0xb20] sm:$0xf]
      %v9616 = vld [vmem:[%s1 + $0xb24] sm:$0xf]
      %v9617 = vld [vmem:[%s1 + $0xb28] sm:$0xf]
      %v9618 = vld [vmem:[%s1 + $0xb2c] sm:$0xf]
      %v9619 = vld [vmem:[%s1 + $0xb30] sm:$0xf]
      %v9620 = vld [vmem:[%s1 + $0xb34] sm:$0xf]
      %v9621 = vld [vmem:[%s1 + $0xb38] sm:$0xf]
      %v9622 = vld [vmem:[%s1 + $0xb3c] sm:$0xf]
      %v9623 = vld [vmem:[%s1 + $0xb40] sm:$0xf]
      %v9624 = vld [vmem:[%s1 + $0xb44] sm:$0xf]
      %v9625 = vld [vmem:[%s1 + $0xb48] sm:$0xf]
      %v9626 = vld [vmem:[%s1 + $0xb4c] sm:$0xf]
      %v9627 = vld [vmem:[%s1 + $0xb50] sm:$0xf]
      %v9628 = vld [vmem:[%s1 + $0xb54] sm:$0xf]
      %v9629 = vld [vmem:[%s1 + $0xb58] sm:$0xf]
      %v9630 = vld [vmem:[%s1 + $0xb5c] sm:$0xf]
      %v9631 = vld [vmem:[%s1 + $0xb60] sm:$0xf]
      %v9632 = vld [vmem:[%s1 + $0xb64] sm:$0xf]
      %v9633 = vld [vmem:[%s1 + $0xb68] sm:$0xf]
      %v9634 = vld [vmem:[%s1 + $0xb6c] sm:$0xf]
      %v9635 = vld [vmem:[%s1 + $0xb70] sm:$0xf]
      %v9636 = vld [vmem:[%s1 + $0xb74] sm:$0xf]
      %v9637 = vld [vmem:[%s1 + $0xb78] sm:$0xf]
      %v9638 = vld [vmem:[%s1 + $0xb7c] sm:$0xf]
      %v9639 = vld [vmem:[%s1 + $0xb80] sm:$0xf]
      %v9640 = vld [vmem:[%s1 + $0xb84] sm:$0xf]
      %v9641 = vld [vmem:[%s1 + $0xb88] sm:$0xf]
      %v9642 = vld [vmem:[%s1 + $0xb8c] sm:$0xf]
      %v9643 = vld [vmem:[%s1 + $0xb90] sm:$0xf]
      %v9644 = vld [vmem:[%s1 + $0xb94] sm:$0xf]
      %v9645 = vld [vmem:[%s1 + $0xb98] sm:$0xf]
      %v9646 = vld [vmem:[%s1 + $0xb9c] sm:$0xf]
      %v9647 = vld [vmem:[%s1 + $0xba0] sm:$0xf]
      %v9648 = vld [vmem:[%s1 + $0xba4] sm:$0xf]
      %v9649 = vld [vmem:[%s1 + $0xba8] sm:$0xf]
      %v9650 = vld [vmem:[%s1 + $0xbac] sm:$0xf]
      %v9651 = vld [vmem:[%s1 + $0xbb0] sm:$0xf]
      %v9652 = vld [vmem:[%s1 + $0xbb4] sm:$0xf]
      %v9653 = vld [vmem:[%s1 + $0xbb8] sm:$0xf]
      %v9654 = vld [vmem:[%s1 + $0xbbc] sm:$0xf]
      %v9655 = vld [vmem:[%s1 + $0xbc0] sm:$0xf]
      %v9656 = vld [vmem:[%s1 + $0xbc4] sm:$0xf]
      %v9657 = vld [vmem:[%s1 + $0xbc8] sm:$0xf]
      %v9658 = vld [vmem:[%s1 + $0xbcc] sm:$0xf]
      %v9659 = vld [vmem:[%s1 + $0xbd0] sm:$0xf]
      %v9660 = vld [vmem:[%s1 + $0xbd4] sm:$0xf]
      %v9661 = vld [vmem:[%s1 + $0xbd8] sm:$0xf]
      %v9662 = vld [vmem:[%s1 + $0xbdc] sm:$0xf]
      %v9663 = vld [vmem:[%s1 + $0xbe0] sm:$0xf]
      %v9664 = vld [vmem:[%s1 + $0xbe4] sm:$0xf]
      %v9665 = vld [vmem:[%s1 + $0xbe8] sm:$0xf]
      %v9666 = vld [vmem:[%s1 + $0xbec] sm:$0xf]
      %v9667 = vld [vmem:[%s1 + $0xbf0] sm:$0xf]
      %v9668 = vld [vmem:[%s1 + $0xbf4] sm:$0xf]
      %v9669 = vld [vmem:[%s1 + $0xbf8] sm:$0xf]
      %v9670 = vld [vmem:[%s1 + $0xbfc] sm:$0xf]
      %v9671 = vld [vmem:[%s1 + $0xc00] sm:$0xf]
      %v9672 = vld [vmem:[%s1 + $0xc04] sm:$0xf]
      %v9673 = vld [vmem:[%s1 + $0xc08] sm:$0xf]
      %v9674 = vld [vmem:[%s1 + $0xc0c] sm:$0xf]
      %v9675 = vld [vmem:[%s1 + $0xc10] sm:$0xf]
      %v9676 = vld [vmem:[%s1 + $0xc14] sm:$0xf]
      %v9677 = vld [vmem:[%s1 + $0xc18] sm:$0xf]
      %v9678 = vld [vmem:[%s1 + $0xc1c] sm:$0xf]
      %v9679 = vld [vmem:[%s1 + $0xc20] sm:$0xf]
      %v9680 = vld [vmem:[%s1 + $0xc24] sm:$0xf]
      %v9681 = vld [vmem:[%s1 + $0xc28] sm:$0xf]
      %v9682 = vld [vmem:[%s1 + $0xc2c] sm:$0xf]
      %v9683 = vld [vmem:[%s1 + $0xc30] sm:$0xf]
      %v9684 = vld [vmem:[%s1 + $0xc34] sm:$0xf]
      %v9685 = vld [vmem:[%s1 + $0xc38] sm:$0xf]
      %v9686 = vld [vmem:[%s1 + $0xc3c] sm:$0xf]
      %v9687 = vld [vmem:[%s1 + $0xc40] sm:$0xf]
      %v9688 = vld [vmem:[%s1 + $0xc44] sm:$0xf]
      %v9689 = vld [vmem:[%s1 + $0xc48] sm:$0xf]
      %v9690 = vld [vmem:[%s1 + $0xc4c] sm:$0xf]
      %v9691 = vld [vmem:[%s1 + $0xc50] sm:$0xf]
      %v9692 = vld [vmem:[%s1 + $0xc54] sm:$0xf]
      %v9693 = vld [vmem:[%s1 + $0xc58] sm:$0xf]
      %v9694 = vld [vmem:[%s1 + $0xc5c] sm:$0xf]
      %v9695 = vld [vmem:[%s1 + $0xc60] sm:$0xf]
      %v9696 = vld [vmem:[%s1 + $0xc64] sm:$0xf]
      %v9697 = vld [vmem:[%s1 + $0xc68] sm:$0xf]
      %v9698 = vld [vmem:[%s1 + $0xc6c] sm:$0xf]
      %v9699 = vld [vmem:[%s1 + $0xc70] sm:$0xf]
      %v9700 = vld [vmem:[%s1 + $0xc74] sm:$0xf]
      %v9701 = vld [vmem:[%s1 + $0xc78] sm:$0xf]
      %v9702 = vld [vmem:[%s1 + $0xc7c] sm:$0xf]
      %v9703 = vld [vmem:[%s1 + $0xc80] sm:$0xf]
      %v9704 = vld [vmem:[%s1 + $0xc84] sm:$0xf]
      %v9705 = vld [vmem:[%s1 + $0xc88] sm:$0xf]
      %v9706 = vld [vmem:[%s1 + $0xc8c] sm:$0xf]
      %v9707 = vld [vmem:[%s1 + $0xc90] sm:$0xf]
      %v9708 = vld [vmem:[%s1 + $0xc94] sm:$0xf]
      %v9709 = vld [vmem:[%s1 + $0xc98] sm:$0xf]
      %v9710 = vld [vmem:[%s1 + $0xc9c] sm:$0xf]
      %v9711 = vld [vmem:[%s1 + $0xca0] sm:$0xf]
      %v9712 = vld [vmem:[%s1 + $0xca4] sm:$0xf]
      %v9713 = vld [vmem:[%s1 + $0xca8] sm:$0xf]
      %v9714 = vld [vmem:[%s1 + $0xcac] sm:$0xf]
      %v9715 = vld [vmem:[%s1 + $0xcb0] sm:$0xf]
      %v9716 = vld [vmem:[%s1 + $0xcb4] sm:$0xf]
      %v9717 = vld [vmem:[%s1 + $0xcb8] sm:$0xf]
      %v9718 = vld [vmem:[%s1 + $0xcbc] sm:$0xf]
      %v9719 = vld [vmem:[%s1 + $0xcc0] sm:$0xf]
      %v9720 = vld [vmem:[%s1 + $0xcc4] sm:$0xf]
      %v9721 = vld [vmem:[%s1 + $0xcc8] sm:$0xf]
      %v9722 = vld [vmem:[%s1 + $0xccc] sm:$0xf]
      %v9723 = vld [vmem:[%s1 + $0xcd0] sm:$0xf]
      %v9724 = vld [vmem:[%s1 + $0xcd4] sm:$0xf]
      %v9725 = vld [vmem:[%s1 + $0xcd8] sm:$0xf]
      %v9726 = vld [vmem:[%s1 + $0xcdc] sm:$0xf]
      %v9727 = vld [vmem:[%s1 + $0xce0] sm:$0xf]
      %v9728 = vld [vmem:[%s1 + $0xce4] sm:$0xf]
      %v9729 = vld [vmem:[%s1 + $0xce8] sm:$0xf]
      %v9730 = vld [vmem:[%s1 + $0xcec] sm:$0xf]
      %v9731 = vld [vmem:[%s1 + $0xcf0] sm:$0xf]
      %v9732 = vld [vmem:[%s1 + $0xcf4] sm:$0xf]
      %v9733 = vld [vmem:[%s1 + $0xcf8] sm:$0xf]
      %v9734 = vld [vmem:[%s1 + $0xcfc] sm:$0xf]
      %v9735 = vld [vmem:[%s1 + $0xd00] sm:$0xf]
      %v9736 = vld [vmem:[%s1 + $0xd04] sm:$0xf]
      %v9737 = vld [vmem:[%s1 + $0xd08] sm:$0xf]
      %v9738 = vld [vmem:[%s1 + $0xd0c] sm:$0xf]
      %v9739 = vld [vmem:[%s1 + $0xd10] sm:$0xf]
      %v9740 = vld [vmem:[%s1 + $0xd14] sm:$0xf]
      %v9741 = vld [vmem:[%s1 + $0xd18] sm:$0xf]
      %v9742 = vld [vmem:[%s1 + $0xd1c] sm:$0xf]
      %v9743 = vld [vmem:[%s2 + $0xc] sm:$0x1]
      %v9744 = vlaneseq
      %v9745 = vshrl.u32 %v9744, 7
      %v9746 = vsub.s32 0, %v9745
      %v9747 = vrot.slane %v9743, %v9746
      %v9892 = vunpack.c.l.b16 %v9599
      %v9893 = vunpack.c.l.b16 %v9600
      %v9894 = vunpack.c.l.b16 %v9601
      %v9895 = vunpack.c.l.b16 %v9602
      %v9896 = vunpack.c.l.b16 %v9603
      %v9897 = vunpack.c.l.b16 %v9604
      %v9898 = vunpack.c.l.b16 %v9605
      %v9899 = vunpack.c.l.b16 %v9606
      %v9900 = vunpack.c.l.b16 %v9607
      %v9901 = vunpack.c.l.b16 %v9608
      %v9902 = vunpack.c.l.b16 %v9609
      %v9903 = vunpack.c.l.b16 %v9610
      %v9904 = vunpack.c.l.b16 %v9611
      %v9905 = vunpack.c.l.b16 %v9612
      %v9906 = vunpack.c.l.b16 %v9613
      %v9907 = vunpack.c.l.b16 %v9614
      %v9908 = vunpack.c.l.b16 %v9615
      %v9909 = vunpack.c.l.b16 %v9616
      %v9910 = vunpack.c.l.b16 %v9617
      %v9911 = vunpack.c.l.b16 %v9618
      %v9912 = vunpack.c.l.b16 %v9619
      %v9913 = vunpack.c.l.b16 %v9620
      %v9914 = vunpack.c.l.b16 %v9621
      %v9915 = vunpack.c.l.b16 %v9622
      %v9916 = vunpack.c.l.b16 %v9623
      %v9917 = vunpack.c.l.b16 %v9624
      %v9918 = vunpack.c.l.b16 %v9625
      %v9919 = vunpack.c.l.b16 %v9626
      %v9920 = vunpack.c.l.b16 %v9627
      %v9921 = vunpack.c.l.b16 %v9628
      %v9922 = vunpack.c.l.b16 %v9629
      %v9923 = vunpack.c.l.b16 %v9630
      %v9924 = vunpack.c.l.b16 %v9631
      %v9925 = vunpack.c.l.b16 %v9632
      %v9926 = vunpack.c.l.b16 %v9633
      %v9927 = vunpack.c.l.b16 %v9634
      %v9928 = vunpack.c.l.b16 %v9635
      %v9929 = vunpack.c.l.b16 %v9636
      %v9930 = vunpack.c.l.b16 %v9637
      %v9931 = vunpack.c.l.b16 %v9638
      %v9932 = vunpack.c.l.b16 %v9639
      %v9933 = vunpack.c.l.b16 %v9640
      %v9934 = vunpack.c.l.b16 %v9641
      %v9935 = vunpack.c.l.b16 %v9642
      %v9936 = vunpack.c.l.b16 %v9643
      %v9937 = vunpack.c.l.b16 %v9644
      %v9938 = vunpack.c.l.b16 %v9645
      %v9939 = vunpack.c.l.b16 %v9646
      %v9940 = vunpack.c.l.b16 %v9647
      %v9941 = vunpack.c.l.b16 %v9648
      %v9942 = vunpack.c.l.b16 %v9649
      %v9943 = vunpack.c.l.b16 %v9650
      %v9944 = vunpack.c.l.b16 %v9651
      %v9945 = vunpack.c.l.b16 %v9652
      %v9946 = vunpack.c.l.b16 %v9653
      %v9947 = vunpack.c.l.b16 %v9654
      %v9948 = vunpack.c.l.b16 %v9655
      %v9949 = vunpack.c.l.b16 %v9656
      %v9950 = vunpack.c.l.b16 %v9657
      %v9951 = vunpack.c.l.b16 %v9658
      %v9952 = vunpack.c.l.b16 %v9659
      %v9953 = vunpack.c.l.b16 %v9660
      %v9954 = vunpack.c.l.b16 %v9661
      %v9955 = vunpack.c.l.b16 %v9662
      %v9956 = vunpack.c.l.b16 %v9663
      %v9957 = vunpack.c.l.b16 %v9664
      %v9958 = vunpack.c.l.b16 %v9665
      %v9959 = vunpack.c.l.b16 %v9666
      %v9960 = vunpack.c.l.b16 %v9667
      %v9961 = vunpack.c.l.b16 %v9668
      %v9962 = vunpack.c.l.b16 %v9669
      %v9963 = vunpack.c.l.b16 %v9670
      %v9964 = vunpack.c.l.b16 %v9671
      %v9965 = vunpack.c.l.b16 %v9672
      %v9966 = vunpack.c.l.b16 %v9673
      %v9967 = vunpack.c.l.b16 %v9674
      %v9968 = vunpack.c.l.b16 %v9675
      %v9969 = vunpack.c.l.b16 %v9676
      %v9970 = vunpack.c.l.b16 %v9677
      %v9971 = vunpack.c.l.b16 %v9678
      %v9972 = vunpack.c.l.b16 %v9679
      %v9973 = vunpack.c.l.b16 %v9680
      %v9974 = vunpack.c.l.b16 %v9681
      %v9975 = vunpack.c.l.b16 %v9682
      %v9976 = vunpack.c.l.b16 %v9683
      %v9977 = vunpack.c.l.b16 %v9684
      %v9978 = vunpack.c.l.b16 %v9685
      %v9979 = vunpack.c.l.b16 %v9686
      %v9980 = vunpack.c.l.b16 %v9687
      %v9981 = vunpack.c.l.b16 %v9688
      %v9982 = vunpack.c.l.b16 %v9689
      %v9983 = vunpack.c.l.b16 %v9690
      %v9984 = vunpack.c.l.b16 %v9691
      %v9985 = vunpack.c.l.b16 %v9692
      %v9986 = vunpack.c.l.b16 %v9693
      %v9987 = vunpack.c.l.b16 %v9694
      %v9988 = vunpack.c.l.b16 %v9695
      %v9989 = vunpack.c.l.b16 %v9696
      %v9990 = vunpack.c.l.b16 %v9697
      %v9991 = vunpack.c.l.b16 %v9698
      %v9992 = vunpack.c.l.b16 %v9699
      %v9993 = vunpack.c.l.b16 %v9700
      %v9994 = vunpack.c.l.b16 %v9701
      %v9995 = vunpack.c.l.b16 %v9702
      %v9996 = vunpack.c.l.b16 %v9703
      %v9997 = vunpack.c.l.b16 %v9704
      %v9998 = vunpack.c.l.b16 %v9705
      %v9999 = vunpack.c.l.b16 %v9706
      %v10000 = vunpack.c.l.b16 %v9707
      %v10001 = vunpack.c.l.b16 %v9708
      %v10002 = vunpack.c.l.b16 %v9709
      %v10003 = vunpack.c.l.b16 %v9710
      %v10004 = vunpack.c.l.b16 %v9711
      %v10005 = vunpack.c.l.b16 %v9712
      %v10006 = vunpack.c.l.b16 %v9713
      %v10007 = vunpack.c.l.b16 %v9714
      %v10008 = vunpack.c.l.b16 %v9715
      %v10009 = vunpack.c.l.b16 %v9716
      %v10010 = vunpack.c.l.b16 %v9717
      %v10011 = vunpack.c.l.b16 %v9718
      %v10012 = vunpack.c.l.b16 %v9719
      %v10013 = vunpack.c.l.b16 %v9720
      %v10014 = vunpack.c.l.b16 %v9721
      %v10015 = vunpack.c.l.b16 %v9722
      %v10016 = vunpack.c.l.b16 %v9723
      %v10017 = vunpack.c.l.b16 %v9724
      %v10018 = vunpack.c.l.b16 %v9725
      %v10019 = vunpack.c.l.b16 %v9726
      %v10020 = vunpack.c.l.b16 %v9727
      %v10021 = vunpack.c.l.b16 %v9728
      %v10022 = vunpack.c.l.b16 %v9729
      %v10023 = vunpack.c.l.b16 %v9730
      %v10024 = vunpack.c.l.b16 %v9731
      %v10025 = vunpack.c.l.b16 %v9732
      %v10026 = vunpack.c.l.b16 %v9733
      %v10027 = vunpack.c.l.b16 %v9734
      %v10028 = vunpack.c.l.b16 %v9735
      %v10029 = vunpack.c.l.b16 %v9736
      %v10030 = vunpack.c.l.b16 %v9737
      %v10031 = vunpack.c.l.b16 %v9738
      %v10032 = vunpack.c.l.b16 %v9739
      %v10033 = vunpack.c.l.b16 %v9740
      %v10034 = vunpack.c.l.b16 %v9741
      %v10035 = vunpack.c.l.b16 %v9742
      %v10036 = vpack.c.b16 %v9893, %v9892
      %v10037 = vpack.c.b16 %v9895, %v9894
      %v10038 = vpack.c.b16 %v9897, %v9896
      %v10039 = vpack.c.b16 %v9899, %v9898
      %v10040 = vpack.c.b16 %v9901, %v9900
      %v10041 = vpack.c.b16 %v9903, %v9902
      %v10042 = vpack.c.b16 %v9905, %v9904
      %v10043 = vpack.c.b16 %v9907, %v9906
      %v10044 = vpack.c.b16 %v9909, %v9908
      %v10045 = vpack.c.b16 %v9911, %v9910
      %v10046 = vpack.c.b16 %v9913, %v9912
      %v10047 = vpack.c.b16 %v9915, %v9914
      %v10048 = vpack.c.b16 %v9917, %v9916
      %v10049 = vpack.c.b16 %v9919, %v9918
      %v10050 = vpack.c.b16 %v9921, %v9920
      %v10051 = vpack.c.b16 %v9923, %v9922
      %v10052 = vpack.c.b16 %v9925, %v9924
      %v10053 = vpack.c.b16 %v9927, %v9926
      %v10054 = vpack.c.b16 %v9929, %v9928
      %v10055 = vpack.c.b16 %v9931, %v9930
      %v10056 = vpack.c.b16 %v9933, %v9932
      %v10057 = vpack.c.b16 %v9935, %v9934
      %v10058 = vpack.c.b16 %v9937, %v9936
      %v10059 = vpack.c.b16 %v9939, %v9938
      %v10060 = vpack.c.b16 %v9941, %v9940
      %v10061 = vpack.c.b16 %v9943, %v9942
      %v10062 = vpack.c.b16 %v9945, %v9944
      %v10063 = vpack.c.b16 %v9947, %v9946
      %v10064 = vpack.c.b16 %v9949, %v9948
      %v10065 = vpack.c.b16 %v9951, %v9950
      %v10066 = vpack.c.b16 %v9953, %v9952
      %v10067 = vpack.c.b16 %v9955, %v9954
      %v10068 = vpack.c.b16 %v9957, %v9956
      %v10069 = vpack.c.b16 %v9959, %v9958
      %v10070 = vpack.c.b16 %v9961, %v9960
      %v10071 = vpack.c.b16 %v9963, %v9962
      %v10072 = vpack.c.b16 %v9965, %v9964
      %v10073 = vpack.c.b16 %v9967, %v9966
      %v10074 = vpack.c.b16 %v9969, %v9968
      %v10075 = vpack.c.b16 %v9971, %v9970
      %v10076 = vpack.c.b16 %v9973, %v9972
      %v10077 = vpack.c.b16 %v9975, %v9974
      %v10078 = vpack.c.b16 %v9977, %v9976
      %v10079 = vpack.c.b16 %v9979, %v9978
      %v10080 = vpack.c.b16 %v9981, %v9980
      %v10081 = vpack.c.b16 %v9983, %v9982
      %v10082 = vpack.c.b16 %v9985, %v9984
      %v10083 = vpack.c.b16 %v9987, %v9986
      %v10084 = vpack.c.b16 %v9989, %v9988
      %v10085 = vpack.c.b16 %v9991, %v9990
      %v10086 = vpack.c.b16 %v9993, %v9992
      %v10087 = vpack.c.b16 %v9995, %v9994
      %v10088 = vpack.c.b16 %v9997, %v9996
      %v10089 = vpack.c.b16 %v9999, %v9998
      %v10090 = vpack.c.b16 %v10001, %v10000
      %v10091 = vpack.c.b16 %v10003, %v10002
      %v10092 = vpack.c.b16 %v10005, %v10004
      %v10093 = vpack.c.b16 %v10007, %v10006
      %v10094 = vpack.c.b16 %v10009, %v10008
      %v10095 = vpack.c.b16 %v10011, %v10010
      %v10096 = vpack.c.b16 %v10013, %v10012
      %v10097 = vpack.c.b16 %v10015, %v10014
      %v10098 = vpack.c.b16 %v10017, %v10016
      %v10099 = vpack.c.b16 %v10019, %v10018
      %v10100 = vpack.c.b16 %v10021, %v10020
      %v10101 = vpack.c.b16 %v10023, %v10022
      %v10102 = vpack.c.b16 %v10025, %v10024
      %v10103 = vpack.c.b16 %v10027, %v10026
      %v10104 = vpack.c.b16 %v10029, %v10028
      %v10105 = vpack.c.b16 %v10031, %v10030
      %v10106 = vpack.c.b16 %v10033, %v10032
      %v10107 = vpack.c.b16 %v10035, %v10034
      %10180 = vmatprep.subr.bf16.mxu0 0
      %10181 = vmatpush1.bf16.msra.mxu0 %v10036
      %10182 = vmatprep.subr.bf16.mxu0 0
      %10183 = vmatpush1.bf16.msra.mxu0 %v10037
      %10184 = vmatprep.subr.bf16.mxu0 0
      %10185 = vmatpush1.bf16.msra.mxu0 %v10038
      %10186 = vmatprep.subr.bf16.mxu0 0
      %10187 = vmatpush1.bf16.msra.mxu0 %v10039
      %10188 = vmatprep.subr.bf16.mxu0 0
      %10189 = vmatpush1.bf16.msra.mxu0 %v10040
      %10190 = vmatprep.subr.bf16.mxu0 0
      %10191 = vmatpush1.bf16.msra.mxu0 %v10041
      %10192 = vmatprep.subr.bf16.mxu0 0
      %10193 = vmatpush1.bf16.msra.mxu0 %v10042
      %10194 = vmatprep.subr.bf16.mxu0 0
      %10195 = vmatpush1.bf16.msra.mxu0 %v10043
      %10196 = vmatprep.subr.bf16.mxu0 0
      %10197 = vmatpush1.bf16.msra.mxu0 %v10044
      %10198 = vmatprep.subr.bf16.mxu0 0
      %10199 = vmatpush1.bf16.msra.mxu0 %v10045
      %10200 = vmatprep.subr.bf16.mxu0 0
      %10201 = vmatpush1.bf16.msra.mxu0 %v10046
      %10202 = vmatprep.subr.bf16.mxu0 0
      %10203 = vmatpush1.bf16.msra.mxu0 %v10047
      %10204 = vmatprep.subr.bf16.mxu0 0
      %10205 = vmatpush1.bf16.msra.mxu0 %v10048
      %10206 = vmatprep.subr.bf16.mxu0 0
      %10207 = vmatpush1.bf16.msra.mxu0 %v10049
      %10208 = vmatprep.subr.bf16.mxu0 0
      %10209 = vmatpush1.bf16.msra.mxu0 %v10050
      %10210 = vmatprep.subr.bf16.mxu0 0
      %10211 = vmatpush1.bf16.msra.mxu0 %v10051
      %10212 = vmatprep.mubr.bf16.mxu0 %v1680
      %10213 = vmatmul.mubr.bf16.gmra.mrb[0].mxu0 %v9106
      %v10214 = vpop.f32.mrb[0].mxu0
      %v10215 = vadd.f32 %v9747, %v10214
      %v10216 = vpop.f32.mrb[0].mxu0
      %v10217 = vpop.f32.mrb[0].mxu0
      %v10218 = vadd.f32 %v9747, %v10217
      %v10219 = vpop.f32.mrb[0].mxu0
      %10220 = vmatprep.mubr.bf16.mxu0 %v1681
      %10221 = vmatmul.mubr.bf16.gmra.mrb[0].mxu0 %v9108
      %v10222 = vpop.f32.mrb[0].mxu0
      %v10223 = vadd.f32 %v9747, %v10222
      %v10224 = vpop.f32.mrb[0].mxu0
      %v10225 = vpop.f32.mrb[0].mxu0
      %v10226 = vadd.f32 %v9747, %v10225
      %v10227 = vpop.f32.mrb[0].mxu0
      %10228 = vmatprep.mubr.bf16.mxu0 %v1682
      %10229 = vmatmul.mubr.bf16.gmra.mrb[0].mxu0 %v9110
      %v10230 = vpop.f32.mrb[0].mxu0
      %v10231 = vadd.f32 %v9747, %v10230
      %v10232 = vpop.f32.mrb[0].mxu0
      %v10233 = vpop.f32.mrb[0].mxu0
      %v10234 = vadd.f32 %v9747, %v10233
      %v10235 = vpop.f32.mrb[0].mxu0
      %10236 = vmatprep.mubr.bf16.mxu0 %v1683
      %10237 = vmatmul.mubr.bf16.gmra.mrb[0].mxu0 %v9112
      %v10238 = vpop.f32.mrb[0].mxu0
      %v10239 = vadd.f32 %v9747, %v10238
      %v10240 = vpop.f32.mrb[0].mxu0
      %v10241 = vpop.f32.mrb[0].mxu0
      %v10242 = vadd.f32 %v9747, %v10241
      %v10243 = vpop.f32.mrb[0].mxu0
      %10244 = vmatprep.mubr.bf16.mxu0 %v1684
      %10245 = vmatmul.mubr.bf16.gmra.mrb[0].mxu0 %v9114
      %v10246 = vpop.f32.mrb[0].mxu0
      %v10247 = vadd.f32 %v9747, %v10246
      %v10248 = vpop.f32.mrb[0].mxu0
      %v10249 = vpop.f32.mrb[0].mxu0
      %v10250 = vadd.f32 %v9747, %v10249
      %v10251 = vpop.f32.mrb[0].mxu0
      %10252 = vmatprep.mubr.bf16.mxu0 %v1685
      %10253 = vmatmul.mubr.bf16.gmra.mrb[0].mxu0 %v9116
      %v10254 = vpop.f32.mrb[0].mxu0
      %v10255 = vadd.f32 %v9747, %v10254
      %v10256 = vpop.f32.mrb[0].mxu0
      %v10257 = vpop.f32.mrb[0].mxu0
      %v10258 = vadd.f32 %v9747, %v10257
      %v10259 = vpop.f32.mrb[0].mxu0
      %10260 = vmatprep.mubr.bf16.mxu0 %v1686
      %10261 = vmatmul.mubr.bf16.gmra.mrb[0].mxu0 %v9118
      %v10262 = vpop.f32.mrb[0].mxu0
      %v10263 = vadd.f32 %v9747, %v10262
      %v10264 = vpop.f32.mrb[0].mxu0
      %v10265 = vpop.f32.mrb[0].mxu0
      %v10266 = vadd.f32 %v9747, %v10265
      %v10267 = vpop.f32.mrb[0].mxu0
      %10268 = vmatprep.mubr.bf16.mxu0 %v1687
      %10269 = vmatmul.mubr.bf16.gmra.mrb[0].mxu0 %v9120
      %v10270 = vpop.f32.mrb[0].mxu0
      %v10271 = vadd.f32 %v9747, %v10270
      %v10272 = vpop.f32.mrb[0].mxu0
      %v10273 = vpop.f32.mrb[0].mxu0
      %v10274 = vadd.f32 %v9747, %v10273
      %v10275 = vpop.f32.mrb[0].mxu0
      %10276 = vdwg.mxu0
      %10277 = vmatprep.subr.bf16.mxu0 0
      %10278 = vmatpush1.bf16.msra.mxu0 %v10052
      %10279 = vmatprep.subr.bf16.mxu0 0
      %10280 = vmatpush1.bf16.msra.mxu0 %v10053
      %10281 = vmatprep.subr.bf16.mxu0 0
      %10282 = vmatpush1.bf16.msra.mxu0 %v10054
      %10283 = vmatprep.subr.bf16.mxu0 0
      %10284 = vmatpush1.bf16.msra.mxu0 %v10055
      %10285 = vmatprep.subr.bf16.mxu0 0
      %10286 = vmatpush1.bf16.msra.mxu0 %v10056
      %10287 = vmatprep.subr.bf16.mxu0 0
      %10288 = vmatpush1.bf16.msra.mxu0 %v10057
      %10289 = vmatprep.subr.bf16.mxu0 0
      %10290 = vmatpush1.bf16.msra.mxu0 %v10058
      %10291 = vmatprep.subr.bf16.mxu0 0
      %10292 = vmatpush1.bf16.msra.mxu0 %v10059
      %10293 = vmatprep.subr.bf16.mxu0 0
      %10294 = vmatpush1.bf16.msra.mxu0 %v10060
      %10295 = vmatprep.subr.bf16.mxu0 0
      %10296 = vmatpush1.bf16.msra.mxu0 %v10061
      %10297 = vmatprep.subr.bf16.mxu0 0
      %10298 = vmatpush1.bf16.msra.mxu0 %v10062
      %10299 = vmatprep.subr.bf16.mxu0 0
      %10300 = vmatpush1.bf16.msra.mxu0 %v10063
      %10301 = vmatprep.subr.bf16.mxu0 0
      %10302 = vmatpush1.bf16.msra.mxu0 %v10064
      %10303 = vmatprep.subr.bf16.mxu0 0
      %10304 = vmatpush1.bf16.msra.mxu0 %v10065
      %10305 = vmatprep.subr.bf16.mxu0 0
      %10306 = vmatpush1.bf16.msra.mxu0 %v10066
      %10307 = vmatprep.subr.bf16.mxu0 0
      %10308 = vmatpush1.bf16.msra.mxu0 %v10067
      %10309 = vmatprep.mubr.bf16.mxu0 %v9551
      %10310 = vmatmul.mubr.bf16.gmra.mrb[0].mxu0 %v9107
      %v10311 = vpop.f32.mrb[0].mxu0
      %v10312 = vadd.f32 %v10215, %v10311
      %v10313 = vpop.f32.mrb[0].mxu0
      %v10314 = vpop.f32.mrb[0].mxu0
      %v10315 = vadd.f32 %v10218, %v10314
      %v10316 = vpop.f32.mrb[0].mxu0
      %10317 = vmatprep.mubr.bf16.mxu0 %v9557
      %10318 = vmatmul.mubr.bf16.gmra.mrb[0].mxu0 %v9109
      %v10319 = vpop.f32.mrb[0].mxu0
      %v10320 = vadd.f32 %v10223, %v10319
      %v10321 = vpop.f32.mrb[0].mxu0
      %v10322 = vpop.f32.mrb[0].mxu0
      %v10323 = vadd.f32 %v10226, %v10322
      %v10324 = vpop.f32.mrb[0].mxu0
      %10325 = vmatprep.mubr.bf16.mxu0 %v9563
      %10326 = vmatmul.mubr.bf16.gmra.mrb[0].mxu0 %v9111
      %v10327 = vpop.f32.mrb[0].mxu0
      %v10328 = vadd.f32 %v10231, %v10327
      %v10329 = vpop.f32.mrb[0].mxu0
      %v10330 = vpop.f32.mrb[0].mxu0
      %v10331 = vadd.f32 %v10234, %v10330
      %v10332 = vpop.f32.mrb[0].mxu0
      %10333 = vmatprep.mubr.bf16.mxu0 %v9569
      %10334 = vmatmul.mubr.bf16.gmra.mrb[0].mxu0 %v9113
      %v10335 = vpop.f32.mrb[0].mxu0
      %v10336 = vadd.f32 %v10239, %v10335
      %v10337 = vpop.f32.mrb[0].mxu0
      %v10338 = vpop.f32.mrb[0].mxu0
      %v10339 = vadd.f32 %v10242, %v10338
      %v10340 = vpop.f32.mrb[0].mxu0
      %10341 = vmatprep.mubr.bf16.mxu0 %v9575
      %10342 = vmatmul.mubr.bf16.gmra.mrb[0].mxu0 %v9115
      %v10343 = vpop.f32.mrb[0].mxu0
      %v10344 = vadd.f32 %v10247, %v10343
      %v10345 = vpop.f32.mrb[0].mxu0
      %v10346 = vpop.f32.mrb[0].mxu0
      %v10347 = vadd.f32 %v10250, %v10346
      %v10348 = vpop.f32.mrb[0].mxu0
      %10349 = vmatprep.mubr.bf16.mxu0 %v9581
      %10350 = vmatmul.mubr.bf16.gmra.mrb[0].mxu0 %v9117
      %v10351 = vpop.f32.mrb[0].mxu0
      %v10352 = vadd.f32 %v10255, %v10351
      %v10353 = vpop.f32.mrb[0].mxu0
      %v10354 = vpop.f32.mrb[0].mxu0
      %v10355 = vadd.f32 %v10258, %v10354
      %v10356 = vpop.f32.mrb[0].mxu0
      %10357 = vmatprep.mubr.bf16.mxu0 %v9587
      %10358 = vmatmul.mubr.bf16.gmra.mrb[0].mxu0 %v9119
      %v10359 = vpop.f32.mrb[0].mxu0
      %v10360 = vadd.f32 %v10263, %v10359
      %v10361 = vpop.f32.mrb[0].mxu0
      %v10362 = vpop.f32.mrb[0].mxu0
      %v10363 = vadd.f32 %v10266, %v10362
      %v10364 = vpop.f32.mrb[0].mxu0
      %10365 = vmatprep.mubr.bf16.mxu0 %v9593
      %10366 = vmatmul.mubr.bf16.gmra.mrb[0].mxu0 %v9121
      %v10367 = vpop.f32.mrb[0].mxu0
      %v10368 = vadd.f32 %v10271, %v10367
      %v10369 = vpop.f32.mrb[0].mxu0
      %v10370 = vpop.f32.mrb[0].mxu0
      %v10371 = vadd.f32 %v10274, %v10370
      %v10372 = vpop.f32.mrb[0].mxu0
      %10373 = vdwg.mxu0
      %10374 = vmatprep.subr.bf16.mxu0 0
      %10375 = vmatpush1.bf16.msra.mxu0 %v10068
      %10376 = vmatprep.subr.bf16.mxu0 0
      %10377 = vmatpush1.bf16.msra.mxu0 %v10069
      %10378 = vmatprep.subr.bf16.mxu0 0
      %10379 = vmatpush1.bf16.msra.mxu0 %v10070
      %10380 = vmatprep.subr.bf16.mxu0 0
      %10381 = vmatpush1.bf16.msra.mxu0 %v10071
      %10382 = vmatprep.subr.bf16.mxu0 0
      %10383 = vmatpush1.bf16.msra.mxu0 %v10072
      %10384 = vmatprep.subr.bf16.mxu0 0
      %10385 = vmatpush1.bf16.msra.mxu0 %v10073
      %10386 = vmatprep.subr.bf16.mxu0 0
      %10387 = vmatpush1.bf16.msra.mxu0 %v10074
      %10388 = vmatprep.subr.bf16.mxu0 0
      %10389 = vmatpush1.bf16.msra.mxu0 %v10075
      %10390 = vmatprep.subr.bf16.mxu0 0
      %10391 = vmatpush1.bf16.msra.mxu0 %v10076
      %10392 = vmatprep.subr.bf16.mxu0 0
      %10393 = vmatpush1.bf16.msra.mxu0 %v10077
      %10394 = vmatprep.subr.bf16.mxu0 0
      %10395 = vmatpush1.bf16.msra.mxu0 %v10078
      %10396 = vmatprep.subr.bf16.mxu0 0
      %10397 = vmatpush1.bf16.msra.mxu0 %v10079
      %10398 = vmatprep.subr.bf16.mxu0 0
      %10399 = vmatpush1.bf16.msra.mxu0 %v10080
      %10400 = vmatprep.subr.bf16.mxu0 0
      %10401 = vmatpush1.bf16.msra.mxu0 %v10081
      %10402 = vmatprep.subr.bf16.mxu0 0
      %10403 = vmatpush1.bf16.msra.mxu0 %v10082
      %10404 = vmatprep.subr.bf16.mxu0 0
      %10405 = vmatpush1.bf16.msra.mxu0 %v10083
      %10406 = vmatprep.mubr.bf16.mxu0 %v9553
      %10407 = vmatmul.mubr.bf16.gmra.mrb[0].mxu0 %v9552
      %v10408 = vpop.f32.mrb[0].mxu0
      %v10409 = vadd.f32 %v10312, %v10408
      %v10410 = vpop.f32.mrb[0].mxu0
      %v10411 = vpop.f32.mrb[0].mxu0
      %v10412 = vadd.f32 %v10315, %v10411
      %v10413 = vpop.f32.mrb[0].mxu0
      %10414 = vmatprep.mubr.bf16.mxu0 %v9559
      %10415 = vmatmul.mubr.bf16.gmra.mrb[0].mxu0 %v9558
      %v10416 = vpop.f32.mrb[0].mxu0
      %v10417 = vadd.f32 %v10320, %v10416
      %v10418 = vpop.f32.mrb[0].mxu0
      %v10419 = vpop.f32.mrb[0].mxu0
      %v10420 = vadd.f32 %v10323, %v10419
      %v10421 = vpop.f32.mrb[0].mxu0
      %10422 = vmatprep.mubr.bf16.mxu0 %v9565
      %10423 = vmatmul.mubr.bf16.gmra.mrb[0].mxu0 %v9564
      %v10424 = vpop.f32.mrb[0].mxu0
      %v10425 = vadd.f32 %v10328, %v10424
      %v10426 = vpop.f32.mrb[0].mxu0
      %v10427 = vpop.f32.mrb[0].mxu0
      %v10428 = vadd.f32 %v10331, %v10427
      %v10429 = vpop.f32.mrb[0].mxu0
      %10430 = vmatprep.mubr.bf16.mxu0 %v9571
      %10431 = vmatmul.mubr.bf16.gmra.mrb[0].mxu0 %v9570
      %v10432 = vpop.f32.mrb[0].mxu0
      %v10433 = vadd.f32 %v10336, %v10432
      %v10434 = vpop.f32.mrb[0].mxu0
      %v10435 = vpop.f32.mrb[0].mxu0
      %v10436 = vadd.f32 %v10339, %v10435
      %v10437 = vpop.f32.mrb[0].mxu0
      %10438 = vmatprep.mubr.bf16.mxu0 %v9577
      %10439 = vmatmul.mubr.bf16.gmra.mrb[0].mxu0 %v9576
      %v10440 = vpop.f32.mrb[0].mxu0
      %v10441 = vadd.f32 %v10344, %v10440
      %v10442 = vpop.f32.mrb[0].mxu0
      %v10443 = vpop.f32.mrb[0].mxu0
      %v10444 = vadd.f32 %v10347, %v10443
      %v10445 = vpop.f32.mrb[0].mxu0
      %10446 = vmatprep.mubr.bf16.mxu0 %v9583
      %10447 = vmatmul.mubr.bf16.gmra.mrb[0].mxu0 %v9582
      %v10448 = vpop.f32.mrb[0].mxu0
      %v10449 = vadd.f32 %v10352, %v10448
      %v10450 = vpop.f32.mrb[0].mxu0
      %v10451 = vpop.f32.mrb[0].mxu0
      %v10452 = vadd.f32 %v10355, %v10451
      %v10453 = vpop.f32.mrb[0].mxu0
      %10454 = vmatprep.mubr.bf16.mxu0 %v9589
      %10455 = vmatmul.mubr.bf16.gmra.mrb[0].mxu0 %v9588
      %v10456 = vpop.f32.mrb[0].mxu0
      %v10457 = vadd.f32 %v10360, %v10456
      %v10458 = vpop.f32.mrb[0].mxu0
      %v10459 = vpop.f32.mrb[0].mxu0
      %v10460 = vadd.f32 %v10363, %v10459
      %v10461 = vpop.f32.mrb[0].mxu0
      %10462 = vmatprep.mubr.bf16.mxu0 %v9595
      %10463 = vmatmul.mubr.bf16.gmra.mrb[0].mxu0 %v9594
      %v10464 = vpop.f32.mrb[0].mxu0
      %v10465 = vadd.f32 %v10368, %v10464
      %v10466 = vpop.f32.mrb[0].mxu0
      %v10467 = vpop.f32.mrb[0].mxu0
      %v10468 = vadd.f32 %v10371, %v10467
      %v10469 = vpop.f32.mrb[0].mxu0
      %10470 = vdwg.mxu0
      %10471 = vmatprep.subr.bf16.mxu0 0
      %10472 = vmatpush1.bf16.msra.mxu0 %v10084
      %10473 = vmatprep.subr.bf16.mxu0 0
      %10474 = vmatpush1.bf16.msra.mxu0 %v10085
      %10475 = vmatprep.subr.bf16.mxu0 0
      %10476 = vmatpush1.bf16.msra.mxu0 %v10086
      %10477 = vmatprep.subr.bf16.mxu0 0
      %10478 = vmatpush1.bf16.msra.mxu0 %v10087
      %10479 = vmatprep.subr.bf16.mxu0 0
      %10480 = vmatpush1.bf16.msra.mxu0 %v10088
      %10481 = vmatprep.subr.bf16.mxu0 0
      %10482 = vmatpush1.bf16.msra.mxu0 %v10089
      %10483 = vmatprep.subr.bf16.mxu0 0
      %10484 = vmatpush1.bf16.msra.mxu0 %v10090
      %10485 = vmatprep.subr.bf16.mxu0 0
      %10486 = vmatpush1.bf16.msra.mxu0 %v10091
      %10487 = vmatprep.subr.bf16.mxu0 0
      %10488 = vmatpush1.bf16.msra.mxu0 %v10092
      %10489 = vmatprep.subr.bf16.mxu0 0
      %10490 = vmatpush1.bf16.msra.mxu0 %v10093
      %10491 = vmatprep.subr.bf16.mxu0 0
      %10492 = vmatpush1.bf16.msra.mxu0 %v10094
      %10493 = vmatprep.subr.bf16.mxu0 0
      %10494 = vmatpush1.bf16.msra.mxu0 %v10095
      %10495 = vmatprep.subr.bf16.mxu0 0
      %10496 = vmatpush1.bf16.msra.mxu0 %v10096
      %10497 = vmatprep.subr.bf16.mxu0 0
      %10498 = vmatpush1.bf16.msra.mxu0 %v10097
      %10499 = vmatprep.subr.bf16.mxu0 0
      %10500 = vmatpush1.bf16.msra.mxu0 %v10098
      %10501 = vmatprep.subr.bf16.mxu0 0
      %10502 = vmatpush1.bf16.msra.mxu0 %v10099
      %10503 = vmatprep.mubr.bf16.mxu0 %v9555
      %10504 = vmatmul.mubr.bf16.gmra.mrb[0].mxu0 %v9554
      %v10505 = vpop.f32.mrb[0].mxu0
      %v10506 = vadd.f32 %v10409, %v10505
      %v10507 = vpop.f32.mrb[0].mxu0
      %v10508 = vpop.f32.mrb[0].mxu0
      %v10509 = vadd.f32 %v10412, %v10508
      %v10510 = vpop.f32.mrb[0].mxu0
      %10511 = vmatprep.mubr.bf16.mxu0 %v9561
      %10512 = vmatmul.mubr.bf16.gmra.mrb[0].mxu0 %v9560
      %v10513 = vpop.f32.mrb[0].mxu0
      %v10514 = vadd.f32 %v10417, %v10513
      %v10515 = vpop.f32.mrb[0].mxu0
      %v10516 = vpop.f32.mrb[0].mxu0
      %v10517 = vadd.f32 %v10420, %v10516
      %v10518 = vpop.f32.mrb[0].mxu0
      %10519 = vmatprep.mubr.bf16.mxu0 %v9567
      %10520 = vmatmul.mubr.bf16.gmra.mrb[0].mxu0 %v9566
      %v10521 = vpop.f32.mrb[0].mxu0
      %v10522 = vadd.f32 %v10425, %v10521
      %v10523 = vpop.f32.mrb[0].mxu0
      %v10524 = vpop.f32.mrb[0].mxu0
      %v10525 = vadd.f32 %v10428, %v10524
      %v10526 = vpop.f32.mrb[0].mxu0
      %10527 = vmatprep.mubr.bf16.mxu0 %v9573
      %10528 = vmatmul.mubr.bf16.gmra.mrb[0].mxu0 %v9572
      %v10529 = vpop.f32.mrb[0].mxu0
      %v10530 = vadd.f32 %v10433, %v10529
      %v10531 = vpop.f32.mrb[0].mxu0
      %v10532 = vpop.f32.mrb[0].mxu0
      %v10533 = vadd.f32 %v10436, %v10532
      %v10534 = vpop.f32.mrb[0].mxu0
      %10535 = vmatprep.mubr.bf16.mxu0 %v9579
      %10536 = vmatmul.mubr.bf16.gmra.mrb[0].mxu0 %v9578
      %v10537 = vpop.f32.mrb[0].mxu0
      %v10538 = vadd.f32 %v10441, %v10537
      %v10539 = vpop.f32.mrb[0].mxu0
      %v10540 = vpop.f32.mrb[0].mxu0
      %v10541 = vadd.f32 %v10444, %v10540
      %v10542 = vpop.f32.mrb[0].mxu0
      %10543 = vmatprep.mubr.bf16.mxu0 %v9585
      %10544 = vmatmul.mubr.bf16.gmra.mrb[0].mxu0 %v9584
      %v10545 = vpop.f32.mrb[0].mxu0
      %v10546 = vadd.f32 %v10449, %v10545
      %v10547 = vpop.f32.mrb[0].mxu0
      %v10548 = vpop.f32.mrb[0].mxu0
      %v10549 = vadd.f32 %v10452, %v10548
      %v10550 = vpop.f32.mrb[0].mxu0
      %10551 = vmatprep.mubr.bf16.mxu0 %v9591
      %10552 = vmatmul.mubr.bf16.gmra.mrb[0].mxu0 %v9590
      %v10553 = vpop.f32.mrb[0].mxu0
      %v10554 = vadd.f32 %v10457, %v10553
      %v10555 = vpop.f32.mrb[0].mxu0
      %v10556 = vpop.f32.mrb[0].mxu0
      %v10557 = vadd.f32 %v10460, %v10556
      %v10558 = vpop.f32.mrb[0].mxu0
      %10559 = vmatprep.mubr.bf16.mxu0 %v9597
      %10560 = vmatmul.mubr.bf16.gmra.mrb[0].mxu0 %v9596
      %v10561 = vpop.f32.mrb[0].mxu0
      %v10562 = vadd.f32 %v10465, %v10561
      %v10563 = vpop.f32.mrb[0].mxu0
      %v10564 = vpop.f32.mrb[0].mxu0
      %v10565 = vadd.f32 %v10468, %v10564
      %v10566 = vpop.f32.mrb[0].mxu0
      %10567 = vdwg.mxu0
      %10568 = vmatprep.subr.bf16.mxu0 0
      %10569 = vmatpush1.bf16.msra.mxu0 %v10100
      %10570 = vmatprep.subr.bf16.mxu0 0
      %10571 = vmatpush1.bf16.msra.mxu0 %v10101
      %10572 = vmatprep.subr.bf16.mxu0 0
      %10573 = vmatpush1.bf16.msra.mxu0 %v10102
      %10574 = vmatprep.subr.bf16.mxu0 0
      %10575 = vmatpush1.bf16.msra.mxu0 %v10103
      %10576 = vmatprep.subr.bf16.mxu0 0
      %10577 = vmatpush1.bf16.msra.mxu0 %v10104
      %10578 = vmatprep.subr.bf16.mxu0 0
      %10579 = vmatpush1.bf16.msra.mxu0 %v10105
      %10580 = vmatprep.subr.bf16.mxu0 0
      %10581 = vmatpush1.bf16.msra.mxu0 %v10106
      %10582 = vmatprep.subr.bf16.mxu0 0
      %10583 = vmatpush1.bf16.msra.mxu0 %v10107
      %10584 = vmatprep.subr.bf16.mxu0 0
      %10585 = vmatpush1.bf16.msra.mxu0 0
      %10586 = vmatprep.subr.bf16.mxu0 0
      %10587 = vmatpush1.bf16.msra.mxu0 0
      %10588 = vmatprep.subr.bf16.mxu0 0
      %10589 = vmatpush1.bf16.msra.mxu0 0
      %10590 = vmatprep.subr.bf16.mxu0 0
      %10591 = vmatpush1.bf16.msra.mxu0 0
      %10592 = vmatprep.subr.bf16.mxu0 0
      %10593 = vmatpush1.bf16.msra.mxu0 0
      %10594 = vmatprep.subr.bf16.mxu0 0
      %10595 = vmatpush1.bf16.msra.mxu0 0
      %10596 = vmatprep.subr.bf16.mxu0 0
      %10597 = vmatpush1.bf16.msra.mxu0 0
      %10598 = vmatprep.subr.bf16.mxu0 0
      %10599 = vmatpush1.bf16.msra.mxu0 0
      %10600 = vmatprep.mubr.bf16.mxu0 0
      %10601 = vmatmul.mubr.bf16.gmra.mrb[0].mxu0 %v9556
      %v10602 = vpop.f32.mrb[0].mxu0
      %v10603 = vadd.f32 %v10506, %v10602
      %v10604 = vpop.f32.mrb[0].mxu0
      %v10605 = vpop.f32.mrb[0].mxu0
      %v10606 = vadd.f32 %v10509, %v10605
      %v10607 = vpop.f32.mrb[0].mxu0
      %10608 = vmatprep.mubr.bf16.mxu0 0
      %10609 = vmatmul.mubr.bf16.gmra.mrb[0].mxu0 %v9562
      %v10610 = vpop.f32.mrb[0].mxu0
      %v10611 = vadd.f32 %v10514, %v10610
      %v10612 = vpop.f32.mrb[0].mxu0
      %v10613 = vpop.f32.mrb[0].mxu0
      %v10614 = vadd.f32 %v10517, %v10613
      %v10615 = vpop.f32.mrb[0].mxu0
      %10616 = vmatprep.mubr.bf16.mxu0 0
      %10617 = vmatmul.mubr.bf16.gmra.mrb[0].mxu0 %v9568
      %v10618 = vpop.f32.mrb[0].mxu0
      %v10619 = vadd.f32 %v10522, %v10618
      %v10620 = vpop.f32.mrb[0].mxu0
      %v10621 = vpop.f32.mrb[0].mxu0
      %v10622 = vadd.f32 %v10525, %v10621
      %v10623 = vpop.f32.mrb[0].mxu0
      %10624 = vmatprep.mubr.bf16.mxu0 0
      %10625 = vmatmul.mubr.bf16.gmra.mrb[0].mxu0 %v9574
      %v10626 = vpop.f32.mrb[0].mxu0
      %v10627 = vadd.f32 %v10530, %v10626
      %v10628 = vpop.f32.mrb[0].mxu0
      %v10629 = vpop.f32.mrb[0].mxu0
      %v10630 = vadd.f32 %v10533, %v10629
      %v10631 = vpop.f32.mrb[0].mxu0
      %10632 = vmatprep.mubr.bf16.mxu0 0
      %10633 = vmatmul.mubr.bf16.gmra.mrb[0].mxu0 %v9580
      %v10634 = vpop.f32.mrb[0].mxu0
      %v10635 = vadd.f32 %v10538, %v10634
      %v10636 = vpop.f32.mrb[0].mxu0
      %v10637 = vpop.f32.mrb[0].mxu0
      %v10638 = vadd.f32 %v10541, %v10637
      %v10639 = vpop.f32.mrb[0].mxu0
      %10640 = vmatprep.mubr.bf16.mxu0 0
      %10641 = vmatmul.mubr.bf16.gmra.mrb[0].mxu0 %v9586
      %v10642 = vpop.f32.mrb[0].mxu0
      %v10643 = vadd.f32 %v10546, %v10642
      %v10644 = vpop.f32.mrb[0].mxu0
      %v10645 = vpop.f32.mrb[0].mxu0
      %v10646 = vadd.f32 %v10549, %v10645
      %v10647 = vpop.f32.mrb[0].mxu0
      %10648 = vmatprep.mubr.bf16.mxu0 0
      %10649 = vmatmul.mubr.bf16.gmra.mrb[0].mxu0 %v9592
      %v10650 = vpop.f32.mrb[0].mxu0
      %v10651 = vadd.f32 %v10554, %v10650
      %v10652 = vpop.f32.mrb[0].mxu0
      %v10653 = vpop.f32.mrb[0].mxu0
      %v10654 = vadd.f32 %v10557, %v10653
      %v10655 = vpop.f32.mrb[0].mxu0
      %10656 = vmatprep.mubr.bf16.mxu0 0
      %10657 = vmatmul.mubr.bf16.gmra.mrb[0].mxu0 %v9598
      %v10658 = vpop.f32.mrb[0].mxu0
      %v10659 = vadd.f32 %v10562, %v10658
      %v10660 = vpop.f32.mrb[0].mxu0
      %v10661 = vpop.f32.mrb[0].mxu0
      %v10662 = vadd.f32 %v10565, %v10661
      %v10663 = vpop.f32.mrb[0].mxu0
      %10664 = vdwg.mxu0
      %10665 = vst [vmem:[#allocation2] sm:$0x1] 0.0
      %10666 = vst [vmem:[#allocation2 + $0x101] sm:$0x1] 0.0
      %v10683 = vrot.slane %v10603, 7
      %v10684 = vrot.slane %v10606, 7
      %v10685 = vsel %vm371, %v10683, %v10684
      %v10686 = vrot.slane %v10611, 7
      %v10687 = vsel %vm371, %v10684, %v10686
      %v10688 = vrot.slane %v10614, 7
      %v10689 = vsel %vm371, %v10686, %v10688
      %v10690 = vrot.slane %v10619, 7
      %v10691 = vsel %vm371, %v10688, %v10690
      %v10692 = vrot.slane %v10622, 7
      %v10693 = vsel %vm371, %v10690, %v10692
      %v10694 = vrot.slane %v10627, 7
      %v10695 = vsel %vm371, %v10692, %v10694
      %v10696 = vrot.slane %v10630, 7
      %v10697 = vsel %vm371, %v10694, %v10696
      %v10698 = vrot.slane %v10635, 7
      %v10699 = vsel %vm371, %v10696, %v10698
      %v10700 = vrot.slane %v10638, 7
      %v10701 = vsel %vm371, %v10698, %v10700
      %v10702 = vrot.slane %v10643, 7
      %v10703 = vsel %vm371, %v10700, %v10702
      %v10704 = vrot.slane %v10646, 7
      %v10705 = vsel %vm371, %v10702, %v10704
      %v10706 = vrot.slane %v10651, 7
      %v10707 = vsel %vm371, %v10704, %v10706
      %v10708 = vrot.slane %v10654, 7
      %v10709 = vsel %vm371, %v10706, %v10708
      %v10710 = vrot.slane %v10659, 7
      %v10711 = vsel %vm371, %v10708, %v10710
      %v10712 = vrot.slane %v10662, 7
      %v10713 = vsel %vm371, %v10710, %v10712
      %10731 = vst [vmem:[#allocation2] sm:$0xfe] %v10683
      %10732 = vst [vmem:[#allocation2 + $0x10] sm:$0xff] %v10685
      %10733 = vst [vmem:[#allocation2 + $0x20] sm:$0xff] %v10687
      %10734 = vst [vmem:[#allocation2 + $0x30] sm:$0xff] %v10689
      %10735 = vst [vmem:[#allocation2 + $0x40] sm:$0xff] %v10691
      %10736 = vst [vmem:[#allocation2 + $0x50] sm:$0xff] %v10693
      %10737 = vst [vmem:[#allocation2 + $0x60] sm:$0xff] %v10695
      %10738 = vst [vmem:[#allocation2 + $0x70] sm:$0xff] %v10697
      %10739 = vst [vmem:[#allocation2 + $0x80] sm:$0xff] %v10699
      %10740 = vst [vmem:[#allocation2 + $0x90] sm:$0xff] %v10701
      %10741 = vst [vmem:[#allocation2 + $0xa0] sm:$0xff] %v10703
      %10742 = vst [vmem:[#allocation2 + $0xb0] sm:$0xff] %v10705
      %10743 = vst [vmem:[#allocation2 + $0xc0] sm:$0xff] %v10707
      %10744 = vst [vmem:[#allocation2 + $0xd0] sm:$0xff] %v10709
      %10745 = vst [vmem:[#allocation2 + $0xe0] sm:$0xff] %v10711
      %10746 = vst [vmem:[#allocation2 + $0xf0] sm:$0xff] %v10713
      %10747 = vst [vmem:[#allocation2 + $0x100] sm:$0x1] %v10712
      %v10748 = vld [vmem:[#allocation2] sm:$0xff]
      %v10749 = vld [vmem:[#allocation2 + $0x10] sm:$0xff]
      %v10750 = vld [vmem:[#allocation2 + $0x20] sm:$0xff]
      %v10751 = vld [vmem:[#allocation2 + $0x30] sm:$0xff]
      %v10752 = vld [vmem:[#allocation2 + $0x40] sm:$0xff]
      %v10753 = vld [vmem:[#allocation2 + $0x50] sm:$0xff]
      %v10754 = vld [vmem:[#allocation2 + $0x60] sm:$0xff]
      %v10755 = vld [vmem:[#allocation2 + $0x70] sm:$0xff]
      %v10756 = vld [vmem:[#allocation2 + $0x80] sm:$0xff]
      %v10757 = vld [vmem:[#allocation2 + $0x90] sm:$0xff]
      %v10758 = vld [vmem:[#allocation2 + $0xa0] sm:$0xff]
      %v10759 = vld [vmem:[#allocation2 + $0xb0] sm:$0xff]
      %v10760 = vld [vmem:[#allocation2 + $0xc0] sm:$0xff]
      %v10761 = vld [vmem:[#allocation2 + $0xd0] sm:$0xff]
      %v10762 = vld [vmem:[#allocation2 + $0xe0] sm:$0xff]
      %v10763 = vld [vmem:[#allocation2 + $0xf0] sm:$0xff]
      %v10764 = vld [vmem:[#allocation2] sm:$0xfc]
      %v10765 = vld [vmem:[#allocation2 + $0x100] sm:$0x3]
      %v10766 = vsel %vm488, 0.0, %v10748
      %v10767 = vsel %vm489, 0.0, %v10749
      %v10768 = vsel %vm490, 0.0, %v10750
      %v10769 = vsel %vm491, 0.0, %v10751
      %v10770 = vsel %vm492, 0.0, %v10752
      %v10771 = vsel %vm493, 0.0, %v10753
      %v10772 = vsel %vm494, 0.0, %v10754
      %v10773 = vsel %vm495, 0.0, %v10755
      %v10774 = vsel %vm496, 0.0, %v10756
      %v10775 = vsel %vm497, 0.0, %v10757
      %v10776 = vsel %vm498, 0.0, %v10758
      %v10777 = vsel %vm499, 0.0, %v10759
      %v10778 = vsel %vm500, 0.0, %v10760
      %v10779 = vsel %vm501, 0.0, %v10761
      %v10780 = vsel %vm502, 0.0, %v10762
      %v10781 = vsel %vm503, 0.0, %v10763
      %v10799 = vrot.slane %v10764, 2
      %v10800 = vrot.slane %v10749, 2
      %v10801 = vsel %vm553, %v10799, %v10800
      %v10802 = vrot.slane %v10750, 2
      %v10803 = vsel %vm553, %v10800, %v10802
      %v10804 = vrot.slane %v10751, 2
      %v10805 = vsel %vm553, %v10802, %v10804
      %v10806 = vrot.slane %v10752, 2
      %v10807 = vsel %vm553, %v10804, %v10806
      %v10808 = vrot.slane %v10753, 2
      %v10809 = vsel %vm553, %v10806, %v10808
      %v10810 = vrot.slane %v10754, 2
      %v10811 = vsel %vm553, %v10808, %v10810
      %v10812 = vrot.slane %v10755, 2
      %v10813 = vsel %vm553, %v10810, %v10812
      %v10814 = vrot.slane %v10756, 2
      %v10815 = vsel %vm553, %v10812, %v10814
      %v10816 = vrot.slane %v10757, 2
      %v10817 = vsel %vm553, %v10814, %v10816
      %v10818 = vrot.slane %v10758, 2
      %v10819 = vsel %vm553, %v10816, %v10818
      %v10820 = vrot.slane %v10759, 2
      %v10821 = vsel %vm553, %v10818, %v10820
      %v10822 = vrot.slane %v10760, 2
      %v10823 = vsel %vm553, %v10820, %v10822
      %v10824 = vrot.slane %v10761, 2
      %v10825 = vsel %vm553, %v10822, %v10824
      %v10826 = vrot.slane %v10762, 2
      %v10827 = vsel %vm553, %v10824, %v10826
      %v10828 = vrot.slane %v10763, 2
      %v10829 = vsel %vm553, %v10826, %v10828
      %v10830 = vrot.slane %v10765, 2
      %v10831 = vsel %vm553, %v10828, %v10830
      %v10848 = vsel %vm520, 0.0, %v10801
      %v10849 = vsel %vm521, 0.0, %v10803
      %v10850 = vsel %vm522, 0.0, %v10805
      %v10851 = vsel %vm523, 0.0, %v10807
      %v10852 = vsel %vm524, 0.0, %v10809
      %v10853 = vsel %vm525, 0.0, %v10811
      %v10854 = vsel %vm526, 0.0, %v10813
      %v10855 = vsel %vm527, 0.0, %v10815
      %v10856 = vsel %vm528, 0.0, %v10817
      %v10857 = vsel %vm529, 0.0, %v10819
      %v10858 = vsel %vm530, 0.0, %v10821
      %v10859 = vsel %vm531, 0.0, %v10823
      %v10860 = vsel %vm532, 0.0, %v10825
      %v10861 = vsel %vm533, 0.0, %v10827
      %v10862 = vsel %vm534, 0.0, %v10829
      %v10863 = vsel %vm535, 0.0, %v10831
      %v10864 = vpack.c.bf16 %v10767, %v10766
      %v10865 = vpack.c.bf16 %v10606, %v10603
      %v10866 = vpack.c.bf16 %v10849, %v10848
      %v10867 = vpack.c.bf16 %v10769, %v10768
      %v10868 = vpack.c.bf16 %v10614, %v10611
      %v10869 = vpack.c.bf16 %v10851, %v10850
      %v10870 = vpack.c.bf16 %v10771, %v10770
      %v10871 = vpack.c.bf16 %v10622, %v10619
      %v10872 = vpack.c.bf16 %v10853, %v10852
      %v10873 = vpack.c.bf16 %v10773, %v10772
      %v10874 = vpack.c.bf16 %v10630, %v10627
      %v10875 = vpack.c.bf16 %v10855, %v10854
      %v10876 = vpack.c.bf16 %v10775, %v10774
      %v10877 = vpack.c.bf16 %v10638, %v10635
      %v10878 = vpack.c.bf16 %v10857, %v10856
      %v10879 = vpack.c.bf16 %v10777, %v10776
      %v10880 = vpack.c.bf16 %v10646, %v10643
      %v10881 = vpack.c.bf16 %v10859, %v10858
      %v10882 = vpack.c.bf16 %v10779, %v10778
      %v10883 = vpack.c.bf16 %v10654, %v10651
      %v10884 = vpack.c.bf16 %v10861, %v10860
      %v10885 = vpack.c.bf16 %v10781, %v10780
      %v10886 = vpack.c.bf16 %v10662, %v10659
      %v10887 = vpack.c.bf16 %v10863, %v10862
      %v10888 = vld [vmem:[%s1 + $0xd20] sm:$0xf]
      %v10889 = vld [vmem:[%s1 + $0xd24] sm:$0xf]
      %v10890 = vld [vmem:[%s1 + $0xd28] sm:$0xf]
      %v10891 = vld [vmem:[%s1 + $0xd2c] sm:$0xf]
      %v10892 = vld [vmem:[%s1 + $0xd30] sm:$0xf]
      %v10893 = vld [vmem:[%s1 + $0xd34] sm:$0xf]
      %v10894 = vld [vmem:[%s1 + $0xd38] sm:$0xf]
      %v10895 = vld [vmem:[%s1 + $0xd3c] sm:$0xf]
      %v10896 = vld [vmem:[%s1 + $0xd40] sm:$0xf]
      %v10897 = vld [vmem:[%s1 + $0xd44] sm:$0xf]
      %v10898 = vld [vmem:[%s1 + $0xd48] sm:$0xf]
      %v10899 = vld [vmem:[%s1 + $0xd4c] sm:$0xf]
      %v10900 = vld [vmem:[%s1 + $0xd50] sm:$0xf]
      %v10901 = vld [vmem:[%s1 + $0xd54] sm:$0xf]
      %v10902 = vld [vmem:[%s1 + $0xd58] sm:$0xf]
      %v10903 = vld [vmem:[%s1 + $0xd5c] sm:$0xf]
      %v10904 = vld [vmem:[%s1 + $0xd60] sm:$0xf]
      %v10905 = vld [vmem:[%s1 + $0xd64] sm:$0xf]
      %v10906 = vld [vmem:[%s1 + $0xd68] sm:$0xf]
      %v10907 = vld [vmem:[%s1 + $0xd6c] sm:$0xf]
      %v10908 = vld [vmem:[%s1 + $0xd70] sm:$0xf]
      %v10909 = vld [vmem:[%s1 + $0xd74] sm:$0xf]
      %v10910 = vld [vmem:[%s1 + $0xd78] sm:$0xf]
      %v10911 = vld [vmem:[%s1 + $0xd7c] sm:$0xf]
      %v10912 = vld [vmem:[%s1 + $0xd80] sm:$0xf]
      %v10913 = vld [vmem:[%s1 + $0xd84] sm:$0xf]
      %v10914 = vld [vmem:[%s1 + $0xd88] sm:$0xf]
      %v10915 = vld [vmem:[%s1 + $0xd8c] sm:$0xf]
      %v10916 = vld [vmem:[%s1 + $0xd90] sm:$0xf]
      %v10917 = vld [vmem:[%s1 + $0xd94] sm:$0xf]
      %v10918 = vld [vmem:[%s1 + $0xd98] sm:$0xf]
      %v10919 = vld [vmem:[%s1 + $0xd9c] sm:$0xf]
      %v10920 = vld [vmem:[%s1 + $0xda0] sm:$0xf]
      %v10921 = vld [vmem:[%s1 + $0xda4] sm:$0xf]
      %v10922 = vld [vmem:[%s1 + $0xda8] sm:$0xf]
      %v10923 = vld [vmem:[%s1 + $0xdac] sm:$0xf]
      %v10924 = vld [vmem:[%s1 + $0xdb0] sm:$0xf]
      %v10925 = vld [vmem:[%s1 + $0xdb4] sm:$0xf]
      %v10926 = vld [vmem:[%s1 + $0xdb8] sm:$0xf]
      %v10927 = vld [vmem:[%s1 + $0xdbc] sm:$0xf]
      %v10928 = vld [vmem:[%s1 + $0xdc0] sm:$0xf]
      %v10929 = vld [vmem:[%s1 + $0xdc4] sm:$0xf]
      %v10930 = vld [vmem:[%s1 + $0xdc8] sm:$0xf]
      %v10931 = vld [vmem:[%s1 + $0xdcc] sm:$0xf]
      %v10932 = vld [vmem:[%s1 + $0xdd0] sm:$0xf]
      %v10933 = vld [vmem:[%s1 + $0xdd4] sm:$0xf]
      %v10934 = vld [vmem:[%s1 + $0xdd8] sm:$0xf]
      %v10935 = vld [vmem:[%s1 + $0xddc] sm:$0xf]
      %v10936 = vld [vmem:[%s2 + $0xd] sm:$0x1]
      %v10937 = vlaneseq
      %v10938 = vshrl.u32 %v10937, 7
      %v10939 = vsub.s32 0, %v10938
      %v10940 = vrot.slane %v10936, %v10939
      %v10989 = vunpack.c.l.b16 %v10888
      %v10990 = vunpack.c.l.b16 %v10889
      %v10991 = vunpack.c.l.b16 %v10890
      %v10992 = vunpack.c.l.b16 %v10891
      %v10993 = vunpack.c.l.b16 %v10892
      %v10994 = vunpack.c.l.b16 %v10893
      %v10995 = vunpack.c.l.b16 %v10894
      %v10996 = vunpack.c.l.b16 %v10895
      %v10997 = vunpack.c.l.b16 %v10896
      %v10998 = vunpack.c.l.b16 %v10897
      %v10999 = vunpack.c.l.b16 %v10898
      %v11000 = vunpack.c.l.b16 %v10899
      %v11001 = vunpack.c.l.b16 %v10900
      %v11002 = vunpack.c.l.b16 %v10901
      %v11003 = vunpack.c.l.b16 %v10902
      %v11004 = vunpack.c.l.b16 %v10903
      %v11005 = vunpack.c.l.b16 %v10904
      %v11006 = vunpack.c.l.b16 %v10905
      %v11007 = vunpack.c.l.b16 %v10906
      %v11008 = vunpack.c.l.b16 %v10907
      %v11009 = vunpack.c.l.b16 %v10908
      %v11010 = vunpack.c.l.b16 %v10909
      %v11011 = vunpack.c.l.b16 %v10910
      %v11012 = vunpack.c.l.b16 %v10911
      %v11013 = vunpack.c.l.b16 %v10912
      %v11014 = vunpack.c.l.b16 %v10913
      %v11015 = vunpack.c.l.b16 %v10914
      %v11016 = vunpack.c.l.b16 %v10915
      %v11017 = vunpack.c.l.b16 %v10916
      %v11018 = vunpack.c.l.b16 %v10917
      %v11019 = vunpack.c.l.b16 %v10918
      %v11020 = vunpack.c.l.b16 %v10919
      %v11021 = vunpack.c.l.b16 %v10920
      %v11022 = vunpack.c.l.b16 %v10921
      %v11023 = vunpack.c.l.b16 %v10922
      %v11024 = vunpack.c.l.b16 %v10923
      %v11025 = vunpack.c.l.b16 %v10924
      %v11026 = vunpack.c.l.b16 %v10925
      %v11027 = vunpack.c.l.b16 %v10926
      %v11028 = vunpack.c.l.b16 %v10927
      %v11029 = vunpack.c.l.b16 %v10928
      %v11030 = vunpack.c.l.b16 %v10929
      %v11031 = vunpack.c.l.b16 %v10930
      %v11032 = vunpack.c.l.b16 %v10931
      %v11033 = vunpack.c.l.b16 %v10932
      %v11034 = vunpack.c.l.b16 %v10933
      %v11035 = vunpack.c.l.b16 %v10934
      %v11036 = vunpack.c.l.b16 %v10935
      %v11037 = vpack.c.b16 %v10990, %v10989
      %v11038 = vpack.c.b16 %v10992, %v10991
      %v11039 = vpack.c.b16 %v10994, %v10993
      %v11040 = vpack.c.b16 %v10996, %v10995
      %v11041 = vpack.c.b16 %v10998, %v10997
      %v11042 = vpack.c.b16 %v11000, %v10999
      %v11043 = vpack.c.b16 %v11002, %v11001
      %v11044 = vpack.c.b16 %v11004, %v11003
      %v11045 = vpack.c.b16 %v11006, %v11005
      %v11046 = vpack.c.b16 %v11008, %v11007
      %v11047 = vpack.c.b16 %v11010, %v11009
      %v11048 = vpack.c.b16 %v11012, %v11011
      %v11049 = vpack.c.b16 %v11014, %v11013
      %v11050 = vpack.c.b16 %v11016, %v11015
      %v11051 = vpack.c.b16 %v11018, %v11017
      %v11052 = vpack.c.b16 %v11020, %v11019
      %v11053 = vpack.c.b16 %v11022, %v11021
      %v11054 = vpack.c.b16 %v11024, %v11023
      %v11055 = vpack.c.b16 %v11026, %v11025
      %v11056 = vpack.c.b16 %v11028, %v11027
      %v11057 = vpack.c.b16 %v11030, %v11029
      %v11058 = vpack.c.b16 %v11032, %v11031
      %v11059 = vpack.c.b16 %v11034, %v11033
      %v11060 = vpack.c.b16 %v11036, %v11035
      %11085 = vmatprep.subr.bf16.mxu0 0
      %11086 = vmatpush1.bf16.msra.mxu0 %v11037
      %11087 = vmatprep.subr.bf16.mxu0 0
      %11088 = vmatpush1.bf16.msra.mxu0 %v11038
      %11089 = vmatprep.subr.bf16.mxu0 0
      %11090 = vmatpush1.bf16.msra.mxu0 %v11039
      %11091 = vmatprep.subr.bf16.mxu0 0
      %11092 = vmatpush1.bf16.msra.mxu0 %v11040
      %11093 = vmatprep.subr.bf16.mxu0 0
      %11094 = vmatpush1.bf16.msra.mxu0 %v11041
      %11095 = vmatprep.subr.bf16.mxu0 0
      %11096 = vmatpush1.bf16.msra.mxu0 %v11042
      %11097 = vmatprep.subr.bf16.mxu0 0
      %11098 = vmatpush1.bf16.msra.mxu0 %v11043
      %11099 = vmatprep.subr.bf16.mxu0 0
      %11100 = vmatpush1.bf16.msra.mxu0 %v11044
      %11101 = vmatprep.subr.bf16.mxu0 0
      %11102 = vmatpush1.bf16.msra.mxu0 %v11045
      %11103 = vmatprep.subr.bf16.mxu0 0
      %11104 = vmatpush1.bf16.msra.mxu0 %v11046
      %11105 = vmatprep.subr.bf16.mxu0 0
      %11106 = vmatpush1.bf16.msra.mxu0 %v11047
      %11107 = vmatprep.subr.bf16.mxu0 0
      %11108 = vmatpush1.bf16.msra.mxu0 %v11048
      %11109 = vmatprep.subr.bf16.mxu0 0
      %11110 = vmatpush1.bf16.msra.mxu0 %v11049
      %11111 = vmatprep.subr.bf16.mxu0 0
      %11112 = vmatpush1.bf16.msra.mxu0 %v11050
      %11113 = vmatprep.subr.bf16.mxu0 0
      %11114 = vmatpush1.bf16.msra.mxu0 %v11051
      %11115 = vmatprep.subr.bf16.mxu0 0
      %11116 = vmatpush1.bf16.msra.mxu0 %v11052
      %11117 = vmatprep.mubr.bf16.mxu0 %v10865
      %11118 = vmatmul.mubr.bf16.gmra.mrb[0].mxu0 %v10864
      %v11119 = vpop.f32.mrb[0].mxu0
      %v11120 = vadd.f32 %v10940, %v11119
      %v11121 = vpop.f32.mrb[0].mxu0
      %v11122 = vpop.f32.mrb[0].mxu0
      %v11123 = vadd.f32 %v10940, %v11122
      %v11124 = vpop.f32.mrb[0].mxu0
      %11125 = vmatprep.mubr.bf16.mxu0 %v10868
      %11126 = vmatmul.mubr.bf16.gmra.mrb[0].mxu0 %v10867
      %v11127 = vpop.f32.mrb[0].mxu0
      %v11128 = vadd.f32 %v10940, %v11127
      %v11129 = vpop.f32.mrb[0].mxu0
      %v11130 = vpop.f32.mrb[0].mxu0
      %v11131 = vadd.f32 %v10940, %v11130
      %v11132 = vpop.f32.mrb[0].mxu0
      %11133 = vmatprep.mubr.bf16.mxu0 %v10871
      %11134 = vmatmul.mubr.bf16.gmra.mrb[0].mxu0 %v10870
      %v11135 = vpop.f32.mrb[0].mxu0
      %v11136 = vadd.f32 %v10940, %v11135
      %v11137 = vpop.f32.mrb[0].mxu0
      %v11138 = vpop.f32.mrb[0].mxu0
      %v11139 = vadd.f32 %v10940, %v11138
      %v11140 = vpop.f32.mrb[0].mxu0
      %11141 = vmatprep.mubr.bf16.mxu0 %v10874
      %11142 = vmatmul.mubr.bf16.gmra.mrb[0].mxu0 %v10873
      %v11143 = vpop.f32.mrb[0].mxu0
      %v11144 = vadd.f32 %v10940, %v11143
      %v11145 = vpop.f32.mrb[0].mxu0
      %v11146 = vpop.f32.mrb[0].mxu0
      %v11147 = vadd.f32 %v10940, %v11146
      %v11148 = vpop.f32.mrb[0].mxu0
      %11149 = vmatprep.mubr.bf16.mxu0 %v10877
      %11150 = vmatmul.mubr.bf16.gmra.mrb[0].mxu0 %v10876
      %v11151 = vpop.f32.mrb[0].mxu0
      %v11152 = vadd.f32 %v10940, %v11151
      %v11153 = vpop.f32.mrb[0].mxu0
      %v11154 = vpop.f32.mrb[0].mxu0
      %v11155 = vadd.f32 %v10940, %v11154
      %v11156 = vpop.f32.mrb[0].mxu0
      %11157 = vmatprep.mubr.bf16.mxu0 %v10880
      %11158 = vmatmul.mubr.bf16.gmra.mrb[0].mxu0 %v10879
      %v11159 = vpop.f32.mrb[0].mxu0
      %v11160 = vadd.f32 %v10940, %v11159
      %v11161 = vpop.f32.mrb[0].mxu0
      %v11162 = vpop.f32.mrb[0].mxu0
      %v11163 = vadd.f32 %v10940, %v11162
      %v11164 = vpop.f32.mrb[0].mxu0
      %11165 = vmatprep.mubr.bf16.mxu0 %v10883
      %11166 = vmatmul.mubr.bf16.gmra.mrb[0].mxu0 %v10882
      %v11167 = vpop.f32.mrb[0].mxu0
      %v11168 = vadd.f32 %v10940, %v11167
      %v11169 = vpop.f32.mrb[0].mxu0
      %v11170 = vpop.f32.mrb[0].mxu0
      %v11171 = vadd.f32 %v10940, %v11170
      %v11172 = vpop.f32.mrb[0].mxu0
      %11173 = vmatprep.mubr.bf16.mxu0 %v10886
      %11174 = vmatmul.mubr.bf16.gmra.mrb[0].mxu0 %v10885
      %v11175 = vpop.f32.mrb[0].mxu0
      %v11176 = vadd.f32 %v10940, %v11175
      %v11177 = vpop.f32.mrb[0].mxu0
      %v11178 = vpop.f32.mrb[0].mxu0
      %v11179 = vadd.f32 %v10940, %v11178
      %v11180 = vpop.f32.mrb[0].mxu0
      %11181 = vdwg.mxu0
      %11182 = vmatprep.subr.bf16.mxu0 0
      %11183 = vmatpush1.bf16.msra.mxu0 %v11053
      %11184 = vmatprep.subr.bf16.mxu0 0
      %11185 = vmatpush1.bf16.msra.mxu0 %v11054
      %11186 = vmatprep.subr.bf16.mxu0 0
      %11187 = vmatpush1.bf16.msra.mxu0 %v11055
      %11188 = vmatprep.subr.bf16.mxu0 0
      %11189 = vmatpush1.bf16.msra.mxu0 %v11056
      %11190 = vmatprep.subr.bf16.mxu0 0
      %11191 = vmatpush1.bf16.msra.mxu0 %v11057
      %11192 = vmatprep.subr.bf16.mxu0 0
      %11193 = vmatpush1.bf16.msra.mxu0 %v11058
      %11194 = vmatprep.subr.bf16.mxu0 0
      %11195 = vmatpush1.bf16.msra.mxu0 %v11059
      %11196 = vmatprep.subr.bf16.mxu0 0
      %11197 = vmatpush1.bf16.msra.mxu0 %v11060
      %11198 = vmatprep.subr.bf16.mxu0 0
      %11199 = vmatpush1.bf16.msra.mxu0 0
      %11200 = vmatprep.subr.bf16.mxu0 0
      %11201 = vmatpush1.bf16.msra.mxu0 0
      %11202 = vmatprep.subr.bf16.mxu0 0
      %11203 = vmatpush1.bf16.msra.mxu0 0
      %11204 = vmatprep.subr.bf16.mxu0 0
      %11205 = vmatpush1.bf16.msra.mxu0 0
      %11206 = vmatprep.subr.bf16.mxu0 0
      %11207 = vmatpush1.bf16.msra.mxu0 0
      %11208 = vmatprep.subr.bf16.mxu0 0
      %11209 = vmatpush1.bf16.msra.mxu0 0
      %11210 = vmatprep.subr.bf16.mxu0 0
      %11211 = vmatpush1.bf16.msra.mxu0 0
      %11212 = vmatprep.subr.bf16.mxu0 0
      %11213 = vmatpush1.bf16.msra.mxu0 0
      %11214 = vmatprep.mubr.bf16.mxu0 0
      %11215 = vmatmul.mubr.bf16.gmra.mrb[0].mxu0 %v10866
      %v11216 = vpop.f32.mrb[0].mxu0
      %v11217 = vadd.f32 %v11120, %v11216
      %v11218 = vpop.f32.mrb[0].mxu0
      %v11219 = vpop.f32.mrb[0].mxu0
      %v11220 = vadd.f32 %v11123, %v11219
      %v11221 = vpop.f32.mrb[0].mxu0
      %11222 = vmatprep.mubr.bf16.mxu0 0
      %11223 = vmatmul.mubr.bf16.gmra.mrb[0].mxu0 %v10869
      %v11224 = vpop.f32.mrb[0].mxu0
      %v11225 = vadd.f32 %v11128, %v11224
      %v11226 = vpop.f32.mrb[0].mxu0
      %v11227 = vpop.f32.mrb[0].mxu0
      %v11228 = vadd.f32 %v11131, %v11227
      %v11229 = vpop.f32.mrb[0].mxu0
      %11230 = vmatprep.mubr.bf16.mxu0 0
      %11231 = vmatmul.mubr.bf16.gmra.mrb[0].mxu0 %v10872
      %v11232 = vpop.f32.mrb[0].mxu0
      %v11233 = vadd.f32 %v11136, %v11232
      %v11234 = vpop.f32.mrb[0].mxu0
      %v11235 = vpop.f32.mrb[0].mxu0
      %v11236 = vadd.f32 %v11139, %v11235
      %v11237 = vpop.f32.mrb[0].mxu0
      %11238 = vmatprep.mubr.bf16.mxu0 0
      %11239 = vmatmul.mubr.bf16.gmra.mrb[0].mxu0 %v10875
      %v11240 = vpop.f32.mrb[0].mxu0
      %v11241 = vadd.f32 %v11144, %v11240
      %v11242 = vpop.f32.mrb[0].mxu0
      %v11243 = vpop.f32.mrb[0].mxu0
      %v11244 = vadd.f32 %v11147, %v11243
      %v11245 = vpop.f32.mrb[0].mxu0
      %11246 = vmatprep.mubr.bf16.mxu0 0
      %11247 = vmatmul.mubr.bf16.gmra.mrb[0].mxu0 %v10878
      %v11248 = vpop.f32.mrb[0].mxu0
      %v11249 = vadd.f32 %v11152, %v11248
      %v11250 = vpop.f32.mrb[0].mxu0
      %v11251 = vpop.f32.mrb[0].mxu0
      %v11252 = vadd.f32 %v11155, %v11251
      %v11253 = vpop.f32.mrb[0].mxu0
      %11254 = vmatprep.mubr.bf16.mxu0 0
      %11255 = vmatmul.mubr.bf16.gmra.mrb[0].mxu0 %v10881
      %v11256 = vpop.f32.mrb[0].mxu0
      %v11257 = vadd.f32 %v11160, %v11256
      %v11258 = vpop.f32.mrb[0].mxu0
      %v11259 = vpop.f32.mrb[0].mxu0
      %v11260 = vadd.f32 %v11163, %v11259
      %v11261 = vpop.f32.mrb[0].mxu0
      %11262 = vmatprep.mubr.bf16.mxu0 0
      %11263 = vmatmul.mubr.bf16.gmra.mrb[0].mxu0 %v10884
      %v11264 = vpop.f32.mrb[0].mxu0
      %v11265 = vadd.f32 %v11168, %v11264
      %v11266 = vpop.f32.mrb[0].mxu0
      %v11267 = vpop.f32.mrb[0].mxu0
      %v11268 = vadd.f32 %v11171, %v11267
      %v11269 = vpop.f32.mrb[0].mxu0
      %11270 = vmatprep.mubr.bf16.mxu0 0
      %11271 = vmatmul.mubr.bf16.gmra.mrb[0].mxu0 %v10887
      %v11272 = vpop.f32.mrb[0].mxu0
      %v11273 = vadd.f32 %v11176, %v11272
      %v11274 = vpop.f32.mrb[0].mxu0
      %v11275 = vpop.f32.mrb[0].mxu0
      %v11276 = vadd.f32 %v11179, %v11275
      %v11277 = vpop.f32.mrb[0].mxu0
      %11278 = vdwg.mxu0
      %v11279 = vpack.c.bf16 %v11220, %v11217
      %v11280 = vpack.c.bf16 %v11228, %v11225
      %v11281 = vpack.c.bf16 %v11236, %v11233
      %v11282 = vpack.c.bf16 %v11244, %v11241
      %v11283 = vpack.c.bf16 %v11252, %v11249
      %v11284 = vpack.c.bf16 %v11260, %v11257
      %v11285 = vpack.c.bf16 %v11268, %v11265
      %v11286 = vpack.c.bf16 %v11276, %v11273
      %v11287 = vld [vmem:[%s1 + $0xde0] sm:$0xf]
      %v11288 = vld [vmem:[%s1 + $0xde4] sm:$0xf]
      %v11289 = vld [vmem:[%s1 + $0xde8] sm:$0xf]
      %v11290 = vld [vmem:[%s1 + $0xdec] sm:$0xf]
      %v11291 = vld [vmem:[%s1 + $0xdf0] sm:$0xf]
      %v11292 = vld [vmem:[%s1 + $0xdf4] sm:$0xf]
      %v11293 = vld [vmem:[%s1 + $0xdf8] sm:$0xf]
      %v11294 = vld [vmem:[%s1 + $0xdfc] sm:$0xf]
      %v11295 = vld [vmem:[%s1 + $0xe00] sm:$0xf]
      %v11296 = vld [vmem:[%s1 + $0xe04] sm:$0xf]
      %v11297 = vld [vmem:[%s1 + $0xe08] sm:$0xf]
      %v11298 = vld [vmem:[%s1 + $0xe0c] sm:$0xf]
      %v11299 = vld [vmem:[%s1 + $0xe10] sm:$0xf]
      %v11300 = vld [vmem:[%s1 + $0xe14] sm:$0xf]
      %v11301 = vld [vmem:[%s1 + $0xe18] sm:$0xf]
      %v11302 = vld [vmem:[%s1 + $0xe1c] sm:$0xf]
      %v11303 = vld [vmem:[%s2 + $0xe] sm:$0x1]
      %v11304 = vlaneseq
      %v11305 = vshrl.u32 %v11304, 7
      %v11306 = vsub.s32 0, %v11305
      %v11307 = vrot.slane %v11303, %v11306
      %v11324 = vunpack.c.l.b16 %v11287
      %v11325 = vunpack.c.l.b16 %v11288
      %v11326 = vunpack.c.l.b16 %v11289
      %v11327 = vunpack.c.l.b16 %v11290
      %v11328 = vunpack.c.l.b16 %v11291
      %v11329 = vunpack.c.l.b16 %v11292
      %v11330 = vunpack.c.l.b16 %v11293
      %v11331 = vunpack.c.l.b16 %v11294
      %v11332 = vunpack.c.l.b16 %v11295
      %v11333 = vunpack.c.l.b16 %v11296
      %v11334 = vunpack.c.l.b16 %v11297
      %v11335 = vunpack.c.l.b16 %v11298
      %v11336 = vunpack.c.l.b16 %v11299
      %v11337 = vunpack.c.l.b16 %v11300
      %v11338 = vunpack.c.l.b16 %v11301
      %v11339 = vunpack.c.l.b16 %v11302
      %v11340 = vpack.c.b16 %v11325, %v11324
      %v11341 = vpack.c.b16 %v11327, %v11326
      %v11342 = vpack.c.b16 %v11329, %v11328
      %v11343 = vpack.c.b16 %v11331, %v11330
      %v11344 = vpack.c.b16 %v11333, %v11332
      %v11345 = vpack.c.b16 %v11335, %v11334
      %v11346 = vpack.c.b16 %v11337, %v11336
      %v11347 = vpack.c.b16 %v11339, %v11338
      %11356 = vmatprep.subr.bf16.mxu0 0
      %11357 = vmatpush1.bf16.msra.mxu0 %v11340
      %11358 = vmatprep.subr.bf16.mxu0 0
      %11359 = vmatpush1.bf16.msra.mxu0 %v11341
      %11360 = vmatprep.subr.bf16.mxu0 0
      %11361 = vmatpush1.bf16.msra.mxu0 %v11342
      %11362 = vmatprep.subr.bf16.mxu0 0
      %11363 = vmatpush1.bf16.msra.mxu0 %v11343
      %11364 = vmatprep.subr.bf16.mxu0 0
      %11365 = vmatpush1.bf16.msra.mxu0 %v11344
      %11366 = vmatprep.subr.bf16.mxu0 0
      %11367 = vmatpush1.bf16.msra.mxu0 %v11345
      %11368 = vmatprep.subr.bf16.mxu0 0
      %11369 = vmatpush1.bf16.msra.mxu0 %v11346
      %11370 = vmatprep.subr.bf16.mxu0 0
      %11371 = vmatpush1.bf16.msra.mxu0 %v11347
      %11372 = vmatprep.subr.bf16.mxu0 0
      %11373 = vmatpush1.bf16.msra.mxu0 0
      %11374 = vmatprep.subr.bf16.mxu0 0
      %11375 = vmatpush1.bf16.msra.mxu0 0
      %11376 = vmatprep.subr.bf16.mxu0 0
      %11377 = vmatpush1.bf16.msra.mxu0 0
      %11378 = vmatprep.subr.bf16.mxu0 0
      %11379 = vmatpush1.bf16.msra.mxu0 0
      %11380 = vmatprep.subr.bf16.mxu0 0
      %11381 = vmatpush1.bf16.msra.mxu0 0
      %11382 = vmatprep.subr.bf16.mxu0 0
      %11383 = vmatpush1.bf16.msra.mxu0 0
      %11384 = vmatprep.subr.bf16.mxu0 0
      %11385 = vmatpush1.bf16.msra.mxu0 0
      %11386 = vmatprep.subr.bf16.mxu0 0
      %11387 = vmatpush1.bf16.msra.mxu0 0
      %11388 = vmatprep.mubr.bf16.mxu0 0
      %11389 = vmatmul.mubr.bf16.gmra.mrb[0].mxu0 %v11279
      %v11390 = vpop.f32.mrb[0].mxu0
      %v11391 = vadd.f32 %v11307, %v11390
      %v11392 = vpop.f32.mrb[0].mxu0
      %v11393 = vpop.f32.mrb[0].mxu0
      %v11394 = vadd.f32 %v11307, %v11393
      %v11395 = vpop.f32.mrb[0].mxu0
      %11396 = vmatprep.mubr.bf16.mxu0 0
      %11397 = vmatmul.mubr.bf16.gmra.mrb[0].mxu0 %v11280
      %v11398 = vpop.f32.mrb[0].mxu0
      %v11399 = vadd.f32 %v11307, %v11398
      %v11400 = vpop.f32.mrb[0].mxu0
      %v11401 = vpop.f32.mrb[0].mxu0
      %v11402 = vadd.f32 %v11307, %v11401
      %v11403 = vpop.f32.mrb[0].mxu0
      %11404 = vmatprep.mubr.bf16.mxu0 0
      %11405 = vmatmul.mubr.bf16.gmra.mrb[0].mxu0 %v11281
      %v11406 = vpop.f32.mrb[0].mxu0
      %v11407 = vadd.f32 %v11307, %v11406
      %v11408 = vpop.f32.mrb[0].mxu0
      %v11409 = vpop.f32.mrb[0].mxu0
      %v11410 = vadd.f32 %v11307, %v11409
      %v11411 = vpop.f32.mrb[0].mxu0
      %11412 = vmatprep.mubr.bf16.mxu0 0
      %11413 = vmatmul.mubr.bf16.gmra.mrb[0].mxu0 %v11282
      %v11414 = vpop.f32.mrb[0].mxu0
      %v11415 = vadd.f32 %v11307, %v11414
      %v11416 = vpop.f32.mrb[0].mxu0
      %v11417 = vpop.f32.mrb[0].mxu0
      %v11418 = vadd.f32 %v11307, %v11417
      %v11419 = vpop.f32.mrb[0].mxu0
      %11420 = vmatprep.mubr.bf16.mxu0 0
      %11421 = vmatmul.mubr.bf16.gmra.mrb[0].mxu0 %v11283
      %v11422 = vpop.f32.mrb[0].mxu0
      %v11423 = vadd.f32 %v11307, %v11422
      %v11424 = vpop.f32.mrb[0].mxu0
      %v11425 = vpop.f32.mrb[0].mxu0
      %v11426 = vadd.f32 %v11307, %v11425
      %v11427 = vpop.f32.mrb[0].mxu0
      %11428 = vmatprep.mubr.bf16.mxu0 0
      %11429 = vmatmul.mubr.bf16.gmra.mrb[0].mxu0 %v11284
      %v11430 = vpop.f32.mrb[0].mxu0
      %v11431 = vadd.f32 %v11307, %v11430
      %v11432 = vpop.f32.mrb[0].mxu0
      %v11433 = vpop.f32.mrb[0].mxu0
      %v11434 = vadd.f32 %v11307, %v11433
      %v11435 = vpop.f32.mrb[0].mxu0
      %11436 = vmatprep.mubr.bf16.mxu0 0
      %11437 = vmatmul.mubr.bf16.gmra.mrb[0].mxu0 %v11285
      %v11438 = vpop.f32.mrb[0].mxu0
      %v11439 = vadd.f32 %v11307, %v11438
      %v11440 = vpop.f32.mrb[0].mxu0
      %v11441 = vpop.f32.mrb[0].mxu0
      %v11442 = vadd.f32 %v11307, %v11441
      %v11443 = vpop.f32.mrb[0].mxu0
      %11444 = vmatprep.mubr.bf16.mxu0 0
      %11445 = vmatmul.mubr.bf16.gmra.mrb[0].mxu0 %v11286
      %v11446 = vpop.f32.mrb[0].mxu0
      %v11447 = vadd.f32 %v11307, %v11446
      %v11448 = vpop.f32.mrb[0].mxu0
      %v11449 = vpop.f32.mrb[0].mxu0
      %v11450 = vadd.f32 %v11307, %v11449
      %v11451 = vpop.f32.mrb[0].mxu0
      %11452 = vdwg.mxu0
      %v11453 = vxor.u32 %v11391, 2147483648
      %v11454 = vxor.u32 %v11394, 2147483648
      %v11455 = vxor.u32 %v11399, 2147483648
      %v11456 = vxor.u32 %v11402, 2147483648
      %v11457 = vxor.u32 %v11407, 2147483648
      %v11458 = vxor.u32 %v11410, 2147483648
      %v11459 = vxor.u32 %v11415, 2147483648
      %v11460 = vxor.u32 %v11418, 2147483648
      %v11461 = vxor.u32 %v11423, 2147483648
      %v11462 = vxor.u32 %v11426, 2147483648
      %v11463 = vxor.u32 %v11431, 2147483648
      %v11464 = vxor.u32 %v11434, 2147483648
      %v11465 = vxor.u32 %v11439, 2147483648
      %v11466 = vxor.u32 %v11442, 2147483648
      %v11467 = vxor.u32 %v11447, 2147483648
      %v11468 = vxor.u32 %v11450, 2147483648
      %v11469 = vmul.f32 %v11453, 1.442695
      %v11470 = vpow.pop %v11469
      %v11471 = vmul.f32 %v11454, 1.442695
      %v11472 = vpow.pop %v11471
      %v11473 = vmul.f32 %v11455, 1.442695
      %v11474 = vpow.pop %v11473
      %v11475 = vmul.f32 %v11456, 1.442695
      %v11476 = vpow.pop %v11475
      %v11477 = vmul.f32 %v11457, 1.442695
      %v11478 = vpow.pop %v11477
      %v11479 = vmul.f32 %v11458, 1.442695
      %v11480 = vpow.pop %v11479
      %v11481 = vmul.f32 %v11459, 1.442695
      %v11482 = vpow.pop %v11481
      %v11483 = vmul.f32 %v11460, 1.442695
      %v11484 = vpow.pop %v11483
      %v11485 = vmul.f32 %v11461, 1.442695
      %v11486 = vpow.pop %v11485
      %v11487 = vmul.f32 %v11462, 1.442695
      %v11488 = vpow.pop %v11487
      %v11489 = vmul.f32 %v11463, 1.442695
      %v11490 = vpow.pop %v11489
      %v11491 = vmul.f32 %v11464, 1.442695
      %v11492 = vpow.pop %v11491
      %v11493 = vmul.f32 %v11465, 1.442695
      %v11494 = vpow.pop %v11493
      %v11495 = vmul.f32 %v11466, 1.442695
      %v11496 = vpow.pop %v11495
      %v11497 = vmul.f32 %v11467, 1.442695
      %v11498 = vpow.pop %v11497
      %v11499 = vmul.f32 %v11468, 1.442695
      %v11500 = vpow.pop %v11499
      %v11501 = vadd.f32 %v11470, 1.0
      %v11502 = vadd.f32 %v11472, 1.0
      %v11503 = vadd.f32 %v11474, 1.0
      %v11504 = vadd.f32 %v11476, 1.0
      %v11505 = vadd.f32 %v11478, 1.0
      %v11506 = vadd.f32 %v11480, 1.0
      %v11507 = vadd.f32 %v11482, 1.0
      %v11508 = vadd.f32 %v11484, 1.0
      %v11509 = vadd.f32 %v11486, 1.0
      %v11510 = vadd.f32 %v11488, 1.0
      %v11511 = vadd.f32 %v11490, 1.0
      %v11512 = vadd.f32 %v11492, 1.0
      %v11513 = vadd.f32 %v11494, 1.0
      %v11514 = vadd.f32 %v11496, 1.0
      %v11515 = vadd.f32 %v11498, 1.0
      %v11516 = vadd.f32 %v11500, 1.0
      %v11517 = vrcp.pop %v11501
      %v11518 = vmul.f32 1.0, %v11517
      %v11519 = vrcp.pop %v11502
      %v11520 = vmul.f32 1.0, %v11519
      %v11521 = vrcp.pop %v11503
      %v11522 = vmul.f32 1.0, %v11521
      %v11523 = vrcp.pop %v11504
      %v11524 = vmul.f32 1.0, %v11523
      %v11525 = vrcp.pop %v11505
      %v11526 = vmul.f32 1.0, %v11525
      %v11527 = vrcp.pop %v11506
      %v11528 = vmul.f32 1.0, %v11527
      %v11529 = vrcp.pop %v11507
      %v11530 = vmul.f32 1.0, %v11529
      %v11531 = vrcp.pop %v11508
      %v11532 = vmul.f32 1.0, %v11531
      %v11533 = vrcp.pop %v11509
      %v11534 = vmul.f32 1.0, %v11533
      %v11535 = vrcp.pop %v11510
      %v11536 = vmul.f32 1.0, %v11535
      %v11537 = vrcp.pop %v11511
      %v11538 = vmul.f32 1.0, %v11537
      %v11539 = vrcp.pop %v11512
      %v11540 = vmul.f32 1.0, %v11539
      %v11541 = vrcp.pop %v11513
      %v11542 = vmul.f32 1.0, %v11541
      %v11543 = vrcp.pop %v11514
      %v11544 = vmul.f32 1.0, %v11543
      %v11545 = vrcp.pop %v11515
      %v11546 = vmul.f32 1.0, %v11545
      %v11547 = vrcp.pop %v11516
      %v11548 = vmul.f32 1.0, %v11547
      %11549 = vst [vmem:[%s334] sm:$0xff] %v11518
      %11550 = vst [vmem:[%s334 + $0x8] sm:$0xff] %v11520
      %11551 = vst [vmem:[%s334 + $0x10] sm:$0xff] %v11522
      %11552 = vst [vmem:[%s334 + $0x18] sm:$0xff] %v11524
      %11553 = vst [vmem:[%s334 + $0x20] sm:$0xff] %v11526
      %11554 = vst [vmem:[%s334 + $0x28] sm:$0xff] %v11528
      %11555 = vst [vmem:[%s334 + $0x30] sm:$0xff] %v11530
      %11556 = vst [vmem:[%s334 + $0x38] sm:$0xff] %v11532
      %11557 = vst [vmem:[%s334 + $0x40] sm:$0xff] %v11534
      %11558 = vst [vmem:[%s334 + $0x48] sm:$0xff] %v11536
      %11559 = vst [vmem:[%s334 + $0x50] sm:$0xff] %v11538
      %11560 = vst [vmem:[%s334 + $0x58] sm:$0xff] %v11540
      %11561 = vst [vmem:[%s334 + $0x60] sm:$0xff] %v11542
      %11562 = vst [vmem:[%s334 + $0x68] sm:$0xff] %v11544
      %11563 = vst [vmem:[%s334 + $0x70] sm:$0xff] %v11546
      %11564 = vst [vmem:[%s334 + $0x78] sm:$0xff] %v11548
      %s11565 = smul.u32 16, %s20
      %p11566 = scmp.lt.s32.totalorder %s11565, 31
      %s11567 = scalar_select %p11566, %s11565, 31
      %s11568 = smul.addr %s11567, 8
      %s11569 = scalar_lea.vmem %s9, %s11568
      // Predicated region
      $region57: #{_lambda_.1} parent=55 // pred_check
        %p11570 = pneg %p232
      $region58: #{_lambda_.1} parent=55 // pred_check_branch
        %11572 = sbr.rel (%p11570) target = $region60
      $region59: #{_lambda_.1} parent=55 // pred_region
        %s11573 = smul.u32 16, %s20
      $region60: #{_lambda_.1} parent=55 // pred_fallthru
        _
    $region56: #{_lambda_.1} parent=5 // pred_fallthru
      _
    %p11574 = scmp.le.s32.totalorder 2, %s15
    // Predicated region
    $region61: #{_lambda_.1} parent=5 // pred_check
      %p11575 = pneg %p11574
    $region62: #{_lambda_.1} parent=5 // pred_check_branch
      %11577 = sbr.rel (%p11575) target = $region64
    $region63: #{_lambda_.1} parent=5 // pred_region
      %s11578 = ssub.s32 %s15, 2
      // Predicated region
      $region65: #{_lambda_.1} parent=63 // pred_check
        %p11579 = pneg %p238
      $region66: #{_lambda_.1} parent=63 // pred_check_branch
        %11581 = sbr.rel (%p11579) target = $region68
      $region67: #{_lambda_.1} parent=63 // pred_region
        %s11582 = smul.u32 16, %s21
        %p11583 = scmp.lt.s32.totalorder %s11582, 31
        %s11584 = scalar_select %p11583, %s11582, 31
        %s11585 = smul.addr %s11584, 8
        %s11586 = scalar_lea.vmem %s9, %s11585
      $region68: #{_lambda_.1} parent=63 // pred_fallthru
        _
    $region64: #{_lambda_.1} parent=5 // pred_fallthru
      _
  $region6: #{_lambda_.1} parent=0 // loop_footer
    %s19 = sadd.s32 1, %s15
  $region7: #{_lambda_.1} parent=0 // loop_footer_branch
    %14 = sbr.rel target = $region3
  $region8: #{_lambda_.1} parent=0 // loop_exit
    _

</llo_original>
